<compile_context>
chip_gen: v7x
topology: tpu7x:2x2x1
jax: 0.10.0
libtpu: 0.0.40
codegen_flags: <defaults>
</compile_context>

<pallas_src>
import numpy as np
import jax
import jax.numpy as jnp
from jax.experimental import pallas as pl
from jax.experimental.pallas import tpu as pltpu

B = 2  # batch size (static)


# ------------------------------ fused kernel --------------------------------

def fused_forward_kernel(xq_ref, wpk_ref, b1_ref, w2_hbm, b2_ref, w1p_hbm,
                         b1f_ref, g_ref, be_ref, w2f_ref, b2f_ref,
                         o_ref,
                         p1s_ref, cols_ref, xflat_ref, w2v_ref, w1pv_ref, sems):
    f32 = jnp.float32

    # ---- kick off the big weight DMAs; they overlap with conv1/conv2 work --
    cp_w2 = pltpu.make_async_copy(w2_hbm, w2v_ref, sems.at[0])
    cp_w1p = pltpu.make_async_copy(w1p_hbm, w1pv_ref, sems.at[1])
    cp_w2.start()
    cp_w1p.start()

    # -------- conv1 (VPU stencil, phases lane-packed) + ReLU + maxpool ------
    # xq_ref[ih, jh*B + b, oY*6 + oX] = xpad[b, 4*ih + oY, 4*jh + oX]
    # wpk_ref[i*4 + j, phase*32 + c]  = w1[c, 0, i-p, j-q]  (0 if out of range)
    #   with phase = 2p + q; this folds the tap->phase regrouping offline so
    #   each input shift is ONE full-lane MAC covering all 4 pooling phases.
    #
    # p1s_ref[hp, tw, u, j2*B + b, c] = pool1pad[b, c, 2u + hp, 2*j2 + tw]
    #   (pool1pad = zero-padded pool1); every conv2 im2col read of this scratch
    #   is a full (8,32) block starting at sublane offset 0.
    p1s_ref[...] = jnp.zeros_like(p1s_ref)            # zero ring for padding
    wrows = [wpk_ref[k:k + 1, :] for k in range(16)]  # 16 x (1, 128)
    bias1 = b1_ref[...]                               # (1, 32)

    for pa in (0, 1):                                 # parity of pool1 row io
        for pb in (0, 1):                             # parity of pool1 col jo
            acc = None                                # (4, 8, 128)
            for i in range(4):
                for j in range(4):
                    lane = (2 * pa + i) * 6 + (2 * pb + j)
                    tp = xq_ref[:, :, lane:lane + 1]          # (4, 8, 1)
                    term = tp * wrows[i * 4 + j]              # (4, 8, 128)
                    acc = term if acc is None else acc + term
            # max over the 4 pooling phases (lane groups of 32)
            pmax = jnp.maximum(jnp.maximum(acc[..., 0:32], acc[..., 32:64]),
                               jnp.maximum(acc[..., 64:96], acc[..., 96:128]))
            grp = jnp.maximum(pmax + bias1, 0.0)              # (4, 8, 32)
            # grp[ih, jh*B + b, c] = pool1[b, c, 2*ih + pa, 2*jh + pb]
            if pb == 0:
                p1s_ref[1 - pa, 1, pa:pa + 4, 0:8, :] = grp
                p1s_ref[1 - pa, 3, pa:pa + 4, 0:6, :] = grp[:, 2:8, :]
            else:
                p1s_ref[1 - pa, 0, pa:pa + 4, 2:8, :] = grp[:, 0:6, :]
                p1s_ref[1 - pa, 2, pa:pa + 4, 0:8, :] = grp

    # -------- conv2 im2col: lane-dense (8,288) row blocks, 16 stores --------
    # cols_ref[phase*32 + i2*8 + j2*B + b, (dy2*3 + dx2)*32 + ci]
    for P2 in range(2):
        for Q2 in range(2):
            base = (2 * P2 + Q2) * 32
            for i2 in range(4):
                taps = []
                for dy2 in range(3):
                    th = P2 + dy2
                    for dx2 in range(3):
                        taps.append(p1s_ref[th % 2, Q2 + dx2, i2 + th // 2])
                row_blk = jnp.concatenate(taps, axis=-1)       # (8, 288)
                cols_ref[base + i2 * 8: base + (i2 + 1) * 8, :] = row_blk

    # -------- conv2: ONE (128,288)@(288,64) MXU matmul + pool + ReLU --------
    cp_w2.wait()
    y = jnp.dot(cols_ref[...], w2v_ref[...], preferred_element_type=f32)  # (128, 64)
    y = y.reshape(4, 32, 64)                                   # (phase, row, co)
    pooled2 = jnp.maximum(jnp.maximum(y[0], y[1]), jnp.maximum(y[2], y[3]))
    pooled2 = jnp.maximum(pooled2 + b2_ref[...], 0.0)          # rows = (i2, j2, b)

    # -------- de-interleave to (B, 1024); NCHW flatten folded into w1p ------
    for r in range(16):                                        # r = i2*4 + j2
        xflat_ref[:, r * 64:(r + 1) * 64] = pooled2[r * B:(r + 1) * B, :]

    # -------- fc1 (single long-K matmul) + ReLU + LayerNorm + fc2 + softmax -
    cp_w1p.wait()
    h = jnp.dot(xflat_ref[...], w1pv_ref[...], preferred_element_type=f32)  # (B, 128)
    h = jnp.maximum(h + b1f_ref[...], 0.0)

    mu = jnp.mean(h, axis=1, keepdims=True)
    var = jnp.mean((h - mu) * (h - mu), axis=1, keepdims=True)  # biased, like torch LN
    h = (h - mu) * jax.lax.rsqrt(var + 1e-5)
    h = h * g_ref[...] + be_ref[...]

    logits = jnp.dot(h, w2f_ref[...], preferred_element_type=f32) + b2f_ref[...]
    lmax = jnp.max(logits, axis=1, keepdims=True)
    e = jnp.exp(logits - lmax)
    s = jnp.sum(e, axis=1, keepdims=True)
    o_ref[...] = (e / s).astype(o_ref.dtype)                    # exact softmax


# ------------------------------ wrappers -------------------------------------

def _prep_input(x):
    """Repack (B,1,16,16) NCHW input into a lane-dense stencil-window form.

    xq[ih, jh*B + b, oY*6 + oX] = xpad[b, 4*ih + oY, 4*jh + oX]    -> (4, 8, 36)
    """
    xb = x[:, 0, :, :]
    xpad = jnp.pad(xb, ((0, 0), (1, 1), (1, 1)))                  # (B, 18, 18)
    cols = []
    for oY in range(6):
        for oX in range(6):
            blk = xpad[:, oY:oY + 13:4, oX:oX + 13:4]             # (B, 4, 4) = (b, ih, jh)
            blk = jnp.transpose(blk, (1, 2, 0)).reshape(4, 4 * B)  # (ih, jh*B + b)
            cols.append(blk)
    return jnp.stack(cols, axis=-1)                               # (4, 8, 36)


def _full(a):
    nd = a.ndim
    return pl.BlockSpec(a.shape, lambda *_: (0,) * nd)


@jax.jit
def forward(x, prepped):
    (wpk, b1c, w2m, b2c, w1p, b1f, gamma, beta, w2f, b2f) = prepped
    xq = _prep_input(x)
    args = (xq, wpk, b1c, w2m, b2c, w1p, b1f, gamma, beta, w2f, b2f)
    in_specs = [
        _full(xq), _full(wpk), _full(b1c),
        pl.BlockSpec(memory_space=pl.ANY),       # conv2 weight: manual DMA overlap
        _full(b2c),
        pl.BlockSpec(memory_space=pl.ANY),       # fc1 weight: manual DMA overlap
        _full(b1f), _full(gamma), _full(beta), _full(w2f), _full(b2f),
    ]
    return pl.pallas_call(
        fused_forward_kernel,
        out_shape=jax.ShapeDtypeStruct((B, 10), jnp.float32),
        in_specs=in_specs,
        out_specs=pl.BlockSpec((B, 10), lambda: (0, 0)),
        scratch_shapes=[
            pltpu.VMEM((2, 4, 5, 8, 32), jnp.float32),   # parity/tap-split padded pool1
            pltpu.VMEM((128, 288), jnp.float32),         # conv2 im2col (4 phases stacked)
            pltpu.VMEM((B, 1024), jnp.float32),          # de-interleaved fc1 input
            pltpu.VMEM((288, 64), jnp.float32),          # conv2 weight landing buffer
            pltpu.VMEM((1024, 128), jnp.float32),        # fc1 weight landing buffer
            pltpu.SemaphoreType.DMA((2,)),               # one sem per manual DMA
        ],
    )(*args)


# --------------------------- params (torch layouts) --------------------------

def init_params(key):
    ks = jax.random.split(key, 8)
    return {
        "conv1_w": 0.20 * jax.random.normal(ks[0], (32, 1, 3, 3), jnp.float32),
        "conv1_b": 0.10 * jax.random.normal(ks[1], (32,), jnp.float32),
        "conv2_w": 0.05 * jax.random.normal(ks[2], (64, 32, 3, 3), jnp.float32),
        "conv2_b": 0.10 * jax.random.normal(ks[3], (64,), jnp.float32),
        "fc1_w": 0.02 * jax.random.normal(ks[4], (128, 64 * 4 * 4), jnp.float32),
        "fc1_b": 0.10 * jax.random.normal(ks[5], (128,), jnp.float32),
        "ln_g": jnp.ones((128,), jnp.float32),
        "ln_b": 0.05 * jax.random.normal(ks[6], (128,), jnp.float32),
        "fc2_w": 0.10 * jax.random.normal(ks[7], (10, 128), jnp.float32),
        "fc2_b": jnp.zeros((10,), jnp.float32),
    }


def prepare_params(p):
    """One-time (offline) repack of torch-layout weights into kernel layouts."""
    # conv1: phase-packed shift weights wpk[i*4+j, phase*32+c] = w1[c,0,i-p,j-q]
    w1 = np.asarray(p["conv1_w"])                                 # (32, 1, 3, 3)
    wpk = np.zeros((4, 4, 4, 32), np.float32)
    for i in range(4):
        for j in range(4):
            for pp in range(2):
                for qq in range(2):
                    dy, dx = i - pp, j - qq
                    if 0 <= dy <= 2 and 0 <= dx <= 2:
                        wpk[i, j, 2 * pp + qq, :] = w1[:, 0, dy, dx]
    wpk = jnp.asarray(wpk.reshape(16, 128))
    b1c = p["conv1_b"].reshape(1, 32)
    # conv2: ((dy,dx,ci), co)
    w2m = jnp.transpose(p["conv2_w"], (2, 3, 1, 0)).reshape(9 * 32, 64)
    b2c = p["conv2_b"].reshape(1, 64)
    # fc1: torch flatten index is co*16 + r (r = i2*4 + j2); kernel x_flat is
    # (b, r*64 + co), so permute the weight rows once here: (r*64 + co, n)
    w1p = jnp.transpose(p["fc1_w"].reshape(128, 64, 16), (2, 1, 0)).reshape(1024, 128)
    b1f = p["fc1_b"].reshape(1, 128)
    gamma = p["ln_g"].reshape(1, 128)
    beta = p["ln_b"].reshape(1, 128)
    w2f = jnp.transpose(p["fc2_w"], (1, 0))                       # (128, 10)
    b2f = p["fc2_b"].reshape(1, 10)
    return (wpk, b1c, w2m, b2c, w1p, b1f, gamma, beta, w2f, b2f)


# ---------------------------- pure-JAX reference -----------------------------

def reference_forward(x, p):
    hi = jax.lax.Precision.HIGHEST
    y = jax.lax.conv_general_dilated(
        x, p["conv1_w"], (1, 1), ((1, 1), (1, 1)),
        dimension_numbers=("NCHW", "OIHW", "NCHW"), precision=hi)
    y = jnp.maximum(y + p["conv1_b"].reshape(1, 32, 1, 1), 0.0)
    y = jax.lax.reduce_window(y, -jnp.inf, jax.lax.max,
                              (1, 1, 2, 2), (1, 1, 2, 2), "VALID")
    y = jax.lax.conv_general_dilated(
        y, p["conv2_w"], (1, 1), ((1, 1), (1, 1)),
        dimension_numbers=("NCHW", "OIHW", "NCHW"), precision=hi)
    y = jnp.maximum(y + p["conv2_b"].reshape(1, 64, 1, 1), 0.0)
    y = jax.lax.reduce_window(y, -jnp.inf, jax.lax.max,
                              (1, 1, 2, 2), (1, 1, 2, 2), "VALID")
    y = y.reshape(x.shape[0], 64 * 4 * 4)
    y = jnp.dot(y, p["fc1_w"].T, precision=hi) + p["fc1_b"]
    y = jnp.maximum(y, 0.0)
    mu = jnp.mean(y, axis=1, keepdims=True)
    var = jnp.mean((y - mu) ** 2, axis=1, keepdims=True)
    y = (y - mu) / jnp.sqrt(var + 1e-5)
    y = y * p["ln_g"] + p["ln_b"]
    y = jnp.dot(y, p["fc2_w"].T, precision=hi) + p["fc2_b"]
    return jax.nn.softmax(y, axis=1)


if __name__ == "__main__":
    key = jax.random.PRNGKey(0)
    k_x, k_p = jax.random.split(key)
    x = jax.random.normal(k_x, (B, 1, 16, 16), jnp.float32)   # NCHW, like PyTorch
    params = init_params(k_p)
    prepped = prepare_params(params)                          # one-time weight repack

    out = jax.block_until_ready(forward(x, prepped))
    ref = jax.block_until_ready(reference_forward(x, params))

    assert out.shape == (B, 10)
    assert bool(jnp.all(jnp.isfinite(out)))
    # exact softmax -> rows sum to 1 up to f32 rounding
    assert bool(jnp.allclose(jnp.sum(out, axis=1), 1.0, atol=1e-4))
    # structural correctness vs pure-JAX reference (loose: default MXU f32 precision)
    assert bool(jnp.allclose(out, ref, atol=2e-2, rtol=2e-2))
    print("KERNEL_OK")
</pallas_src>

<mosaic_0001>
module attributes {stable_mosaic.version = 11 : i64} {
  func.func @fused_forward_kernel(%arg0: memref<4x8x36xf32, #tpu.memory_space<vmem>>, %arg1: memref<16x128xf32, #tpu.memory_space<vmem>>, %arg2: memref<1x32xf32, #tpu.memory_space<vmem>>, %arg3: memref<288x64xf32, #tpu.memory_space<any>>, %arg4: memref<1x64xf32, #tpu.memory_space<vmem>>, %arg5: memref<1024x128xf32, #tpu.memory_space<any>>, %arg6: memref<1x128xf32, #tpu.memory_space<vmem>>, %arg7: memref<1x128xf32, #tpu.memory_space<vmem>>, %arg8: memref<1x128xf32, #tpu.memory_space<vmem>>, %arg9: memref<128x10xf32, #tpu.memory_space<vmem>>, %arg10: memref<1x10xf32, #tpu.memory_space<vmem>>, %arg11: memref<2x10xf32, #tpu.memory_space<vmem>>, %arg12: memref<2x4x5x8x32xf32, #tpu.memory_space<vmem>>, %arg13: memref<128x288xf32, #tpu.memory_space<vmem>>, %arg14: memref<2x1024xf32, #tpu.memory_space<vmem>>, %arg15: memref<288x64xf32, #tpu.memory_space<vmem>>, %arg16: memref<1024x128xf32, #tpu.memory_space<vmem>>, %arg17: memref<2x!tpu.dma_semaphore, #tpu.memory_space<semaphore_mem>>) attributes {dimension_semantics = [], scalar_prefetch = 0 : i64, scratch_operands = 6 : i64, tpu.core_type = #tpu.core_type<tc>} {
    %c0_i32 = arith.constant 0 : i32
    %0 = tpu.memref_slice %arg17[%c0_i32] : memref<2x!tpu.dma_semaphore, #tpu.memory_space<semaphore_mem>> -> memref<1x!tpu.dma_semaphore, #tpu.memory_space<semaphore_mem>>
    %1 = tpu.memref_squeeze %0 : memref<1x!tpu.dma_semaphore, #tpu.memory_space<semaphore_mem>> -> memref<!tpu.dma_semaphore, #tpu.memory_space<semaphore_mem>>
    tpu.enqueue_dma source(%arg3 : memref<288x64xf32, #tpu.memory_space<any>>) target(%arg15 : memref<288x64xf32, #tpu.memory_space<vmem>>) target_semaphore(%1 : memref<!tpu.dma_semaphore, #tpu.memory_space<semaphore_mem>>)
    %c1_i32 = arith.constant 1 : i32
    %2 = tpu.memref_slice %arg17[%c1_i32] : memref<2x!tpu.dma_semaphore, #tpu.memory_space<semaphore_mem>> -> memref<1x!tpu.dma_semaphore, #tpu.memory_space<semaphore_mem>>
    %3 = tpu.memref_squeeze %2 : memref<1x!tpu.dma_semaphore, #tpu.memory_space<semaphore_mem>> -> memref<!tpu.dma_semaphore, #tpu.memory_space<semaphore_mem>>
    tpu.enqueue_dma source(%arg5 : memref<1024x128xf32, #tpu.memory_space<any>>) target(%arg16 : memref<1024x128xf32, #tpu.memory_space<vmem>>) target_semaphore(%3 : memref<!tpu.dma_semaphore, #tpu.memory_space<semaphore_mem>>)
    %cst = arith.constant 0.000000e+00 : f32
    %4 = vector.broadcast %cst : f32 to vector<2x4x5x8x32xf32>
    %c0 = arith.constant 0 : index
    %c0_0 = arith.constant 0 : index
    %c0_1 = arith.constant 0 : index
    %c0_2 = arith.constant 0 : index
    %c0_3 = arith.constant 0 : index
    %5 = vector.load %arg12[%c0, %c0_0, %c0_1, %c0_2, %c0_3] : memref<2x4x5x8x32xf32, #tpu.memory_space<vmem>>, vector<2x4x5x8x32xf32>
    tpu.vector_store %arg12[%c0, %c0_0, %c0_1, %c0_2, %c0_3], %4 {strides = array<i32>} : memref<2x4x5x8x32xf32, #tpu.memory_space<vmem>>, vector<2x4x5x8x32xf32>,
    %c0_4 = arith.constant 0 : index
    %c0_5 = arith.constant 0 : index
    %6 = vector.load %arg1[%c0_4, %c0_5] : memref<16x128xf32, #tpu.memory_space<vmem>>, vector<1x128xf32>
    %c1 = arith.constant 1 : index
    %c0_6 = arith.constant 0 : index
    %7 = vector.load %arg1[%c1, %c0_6] : memref<16x128xf32, #tpu.memory_space<vmem>>, vector<1x128xf32>
    %c2 = arith.constant 2 : index
    %c0_7 = arith.constant 0 : index
    %8 = vector.load %arg1[%c2, %c0_7] : memref<16x128xf32, #tpu.memory_space<vmem>>, vector<1x128xf32>
    %c3 = arith.constant 3 : index
    %c0_8 = arith.constant 0 : index
    %9 = vector.load %arg1[%c3, %c0_8] : memref<16x128xf32, #tpu.memory_space<vmem>>, vector<1x128xf32>
    %c4 = arith.constant 4 : index
    %c0_9 = arith.constant 0 : index
    %10 = vector.load %arg1[%c4, %c0_9] : memref<16x128xf32, #tpu.memory_space<vmem>>, vector<1x128xf32>
    %c5 = arith.constant 5 : index
    %c0_10 = arith.constant 0 : index
    %11 = vector.load %arg1[%c5, %c0_10] : memref<16x128xf32, #tpu.memory_space<vmem>>, vector<1x128xf32>
    %c6 = arith.constant 6 : index
    %c0_11 = arith.constant 0 : index
    %12 = vector.load %arg1[%c6, %c0_11] : memref<16x128xf32, #tpu.memory_space<vmem>>, vector<1x128xf32>
    %c7 = arith.constant 7 : index
    %c0_12 = arith.constant 0 : index
    %13 = vector.load %arg1[%c7, %c0_12] : memref<16x128xf32, #tpu.memory_space<vmem>>, vector<1x128xf32>
    %c8 = arith.constant 8 : index
    %c0_13 = arith.constant 0 : index
    %14 = vector.load %arg1[%c8, %c0_13] : memref<16x128xf32, #tpu.memory_space<vmem>>, vector<1x128xf32>
    %c9 = arith.constant 9 : index
    %c0_14 = arith.constant 0 : index
    %15 = vector.load %arg1[%c9, %c0_14] : memref<16x128xf32, #tpu.memory_space<vmem>>, vector<1x128xf32>
    %c10 = arith.constant 10 : index
    %c0_15 = arith.constant 0 : index
    %16 = vector.load %arg1[%c10, %c0_15] : memref<16x128xf32, #tpu.memory_space<vmem>>, vector<1x128xf32>
    %c11 = arith.constant 11 : index
    %c0_16 = arith.constant 0 : index
    %17 = vector.load %arg1[%c11, %c0_16] : memref<16x128xf32, #tpu.memory_space<vmem>>, vector<1x128xf32>
    %c12 = arith.constant 12 : index
    %c0_17 = arith.constant 0 : index
    %18 = vector.load %arg1[%c12, %c0_17] : memref<16x128xf32, #tpu.memory_space<vmem>>, vector<1x128xf32>
    %c13 = arith.constant 13 : index
    %c0_18 = arith.constant 0 : index
    %19 = vector.load %arg1[%c13, %c0_18] : memref<16x128xf32, #tpu.memory_space<vmem>>, vector<1x128xf32>
    %c14 = arith.constant 14 : index
    %c0_19 = arith.constant 0 : index
    %20 = vector.load %arg1[%c14, %c0_19] : memref<16x128xf32, #tpu.memory_space<vmem>>, vector<1x128xf32>
    %c15 = arith.constant 15 : index
    %c0_20 = arith.constant 0 : index
    %21 = vector.load %arg1[%c15, %c0_20] : memref<16x128xf32, #tpu.memory_space<vmem>>, vector<1x128xf32>
    %c0_21 = arith.constant 0 : index
    %c0_22 = arith.constant 0 : index
    %22 = vector.load %arg2[%c0_21, %c0_22] : memref<1x32xf32, #tpu.memory_space<vmem>>, vector<1x32xf32>
    %c0_23 = arith.constant 0 : index
    %c0_24 = arith.constant 0 : index
    %c0_25 = arith.constant 0 : index
    %23 = vector.load %arg0[%c0_23, %c0_24, %c0_25] : memref<4x8x36xf32, #tpu.memory_space<vmem>>, vector<4x8x1xf32>
    %24 = vector.shape_cast %6 : vector<1x128xf32> to vector<1x1x128xf32>
    %25 = vector.broadcast %23 : vector<4x8x1xf32> to vector<4x8x128xf32>
    %26 = vector.broadcast %24 : vector<1x1x128xf32> to vector<4x8x128xf32>
    %27 = arith.mulf %25, %26 : vector<4x8x128xf32>
    %c0_26 = arith.constant 0 : index
    %c0_27 = arith.constant 0 : index
    %c1_28 = arith.constant 1 : index
    %28 = vector.load %arg0[%c0_26, %c0_27, %c1_28] : memref<4x8x36xf32, #tpu.memory_space<vmem>>, vector<4x8x1xf32>
    %29 = vector.shape_cast %7 : vector<1x128xf32> to vector<1x1x128xf32>
    %30 = vector.broadcast %28 : vector<4x8x1xf32> to vector<4x8x128xf32>
    %31 = vector.broadcast %29 : vector<1x1x128xf32> to vector<4x8x128xf32>
    %32 = arith.mulf %30, %31 : vector<4x8x128xf32>
    %33 = arith.addf %27, %32 : vector<4x8x128xf32>
    %c0_29 = arith.constant 0 : index
    %c0_30 = arith.constant 0 : index
    %c2_31 = arith.constant 2 : index
    %34 = vector.load %arg0[%c0_29, %c0_30, %c2_31] : memref<4x8x36xf32, #tpu.memory_space<vmem>>, vector<4x8x1xf32>
    %35 = vector.shape_cast %8 : vector<1x128xf32> to vector<1x1x128xf32>
    %36 = vector.broadcast %34 : vector<4x8x1xf32> to vector<4x8x128xf32>
    %37 = vector.broadcast %35 : vector<1x1x128xf32> to vector<4x8x128xf32>
    %38 = arith.mulf %36, %37 : vector<4x8x128xf32>
    %39 = arith.addf %33, %38 : vector<4x8x128xf32>
    %c0_32 = arith.constant 0 : index
    %c0_33 = arith.constant 0 : index
    %c3_34 = arith.constant 3 : index
    %40 = vector.load %arg0[%c0_32, %c0_33, %c3_34] : memref<4x8x36xf32, #tpu.memory_space<vmem>>, vector<4x8x1xf32>
    %41 = vector.shape_cast %9 : vector<1x128xf32> to vector<1x1x128xf32>
    %42 = vector.broadcast %40 : vector<4x8x1xf32> to vector<4x8x128xf32>
    %43 = vector.broadcast %41 : vector<1x1x128xf32> to vector<4x8x128xf32>
    %44 = arith.mulf %42, %43 : vector<4x8x128xf32>
    %45 = arith.addf %39, %44 : vector<4x8x128xf32>
    %c0_35 = arith.constant 0 : index
    %c0_36 = arith.constant 0 : index
    %c6_37 = arith.constant 6 : index
    %46 = vector.load %arg0[%c0_35, %c0_36, %c6_37] : memref<4x8x36xf32, #tpu.memory_space<vmem>>, vector<4x8x1xf32>
    %47 = vector.shape_cast %10 : vector<1x128xf32> to vector<1x1x128xf32>
    %48 = vector.broadcast %46 : vector<4x8x1xf32> to vector<4x8x128xf32>
    %49 = vector.broadcast %47 : vector<1x1x128xf32> to vector<4x8x128xf32>
    %50 = arith.mulf %48, %49 : vector<4x8x128xf32>
    %51 = arith.addf %45, %50 : vector<4x8x128xf32>
    %c0_38 = arith.constant 0 : index
    %c0_39 = arith.constant 0 : index
    %c7_40 = arith.constant 7 : index
    %52 = vector.load %arg0[%c0_38, %c0_39, %c7_40] : memref<4x8x36xf32, #tpu.memory_space<vmem>>, vector<4x8x1xf32>
    %53 = vector.shape_cast %11 : vector<1x128xf32> to vector<1x1x128xf32>
    %54 = vector.broadcast %52 : vector<4x8x1xf32> to vector<4x8x128xf32>
    %55 = vector.broadcast %53 : vector<1x1x128xf32> to vector<4x8x128xf32>
    %56 = arith.mulf %54, %55 : vector<4x8x128xf32>
    %57 = arith.addf %51, %56 : vector<4x8x128xf32>
    %c0_41 = arith.constant 0 : index
    %c0_42 = arith.constant 0 : index
    %c8_43 = arith.constant 8 : index
    %58 = vector.load %arg0[%c0_41, %c0_42, %c8_43] : memref<4x8x36xf32, #tpu.memory_space<vmem>>, vector<4x8x1xf32>
    %59 = vector.shape_cast %12 : vector<1x128xf32> to vector<1x1x128xf32>
    %60 = vector.broadcast %58 : vector<4x8x1xf32> to vector<4x8x128xf32>
    %61 = vector.broadcast %59 : vector<1x1x128xf32> to vector<4x8x128xf32>
    %62 = arith.mulf %60, %61 : vector<4x8x128xf32>
    %63 = arith.addf %57, %62 : vector<4x8x128xf32>
    %c0_44 = arith.constant 0 : index
    %c0_45 = arith.constant 0 : index
    %c9_46 = arith.constant 9 : index
    %64 = vector.load %arg0[%c0_44, %c0_45, %c9_46] : memref<4x8x36xf32, #tpu.memory_space<vmem>>, vector<4x8x1xf32>
    %65 = vector.shape_cast %13 : vector<1x128xf32> to vector<1x1x128xf32>
    %66 = vector.broadcast %64 : vector<4x8x1xf32> to vector<4x8x128xf32>
    %67 = vector.broadcast %65 : vector<1x1x128xf32> to vector<4x8x128xf32>
    %68 = arith.mulf %66, %67 : vector<4x8x128xf32>
    %69 = arith.addf %63, %68 : vector<4x8x128xf32>
    %c0_47 = arith.constant 0 : index
    %c0_48 = arith.constant 0 : index
    %c12_49 = arith.constant 12 : index
    %70 = vector.load %arg0[%c0_47, %c0_48, %c12_49] : memref<4x8x36xf32, #tpu.memory_space<vmem>>, vector<4x8x1xf32>
    %71 = vector.shape_cast %14 : vector<1x128xf32> to vector<1x1x128xf32>
    %72 = vector.broadcast %70 : vector<4x8x1xf32> to vector<4x8x128xf32>
    %73 = vector.broadcast %71 : vector<1x1x128xf32> to vector<4x8x128xf32>
    %74 = arith.mulf %72, %73 : vector<4x8x128xf32>
    %75 = arith.addf %69, %74 : vector<4x8x128xf32>
    %c0_50 = arith.constant 0 : index
    %c0_51 = arith.constant 0 : index
    %c13_52 = arith.constant 13 : index
    %76 = vector.load %arg0[%c0_50, %c0_51, %c13_52] : memref<4x8x36xf32, #tpu.memory_space<vmem>>, vector<4x8x1xf32>
    %77 = vector.shape_cast %15 : vector<1x128xf32> to vector<1x1x128xf32>
    %78 = vector.broadcast %76 : vector<4x8x1xf32> to vector<4x8x128xf32>
    %79 = vector.broadcast %77 : vector<1x1x128xf32> to vector<4x8x128xf32>
    %80 = arith.mulf %78, %79 : vector<4x8x128xf32>
    %81 = arith.addf %75, %80 : vector<4x8x128xf32>
    %c0_53 = arith.constant 0 : index
    %c0_54 = arith.constant 0 : index
    %c14_55 = arith.constant 14 : index
    %82 = vector.load %arg0[%c0_53, %c0_54, %c14_55] : memref<4x8x36xf32, #tpu.memory_space<vmem>>, vector<4x8x1xf32>
    %83 = vector.shape_cast %16 : vector<1x128xf32> to vector<1x1x128xf32>
    %84 = vector.broadcast %82 : vector<4x8x1xf32> to vector<4x8x128xf32>
    %85 = vector.broadcast %83 : vector<1x1x128xf32> to vector<4x8x128xf32>
    %86 = arith.mulf %84, %85 : vector<4x8x128xf32>
    %87 = arith.addf %81, %86 : vector<4x8x128xf32>
    %c0_56 = arith.constant 0 : index
    %c0_57 = arith.constant 0 : index
    %c15_58 = arith.constant 15 : index
    %88 = vector.load %arg0[%c0_56, %c0_57, %c15_58] : memref<4x8x36xf32, #tpu.memory_space<vmem>>, vector<4x8x1xf32>
    %89 = vector.shape_cast %17 : vector<1x128xf32> to vector<1x1x128xf32>
    %90 = vector.broadcast %88 : vector<4x8x1xf32> to vector<4x8x128xf32>
    %91 = vector.broadcast %89 : vector<1x1x128xf32> to vector<4x8x128xf32>
    %92 = arith.mulf %90, %91 : vector<4x8x128xf32>
    %93 = arith.addf %87, %92 : vector<4x8x128xf32>
    %c0_59 = arith.constant 0 : index
    %c0_60 = arith.constant 0 : index
    %c18 = arith.constant 18 : index
    %94 = vector.load %arg0[%c0_59, %c0_60, %c18] : memref<4x8x36xf32, #tpu.memory_space<vmem>>, vector<4x8x1xf32>
    %95 = vector.shape_cast %18 : vector<1x128xf32> to vector<1x1x128xf32>
    %96 = vector.broadcast %94 : vector<4x8x1xf32> to vector<4x8x128xf32>
    %97 = vector.broadcast %95 : vector<1x1x128xf32> to vector<4x8x128xf32>
    %98 = arith.mulf %96, %97 : vector<4x8x128xf32>
    %99 = arith.addf %93, %98 : vector<4x8x128xf32>
    %c0_61 = arith.constant 0 : index
    %c0_62 = arith.constant 0 : index
    %c19 = arith.constant 19 : index
    %100 = vector.load %arg0[%c0_61, %c0_62, %c19] : memref<4x8x36xf32, #tpu.memory_space<vmem>>, vector<4x8x1xf32>
    %101 = vector.shape_cast %19 : vector<1x128xf32> to vector<1x1x128xf32>
    %102 = vector.broadcast %100 : vector<4x8x1xf32> to vector<4x8x128xf32>
    %103 = vector.broadcast %101 : vector<1x1x128xf32> to vector<4x8x128xf32>
    %104 = arith.mulf %102, %103 : vector<4x8x128xf32>
    %105 = arith.addf %99, %104 : vector<4x8x128xf32>
    %c0_63 = arith.constant 0 : index
    %c0_64 = arith.constant 0 : index
    %c20 = arith.constant 20 : index
    %106 = vector.load %arg0[%c0_63, %c0_64, %c20] : memref<4x8x36xf32, #tpu.memory_space<vmem>>, vector<4x8x1xf32>
    %107 = vector.shape_cast %20 : vector<1x128xf32> to vector<1x1x128xf32>
    %108 = vector.broadcast %106 : vector<4x8x1xf32> to vector<4x8x128xf32>
    %109 = vector.broadcast %107 : vector<1x1x128xf32> to vector<4x8x128xf32>
    %110 = arith.mulf %108, %109 : vector<4x8x128xf32>
    %111 = arith.addf %105, %110 : vector<4x8x128xf32>
    %c0_65 = arith.constant 0 : index
    %c0_66 = arith.constant 0 : index
    %c21 = arith.constant 21 : index
    %112 = vector.load %arg0[%c0_65, %c0_66, %c21] : memref<4x8x36xf32, #tpu.memory_space<vmem>>, vector<4x8x1xf32>
    %113 = vector.shape_cast %21 : vector<1x128xf32> to vector<1x1x128xf32>
    %114 = vector.broadcast %112 : vector<4x8x1xf32> to vector<4x8x128xf32>
    %115 = vector.broadcast %113 : vector<1x1x128xf32> to vector<4x8x128xf32>
    %116 = arith.mulf %114, %115 : vector<4x8x128xf32>
    %117 = arith.addf %111, %116 : vector<4x8x128xf32>
    %118 = vector.extract_strided_slice %117 {offsets = [0, 0, 0], sizes = [4, 8, 32], strides = [1, 1, 1]} : vector<4x8x128xf32> to vector<4x8x32xf32>
    %119 = vector.extract_strided_slice %117 {offsets = [0, 0, 32], sizes = [4, 8, 32], strides = [1, 1, 1]} : vector<4x8x128xf32> to vector<4x8x32xf32>
    %120 = arith.maximumf %118, %119 : vector<4x8x32xf32>
    %121 = vector.extract_strided_slice %117 {offsets = [0, 0, 64], sizes = [4, 8, 32], strides = [1, 1, 1]} : vector<4x8x128xf32> to vector<4x8x32xf32>
    %122 = vector.extract_strided_slice %117 {offsets = [0, 0, 96], sizes = [4, 8, 32], strides = [1, 1, 1]} : vector<4x8x128xf32> to vector<4x8x32xf32>
    %123 = arith.maximumf %121, %122 : vector<4x8x32xf32>
    %124 = arith.maximumf %120, %123 : vector<4x8x32xf32>
    %125 = vector.shape_cast %22 : vector<1x32xf32> to vector<1x1x32xf32>
    %126 = vector.broadcast %125 : vector<1x1x32xf32> to vector<4x8x32xf32>
    %127 = arith.addf %124, %126 : vector<4x8x32xf32>
    %cst_67 = arith.constant 0.000000e+00 : f32
    %128 = vector.broadcast %cst_67 : f32 to vector<4x8x32xf32>
    %129 = arith.maximumf %127, %128 : vector<4x8x32xf32>
    %c1_68 = arith.constant 1 : index
    %c1_69 = arith.constant 1 : index
    %c0_70 = arith.constant 0 : index
    %c0_71 = arith.constant 0 : index
    %c0_72 = arith.constant 0 : index
    %130 = vector.load %arg12[%c1_68, %c1_69, %c0_70, %c0_71, %c0_72] : memref<2x4x5x8x32xf32, #tpu.memory_space<vmem>>, vector<1x1x4x8x32xf32>
    %131 = vector.shape_cast %130 : vector<1x1x4x8x32xf32> to vector<4x8x32xf32>
    %132 = vector.shape_cast %129 : vector<4x8x32xf32> to vector<1x1x4x8x32xf32>
    tpu.vector_store %arg12[%c1_68, %c1_69, %c0_70, %c0_71, %c0_72], %132 {strides = array<i32>} : memref<2x4x5x8x32xf32, #tpu.memory_space<vmem>>, vector<1x1x4x8x32xf32>,
    %133 = vector.extract_strided_slice %129 {offsets = [0, 2, 0], sizes = [4, 6, 32], strides = [1, 1, 1]} : vector<4x8x32xf32> to vector<4x6x32xf32>
    %c1_73 = arith.constant 1 : index
    %c3_74 = arith.constant 3 : index
    %c0_75 = arith.constant 0 : index
    %c0_76 = arith.constant 0 : index
    %c0_77 = arith.constant 0 : index
    %134 = vector.load %arg12[%c1_73, %c3_74, %c0_75, %c0_76, %c0_77] : memref<2x4x5x8x32xf32, #tpu.memory_space<vmem>>, vector<1x1x4x6x32xf32>
    %135 = vector.shape_cast %134 : vector<1x1x4x6x32xf32> to vector<4x6x32xf32>
    %136 = vector.shape_cast %133 : vector<4x6x32xf32> to vector<1x1x4x6x32xf32>
    tpu.vector_store %arg12[%c1_73, %c3_74, %c0_75, %c0_76, %c0_77], %136 {strides = array<i32>} : memref<2x4x5x8x32xf32, #tpu.memory_space<vmem>>, vector<1x1x4x6x32xf32>,
    %c0_78 = arith.constant 0 : index
    %c0_79 = arith.constant 0 : index
    %c2_80 = arith.constant 2 : index
    %137 = vector.load %arg0[%c0_78, %c0_79, %c2_80] : memref<4x8x36xf32, #tpu.memory_space<vmem>>, vector<4x8x1xf32>
    %138 = vector.shape_cast %6 : vector<1x128xf32> to vector<1x1x128xf32>
    %139 = vector.broadcast %137 : vector<4x8x1xf32> to vector<4x8x128xf32>
    %140 = vector.broadcast %138 : vector<1x1x128xf32> to vector<4x8x128xf32>
    %141 = arith.mulf %139, %140 : vector<4x8x128xf32>
    %c0_81 = arith.constant 0 : index
    %c0_82 = arith.constant 0 : index
    %c3_83 = arith.constant 3 : index
    %142 = vector.load %arg0[%c0_81, %c0_82, %c3_83] : memref<4x8x36xf32, #tpu.memory_space<vmem>>, vector<4x8x1xf32>
    %143 = vector.shape_cast %7 : vector<1x128xf32> to vector<1x1x128xf32>
    %144 = vector.broadcast %142 : vector<4x8x1xf32> to vector<4x8x128xf32>
    %145 = vector.broadcast %143 : vector<1x1x128xf32> to vector<4x8x128xf32>
    %146 = arith.mulf %144, %145 : vector<4x8x128xf32>
    %147 = arith.addf %141, %146 : vector<4x8x128xf32>
    %c0_84 = arith.constant 0 : index
    %c0_85 = arith.constant 0 : index
    %c4_86 = arith.constant 4 : index
    %148 = vector.load %arg0[%c0_84, %c0_85, %c4_86] : memref<4x8x36xf32, #tpu.memory_space<vmem>>, vector<4x8x1xf32>
    %149 = vector.shape_cast %8 : vector<1x128xf32> to vector<1x1x128xf32>
    %150 = vector.broadcast %148 : vector<4x8x1xf32> to vector<4x8x128xf32>
    %151 = vector.broadcast %149 : vector<1x1x128xf32> to vector<4x8x128xf32>
    %152 = arith.mulf %150, %151 : vector<4x8x128xf32>
    %153 = arith.addf %147, %152 : vector<4x8x128xf32>
    %c0_87 = arith.constant 0 : index
    %c0_88 = arith.constant 0 : index
    %c5_89 = arith.constant 5 : index
    %154 = vector.load %arg0[%c0_87, %c0_88, %c5_89] : memref<4x8x36xf32, #tpu.memory_space<vmem>>, vector<4x8x1xf32>
    %155 = vector.shape_cast %9 : vector<1x128xf32> to vector<1x1x128xf32>
    %156 = vector.broadcast %154 : vector<4x8x1xf32> to vector<4x8x128xf32>
    %157 = vector.broadcast %155 : vector<1x1x128xf32> to vector<4x8x128xf32>
    %158 = arith.mulf %156, %157 : vector<4x8x128xf32>
    %159 = arith.addf %153, %158 : vector<4x8x128xf32>
    %c0_90 = arith.constant 0 : index
    %c0_91 = arith.constant 0 : index
    %c8_92 = arith.constant 8 : index
    %160 = vector.load %arg0[%c0_90, %c0_91, %c8_92] : memref<4x8x36xf32, #tpu.memory_space<vmem>>, vector<4x8x1xf32>
    %161 = vector.shape_cast %10 : vector<1x128xf32> to vector<1x1x128xf32>
    %162 = vector.broadcast %160 : vector<4x8x1xf32> to vector<4x8x128xf32>
    %163 = vector.broadcast %161 : vector<1x1x128xf32> to vector<4x8x128xf32>
    %164 = arith.mulf %162, %163 : vector<4x8x128xf32>
    %165 = arith.addf %159, %164 : vector<4x8x128xf32>
    %c0_93 = arith.constant 0 : index
    %c0_94 = arith.constant 0 : index
    %c9_95 = arith.constant 9 : index
    %166 = vector.load %arg0[%c0_93, %c0_94, %c9_95] : memref<4x8x36xf32, #tpu.memory_space<vmem>>, vector<4x8x1xf32>
    %167 = vector.shape_cast %11 : vector<1x128xf32> to vector<1x1x128xf32>
    %168 = vector.broadcast %166 : vector<4x8x1xf32> to vector<4x8x128xf32>
    %169 = vector.broadcast %167 : vector<1x1x128xf32> to vector<4x8x128xf32>
    %170 = arith.mulf %168, %169 : vector<4x8x128xf32>
    %171 = arith.addf %165, %170 : vector<4x8x128xf32>
    %c0_96 = arith.constant 0 : index
    %c0_97 = arith.constant 0 : index
    %c10_98 = arith.constant 10 : index
    %172 = vector.load %arg0[%c0_96, %c0_97, %c10_98] : memref<4x8x36xf32, #tpu.memory_space<vmem>>, vector<4x8x1xf32>
    %173 = vector.shape_cast %12 : vector<1x128xf32> to vector<1x1x128xf32>
    %174 = vector.broadcast %172 : vector<4x8x1xf32> to vector<4x8x128xf32>
    %175 = vector.broadcast %173 : vector<1x1x128xf32> to vector<4x8x128xf32>
    %176 = arith.mulf %174, %175 : vector<4x8x128xf32>
    %177 = arith.addf %171, %176 : vector<4x8x128xf32>
    %c0_99 = arith.constant 0 : index
    %c0_100 = arith.constant 0 : index
    %c11_101 = arith.constant 11 : index
    %178 = vector.load %arg0[%c0_99, %c0_100, %c11_101] : memref<4x8x36xf32, #tpu.memory_space<vmem>>, vector<4x8x1xf32>
    %179 = vector.shape_cast %13 : vector<1x128xf32> to vector<1x1x128xf32>
    %180 = vector.broadcast %178 : vector<4x8x1xf32> to vector<4x8x128xf32>
    %181 = vector.broadcast %179 : vector<1x1x128xf32> to vector<4x8x128xf32>
    %182 = arith.mulf %180, %181 : vector<4x8x128xf32>
    %183 = arith.addf %177, %182 : vector<4x8x128xf32>
    %c0_102 = arith.constant 0 : index
    %c0_103 = arith.constant 0 : index
    %c14_104 = arith.constant 14 : index
    %184 = vector.load %arg0[%c0_102, %c0_103, %c14_104] : memref<4x8x36xf32, #tpu.memory_space<vmem>>, vector<4x8x1xf32>
    %185 = vector.shape_cast %14 : vector<1x128xf32> to vector<1x1x128xf32>
    %186 = vector.broadcast %184 : vector<4x8x1xf32> to vector<4x8x128xf32>
    %187 = vector.broadcast %185 : vector<1x1x128xf32> to vector<4x8x128xf32>
    %188 = arith.mulf %186, %187 : vector<4x8x128xf32>
    %189 = arith.addf %183, %188 : vector<4x8x128xf32>
    %c0_105 = arith.constant 0 : index
    %c0_106 = arith.constant 0 : index
    %c15_107 = arith.constant 15 : index
    %190 = vector.load %arg0[%c0_105, %c0_106, %c15_107] : memref<4x8x36xf32, #tpu.memory_space<vmem>>, vector<4x8x1xf32>
    %191 = vector.shape_cast %15 : vector<1x128xf32> to vector<1x1x128xf32>
    %192 = vector.broadcast %190 : vector<4x8x1xf32> to vector<4x8x128xf32>
    %193 = vector.broadcast %191 : vector<1x1x128xf32> to vector<4x8x128xf32>
    %194 = arith.mulf %192, %193 : vector<4x8x128xf32>
    %195 = arith.addf %189, %194 : vector<4x8x128xf32>
    %c0_108 = arith.constant 0 : index
    %c0_109 = arith.constant 0 : index
    %c16 = arith.constant 16 : index
    %196 = vector.load %arg0[%c0_108, %c0_109, %c16] : memref<4x8x36xf32, #tpu.memory_space<vmem>>, vector<4x8x1xf32>
    %197 = vector.shape_cast %16 : vector<1x128xf32> to vector<1x1x128xf32>
    %198 = vector.broadcast %196 : vector<4x8x1xf32> to vector<4x8x128xf32>
    %199 = vector.broadcast %197 : vector<1x1x128xf32> to vector<4x8x128xf32>
    %200 = arith.mulf %198, %199 : vector<4x8x128xf32>
    %201 = arith.addf %195, %200 : vector<4x8x128xf32>
    %c0_110 = arith.constant 0 : index
    %c0_111 = arith.constant 0 : index
    %c17 = arith.constant 17 : index
    %202 = vector.load %arg0[%c0_110, %c0_111, %c17] : memref<4x8x36xf32, #tpu.memory_space<vmem>>, vector<4x8x1xf32>
    %203 = vector.shape_cast %17 : vector<1x128xf32> to vector<1x1x128xf32>
    %204 = vector.broadcast %202 : vector<4x8x1xf32> to vector<4x8x128xf32>
    %205 = vector.broadcast %203 : vector<1x1x128xf32> to vector<4x8x128xf32>
    %206 = arith.mulf %204, %205 : vector<4x8x128xf32>
    %207 = arith.addf %201, %206 : vector<4x8x128xf32>
    %c0_112 = arith.constant 0 : index
    %c0_113 = arith.constant 0 : index
    %c20_114 = arith.constant 20 : index
    %208 = vector.load %arg0[%c0_112, %c0_113, %c20_114] : memref<4x8x36xf32, #tpu.memory_space<vmem>>, vector<4x8x1xf32>
    %209 = vector.shape_cast %18 : vector<1x128xf32> to vector<1x1x128xf32>
    %210 = vector.broadcast %208 : vector<4x8x1xf32> to vector<4x8x128xf32>
    %211 = vector.broadcast %209 : vector<1x1x128xf32> to vector<4x8x128xf32>
    %212 = arith.mulf %210, %211 : vector<4x8x128xf32>
    %213 = arith.addf %207, %212 : vector<4x8x128xf32>
    %c0_115 = arith.constant 0 : index
    %c0_116 = arith.constant 0 : index
    %c21_117 = arith.constant 21 : index
    %214 = vector.load %arg0[%c0_115, %c0_116, %c21_117] : memref<4x8x36xf32, #tpu.memory_space<vmem>>, vector<4x8x1xf32>
    %215 = vector.shape_cast %19 : vector<1x128xf32> to vector<1x1x128xf32>
    %216 = vector.broadcast %214 : vector<4x8x1xf32> to vector<4x8x128xf32>
    %217 = vector.broadcast %215 : vector<1x1x128xf32> to vector<4x8x128xf32>
    %218 = arith.mulf %216, %217 : vector<4x8x128xf32>
    %219 = arith.addf %213, %218 : vector<4x8x128xf32>
    %c0_118 = arith.constant 0 : index
    %c0_119 = arith.constant 0 : index
    %c22 = arith.constant 22 : index
    %220 = vector.load %arg0[%c0_118, %c0_119, %c22] : memref<4x8x36xf32, #tpu.memory_space<vmem>>, vector<4x8x1xf32>
    %221 = vector.shape_cast %20 : vector<1x128xf32> to vector<1x1x128xf32>
    %222 = vector.broadcast %220 : vector<4x8x1xf32> to vector<4x8x128xf32>
    %223 = vector.broadcast %221 : vector<1x1x128xf32> to vector<4x8x128xf32>
    %224 = arith.mulf %222, %223 : vector<4x8x128xf32>
    %225 = arith.addf %219, %224 : vector<4x8x128xf32>
    %c0_120 = arith.constant 0 : index
    %c0_121 = arith.constant 0 : index
    %c23 = arith.constant 23 : index
    %226 = vector.load %arg0[%c0_120, %c0_121, %c23] : memref<4x8x36xf32, #tpu.memory_space<vmem>>, vector<4x8x1xf32>
    %227 = vector.shape_cast %21 : vector<1x128xf32> to vector<1x1x128xf32>
    %228 = vector.broadcast %226 : vector<4x8x1xf32> to vector<4x8x128xf32>
    %229 = vector.broadcast %227 : vector<1x1x128xf32> to vector<4x8x128xf32>
    %230 = arith.mulf %228, %229 : vector<4x8x128xf32>
    %231 = arith.addf %225, %230 : vector<4x8x128xf32>
    %232 = vector.extract_strided_slice %231 {offsets = [0, 0, 0], sizes = [4, 8, 32], strides = [1, 1, 1]} : vector<4x8x128xf32> to vector<4x8x32xf32>
    %233 = vector.extract_strided_slice %231 {offsets = [0, 0, 32], sizes = [4, 8, 32], strides = [1, 1, 1]} : vector<4x8x128xf32> to vector<4x8x32xf32>
    %234 = arith.maximumf %232, %233 : vector<4x8x32xf32>
    %235 = vector.extract_strided_slice %231 {offsets = [0, 0, 64], sizes = [4, 8, 32], strides = [1, 1, 1]} : vector<4x8x128xf32> to vector<4x8x32xf32>
    %236 = vector.extract_strided_slice %231 {offsets = [0, 0, 96], sizes = [4, 8, 32], strides = [1, 1, 1]} : vector<4x8x128xf32> to vector<4x8x32xf32>
    %237 = arith.maximumf %235, %236 : vector<4x8x32xf32>
    %238 = arith.maximumf %234, %237 : vector<4x8x32xf32>
    %239 = vector.shape_cast %22 : vector<1x32xf32> to vector<1x1x32xf32>
    %240 = vector.broadcast %239 : vector<1x1x32xf32> to vector<4x8x32xf32>
    %241 = arith.addf %238, %240 : vector<4x8x32xf32>
    %cst_122 = arith.constant 0.000000e+00 : f32
    %242 = vector.broadcast %cst_122 : f32 to vector<4x8x32xf32>
    %243 = arith.maximumf %241, %242 : vector<4x8x32xf32>
    %244 = vector.extract_strided_slice %243 {offsets = [0, 0, 0], sizes = [4, 6, 32], strides = [1, 1, 1]} : vector<4x8x32xf32> to vector<4x6x32xf32>
    %c1_123 = arith.constant 1 : index
    %c0_124 = arith.constant 0 : index
    %c0_125 = arith.constant 0 : index
    %c2_126 = arith.constant 2 : index
    %c0_127 = arith.constant 0 : index
    %245 = vector.load %arg12[%c1_123, %c0_124, %c0_125, %c2_126, %c0_127] : memref<2x4x5x8x32xf32, #tpu.memory_space<vmem>>, vector<1x1x4x6x32xf32>
    %246 = vector.shape_cast %245 : vector<1x1x4x6x32xf32> to vector<4x6x32xf32>
    %247 = vector.shape_cast %244 : vector<4x6x32xf32> to vector<1x1x4x6x32xf32>
    tpu.vector_store %arg12[%c1_123, %c0_124, %c0_125, %c2_126, %c0_127], %247 {strides = array<i32>} : memref<2x4x5x8x32xf32, #tpu.memory_space<vmem>>, vector<1x1x4x6x32xf32>,
    %c1_128 = arith.constant 1 : index
    %c2_129 = arith.constant 2 : index
    %c0_130 = arith.constant 0 : index
    %c0_131 = arith.constant 0 : index
    %c0_132 = arith.constant 0 : index
    %248 = vector.load %arg12[%c1_128, %c2_129, %c0_130, %c0_131, %c0_132] : memref<2x4x5x8x32xf32, #tpu.memory_space<vmem>>, vector<1x1x4x8x32xf32>
    %249 = vector.shape_cast %248 : vector<1x1x4x8x32xf32> to vector<4x8x32xf32>
    %250 = vector.shape_cast %243 : vector<4x8x32xf32> to vector<1x1x4x8x32xf32>
    tpu.vector_store %arg12[%c1_128, %c2_129, %c0_130, %c0_131, %c0_132], %250 {strides = array<i32>} : memref<2x4x5x8x32xf32, #tpu.memory_space<vmem>>, vector<1x1x4x8x32xf32>,
    %c0_133 = arith.constant 0 : index
    %c0_134 = arith.constant 0 : index
    %c12_135 = arith.constant 12 : index
    %251 = vector.load %arg0[%c0_133, %c0_134, %c12_135] : memref<4x8x36xf32, #tpu.memory_space<vmem>>, vector<4x8x1xf32>
    %252 = vector.shape_cast %6 : vector<1x128xf32> to vector<1x1x128xf32>
    %253 = vector.broadcast %251 : vector<4x8x1xf32> to vector<4x8x128xf32>
    %254 = vector.broadcast %252 : vector<1x1x128xf32> to vector<4x8x128xf32>
    %255 = arith.mulf %253, %254 : vector<4x8x128xf32>
    %c0_136 = arith.constant 0 : index
    %c0_137 = arith.constant 0 : index
    %c13_138 = arith.constant 13 : index
    %256 = vector.load %arg0[%c0_136, %c0_137, %c13_138] : memref<4x8x36xf32, #tpu.memory_space<vmem>>, vector<4x8x1xf32>
    %257 = vector.shape_cast %7 : vector<1x128xf32> to vector<1x1x128xf32>
    %258 = vector.broadcast %256 : vector<4x8x1xf32> to vector<4x8x128xf32>
    %259 = vector.broadcast %257 : vector<1x1x128xf32> to vector<4x8x128xf32>
    %260 = arith.mulf %258, %259 : vector<4x8x128xf32>
    %261 = arith.addf %255, %260 : vector<4x8x128xf32>
    %c0_139 = arith.constant 0 : index
    %c0_140 = arith.constant 0 : index
    %c14_141 = arith.constant 14 : index
    %262 = vector.load %arg0[%c0_139, %c0_140, %c14_141] : memref<4x8x36xf32, #tpu.memory_space<vmem>>, vector<4x8x1xf32>
    %263 = vector.shape_cast %8 : vector<1x128xf32> to vector<1x1x128xf32>
    %264 = vector.broadcast %262 : vector<4x8x1xf32> to vector<4x8x128xf32>
    %265 = vector.broadcast %263 : vector<1x1x128xf32> to vector<4x8x128xf32>
    %266 = arith.mulf %264, %265 : vector<4x8x128xf32>
    %267 = arith.addf %261, %266 : vector<4x8x128xf32>
    %c0_142 = arith.constant 0 : index
    %c0_143 = arith.constant 0 : index
    %c15_144 = arith.constant 15 : index
    %268 = vector.load %arg0[%c0_142, %c0_143, %c15_144] : memref<4x8x36xf32, #tpu.memory_space<vmem>>, vector<4x8x1xf32>
    %269 = vector.shape_cast %9 : vector<1x128xf32> to vector<1x1x128xf32>
    %270 = vector.broadcast %268 : vector<4x8x1xf32> to vector<4x8x128xf32>
    %271 = vector.broadcast %269 : vector<1x1x128xf32> to vector<4x8x128xf32>
    %272 = arith.mulf %270, %271 : vector<4x8x128xf32>
    %273 = arith.addf %267, %272 : vector<4x8x128xf32>
    %c0_145 = arith.constant 0 : index
    %c0_146 = arith.constant 0 : index
    %c18_147 = arith.constant 18 : index
    %274 = vector.load %arg0[%c0_145, %c0_146, %c18_147] : memref<4x8x36xf32, #tpu.memory_space<vmem>>, vector<4x8x1xf32>
    %275 = vector.shape_cast %10 : vector<1x128xf32> to vector<1x1x128xf32>
    %276 = vector.broadcast %274 : vector<4x8x1xf32> to vector<4x8x128xf32>
    %277 = vector.broadcast %275 : vector<1x1x128xf32> to vector<4x8x128xf32>
    %278 = arith.mulf %276, %277 : vector<4x8x128xf32>
    %279 = arith.addf %273, %278 : vector<4x8x128xf32>
    %c0_148 = arith.constant 0 : index
    %c0_149 = arith.constant 0 : index
    %c19_150 = arith.constant 19 : index
    %280 = vector.load %arg0[%c0_148, %c0_149, %c19_150] : memref<4x8x36xf32, #tpu.memory_space<vmem>>, vector<4x8x1xf32>
    %281 = vector.shape_cast %11 : vector<1x128xf32> to vector<1x1x128xf32>
    %282 = vector.broadcast %280 : vector<4x8x1xf32> to vector<4x8x128xf32>
    %283 = vector.broadcast %281 : vector<1x1x128xf32> to vector<4x8x128xf32>
    %284 = arith.mulf %282, %283 : vector<4x8x128xf32>
    %285 = arith.addf %279, %284 : vector<4x8x128xf32>
    %c0_151 = arith.constant 0 : index
    %c0_152 = arith.constant 0 : index
    %c20_153 = arith.constant 20 : index
    %286 = vector.load %arg0[%c0_151, %c0_152, %c20_153] : memref<4x8x36xf32, #tpu.memory_space<vmem>>, vector<4x8x1xf32>
    %287 = vector.shape_cast %12 : vector<1x128xf32> to vector<1x1x128xf32>
    %288 = vector.broadcast %286 : vector<4x8x1xf32> to vector<4x8x128xf32>
    %289 = vector.broadcast %287 : vector<1x1x128xf32> to vector<4x8x128xf32>
    %290 = arith.mulf %288, %289 : vector<4x8x128xf32>
    %291 = arith.addf %285, %290 : vector<4x8x128xf32>
    %c0_154 = arith.constant 0 : index
    %c0_155 = arith.constant 0 : index
    %c21_156 = arith.constant 21 : index
    %292 = vector.load %arg0[%c0_154, %c0_155, %c21_156] : memref<4x8x36xf32, #tpu.memory_space<vmem>>, vector<4x8x1xf32>
    %293 = vector.shape_cast %13 : vector<1x128xf32> to vector<1x1x128xf32>
    %294 = vector.broadcast %292 : vector<4x8x1xf32> to vector<4x8x128xf32>
    %295 = vector.broadcast %293 : vector<1x1x128xf32> to vector<4x8x128xf32>
    %296 = arith.mulf %294, %295 : vector<4x8x128xf32>
    %297 = arith.addf %291, %296 : vector<4x8x128xf32>
    %c0_157 = arith.constant 0 : index
    %c0_158 = arith.constant 0 : index
    %c24 = arith.constant 24 : index
    %298 = vector.load %arg0[%c0_157, %c0_158, %c24] : memref<4x8x36xf32, #tpu.memory_space<vmem>>, vector<4x8x1xf32>
    %299 = vector.shape_cast %14 : vector<1x128xf32> to vector<1x1x128xf32>
    %300 = vector.broadcast %298 : vector<4x8x1xf32> to vector<4x8x128xf32>
    %301 = vector.broadcast %299 : vector<1x1x128xf32> to vector<4x8x128xf32>
    %302 = arith.mulf %300, %301 : vector<4x8x128xf32>
    %303 = arith.addf %297, %302 : vector<4x8x128xf32>
    %c0_159 = arith.constant 0 : index
    %c0_160 = arith.constant 0 : index
    %c25 = arith.constant 25 : index
    %304 = vector.load %arg0[%c0_159, %c0_160, %c25] : memref<4x8x36xf32, #tpu.memory_space<vmem>>, vector<4x8x1xf32>
    %305 = vector.shape_cast %15 : vector<1x128xf32> to vector<1x1x128xf32>
    %306 = vector.broadcast %304 : vector<4x8x1xf32> to vector<4x8x128xf32>
    %307 = vector.broadcast %305 : vector<1x1x128xf32> to vector<4x8x128xf32>
    %308 = arith.mulf %306, %307 : vector<4x8x128xf32>
    %309 = arith.addf %303, %308 : vector<4x8x128xf32>
    %c0_161 = arith.constant 0 : index
    %c0_162 = arith.constant 0 : index
    %c26 = arith.constant 26 : index
    %310 = vector.load %arg0[%c0_161, %c0_162, %c26] : memref<4x8x36xf32, #tpu.memory_space<vmem>>, vector<4x8x1xf32>
    %311 = vector.shape_cast %16 : vector<1x128xf32> to vector<1x1x128xf32>
    %312 = vector.broadcast %310 : vector<4x8x1xf32> to vector<4x8x128xf32>
    %313 = vector.broadcast %311 : vector<1x1x128xf32> to vector<4x8x128xf32>
    %314 = arith.mulf %312, %313 : vector<4x8x128xf32>
    %315 = arith.addf %309, %314 : vector<4x8x128xf32>
    %c0_163 = arith.constant 0 : index
    %c0_164 = arith.constant 0 : index
    %c27 = arith.constant 27 : index
    %316 = vector.load %arg0[%c0_163, %c0_164, %c27] : memref<4x8x36xf32, #tpu.memory_space<vmem>>, vector<4x8x1xf32>
    %317 = vector.shape_cast %17 : vector<1x128xf32> to vector<1x1x128xf32>
    %318 = vector.broadcast %316 : vector<4x8x1xf32> to vector<4x8x128xf32>
    %319 = vector.broadcast %317 : vector<1x1x128xf32> to vector<4x8x128xf32>
    %320 = arith.mulf %318, %319 : vector<4x8x128xf32>
    %321 = arith.addf %315, %320 : vector<4x8x128xf32>
    %c0_165 = arith.constant 0 : index
    %c0_166 = arith.constant 0 : index
    %c30 = arith.constant 30 : index
    %322 = vector.load %arg0[%c0_165, %c0_166, %c30] : memref<4x8x36xf32, #tpu.memory_space<vmem>>, vector<4x8x1xf32>
    %323 = vector.shape_cast %18 : vector<1x128xf32> to vector<1x1x128xf32>
    %324 = vector.broadcast %322 : vector<4x8x1xf32> to vector<4x8x128xf32>
    %325 = vector.broadcast %323 : vector<1x1x128xf32> to vector<4x8x128xf32>
    %326 = arith.mulf %324, %325 : vector<4x8x128xf32>
    %327 = arith.addf %321, %326 : vector<4x8x128xf32>
    %c0_167 = arith.constant 0 : index
    %c0_168 = arith.constant 0 : index
    %c31 = arith.constant 31 : index
    %328 = vector.load %arg0[%c0_167, %c0_168, %c31] : memref<4x8x36xf32, #tpu.memory_space<vmem>>, vector<4x8x1xf32>
    %329 = vector.shape_cast %19 : vector<1x128xf32> to vector<1x1x128xf32>
    %330 = vector.broadcast %328 : vector<4x8x1xf32> to vector<4x8x128xf32>
    %331 = vector.broadcast %329 : vector<1x1x128xf32> to vector<4x8x128xf32>
    %332 = arith.mulf %330, %331 : vector<4x8x128xf32>
    %333 = arith.addf %327, %332 : vector<4x8x128xf32>
    %c0_169 = arith.constant 0 : index
    %c0_170 = arith.constant 0 : index
    %c32 = arith.constant 32 : index
    %334 = vector.load %arg0[%c0_169, %c0_170, %c32] : memref<4x8x36xf32, #tpu.memory_space<vmem>>, vector<4x8x1xf32>
    %335 = vector.shape_cast %20 : vector<1x128xf32> to vector<1x1x128xf32>
    %336 = vector.broadcast %334 : vector<4x8x1xf32> to vector<4x8x128xf32>
    %337 = vector.broadcast %335 : vector<1x1x128xf32> to vector<4x8x128xf32>
    %338 = arith.mulf %336, %337 : vector<4x8x128xf32>
    %339 = arith.addf %333, %338 : vector<4x8x128xf32>
    %c0_171 = arith.constant 0 : index
    %c0_172 = arith.constant 0 : index
    %c33 = arith.constant 33 : index
    %340 = vector.load %arg0[%c0_171, %c0_172, %c33] : memref<4x8x36xf32, #tpu.memory_space<vmem>>, vector<4x8x1xf32>
    %341 = vector.shape_cast %21 : vector<1x128xf32> to vector<1x1x128xf32>
    %342 = vector.broadcast %340 : vector<4x8x1xf32> to vector<4x8x128xf32>
    %343 = vector.broadcast %341 : vector<1x1x128xf32> to vector<4x8x128xf32>
    %344 = arith.mulf %342, %343 : vector<4x8x128xf32>
    %345 = arith.addf %339, %344 : vector<4x8x128xf32>
    %346 = vector.extract_strided_slice %345 {offsets = [0, 0, 0], sizes = [4, 8, 32], strides = [1, 1, 1]} : vector<4x8x128xf32> to vector<4x8x32xf32>
    %347 = vector.extract_strided_slice %345 {offsets = [0, 0, 32], sizes = [4, 8, 32], strides = [1, 1, 1]} : vector<4x8x128xf32> to vector<4x8x32xf32>
    %348 = arith.maximumf %346, %347 : vector<4x8x32xf32>
    %349 = vector.extract_strided_slice %345 {offsets = [0, 0, 64], sizes = [4, 8, 32], strides = [1, 1, 1]} : vector<4x8x128xf32> to vector<4x8x32xf32>
    %350 = vector.extract_strided_slice %345 {offsets = [0, 0, 96], sizes = [4, 8, 32], strides = [1, 1, 1]} : vector<4x8x128xf32> to vector<4x8x32xf32>
    %351 = arith.maximumf %349, %350 : vector<4x8x32xf32>
    %352 = arith.maximumf %348, %351 : vector<4x8x32xf32>
    %353 = vector.shape_cast %22 : vector<1x32xf32> to vector<1x1x32xf32>
    %354 = vector.broadcast %353 : vector<1x1x32xf32> to vector<4x8x32xf32>
    %355 = arith.addf %352, %354 : vector<4x8x32xf32>
    %cst_173 = arith.constant 0.000000e+00 : f32
    %356 = vector.broadcast %cst_173 : f32 to vector<4x8x32xf32>
    %357 = arith.maximumf %355, %356 : vector<4x8x32xf32>
    %c0_174 = arith.constant 0 : index
    %c1_175 = arith.constant 1 : index
    %c1_176 = arith.constant 1 : index
    %c0_177 = arith.constant 0 : index
    %c0_178 = arith.constant 0 : index
    %358 = vector.load %arg12[%c0_174, %c1_175, %c1_176, %c0_177, %c0_178] : memref<2x4x5x8x32xf32, #tpu.memory_space<vmem>>, vector<1x1x4x8x32xf32>
    %359 = vector.shape_cast %358 : vector<1x1x4x8x32xf32> to vector<4x8x32xf32>
    %360 = vector.shape_cast %357 : vector<4x8x32xf32> to vector<1x1x4x8x32xf32>
    tpu.vector_store %arg12[%c0_174, %c1_175, %c1_176, %c0_177, %c0_178], %360 {strides = array<i32>} : memref<2x4x5x8x32xf32, #tpu.memory_space<vmem>>, vector<1x1x4x8x32xf32>,
    %361 = vector.extract_strided_slice %357 {offsets = [0, 2, 0], sizes = [4, 6, 32], strides = [1, 1, 1]} : vector<4x8x32xf32> to vector<4x6x32xf32>
    %c0_179 = arith.constant 0 : index
    %c3_180 = arith.constant 3 : index
    %c1_181 = arith.constant 1 : index
    %c0_182 = arith.constant 0 : index
    %c0_183 = arith.constant 0 : index
    %362 = vector.load %arg12[%c0_179, %c3_180, %c1_181, %c0_182, %c0_183] : memref<2x4x5x8x32xf32, #tpu.memory_space<vmem>>, vector<1x1x4x6x32xf32>
    %363 = vector.shape_cast %362 : vector<1x1x4x6x32xf32> to vector<4x6x32xf32>
    %364 = vector.shape_cast %361 : vector<4x6x32xf32> to vector<1x1x4x6x32xf32>
    tpu.vector_store %arg12[%c0_179, %c3_180, %c1_181, %c0_182, %c0_183], %364 {strides = array<i32>} : memref<2x4x5x8x32xf32, #tpu.memory_space<vmem>>, vector<1x1x4x6x32xf32>,
    %c0_184 = arith.constant 0 : index
    %c0_185 = arith.constant 0 : index
    %c14_186 = arith.constant 14 : index
    %365 = vector.load %arg0[%c0_184, %c0_185, %c14_186] : memref<4x8x36xf32, #tpu.memory_space<vmem>>, vector<4x8x1xf32>
    %366 = vector.shape_cast %6 : vector<1x128xf32> to vector<1x1x128xf32>
    %367 = vector.broadcast %365 : vector<4x8x1xf32> to vector<4x8x128xf32>
    %368 = vector.broadcast %366 : vector<1x1x128xf32> to vector<4x8x128xf32>
    %369 = arith.mulf %367, %368 : vector<4x8x128xf32>
    %c0_187 = arith.constant 0 : index
    %c0_188 = arith.constant 0 : index
    %c15_189 = arith.constant 15 : index
    %370 = vector.load %arg0[%c0_187, %c0_188, %c15_189] : memref<4x8x36xf32, #tpu.memory_space<vmem>>, vector<4x8x1xf32>
    %371 = vector.shape_cast %7 : vector<1x128xf32> to vector<1x1x128xf32>
    %372 = vector.broadcast %370 : vector<4x8x1xf32> to vector<4x8x128xf32>
    %373 = vector.broadcast %371 : vector<1x1x128xf32> to vector<4x8x128xf32>
    %374 = arith.mulf %372, %373 : vector<4x8x128xf32>
    %375 = arith.addf %369, %374 : vector<4x8x128xf32>
    %c0_190 = arith.constant 0 : index
    %c0_191 = arith.constant 0 : index
    %c16_192 = arith.constant 16 : index
    %376 = vector.load %arg0[%c0_190, %c0_191, %c16_192] : memref<4x8x36xf32, #tpu.memory_space<vmem>>, vector<4x8x1xf32>
    %377 = vector.shape_cast %8 : vector<1x128xf32> to vector<1x1x128xf32>
    %378 = vector.broadcast %376 : vector<4x8x1xf32> to vector<4x8x128xf32>
    %379 = vector.broadcast %377 : vector<1x1x128xf32> to vector<4x8x128xf32>
    %380 = arith.mulf %378, %379 : vector<4x8x128xf32>
    %381 = arith.addf %375, %380 : vector<4x8x128xf32>
    %c0_193 = arith.constant 0 : index
    %c0_194 = arith.constant 0 : index
    %c17_195 = arith.constant 17 : index
    %382 = vector.load %arg0[%c0_193, %c0_194, %c17_195] : memref<4x8x36xf32, #tpu.memory_space<vmem>>, vector<4x8x1xf32>
    %383 = vector.shape_cast %9 : vector<1x128xf32> to vector<1x1x128xf32>
    %384 = vector.broadcast %382 : vector<4x8x1xf32> to vector<4x8x128xf32>
    %385 = vector.broadcast %383 : vector<1x1x128xf32> to vector<4x8x128xf32>
    %386 = arith.mulf %384, %385 : vector<4x8x128xf32>
    %387 = arith.addf %381, %386 : vector<4x8x128xf32>
    %c0_196 = arith.constant 0 : index
    %c0_197 = arith.constant 0 : index
    %c20_198 = arith.constant 20 : index
    %388 = vector.load %arg0[%c0_196, %c0_197, %c20_198] : memref<4x8x36xf32, #tpu.memory_space<vmem>>, vector<4x8x1xf32>
    %389 = vector.shape_cast %10 : vector<1x128xf32> to vector<1x1x128xf32>
    %390 = vector.broadcast %388 : vector<4x8x1xf32> to vector<4x8x128xf32>
    %391 = vector.broadcast %389 : vector<1x1x128xf32> to vector<4x8x128xf32>
    %392 = arith.mulf %390, %391 : vector<4x8x128xf32>
    %393 = arith.addf %387, %392 : vector<4x8x128xf32>
    %c0_199 = arith.constant 0 : index
    %c0_200 = arith.constant 0 : index
    %c21_201 = arith.constant 21 : index
    %394 = vector.load %arg0[%c0_199, %c0_200, %c21_201] : memref<4x8x36xf32, #tpu.memory_space<vmem>>, vector<4x8x1xf32>
    %395 = vector.shape_cast %11 : vector<1x128xf32> to vector<1x1x128xf32>
    %396 = vector.broadcast %394 : vector<4x8x1xf32> to vector<4x8x128xf32>
    %397 = vector.broadcast %395 : vector<1x1x128xf32> to vector<4x8x128xf32>
    %398 = arith.mulf %396, %397 : vector<4x8x128xf32>
    %399 = arith.addf %393, %398 : vector<4x8x128xf32>
    %c0_202 = arith.constant 0 : index
    %c0_203 = arith.constant 0 : index
    %c22_204 = arith.constant 22 : index
    %400 = vector.load %arg0[%c0_202, %c0_203, %c22_204] : memref<4x8x36xf32, #tpu.memory_space<vmem>>, vector<4x8x1xf32>
    %401 = vector.shape_cast %12 : vector<1x128xf32> to vector<1x1x128xf32>
    %402 = vector.broadcast %400 : vector<4x8x1xf32> to vector<4x8x128xf32>
    %403 = vector.broadcast %401 : vector<1x1x128xf32> to vector<4x8x128xf32>
    %404 = arith.mulf %402, %403 : vector<4x8x128xf32>
    %405 = arith.addf %399, %404 : vector<4x8x128xf32>
    %c0_205 = arith.constant 0 : index
    %c0_206 = arith.constant 0 : index
    %c23_207 = arith.constant 23 : index
    %406 = vector.load %arg0[%c0_205, %c0_206, %c23_207] : memref<4x8x36xf32, #tpu.memory_space<vmem>>, vector<4x8x1xf32>
    %407 = vector.shape_cast %13 : vector<1x128xf32> to vector<1x1x128xf32>
    %408 = vector.broadcast %406 : vector<4x8x1xf32> to vector<4x8x128xf32>
    %409 = vector.broadcast %407 : vector<1x1x128xf32> to vector<4x8x128xf32>
    %410 = arith.mulf %408, %409 : vector<4x8x128xf32>
    %411 = arith.addf %405, %410 : vector<4x8x128xf32>
    %c0_208 = arith.constant 0 : index
    %c0_209 = arith.constant 0 : index
    %c26_210 = arith.constant 26 : index
    %412 = vector.load %arg0[%c0_208, %c0_209, %c26_210] : memref<4x8x36xf32, #tpu.memory_space<vmem>>, vector<4x8x1xf32>
    %413 = vector.shape_cast %14 : vector<1x128xf32> to vector<1x1x128xf32>
    %414 = vector.broadcast %412 : vector<4x8x1xf32> to vector<4x8x128xf32>
    %415 = vector.broadcast %413 : vector<1x1x128xf32> to vector<4x8x128xf32>
    %416 = arith.mulf %414, %415 : vector<4x8x128xf32>
    %417 = arith.addf %411, %416 : vector<4x8x128xf32>
    %c0_211 = arith.constant 0 : index
    %c0_212 = arith.constant 0 : index
    %c27_213 = arith.constant 27 : index
    %418 = vector.load %arg0[%c0_211, %c0_212, %c27_213] : memref<4x8x36xf32, #tpu.memory_space<vmem>>, vector<4x8x1xf32>
    %419 = vector.shape_cast %15 : vector<1x128xf32> to vector<1x1x128xf32>
    %420 = vector.broadcast %418 : vector<4x8x1xf32> to vector<4x8x128xf32>
    %421 = vector.broadcast %419 : vector<1x1x128xf32> to vector<4x8x128xf32>
    %422 = arith.mulf %420, %421 : vector<4x8x128xf32>
    %423 = arith.addf %417, %422 : vector<4x8x128xf32>
    %c0_214 = arith.constant 0 : index
    %c0_215 = arith.constant 0 : index
    %c28 = arith.constant 28 : index
    %424 = vector.load %arg0[%c0_214, %c0_215, %c28] : memref<4x8x36xf32, #tpu.memory_space<vmem>>, vector<4x8x1xf32>
    %425 = vector.shape_cast %16 : vector<1x128xf32> to vector<1x1x128xf32>
    %426 = vector.broadcast %424 : vector<4x8x1xf32> to vector<4x8x128xf32>
    %427 = vector.broadcast %425 : vector<1x1x128xf32> to vector<4x8x128xf32>
    %428 = arith.mulf %426, %427 : vector<4x8x128xf32>
    %429 = arith.addf %423, %428 : vector<4x8x128xf32>
    %c0_216 = arith.constant 0 : index
    %c0_217 = arith.constant 0 : index
    %c29 = arith.constant 29 : index
    %430 = vector.load %arg0[%c0_216, %c0_217, %c29] : memref<4x8x36xf32, #tpu.memory_space<vmem>>, vector<4x8x1xf32>
    %431 = vector.shape_cast %17 : vector<1x128xf32> to vector<1x1x128xf32>
    %432 = vector.broadcast %430 : vector<4x8x1xf32> to vector<4x8x128xf32>
    %433 = vector.broadcast %431 : vector<1x1x128xf32> to vector<4x8x128xf32>
    %434 = arith.mulf %432, %433 : vector<4x8x128xf32>
    %435 = arith.addf %429, %434 : vector<4x8x128xf32>
    %c0_218 = arith.constant 0 : index
    %c0_219 = arith.constant 0 : index
    %c32_220 = arith.constant 32 : index
    %436 = vector.load %arg0[%c0_218, %c0_219, %c32_220] : memref<4x8x36xf32, #tpu.memory_space<vmem>>, vector<4x8x1xf32>
    %437 = vector.shape_cast %18 : vector<1x128xf32> to vector<1x1x128xf32>
    %438 = vector.broadcast %436 : vector<4x8x1xf32> to vector<4x8x128xf32>
    %439 = vector.broadcast %437 : vector<1x1x128xf32> to vector<4x8x128xf32>
    %440 = arith.mulf %438, %439 : vector<4x8x128xf32>
    %441 = arith.addf %435, %440 : vector<4x8x128xf32>
    %c0_221 = arith.constant 0 : index
    %c0_222 = arith.constant 0 : index
    %c33_223 = arith.constant 33 : index
    %442 = vector.load %arg0[%c0_221, %c0_222, %c33_223] : memref<4x8x36xf32, #tpu.memory_space<vmem>>, vector<4x8x1xf32>
    %443 = vector.shape_cast %19 : vector<1x128xf32> to vector<1x1x128xf32>
    %444 = vector.broadcast %442 : vector<4x8x1xf32> to vector<4x8x128xf32>
    %445 = vector.broadcast %443 : vector<1x1x128xf32> to vector<4x8x128xf32>
    %446 = arith.mulf %444, %445 : vector<4x8x128xf32>
    %447 = arith.addf %441, %446 : vector<4x8x128xf32>
    %c0_224 = arith.constant 0 : index
    %c0_225 = arith.constant 0 : index
    %c34 = arith.constant 34 : index
    %448 = vector.load %arg0[%c0_224, %c0_225, %c34] : memref<4x8x36xf32, #tpu.memory_space<vmem>>, vector<4x8x1xf32>
    %449 = vector.shape_cast %20 : vector<1x128xf32> to vector<1x1x128xf32>
    %450 = vector.broadcast %448 : vector<4x8x1xf32> to vector<4x8x128xf32>
    %451 = vector.broadcast %449 : vector<1x1x128xf32> to vector<4x8x128xf32>
    %452 = arith.mulf %450, %451 : vector<4x8x128xf32>
    %453 = arith.addf %447, %452 : vector<4x8x128xf32>
    %c0_226 = arith.constant 0 : index
    %c0_227 = arith.constant 0 : index
    %c35 = arith.constant 35 : index
    %454 = vector.load %arg0[%c0_226, %c0_227, %c35] : memref<4x8x36xf32, #tpu.memory_space<vmem>>, vector<4x8x1xf32>
    %455 = vector.shape_cast %21 : vector<1x128xf32> to vector<1x1x128xf32>
    %456 = vector.broadcast %454 : vector<4x8x1xf32> to vector<4x8x128xf32>
    %457 = vector.broadcast %455 : vector<1x1x128xf32> to vector<4x8x128xf32>
    %458 = arith.mulf %456, %457 : vector<4x8x128xf32>
    %459 = arith.addf %453, %458 : vector<4x8x128xf32>
    %460 = vector.extract_strided_slice %459 {offsets = [0, 0, 0], sizes = [4, 8, 32], strides = [1, 1, 1]} : vector<4x8x128xf32> to vector<4x8x32xf32>
    %461 = vector.extract_strided_slice %459 {offsets = [0, 0, 32], sizes = [4, 8, 32], strides = [1, 1, 1]} : vector<4x8x128xf32> to vector<4x8x32xf32>
    %462 = arith.maximumf %460, %461 : vector<4x8x32xf32>
    %463 = vector.extract_strided_slice %459 {offsets = [0, 0, 64], sizes = [4, 8, 32], strides = [1, 1, 1]} : vector<4x8x128xf32> to vector<4x8x32xf32>
    %464 = vector.extract_strided_slice %459 {offsets = [0, 0, 96], sizes = [4, 8, 32], strides = [1, 1, 1]} : vector<4x8x128xf32> to vector<4x8x32xf32>
    %465 = arith.maximumf %463, %464 : vector<4x8x32xf32>
    %466 = arith.maximumf %462, %465 : vector<4x8x32xf32>
    %467 = vector.shape_cast %22 : vector<1x32xf32> to vector<1x1x32xf32>
    %468 = vector.broadcast %467 : vector<1x1x32xf32> to vector<4x8x32xf32>
    %469 = arith.addf %466, %468 : vector<4x8x32xf32>
    %cst_228 = arith.constant 0.000000e+00 : f32
    %470 = vector.broadcast %cst_228 : f32 to vector<4x8x32xf32>
    %471 = arith.maximumf %469, %470 : vector<4x8x32xf32>
    %472 = vector.extract_strided_slice %471 {offsets = [0, 0, 0], sizes = [4, 6, 32], strides = [1, 1, 1]} : vector<4x8x32xf32> to vector<4x6x32xf32>
    %c0_229 = arith.constant 0 : index
    %c0_230 = arith.constant 0 : index
    %c1_231 = arith.constant 1 : index
    %c2_232 = arith.constant 2 : index
    %c0_233 = arith.constant 0 : index
    %473 = vector.load %arg12[%c0_229, %c0_230, %c1_231, %c2_232, %c0_233] : memref<2x4x5x8x32xf32, #tpu.memory_space<vmem>>, vector<1x1x4x6x32xf32>
    %474 = vector.shape_cast %473 : vector<1x1x4x6x32xf32> to vector<4x6x32xf32>
    %475 = vector.shape_cast %472 : vector<4x6x32xf32> to vector<1x1x4x6x32xf32>
    tpu.vector_store %arg12[%c0_229, %c0_230, %c1_231, %c2_232, %c0_233], %475 {strides = array<i32>} : memref<2x4x5x8x32xf32, #tpu.memory_space<vmem>>, vector<1x1x4x6x32xf32>,
    %c0_234 = arith.constant 0 : index
    %c2_235 = arith.constant 2 : index
    %c1_236 = arith.constant 1 : index
    %c0_237 = arith.constant 0 : index
    %c0_238 = arith.constant 0 : index
    %476 = vector.load %arg12[%c0_234, %c2_235, %c1_236, %c0_237, %c0_238] : memref<2x4x5x8x32xf32, #tpu.memory_space<vmem>>, vector<1x1x4x8x32xf32>
    %477 = vector.shape_cast %476 : vector<1x1x4x8x32xf32> to vector<4x8x32xf32>
    %478 = vector.shape_cast %471 : vector<4x8x32xf32> to vector<1x1x4x8x32xf32>
    tpu.vector_store %arg12[%c0_234, %c2_235, %c1_236, %c0_237, %c0_238], %478 {strides = array<i32>} : memref<2x4x5x8x32xf32, #tpu.memory_space<vmem>>, vector<1x1x4x8x32xf32>,
    %c0_239 = arith.constant 0 : index
    %c0_240 = arith.constant 0 : index
    %c0_241 = arith.constant 0 : index
    %c0_242 = arith.constant 0 : index
    %c0_243 = arith.constant 0 : index
    %479 = vector.load %arg12[%c0_239, %c0_240, %c0_241, %c0_242, %c0_243] : memref<2x4x5x8x32xf32, #tpu.memory_space<vmem>>, vector<1x1x1x8x32xf32>
    %480 = vector.shape_cast %479 : vector<1x1x1x8x32xf32> to vector<8x32xf32>
    %c0_244 = arith.constant 0 : index
    %c1_245 = arith.constant 1 : index
    %c0_246 = arith.constant 0 : index
    %c0_247 = arith.constant 0 : index
    %c0_248 = arith.constant 0 : index
    %481 = vector.load %arg12[%c0_244, %c1_245, %c0_246, %c0_247, %c0_248] : memref<2x4x5x8x32xf32, #tpu.memory_space<vmem>>, vector<1x1x1x8x32xf32>
    %482 = vector.shape_cast %481 : vector<1x1x1x8x32xf32> to vector<8x32xf32>
    %c0_249 = arith.constant 0 : index
    %c2_250 = arith.constant 2 : index
    %c0_251 = arith.constant 0 : index
    %c0_252 = arith.constant 0 : index
    %c0_253 = arith.constant 0 : index
    %483 = vector.load %arg12[%c0_249, %c2_250, %c0_251, %c0_252, %c0_253] : memref<2x4x5x8x32xf32, #tpu.memory_space<vmem>>, vector<1x1x1x8x32xf32>
    %484 = vector.shape_cast %483 : vector<1x1x1x8x32xf32> to vector<8x32xf32>
    %c1_254 = arith.constant 1 : index
    %c0_255 = arith.constant 0 : index
    %c0_256 = arith.constant 0 : index
    %c0_257 = arith.constant 0 : index
    %c0_258 = arith.constant 0 : index
    %485 = vector.load %arg12[%c1_254, %c0_255, %c0_256, %c0_257, %c0_258] : memref<2x4x5x8x32xf32, #tpu.memory_space<vmem>>, vector<1x1x1x8x32xf32>
    %486 = vector.shape_cast %485 : vector<1x1x1x8x32xf32> to vector<8x32xf32>
    %c1_259 = arith.constant 1 : index
    %c1_260 = arith.constant 1 : index
    %c0_261 = arith.constant 0 : index
    %c0_262 = arith.constant 0 : index
    %c0_263 = arith.constant 0 : index
    %487 = vector.load %arg12[%c1_259, %c1_260, %c0_261, %c0_262, %c0_263] : memref<2x4x5x8x32xf32, #tpu.memory_space<vmem>>, vector<1x1x1x8x32xf32>
    %488 = vector.shape_cast %487 : vector<1x1x1x8x32xf32> to vector<8x32xf32>
    %c1_264 = arith.constant 1 : index
    %c2_265 = arith.constant 2 : index
    %c0_266 = arith.constant 0 : index
    %c0_267 = arith.constant 0 : index
    %c0_268 = arith.constant 0 : index
    %489 = vector.load %arg12[%c1_264, %c2_265, %c0_266, %c0_267, %c0_268] : memref<2x4x5x8x32xf32, #tpu.memory_space<vmem>>, vector<1x1x1x8x32xf32>
    %490 = vector.shape_cast %489 : vector<1x1x1x8x32xf32> to vector<8x32xf32>
    %c0_269 = arith.constant 0 : index
    %c0_270 = arith.constant 0 : index
    %c1_271 = arith.constant 1 : index
    %c0_272 = arith.constant 0 : index
    %c0_273 = arith.constant 0 : index
    %491 = vector.load %arg12[%c0_269, %c0_270, %c1_271, %c0_272, %c0_273] : memref<2x4x5x8x32xf32, #tpu.memory_space<vmem>>, vector<1x1x1x8x32xf32>
    %492 = vector.shape_cast %491 : vector<1x1x1x8x32xf32> to vector<8x32xf32>
    %c0_274 = arith.constant 0 : index
    %c1_275 = arith.constant 1 : index
    %c1_276 = arith.constant 1 : index
    %c0_277 = arith.constant 0 : index
    %c0_278 = arith.constant 0 : index
    %493 = vector.load %arg12[%c0_274, %c1_275, %c1_276, %c0_277, %c0_278] : memref<2x4x5x8x32xf32, #tpu.memory_space<vmem>>, vector<1x1x1x8x32xf32>
    %494 = vector.shape_cast %493 : vector<1x1x1x8x32xf32> to vector<8x32xf32>
    %c0_279 = arith.constant 0 : index
    %c2_280 = arith.constant 2 : index
    %c1_281 = arith.constant 1 : index
    %c0_282 = arith.constant 0 : index
    %c0_283 = arith.constant 0 : index
    %495 = vector.load %arg12[%c0_279, %c2_280, %c1_281, %c0_282, %c0_283] : memref<2x4x5x8x32xf32, #tpu.memory_space<vmem>>, vector<1x1x1x8x32xf32>
    %496 = vector.shape_cast %495 : vector<1x1x1x8x32xf32> to vector<8x32xf32>
    %497 = tpu.concatenate %480, %482, %484, %486, %488, %490, %492, %494, %496 in 1 : vector<8x32xf32>, vector<8x32xf32>, vector<8x32xf32>, vector<8x32xf32>, vector<8x32xf32>, vector<8x32xf32>, vector<8x32xf32>, vector<8x32xf32>, vector<8x32xf32> -> vector<8x288xf32>
    %c0_284 = arith.constant 0 : index
    %c0_285 = arith.constant 0 : index
    %498 = vector.load %arg13[%c0_284, %c0_285] : memref<128x288xf32, #tpu.memory_space<vmem>>, vector<8x288xf32>
    tpu.vector_store %arg13[%c0_284, %c0_285], %497 {strides = array<i32>} : memref<128x288xf32, #tpu.memory_space<vmem>>, vector<8x288xf32>,
    %c0_286 = arith.constant 0 : index
    %c0_287 = arith.constant 0 : index
    %c1_288 = arith.constant 1 : index
    %c0_289 = arith.constant 0 : index
    %c0_290 = arith.constant 0 : index
    %499 = vector.load %arg12[%c0_286, %c0_287, %c1_288, %c0_289, %c0_290] : memref<2x4x5x8x32xf32, #tpu.memory_space<vmem>>, vector<1x1x1x8x32xf32>
    %500 = vector.shape_cast %499 : vector<1x1x1x8x32xf32> to vector<8x32xf32>
    %c0_291 = arith.constant 0 : index
    %c1_292 = arith.constant 1 : index
    %c1_293 = arith.constant 1 : index
    %c0_294 = arith.constant 0 : index
    %c0_295 = arith.constant 0 : index
    %501 = vector.load %arg12[%c0_291, %c1_292, %c1_293, %c0_294, %c0_295] : memref<2x4x5x8x32xf32, #tpu.memory_space<vmem>>, vector<1x1x1x8x32xf32>
    %502 = vector.shape_cast %501 : vector<1x1x1x8x32xf32> to vector<8x32xf32>
    %c0_296 = arith.constant 0 : index
    %c2_297 = arith.constant 2 : index
    %c1_298 = arith.constant 1 : index
    %c0_299 = arith.constant 0 : index
    %c0_300 = arith.constant 0 : index
    %503 = vector.load %arg12[%c0_296, %c2_297, %c1_298, %c0_299, %c0_300] : memref<2x4x5x8x32xf32, #tpu.memory_space<vmem>>, vector<1x1x1x8x32xf32>
    %504 = vector.shape_cast %503 : vector<1x1x1x8x32xf32> to vector<8x32xf32>
    %c1_301 = arith.constant 1 : index
    %c0_302 = arith.constant 0 : index
    %c1_303 = arith.constant 1 : index
    %c0_304 = arith.constant 0 : index
    %c0_305 = arith.constant 0 : index
    %505 = vector.load %arg12[%c1_301, %c0_302, %c1_303, %c0_304, %c0_305] : memref<2x4x5x8x32xf32, #tpu.memory_space<vmem>>, vector<1x1x1x8x32xf32>
    %506 = vector.shape_cast %505 : vector<1x1x1x8x32xf32> to vector<8x32xf32>
    %c1_306 = arith.constant 1 : index
    %c1_307 = arith.constant 1 : index
    %c1_308 = arith.constant 1 : index
    %c0_309 = arith.constant 0 : index
    %c0_310 = arith.constant 0 : index
    %507 = vector.load %arg12[%c1_306, %c1_307, %c1_308, %c0_309, %c0_310] : memref<2x4x5x8x32xf32, #tpu.memory_space<vmem>>, vector<1x1x1x8x32xf32>
    %508 = vector.shape_cast %507 : vector<1x1x1x8x32xf32> to vector<8x32xf32>
    %c1_311 = arith.constant 1 : index
    %c2_312 = arith.constant 2 : index
    %c1_313 = arith.constant 1 : index
    %c0_314 = arith.constant 0 : index
    %c0_315 = arith.constant 0 : index
    %509 = vector.load %arg12[%c1_311, %c2_312, %c1_313, %c0_314, %c0_315] : memref<2x4x5x8x32xf32, #tpu.memory_space<vmem>>, vector<1x1x1x8x32xf32>
    %510 = vector.shape_cast %509 : vector<1x1x1x8x32xf32> to vector<8x32xf32>
    %c0_316 = arith.constant 0 : index
    %c0_317 = arith.constant 0 : index
    %c2_318 = arith.constant 2 : index
    %c0_319 = arith.constant 0 : index
    %c0_320 = arith.constant 0 : index
    %511 = vector.load %arg12[%c0_316, %c0_317, %c2_318, %c0_319, %c0_320] : memref<2x4x5x8x32xf32, #tpu.memory_space<vmem>>, vector<1x1x1x8x32xf32>
    %512 = vector.shape_cast %511 : vector<1x1x1x8x32xf32> to vector<8x32xf32>
    %c0_321 = arith.constant 0 : index
    %c1_322 = arith.constant 1 : index
    %c2_323 = arith.constant 2 : index
    %c0_324 = arith.constant 0 : index
    %c0_325 = arith.constant 0 : index
    %513 = vector.load %arg12[%c0_321, %c1_322, %c2_323, %c0_324, %c0_325] : memref<2x4x5x8x32xf32, #tpu.memory_space<vmem>>, vector<1x1x1x8x32xf32>
    %514 = vector.shape_cast %513 : vector<1x1x1x8x32xf32> to vector<8x32xf32>
    %c0_326 = arith.constant 0 : index
    %c2_327 = arith.constant 2 : index
    %c2_328 = arith.constant 2 : index
    %c0_329 = arith.constant 0 : index
    %c0_330 = arith.constant 0 : index
    %515 = vector.load %arg12[%c0_326, %c2_327, %c2_328, %c0_329, %c0_330] : memref<2x4x5x8x32xf32, #tpu.memory_space<vmem>>, vector<1x1x1x8x32xf32>
    %516 = vector.shape_cast %515 : vector<1x1x1x8x32xf32> to vector<8x32xf32>
    %517 = tpu.concatenate %500, %502, %504, %506, %508, %510, %512, %514, %516 in 1 : vector<8x32xf32>, vector<8x32xf32>, vector<8x32xf32>, vector<8x32xf32>, vector<8x32xf32>, vector<8x32xf32>, vector<8x32xf32>, vector<8x32xf32>, vector<8x32xf32> -> vector<8x288xf32>
    %c8_331 = arith.constant 8 : index
    %c0_332 = arith.constant 0 : index
    %518 = vector.load %arg13[%c8_331, %c0_332] : memref<128x288xf32, #tpu.memory_space<vmem>>, vector<8x288xf32>
    tpu.vector_store %arg13[%c8_331, %c0_332], %517 {strides = array<i32>} : memref<128x288xf32, #tpu.memory_space<vmem>>, vector<8x288xf32>,
    %c0_333 = arith.constant 0 : index
    %c0_334 = arith.constant 0 : index
    %c2_335 = arith.constant 2 : index
    %c0_336 = arith.constant 0 : index
    %c0_337 = arith.constant 0 : index
    %519 = vector.load %arg12[%c0_333, %c0_334, %c2_335, %c0_336, %c0_337] : memref<2x4x5x8x32xf32, #tpu.memory_space<vmem>>, vector<1x1x1x8x32xf32>
    %520 = vector.shape_cast %519 : vector<1x1x1x8x32xf32> to vector<8x32xf32>
    %c0_338 = arith.constant 0 : index
    %c1_339 = arith.constant 1 : index
    %c2_340 = arith.constant 2 : index
    %c0_341 = arith.constant 0 : index
    %c0_342 = arith.constant 0 : index
    %521 = vector.load %arg12[%c0_338, %c1_339, %c2_340, %c0_341, %c0_342] : memref<2x4x5x8x32xf32, #tpu.memory_space<vmem>>, vector<1x1x1x8x32xf32>
    %522 = vector.shape_cast %521 : vector<1x1x1x8x32xf32> to vector<8x32xf32>
    %c0_343 = arith.constant 0 : index
    %c2_344 = arith.constant 2 : index
    %c2_345 = arith.constant 2 : index
    %c0_346 = arith.constant 0 : index
    %c0_347 = arith.constant 0 : index
    %523 = vector.load %arg12[%c0_343, %c2_344, %c2_345, %c0_346, %c0_347] : memref<2x4x5x8x32xf32, #tpu.memory_space<vmem>>, vector<1x1x1x8x32xf32>
    %524 = vector.shape_cast %523 : vector<1x1x1x8x32xf32> to vector<8x32xf32>
    %c1_348 = arith.constant 1 : index
    %c0_349 = arith.constant 0 : index
    %c2_350 = arith.constant 2 : index
    %c0_351 = arith.constant 0 : index
    %c0_352 = arith.constant 0 : index
    %525 = vector.load %arg12[%c1_348, %c0_349, %c2_350, %c0_351, %c0_352] : memref<2x4x5x8x32xf32, #tpu.memory_space<vmem>>, vector<1x1x1x8x32xf32>
    %526 = vector.shape_cast %525 : vector<1x1x1x8x32xf32> to vector<8x32xf32>
    %c1_353 = arith.constant 1 : index
    %c1_354 = arith.constant 1 : index
    %c2_355 = arith.constant 2 : index
    %c0_356 = arith.constant 0 : index
    %c0_357 = arith.constant 0 : index
    %527 = vector.load %arg12[%c1_353, %c1_354, %c2_355, %c0_356, %c0_357] : memref<2x4x5x8x32xf32, #tpu.memory_space<vmem>>, vector<1x1x1x8x32xf32>
    %528 = vector.shape_cast %527 : vector<1x1x1x8x32xf32> to vector<8x32xf32>
    %c1_358 = arith.constant 1 : index
    %c2_359 = arith.constant 2 : index
    %c2_360 = arith.constant 2 : index
    %c0_361 = arith.constant 0 : index
    %c0_362 = arith.constant 0 : index
    %529 = vector.load %arg12[%c1_358, %c2_359, %c2_360, %c0_361, %c0_362] : memref<2x4x5x8x32xf32, #tpu.memory_space<vmem>>, vector<1x1x1x8x32xf32>
    %530 = vector.shape_cast %529 : vector<1x1x1x8x32xf32> to vector<8x32xf32>
    %c0_363 = arith.constant 0 : index
    %c0_364 = arith.constant 0 : index
    %c3_365 = arith.constant 3 : index
    %c0_366 = arith.constant 0 : index
    %c0_367 = arith.constant 0 : index
    %531 = vector.load %arg12[%c0_363, %c0_364, %c3_365, %c0_366, %c0_367] : memref<2x4x5x8x32xf32, #tpu.memory_space<vmem>>, vector<1x1x1x8x32xf32>
    %532 = vector.shape_cast %531 : vector<1x1x1x8x32xf32> to vector<8x32xf32>
    %c0_368 = arith.constant 0 : index
    %c1_369 = arith.constant 1 : index
    %c3_370 = arith.constant 3 : index
    %c0_371 = arith.constant 0 : index
    %c0_372 = arith.constant 0 : index
    %533 = vector.load %arg12[%c0_368, %c1_369, %c3_370, %c0_371, %c0_372] : memref<2x4x5x8x32xf32, #tpu.memory_space<vmem>>, vector<1x1x1x8x32xf32>
    %534 = vector.shape_cast %533 : vector<1x1x1x8x32xf32> to vector<8x32xf32>
    %c0_373 = arith.constant 0 : index
    %c2_374 = arith.constant 2 : index
    %c3_375 = arith.constant 3 : index
    %c0_376 = arith.constant 0 : index
    %c0_377 = arith.constant 0 : index
    %535 = vector.load %arg12[%c0_373, %c2_374, %c3_375, %c0_376, %c0_377] : memref<2x4x5x8x32xf32, #tpu.memory_space<vmem>>, vector<1x1x1x8x32xf32>
    %536 = vector.shape_cast %535 : vector<1x1x1x8x32xf32> to vector<8x32xf32>
    %537 = tpu.concatenate %520, %522, %524, %526, %528, %530, %532, %534, %536 in 1 : vector<8x32xf32>, vector<8x32xf32>, vector<8x32xf32>, vector<8x32xf32>, vector<8x32xf32>, vector<8x32xf32>, vector<8x32xf32>, vector<8x32xf32>, vector<8x32xf32> -> vector<8x288xf32>
    %c16_378 = arith.constant 16 : index
    %c0_379 = arith.constant 0 : index
    %538 = vector.load %arg13[%c16_378, %c0_379] : memref<128x288xf32, #tpu.memory_space<vmem>>, vector<8x288xf32>
    tpu.vector_store %arg13[%c16_378, %c0_379], %537 {strides = array<i32>} : memref<128x288xf32, #tpu.memory_space<vmem>>, vector<8x288xf32>,
    %c0_380 = arith.constant 0 : index
    %c0_381 = arith.constant 0 : index
    %c3_382 = arith.constant 3 : index
    %c0_383 = arith.constant 0 : index
    %c0_384 = arith.constant 0 : index
    %539 = vector.load %arg12[%c0_380, %c0_381, %c3_382, %c0_383, %c0_384] : memref<2x4x5x8x32xf32, #tpu.memory_space<vmem>>, vector<1x1x1x8x32xf32>
    %540 = vector.shape_cast %539 : vector<1x1x1x8x32xf32> to vector<8x32xf32>
    %c0_385 = arith.constant 0 : index
    %c1_386 = arith.constant 1 : index
    %c3_387 = arith.constant 3 : index
    %c0_388 = arith.constant 0 : index
    %c0_389 = arith.constant 0 : index
    %541 = vector.load %arg12[%c0_385, %c1_386, %c3_387, %c0_388, %c0_389] : memref<2x4x5x8x32xf32, #tpu.memory_space<vmem>>, vector<1x1x1x8x32xf32>
    %542 = vector.shape_cast %541 : vector<1x1x1x8x32xf32> to vector<8x32xf32>
    %c0_390 = arith.constant 0 : index
    %c2_391 = arith.constant 2 : index
    %c3_392 = arith.constant 3 : index
    %c0_393 = arith.constant 0 : index
    %c0_394 = arith.constant 0 : index
    %543 = vector.load %arg12[%c0_390, %c2_391, %c3_392, %c0_393, %c0_394] : memref<2x4x5x8x32xf32, #tpu.memory_space<vmem>>, vector<1x1x1x8x32xf32>
    %544 = vector.shape_cast %543 : vector<1x1x1x8x32xf32> to vector<8x32xf32>
    %c1_395 = arith.constant 1 : index
    %c0_396 = arith.constant 0 : index
    %c3_397 = arith.constant 3 : index
    %c0_398 = arith.constant 0 : index
    %c0_399 = arith.constant 0 : index
    %545 = vector.load %arg12[%c1_395, %c0_396, %c3_397, %c0_398, %c0_399] : memref<2x4x5x8x32xf32, #tpu.memory_space<vmem>>, vector<1x1x1x8x32xf32>
    %546 = vector.shape_cast %545 : vector<1x1x1x8x32xf32> to vector<8x32xf32>
    %c1_400 = arith.constant 1 : index
    %c1_401 = arith.constant 1 : index
    %c3_402 = arith.constant 3 : index
    %c0_403 = arith.constant 0 : index
    %c0_404 = arith.constant 0 : index
    %547 = vector.load %arg12[%c1_400, %c1_401, %c3_402, %c0_403, %c0_404] : memref<2x4x5x8x32xf32, #tpu.memory_space<vmem>>, vector<1x1x1x8x32xf32>
    %548 = vector.shape_cast %547 : vector<1x1x1x8x32xf32> to vector<8x32xf32>
    %c1_405 = arith.constant 1 : index
    %c2_406 = arith.constant 2 : index
    %c3_407 = arith.constant 3 : index
    %c0_408 = arith.constant 0 : index
    %c0_409 = arith.constant 0 : index
    %549 = vector.load %arg12[%c1_405, %c2_406, %c3_407, %c0_408, %c0_409] : memref<2x4x5x8x32xf32, #tpu.memory_space<vmem>>, vector<1x1x1x8x32xf32>
    %550 = vector.shape_cast %549 : vector<1x1x1x8x32xf32> to vector<8x32xf32>
    %c0_410 = arith.constant 0 : index
    %c0_411 = arith.constant 0 : index
    %c4_412 = arith.constant 4 : index
    %c0_413 = arith.constant 0 : index
    %c0_414 = arith.constant 0 : index
    %551 = vector.load %arg12[%c0_410, %c0_411, %c4_412, %c0_413, %c0_414] : memref<2x4x5x8x32xf32, #tpu.memory_space<vmem>>, vector<1x1x1x8x32xf32>
    %552 = vector.shape_cast %551 : vector<1x1x1x8x32xf32> to vector<8x32xf32>
    %c0_415 = arith.constant 0 : index
    %c1_416 = arith.constant 1 : index
    %c4_417 = arith.constant 4 : index
    %c0_418 = arith.constant 0 : index
    %c0_419 = arith.constant 0 : index
    %553 = vector.load %arg12[%c0_415, %c1_416, %c4_417, %c0_418, %c0_419] : memref<2x4x5x8x32xf32, #tpu.memory_space<vmem>>, vector<1x1x1x8x32xf32>
    %554 = vector.shape_cast %553 : vector<1x1x1x8x32xf32> to vector<8x32xf32>
    %c0_420 = arith.constant 0 : index
    %c2_421 = arith.constant 2 : index
    %c4_422 = arith.constant 4 : index
    %c0_423 = arith.constant 0 : index
    %c0_424 = arith.constant 0 : index
    %555 = vector.load %arg12[%c0_420, %c2_421, %c4_422, %c0_423, %c0_424] : memref<2x4x5x8x32xf32, #tpu.memory_space<vmem>>, vector<1x1x1x8x32xf32>
    %556 = vector.shape_cast %555 : vector<1x1x1x8x32xf32> to vector<8x32xf32>
    %557 = tpu.concatenate %540, %542, %544, %546, %548, %550, %552, %554, %556 in 1 : vector<8x32xf32>, vector<8x32xf32>, vector<8x32xf32>, vector<8x32xf32>, vector<8x32xf32>, vector<8x32xf32>, vector<8x32xf32>, vector<8x32xf32>, vector<8x32xf32> -> vector<8x288xf32>
    %c24_425 = arith.constant 24 : index
    %c0_426 = arith.constant 0 : index
    %558 = vector.load %arg13[%c24_425, %c0_426] : memref<128x288xf32, #tpu.memory_space<vmem>>, vector<8x288xf32>
    tpu.vector_store %arg13[%c24_425, %c0_426], %557 {strides = array<i32>} : memref<128x288xf32, #tpu.memory_space<vmem>>, vector<8x288xf32>,
    %c0_427 = arith.constant 0 : index
    %c1_428 = arith.constant 1 : index
    %c0_429 = arith.constant 0 : index
    %c0_430 = arith.constant 0 : index
    %c0_431 = arith.constant 0 : index
    %559 = vector.load %arg12[%c0_427, %c1_428, %c0_429, %c0_430, %c0_431] : memref<2x4x5x8x32xf32, #tpu.memory_space<vmem>>, vector<1x1x1x8x32xf32>
    %560 = vector.shape_cast %559 : vector<1x1x1x8x32xf32> to vector<8x32xf32>
    %c0_432 = arith.constant 0 : index
    %c2_433 = arith.constant 2 : index
    %c0_434 = arith.constant 0 : index
    %c0_435 = arith.constant 0 : index
    %c0_436 = arith.constant 0 : index
    %561 = vector.load %arg12[%c0_432, %c2_433, %c0_434, %c0_435, %c0_436] : memref<2x4x5x8x32xf32, #tpu.memory_space<vmem>>, vector<1x1x1x8x32xf32>
    %562 = vector.shape_cast %561 : vector<1x1x1x8x32xf32> to vector<8x32xf32>
    %c0_437 = arith.constant 0 : index
    %c3_438 = arith.constant 3 : index
    %c0_439 = arith.constant 0 : index
    %c0_440 = arith.constant 0 : index
    %c0_441 = arith.constant 0 : index
    %563 = vector.load %arg12[%c0_437, %c3_438, %c0_439, %c0_440, %c0_441] : memref<2x4x5x8x32xf32, #tpu.memory_space<vmem>>, vector<1x1x1x8x32xf32>
    %564 = vector.shape_cast %563 : vector<1x1x1x8x32xf32> to vector<8x32xf32>
    %c1_442 = arith.constant 1 : index
    %c1_443 = arith.constant 1 : index
    %c0_444 = arith.constant 0 : index
    %c0_445 = arith.constant 0 : index
    %c0_446 = arith.constant 0 : index
    %565 = vector.load %arg12[%c1_442, %c1_443, %c0_444, %c0_445, %c0_446] : memref<2x4x5x8x32xf32, #tpu.memory_space<vmem>>, vector<1x1x1x8x32xf32>
    %566 = vector.shape_cast %565 : vector<1x1x1x8x32xf32> to vector<8x32xf32>
    %c1_447 = arith.constant 1 : index
    %c2_448 = arith.constant 2 : index
    %c0_449 = arith.constant 0 : index
    %c0_450 = arith.constant 0 : index
    %c0_451 = arith.constant 0 : index
    %567 = vector.load %arg12[%c1_447, %c2_448, %c0_449, %c0_450, %c0_451] : memref<2x4x5x8x32xf32, #tpu.memory_space<vmem>>, vector<1x1x1x8x32xf32>
    %568 = vector.shape_cast %567 : vector<1x1x1x8x32xf32> to vector<8x32xf32>
    %c1_452 = arith.constant 1 : index
    %c3_453 = arith.constant 3 : index
    %c0_454 = arith.constant 0 : index
    %c0_455 = arith.constant 0 : index
    %c0_456 = arith.constant 0 : index
    %569 = vector.load %arg12[%c1_452, %c3_453, %c0_454, %c0_455, %c0_456] : memref<2x4x5x8x32xf32, #tpu.memory_space<vmem>>, vector<1x1x1x8x32xf32>
    %570 = vector.shape_cast %569 : vector<1x1x1x8x32xf32> to vector<8x32xf32>
    %c0_457 = arith.constant 0 : index
    %c1_458 = arith.constant 1 : index
    %c1_459 = arith.constant 1 : index
    %c0_460 = arith.constant 0 : index
    %c0_461 = arith.constant 0 : index
    %571 = vector.load %arg12[%c0_457, %c1_458, %c1_459, %c0_460, %c0_461] : memref<2x4x5x8x32xf32, #tpu.memory_space<vmem>>, vector<1x1x1x8x32xf32>
    %572 = vector.shape_cast %571 : vector<1x1x1x8x32xf32> to vector<8x32xf32>
    %c0_462 = arith.constant 0 : index
    %c2_463 = arith.constant 2 : index
    %c1_464 = arith.constant 1 : index
    %c0_465 = arith.constant 0 : index
    %c0_466 = arith.constant 0 : index
    %573 = vector.load %arg12[%c0_462, %c2_463, %c1_464, %c0_465, %c0_466] : memref<2x4x5x8x32xf32, #tpu.memory_space<vmem>>, vector<1x1x1x8x32xf32>
    %574 = vector.shape_cast %573 : vector<1x1x1x8x32xf32> to vector<8x32xf32>
    %c0_467 = arith.constant 0 : index
    %c3_468 = arith.constant 3 : index
    %c1_469 = arith.constant 1 : index
    %c0_470 = arith.constant 0 : index
    %c0_471 = arith.constant 0 : index
    %575 = vector.load %arg12[%c0_467, %c3_468, %c1_469, %c0_470, %c0_471] : memref<2x4x5x8x32xf32, #tpu.memory_space<vmem>>, vector<1x1x1x8x32xf32>
    %576 = vector.shape_cast %575 : vector<1x1x1x8x32xf32> to vector<8x32xf32>
    %577 = tpu.concatenate %560, %562, %564, %566, %568, %570, %572, %574, %576 in 1 : vector<8x32xf32>, vector<8x32xf32>, vector<8x32xf32>, vector<8x32xf32>, vector<8x32xf32>, vector<8x32xf32>, vector<8x32xf32>, vector<8x32xf32>, vector<8x32xf32> -> vector<8x288xf32>
    %c32_472 = arith.constant 32 : index
    %c0_473 = arith.constant 0 : index
    %578 = vector.load %arg13[%c32_472, %c0_473] : memref<128x288xf32, #tpu.memory_space<vmem>>, vector<8x288xf32>
    tpu.vector_store %arg13[%c32_472, %c0_473], %577 {strides = array<i32>} : memref<128x288xf32, #tpu.memory_space<vmem>>, vector<8x288xf32>,
    %c0_474 = arith.constant 0 : index
    %c1_475 = arith.constant 1 : index
    %c1_476 = arith.constant 1 : index
    %c0_477 = arith.constant 0 : index
    %c0_478 = arith.constant 0 : index
    %579 = vector.load %arg12[%c0_474, %c1_475, %c1_476, %c0_477, %c0_478] : memref<2x4x5x8x32xf32, #tpu.memory_space<vmem>>, vector<1x1x1x8x32xf32>
    %580 = vector.shape_cast %579 : vector<1x1x1x8x32xf32> to vector<8x32xf32>
    %c0_479 = arith.constant 0 : index
    %c2_480 = arith.constant 2 : index
    %c1_481 = arith.constant 1 : index
    %c0_482 = arith.constant 0 : index
    %c0_483 = arith.constant 0 : index
    %581 = vector.load %arg12[%c0_479, %c2_480, %c1_481, %c0_482, %c0_483] : memref<2x4x5x8x32xf32, #tpu.memory_space<vmem>>, vector<1x1x1x8x32xf32>
    %582 = vector.shape_cast %581 : vector<1x1x1x8x32xf32> to vector<8x32xf32>
    %c0_484 = arith.constant 0 : index
    %c3_485 = arith.constant 3 : index
    %c1_486 = arith.constant 1 : index
    %c0_487 = arith.constant 0 : index
    %c0_488 = arith.constant 0 : index
    %583 = vector.load %arg12[%c0_484, %c3_485, %c1_486, %c0_487, %c0_488] : memref<2x4x5x8x32xf32, #tpu.memory_space<vmem>>, vector<1x1x1x8x32xf32>
    %584 = vector.shape_cast %583 : vector<1x1x1x8x32xf32> to vector<8x32xf32>
    %c1_489 = arith.constant 1 : index
    %c1_490 = arith.constant 1 : index
    %c1_491 = arith.constant 1 : index
    %c0_492 = arith.constant 0 : index
    %c0_493 = arith.constant 0 : index
    %585 = vector.load %arg12[%c1_489, %c1_490, %c1_491, %c0_492, %c0_493] : memref<2x4x5x8x32xf32, #tpu.memory_space<vmem>>, vector<1x1x1x8x32xf32>
    %586 = vector.shape_cast %585 : vector<1x1x1x8x32xf32> to vector<8x32xf32>
    %c1_494 = arith.constant 1 : index
    %c2_495 = arith.constant 2 : index
    %c1_496 = arith.constant 1 : index
    %c0_497 = arith.constant 0 : index
    %c0_498 = arith.constant 0 : index
    %587 = vector.load %arg12[%c1_494, %c2_495, %c1_496, %c0_497, %c0_498] : memref<2x4x5x8x32xf32, #tpu.memory_space<vmem>>, vector<1x1x1x8x32xf32>
    %588 = vector.shape_cast %587 : vector<1x1x1x8x32xf32> to vector<8x32xf32>
    %c1_499 = arith.constant 1 : index
    %c3_500 = arith.constant 3 : index
    %c1_501 = arith.constant 1 : index
    %c0_502 = arith.constant 0 : index
    %c0_503 = arith.constant 0 : index
    %589 = vector.load %arg12[%c1_499, %c3_500, %c1_501, %c0_502, %c0_503] : memref<2x4x5x8x32xf32, #tpu.memory_space<vmem>>, vector<1x1x1x8x32xf32>
    %590 = vector.shape_cast %589 : vector<1x1x1x8x32xf32> to vector<8x32xf32>
    %c0_504 = arith.constant 0 : index
    %c1_505 = arith.constant 1 : index
    %c2_506 = arith.constant 2 : index
    %c0_507 = arith.constant 0 : index
    %c0_508 = arith.constant 0 : index
    %591 = vector.load %arg12[%c0_504, %c1_505, %c2_506, %c0_507, %c0_508] : memref<2x4x5x8x32xf32, #tpu.memory_space<vmem>>, vector<1x1x1x8x32xf32>
    %592 = vector.shape_cast %591 : vector<1x1x1x8x32xf32> to vector<8x32xf32>
    %c0_509 = arith.constant 0 : index
    %c2_510 = arith.constant 2 : index
    %c2_511 = arith.constant 2 : index
    %c0_512 = arith.constant 0 : index
    %c0_513 = arith.constant 0 : index
    %593 = vector.load %arg12[%c0_509, %c2_510, %c2_511, %c0_512, %c0_513] : memref<2x4x5x8x32xf32, #tpu.memory_space<vmem>>, vector<1x1x1x8x32xf32>
    %594 = vector.shape_cast %593 : vector<1x1x1x8x32xf32> to vector<8x32xf32>
    %c0_514 = arith.constant 0 : index
    %c3_515 = arith.constant 3 : index
    %c2_516 = arith.constant 2 : index
    %c0_517 = arith.constant 0 : index
    %c0_518 = arith.constant 0 : index
    %595 = vector.load %arg12[%c0_514, %c3_515, %c2_516, %c0_517, %c0_518] : memref<2x4x5x8x32xf32, #tpu.memory_space<vmem>>, vector<1x1x1x8x32xf32>
    %596 = vector.shape_cast %595 : vector<1x1x1x8x32xf32> to vector<8x32xf32>
    %597 = tpu.concatenate %580, %582, %584, %586, %588, %590, %592, %594, %596 in 1 : vector<8x32xf32>, vector<8x32xf32>, vector<8x32xf32>, vector<8x32xf32>, vector<8x32xf32>, vector<8x32xf32>, vector<8x32xf32>, vector<8x32xf32>, vector<8x32xf32> -> vector<8x288xf32>
    %c40 = arith.constant 40 : index
    %c0_519 = arith.constant 0 : index
    %598 = vector.load %arg13[%c40, %c0_519] : memref<128x288xf32, #tpu.memory_space<vmem>>, vector<8x288xf32>
    tpu.vector_store %arg13[%c40, %c0_519], %597 {strides = array<i32>} : memref<128x288xf32, #tpu.memory_space<vmem>>, vector<8x288xf32>,
    %c0_520 = arith.constant 0 : index
    %c1_521 = arith.constant 1 : index
    %c2_522 = arith.constant 2 : index
    %c0_523 = arith.constant 0 : index
    %c0_524 = arith.constant 0 : index
    %599 = vector.load %arg12[%c0_520, %c1_521, %c2_522, %c0_523, %c0_524] : memref<2x4x5x8x32xf32, #tpu.memory_space<vmem>>, vector<1x1x1x8x32xf32>
    %600 = vector.shape_cast %599 : vector<1x1x1x8x32xf32> to vector<8x32xf32>
    %c0_525 = arith.constant 0 : index
    %c2_526 = arith.constant 2 : index
    %c2_527 = arith.constant 2 : index
    %c0_528 = arith.constant 0 : index
    %c0_529 = arith.constant 0 : index
    %601 = vector.load %arg12[%c0_525, %c2_526, %c2_527, %c0_528, %c0_529] : memref<2x4x5x8x32xf32, #tpu.memory_space<vmem>>, vector<1x1x1x8x32xf32>
    %602 = vector.shape_cast %601 : vector<1x1x1x8x32xf32> to vector<8x32xf32>
    %c0_530 = arith.constant 0 : index
    %c3_531 = arith.constant 3 : index
    %c2_532 = arith.constant 2 : index
    %c0_533 = arith.constant 0 : index
    %c0_534 = arith.constant 0 : index
    %603 = vector.load %arg12[%c0_530, %c3_531, %c2_532, %c0_533, %c0_534] : memref<2x4x5x8x32xf32, #tpu.memory_space<vmem>>, vector<1x1x1x8x32xf32>
    %604 = vector.shape_cast %603 : vector<1x1x1x8x32xf32> to vector<8x32xf32>
    %c1_535 = arith.constant 1 : index
    %c1_536 = arith.constant 1 : index
    %c2_537 = arith.constant 2 : index
    %c0_538 = arith.constant 0 : index
    %c0_539 = arith.constant 0 : index
    %605 = vector.load %arg12[%c1_535, %c1_536, %c2_537, %c0_538, %c0_539] : memref<2x4x5x8x32xf32, #tpu.memory_space<vmem>>, vector<1x1x1x8x32xf32>
    %606 = vector.shape_cast %605 : vector<1x1x1x8x32xf32> to vector<8x32xf32>
    %c1_540 = arith.constant 1 : index
    %c2_541 = arith.constant 2 : index
    %c2_542 = arith.constant 2 : index
    %c0_543 = arith.constant 0 : index
    %c0_544 = arith.constant 0 : index
    %607 = vector.load %arg12[%c1_540, %c2_541, %c2_542, %c0_543, %c0_544] : memref<2x4x5x8x32xf32, #tpu.memory_space<vmem>>, vector<1x1x1x8x32xf32>
    %608 = vector.shape_cast %607 : vector<1x1x1x8x32xf32> to vector<8x32xf32>
    %c1_545 = arith.constant 1 : index
    %c3_546 = arith.constant 3 : index
    %c2_547 = arith.constant 2 : index
    %c0_548 = arith.constant 0 : index
    %c0_549 = arith.constant 0 : index
    %609 = vector.load %arg12[%c1_545, %c3_546, %c2_547, %c0_548, %c0_549] : memref<2x4x5x8x32xf32, #tpu.memory_space<vmem>>, vector<1x1x1x8x32xf32>
    %610 = vector.shape_cast %609 : vector<1x1x1x8x32xf32> to vector<8x32xf32>
    %c0_550 = arith.constant 0 : index
    %c1_551 = arith.constant 1 : index
    %c3_552 = arith.constant 3 : index
    %c0_553 = arith.constant 0 : index
    %c0_554 = arith.constant 0 : index
    %611 = vector.load %arg12[%c0_550, %c1_551, %c3_552, %c0_553, %c0_554] : memref<2x4x5x8x32xf32, #tpu.memory_space<vmem>>, vector<1x1x1x8x32xf32>
    %612 = vector.shape_cast %611 : vector<1x1x1x8x32xf32> to vector<8x32xf32>
    %c0_555 = arith.constant 0 : index
    %c2_556 = arith.constant 2 : index
    %c3_557 = arith.constant 3 : index
    %c0_558 = arith.constant 0 : index
    %c0_559 = arith.constant 0 : index
    %613 = vector.load %arg12[%c0_555, %c2_556, %c3_557, %c0_558, %c0_559] : memref<2x4x5x8x32xf32, #tpu.memory_space<vmem>>, vector<1x1x1x8x32xf32>
    %614 = vector.shape_cast %613 : vector<1x1x1x8x32xf32> to vector<8x32xf32>
    %c0_560 = arith.constant 0 : index
    %c3_561 = arith.constant 3 : index
    %c3_562 = arith.constant 3 : index
    %c0_563 = arith.constant 0 : index
    %c0_564 = arith.constant 0 : index
    %615 = vector.load %arg12[%c0_560, %c3_561, %c3_562, %c0_563, %c0_564] : memref<2x4x5x8x32xf32, #tpu.memory_space<vmem>>, vector<1x1x1x8x32xf32>
    %616 = vector.shape_cast %615 : vector<1x1x1x8x32xf32> to vector<8x32xf32>
    %617 = tpu.concatenate %600, %602, %604, %606, %608, %610, %612, %614, %616 in 1 : vector<8x32xf32>, vector<8x32xf32>, vector<8x32xf32>, vector<8x32xf32>, vector<8x32xf32>, vector<8x32xf32>, vector<8x32xf32>, vector<8x32xf32>, vector<8x32xf32> -> vector<8x288xf32>
    %c48 = arith.constant 48 : index
    %c0_565 = arith.constant 0 : index
    %618 = vector.load %arg13[%c48, %c0_565] : memref<128x288xf32, #tpu.memory_space<vmem>>, vector<8x288xf32>
    tpu.vector_store %arg13[%c48, %c0_565], %617 {strides = array<i32>} : memref<128x288xf32, #tpu.memory_space<vmem>>, vector<8x288xf32>,
    %c0_566 = arith.constant 0 : index
    %c1_567 = arith.constant 1 : index
    %c3_568 = arith.constant 3 : index
    %c0_569 = arith.constant 0 : index
    %c0_570 = arith.constant 0 : index
    %619 = vector.load %arg12[%c0_566, %c1_567, %c3_568, %c0_569, %c0_570] : memref<2x4x5x8x32xf32, #tpu.memory_space<vmem>>, vector<1x1x1x8x32xf32>
    %620 = vector.shape_cast %619 : vector<1x1x1x8x32xf32> to vector<8x32xf32>
    %c0_571 = arith.constant 0 : index
    %c2_572 = arith.constant 2 : index
    %c3_573 = arith.constant 3 : index
    %c0_574 = arith.constant 0 : index
    %c0_575 = arith.constant 0 : index
    %621 = vector.load %arg12[%c0_571, %c2_572, %c3_573, %c0_574, %c0_575] : memref<2x4x5x8x32xf32, #tpu.memory_space<vmem>>, vector<1x1x1x8x32xf32>
    %622 = vector.shape_cast %621 : vector<1x1x1x8x32xf32> to vector<8x32xf32>
    %c0_576 = arith.constant 0 : index
    %c3_577 = arith.constant 3 : index
    %c3_578 = arith.constant 3 : index
    %c0_579 = arith.constant 0 : index
    %c0_580 = arith.constant 0 : index
    %623 = vector.load %arg12[%c0_576, %c3_577, %c3_578, %c0_579, %c0_580] : memref<2x4x5x8x32xf32, #tpu.memory_space<vmem>>, vector<1x1x1x8x32xf32>
    %624 = vector.shape_cast %623 : vector<1x1x1x8x32xf32> to vector<8x32xf32>
    %c1_581 = arith.constant 1 : index
    %c1_582 = arith.constant 1 : index
    %c3_583 = arith.constant 3 : index
    %c0_584 = arith.constant 0 : index
    %c0_585 = arith.constant 0 : index
    %625 = vector.load %arg12[%c1_581, %c1_582, %c3_583, %c0_584, %c0_585] : memref<2x4x5x8x32xf32, #tpu.memory_space<vmem>>, vector<1x1x1x8x32xf32>
    %626 = vector.shape_cast %625 : vector<1x1x1x8x32xf32> to vector<8x32xf32>
    %c1_586 = arith.constant 1 : index
    %c2_587 = arith.constant 2 : index
    %c3_588 = arith.constant 3 : index
    %c0_589 = arith.constant 0 : index
    %c0_590 = arith.constant 0 : index
    %627 = vector.load %arg12[%c1_586, %c2_587, %c3_588, %c0_589, %c0_590] : memref<2x4x5x8x32xf32, #tpu.memory_space<vmem>>, vector<1x1x1x8x32xf32>
    %628 = vector.shape_cast %627 : vector<1x1x1x8x32xf32> to vector<8x32xf32>
    %c1_591 = arith.constant 1 : index
    %c3_592 = arith.constant 3 : index
    %c3_593 = arith.constant 3 : index
    %c0_594 = arith.constant 0 : index
    %c0_595 = arith.constant 0 : index
    %629 = vector.load %arg12[%c1_591, %c3_592, %c3_593, %c0_594, %c0_595] : memref<2x4x5x8x32xf32, #tpu.memory_space<vmem>>, vector<1x1x1x8x32xf32>
    %630 = vector.shape_cast %629 : vector<1x1x1x8x32xf32> to vector<8x32xf32>
    %c0_596 = arith.constant 0 : index
    %c1_597 = arith.constant 1 : index
    %c4_598 = arith.constant 4 : index
    %c0_599 = arith.constant 0 : index
    %c0_600 = arith.constant 0 : index
    %631 = vector.load %arg12[%c0_596, %c1_597, %c4_598, %c0_599, %c0_600] : memref<2x4x5x8x32xf32, #tpu.memory_space<vmem>>, vector<1x1x1x8x32xf32>
    %632 = vector.shape_cast %631 : vector<1x1x1x8x32xf32> to vector<8x32xf32>
    %c0_601 = arith.constant 0 : index
    %c2_602 = arith.constant 2 : index
    %c4_603 = arith.constant 4 : index
    %c0_604 = arith.constant 0 : index
    %c0_605 = arith.constant 0 : index
    %633 = vector.load %arg12[%c0_601, %c2_602, %c4_603, %c0_604, %c0_605] : memref<2x4x5x8x32xf32, #tpu.memory_space<vmem>>, vector<1x1x1x8x32xf32>
    %634 = vector.shape_cast %633 : vector<1x1x1x8x32xf32> to vector<8x32xf32>
    %c0_606 = arith.constant 0 : index
    %c3_607 = arith.constant 3 : index
    %c4_608 = arith.constant 4 : index
    %c0_609 = arith.constant 0 : index
    %c0_610 = arith.constant 0 : index
    %635 = vector.load %arg12[%c0_606, %c3_607, %c4_608, %c0_609, %c0_610] : memref<2x4x5x8x32xf32, #tpu.memory_space<vmem>>, vector<1x1x1x8x32xf32>
    %636 = vector.shape_cast %635 : vector<1x1x1x8x32xf32> to vector<8x32xf32>
    %637 = tpu.concatenate %620, %622, %624, %626, %628, %630, %632, %634, %636 in 1 : vector<8x32xf32>, vector<8x32xf32>, vector<8x32xf32>, vector<8x32xf32>, vector<8x32xf32>, vector<8x32xf32>, vector<8x32xf32>, vector<8x32xf32>, vector<8x32xf32> -> vector<8x288xf32>
    %c56 = arith.constant 56 : index
    %c0_611 = arith.constant 0 : index
    %638 = vector.load %arg13[%c56, %c0_611] : memref<128x288xf32, #tpu.memory_space<vmem>>, vector<8x288xf32>
    tpu.vector_store %arg13[%c56, %c0_611], %637 {strides = array<i32>} : memref<128x288xf32, #tpu.memory_space<vmem>>, vector<8x288xf32>,
    %c1_612 = arith.constant 1 : index
    %c0_613 = arith.constant 0 : index
    %c0_614 = arith.constant 0 : index
    %c0_615 = arith.constant 0 : index
    %c0_616 = arith.constant 0 : index
    %639 = vector.load %arg12[%c1_612, %c0_613, %c0_614, %c0_615, %c0_616] : memref<2x4x5x8x32xf32, #tpu.memory_space<vmem>>, vector<1x1x1x8x32xf32>
    %640 = vector.shape_cast %639 : vector<1x1x1x8x32xf32> to vector<8x32xf32>
    %c1_617 = arith.constant 1 : index
    %c1_618 = arith.constant 1 : index
    %c0_619 = arith.constant 0 : index
    %c0_620 = arith.constant 0 : index
    %c0_621 = arith.constant 0 : index
    %641 = vector.load %arg12[%c1_617, %c1_618, %c0_619, %c0_620, %c0_621] : memref<2x4x5x8x32xf32, #tpu.memory_space<vmem>>, vector<1x1x1x8x32xf32>
    %642 = vector.shape_cast %641 : vector<1x1x1x8x32xf32> to vector<8x32xf32>
    %c1_622 = arith.constant 1 : index
    %c2_623 = arith.constant 2 : index
    %c0_624 = arith.constant 0 : index
    %c0_625 = arith.constant 0 : index
    %c0_626 = arith.constant 0 : index
    %643 = vector.load %arg12[%c1_622, %c2_623, %c0_624, %c0_625, %c0_626] : memref<2x4x5x8x32xf32, #tpu.memory_space<vmem>>, vector<1x1x1x8x32xf32>
    %644 = vector.shape_cast %643 : vector<1x1x1x8x32xf32> to vector<8x32xf32>
    %c0_627 = arith.constant 0 : index
    %c0_628 = arith.constant 0 : index
    %c1_629 = arith.constant 1 : index
    %c0_630 = arith.constant 0 : index
    %c0_631 = arith.constant 0 : index
    %645 = vector.load %arg12[%c0_627, %c0_628, %c1_629, %c0_630, %c0_631] : memref<2x4x5x8x32xf32, #tpu.memory_space<vmem>>, vector<1x1x1x8x32xf32>
    %646 = vector.shape_cast %645 : vector<1x1x1x8x32xf32> to vector<8x32xf32>
    %c0_632 = arith.constant 0 : index
    %c1_633 = arith.constant 1 : index
    %c1_634 = arith.constant 1 : index
    %c0_635 = arith.constant 0 : index
    %c0_636 = arith.constant 0 : index
    %647 = vector.load %arg12[%c0_632, %c1_633, %c1_634, %c0_635, %c0_636] : memref<2x4x5x8x32xf32, #tpu.memory_space<vmem>>, vector<1x1x1x8x32xf32>
    %648 = vector.shape_cast %647 : vector<1x1x1x8x32xf32> to vector<8x32xf32>
    %c0_637 = arith.constant 0 : index
    %c2_638 = arith.constant 2 : index
    %c1_639 = arith.constant 1 : index
    %c0_640 = arith.constant 0 : index
    %c0_641 = arith.constant 0 : index
    %649 = vector.load %arg12[%c0_637, %c2_638, %c1_639, %c0_640, %c0_641] : memref<2x4x5x8x32xf32, #tpu.memory_space<vmem>>, vector<1x1x1x8x32xf32>
    %650 = vector.shape_cast %649 : vector<1x1x1x8x32xf32> to vector<8x32xf32>
    %c1_642 = arith.constant 1 : index
    %c0_643 = arith.constant 0 : index
    %c1_644 = arith.constant 1 : index
    %c0_645 = arith.constant 0 : index
    %c0_646 = arith.constant 0 : index
    %651 = vector.load %arg12[%c1_642, %c0_643, %c1_644, %c0_645, %c0_646] : memref<2x4x5x8x32xf32, #tpu.memory_space<vmem>>, vector<1x1x1x8x32xf32>
    %652 = vector.shape_cast %651 : vector<1x1x1x8x32xf32> to vector<8x32xf32>
    %c1_647 = arith.constant 1 : index
    %c1_648 = arith.constant 1 : index
    %c1_649 = arith.constant 1 : index
    %c0_650 = arith.constant 0 : index
    %c0_651 = arith.constant 0 : index
    %653 = vector.load %arg12[%c1_647, %c1_648, %c1_649, %c0_650, %c0_651] : memref<2x4x5x8x32xf32, #tpu.memory_space<vmem>>, vector<1x1x1x8x32xf32>
    %654 = vector.shape_cast %653 : vector<1x1x1x8x32xf32> to vector<8x32xf32>
    %c1_652 = arith.constant 1 : index
    %c2_653 = arith.constant 2 : index
    %c1_654 = arith.constant 1 : index
    %c0_655 = arith.constant 0 : index
    %c0_656 = arith.constant 0 : index
    %655 = vector.load %arg12[%c1_652, %c2_653, %c1_654, %c0_655, %c0_656] : memref<2x4x5x8x32xf32, #tpu.memory_space<vmem>>, vector<1x1x1x8x32xf32>
    %656 = vector.shape_cast %655 : vector<1x1x1x8x32xf32> to vector<8x32xf32>
    %657 = tpu.concatenate %640, %642, %644, %646, %648, %650, %652, %654, %656 in 1 : vector<8x32xf32>, vector<8x32xf32>, vector<8x32xf32>, vector<8x32xf32>, vector<8x32xf32>, vector<8x32xf32>, vector<8x32xf32>, vector<8x32xf32>, vector<8x32xf32> -> vector<8x288xf32>
    %c64 = arith.constant 64 : index
    %c0_657 = arith.constant 0 : index
    %658 = vector.load %arg13[%c64, %c0_657] : memref<128x288xf32, #tpu.memory_space<vmem>>, vector<8x288xf32>
    tpu.vector_store %arg13[%c64, %c0_657], %657 {strides = array<i32>} : memref<128x288xf32, #tpu.memory_space<vmem>>, vector<8x288xf32>,
    %c1_658 = arith.constant 1 : index
    %c0_659 = arith.constant 0 : index
    %c1_660 = arith.constant 1 : index
    %c0_661 = arith.constant 0 : index
    %c0_662 = arith.constant 0 : index
    %659 = vector.load %arg12[%c1_658, %c0_659, %c1_660, %c0_661, %c0_662] : memref<2x4x5x8x32xf32, #tpu.memory_space<vmem>>, vector<1x1x1x8x32xf32>
    %660 = vector.shape_cast %659 : vector<1x1x1x8x32xf32> to vector<8x32xf32>
    %c1_663 = arith.constant 1 : index
    %c1_664 = arith.constant 1 : index
    %c1_665 = arith.constant 1 : index
    %c0_666 = arith.constant 0 : index
    %c0_667 = arith.constant 0 : index
    %661 = vector.load %arg12[%c1_663, %c1_664, %c1_665, %c0_666, %c0_667] : memref<2x4x5x8x32xf32, #tpu.memory_space<vmem>>, vector<1x1x1x8x32xf32>
    %662 = vector.shape_cast %661 : vector<1x1x1x8x32xf32> to vector<8x32xf32>
    %c1_668 = arith.constant 1 : index
    %c2_669 = arith.constant 2 : index
    %c1_670 = arith.constant 1 : index
    %c0_671 = arith.constant 0 : index
    %c0_672 = arith.constant 0 : index
    %663 = vector.load %arg12[%c1_668, %c2_669, %c1_670, %c0_671, %c0_672] : memref<2x4x5x8x32xf32, #tpu.memory_space<vmem>>, vector<1x1x1x8x32xf32>
    %664 = vector.shape_cast %663 : vector<1x1x1x8x32xf32> to vector<8x32xf32>
    %c0_673 = arith.constant 0 : index
    %c0_674 = arith.constant 0 : index
    %c2_675 = arith.constant 2 : index
    %c0_676 = arith.constant 0 : index
    %c0_677 = arith.constant 0 : index
    %665 = vector.load %arg12[%c0_673, %c0_674, %c2_675, %c0_676, %c0_677] : memref<2x4x5x8x32xf32, #tpu.memory_space<vmem>>, vector<1x1x1x8x32xf32>
    %666 = vector.shape_cast %665 : vector<1x1x1x8x32xf32> to vector<8x32xf32>
    %c0_678 = arith.constant 0 : index
    %c1_679 = arith.constant 1 : index
    %c2_680 = arith.constant 2 : index
    %c0_681 = arith.constant 0 : index
    %c0_682 = arith.constant 0 : index
    %667 = vector.load %arg12[%c0_678, %c1_679, %c2_680, %c0_681, %c0_682] : memref<2x4x5x8x32xf32, #tpu.memory_space<vmem>>, vector<1x1x1x8x32xf32>
    %668 = vector.shape_cast %667 : vector<1x1x1x8x32xf32> to vector<8x32xf32>
    %c0_683 = arith.constant 0 : index
    %c2_684 = arith.constant 2 : index
    %c2_685 = arith.constant 2 : index
    %c0_686 = arith.constant 0 : index
    %c0_687 = arith.constant 0 : index
    %669 = vector.load %arg12[%c0_683, %c2_684, %c2_685, %c0_686, %c0_687] : memref<2x4x5x8x32xf32, #tpu.memory_space<vmem>>, vector<1x1x1x8x32xf32>
    %670 = vector.shape_cast %669 : vector<1x1x1x8x32xf32> to vector<8x32xf32>
    %c1_688 = arith.constant 1 : index
    %c0_689 = arith.constant 0 : index
    %c2_690 = arith.constant 2 : index
    %c0_691 = arith.constant 0 : index
    %c0_692 = arith.constant 0 : index
    %671 = vector.load %arg12[%c1_688, %c0_689, %c2_690, %c0_691, %c0_692] : memref<2x4x5x8x32xf32, #tpu.memory_space<vmem>>, vector<1x1x1x8x32xf32>
    %672 = vector.shape_cast %671 : vector<1x1x1x8x32xf32> to vector<8x32xf32>
    %c1_693 = arith.constant 1 : index
    %c1_694 = arith.constant 1 : index
    %c2_695 = arith.constant 2 : index
    %c0_696 = arith.constant 0 : index
    %c0_697 = arith.constant 0 : index
    %673 = vector.load %arg12[%c1_693, %c1_694, %c2_695, %c0_696, %c0_697] : memref<2x4x5x8x32xf32, #tpu.memory_space<vmem>>, vector<1x1x1x8x32xf32>
    %674 = vector.shape_cast %673 : vector<1x1x1x8x32xf32> to vector<8x32xf32>
    %c1_698 = arith.constant 1 : index
    %c2_699 = arith.constant 2 : index
    %c2_700 = arith.constant 2 : index
    %c0_701 = arith.constant 0 : index
    %c0_702 = arith.constant 0 : index
    %675 = vector.load %arg12[%c1_698, %c2_699, %c2_700, %c0_701, %c0_702] : memref<2x4x5x8x32xf32, #tpu.memory_space<vmem>>, vector<1x1x1x8x32xf32>
    %676 = vector.shape_cast %675 : vector<1x1x1x8x32xf32> to vector<8x32xf32>
    %677 = tpu.concatenate %660, %662, %664, %666, %668, %670, %672, %674, %676 in 1 : vector<8x32xf32>, vector<8x32xf32>, vector<8x32xf32>, vector<8x32xf32>, vector<8x32xf32>, vector<8x32xf32>, vector<8x32xf32>, vector<8x32xf32>, vector<8x32xf32> -> vector<8x288xf32>
    %c72 = arith.constant 72 : index
    %c0_703 = arith.constant 0 : index
    %678 = vector.load %arg13[%c72, %c0_703] : memref<128x288xf32, #tpu.memory_space<vmem>>, vector<8x288xf32>
    tpu.vector_store %arg13[%c72, %c0_703], %677 {strides = array<i32>} : memref<128x288xf32, #tpu.memory_space<vmem>>, vector<8x288xf32>,
    %c1_704 = arith.constant 1 : index
    %c0_705 = arith.constant 0 : index
    %c2_706 = arith.constant 2 : index
    %c0_707 = arith.constant 0 : index
    %c0_708 = arith.constant 0 : index
    %679 = vector.load %arg12[%c1_704, %c0_705, %c2_706, %c0_707, %c0_708] : memref<2x4x5x8x32xf32, #tpu.memory_space<vmem>>, vector<1x1x1x8x32xf32>
    %680 = vector.shape_cast %679 : vector<1x1x1x8x32xf32> to vector<8x32xf32>
    %c1_709 = arith.constant 1 : index
    %c1_710 = arith.constant 1 : index
    %c2_711 = arith.constant 2 : index
    %c0_712 = arith.constant 0 : index
    %c0_713 = arith.constant 0 : index
    %681 = vector.load %arg12[%c1_709, %c1_710, %c2_711, %c0_712, %c0_713] : memref<2x4x5x8x32xf32, #tpu.memory_space<vmem>>, vector<1x1x1x8x32xf32>
    %682 = vector.shape_cast %681 : vector<1x1x1x8x32xf32> to vector<8x32xf32>
    %c1_714 = arith.constant 1 : index
    %c2_715 = arith.constant 2 : index
    %c2_716 = arith.constant 2 : index
    %c0_717 = arith.constant 0 : index
    %c0_718 = arith.constant 0 : index
    %683 = vector.load %arg12[%c1_714, %c2_715, %c2_716, %c0_717, %c0_718] : memref<2x4x5x8x32xf32, #tpu.memory_space<vmem>>, vector<1x1x1x8x32xf32>
    %684 = vector.shape_cast %683 : vector<1x1x1x8x32xf32> to vector<8x32xf32>
    %c0_719 = arith.constant 0 : index
    %c0_720 = arith.constant 0 : index
    %c3_721 = arith.constant 3 : index
    %c0_722 = arith.constant 0 : index
    %c0_723 = arith.constant 0 : index
    %685 = vector.load %arg12[%c0_719, %c0_720, %c3_721, %c0_722, %c0_723] : memref<2x4x5x8x32xf32, #tpu.memory_space<vmem>>, vector<1x1x1x8x32xf32>
    %686 = vector.shape_cast %685 : vector<1x1x1x8x32xf32> to vector<8x32xf32>
    %c0_724 = arith.constant 0 : index
    %c1_725 = arith.constant 1 : index
    %c3_726 = arith.constant 3 : index
    %c0_727 = arith.constant 0 : index
    %c0_728 = arith.constant 0 : index
    %687 = vector.load %arg12[%c0_724, %c1_725, %c3_726, %c0_727, %c0_728] : memref<2x4x5x8x32xf32, #tpu.memory_space<vmem>>, vector<1x1x1x8x32xf32>
    %688 = vector.shape_cast %687 : vector<1x1x1x8x32xf32> to vector<8x32xf32>
    %c0_729 = arith.constant 0 : index
    %c2_730 = arith.constant 2 : index
    %c3_731 = arith.constant 3 : index
    %c0_732 = arith.constant 0 : index
    %c0_733 = arith.constant 0 : index
    %689 = vector.load %arg12[%c0_729, %c2_730, %c3_731, %c0_732, %c0_733] : memref<2x4x5x8x32xf32, #tpu.memory_space<vmem>>, vector<1x1x1x8x32xf32>
    %690 = vector.shape_cast %689 : vector<1x1x1x8x32xf32> to vector<8x32xf32>
    %c1_734 = arith.constant 1 : index
    %c0_735 = arith.constant 0 : index
    %c3_736 = arith.constant 3 : index
    %c0_737 = arith.constant 0 : index
    %c0_738 = arith.constant 0 : index
    %691 = vector.load %arg12[%c1_734, %c0_735, %c3_736, %c0_737, %c0_738] : memref<2x4x5x8x32xf32, #tpu.memory_space<vmem>>, vector<1x1x1x8x32xf32>
    %692 = vector.shape_cast %691 : vector<1x1x1x8x32xf32> to vector<8x32xf32>
    %c1_739 = arith.constant 1 : index
    %c1_740 = arith.constant 1 : index
    %c3_741 = arith.constant 3 : index
    %c0_742 = arith.constant 0 : index
    %c0_743 = arith.constant 0 : index
    %693 = vector.load %arg12[%c1_739, %c1_740, %c3_741, %c0_742, %c0_743] : memref<2x4x5x8x32xf32, #tpu.memory_space<vmem>>, vector<1x1x1x8x32xf32>
    %694 = vector.shape_cast %693 : vector<1x1x1x8x32xf32> to vector<8x32xf32>
    %c1_744 = arith.constant 1 : index
    %c2_745 = arith.constant 2 : index
    %c3_746 = arith.constant 3 : index
    %c0_747 = arith.constant 0 : index
    %c0_748 = arith.constant 0 : index
    %695 = vector.load %arg12[%c1_744, %c2_745, %c3_746, %c0_747, %c0_748] : memref<2x4x5x8x32xf32, #tpu.memory_space<vmem>>, vector<1x1x1x8x32xf32>
    %696 = vector.shape_cast %695 : vector<1x1x1x8x32xf32> to vector<8x32xf32>
    %697 = tpu.concatenate %680, %682, %684, %686, %688, %690, %692, %694, %696 in 1 : vector<8x32xf32>, vector<8x32xf32>, vector<8x32xf32>, vector<8x32xf32>, vector<8x32xf32>, vector<8x32xf32>, vector<8x32xf32>, vector<8x32xf32>, vector<8x32xf32> -> vector<8x288xf32>
    %c80 = arith.constant 80 : index
    %c0_749 = arith.constant 0 : index
    %698 = vector.load %arg13[%c80, %c0_749] : memref<128x288xf32, #tpu.memory_space<vmem>>, vector<8x288xf32>
    tpu.vector_store %arg13[%c80, %c0_749], %697 {strides = array<i32>} : memref<128x288xf32, #tpu.memory_space<vmem>>, vector<8x288xf32>,
    %c1_750 = arith.constant 1 : index
    %c0_751 = arith.constant 0 : index
    %c3_752 = arith.constant 3 : index
    %c0_753 = arith.constant 0 : index
    %c0_754 = arith.constant 0 : index
    %699 = vector.load %arg12[%c1_750, %c0_751, %c3_752, %c0_753, %c0_754] : memref<2x4x5x8x32xf32, #tpu.memory_space<vmem>>, vector<1x1x1x8x32xf32>
    %700 = vector.shape_cast %699 : vector<1x1x1x8x32xf32> to vector<8x32xf32>
    %c1_755 = arith.constant 1 : index
    %c1_756 = arith.constant 1 : index
    %c3_757 = arith.constant 3 : index
    %c0_758 = arith.constant 0 : index
    %c0_759 = arith.constant 0 : index
    %701 = vector.load %arg12[%c1_755, %c1_756, %c3_757, %c0_758, %c0_759] : memref<2x4x5x8x32xf32, #tpu.memory_space<vmem>>, vector<1x1x1x8x32xf32>
    %702 = vector.shape_cast %701 : vector<1x1x1x8x32xf32> to vector<8x32xf32>
    %c1_760 = arith.constant 1 : index
    %c2_761 = arith.constant 2 : index
    %c3_762 = arith.constant 3 : index
    %c0_763 = arith.constant 0 : index
    %c0_764 = arith.constant 0 : index
    %703 = vector.load %arg12[%c1_760, %c2_761, %c3_762, %c0_763, %c0_764] : memref<2x4x5x8x32xf32, #tpu.memory_space<vmem>>, vector<1x1x1x8x32xf32>
    %704 = vector.shape_cast %703 : vector<1x1x1x8x32xf32> to vector<8x32xf32>
    %c0_765 = arith.constant 0 : index
    %c0_766 = arith.constant 0 : index
    %c4_767 = arith.constant 4 : index
    %c0_768 = arith.constant 0 : index
    %c0_769 = arith.constant 0 : index
    %705 = vector.load %arg12[%c0_765, %c0_766, %c4_767, %c0_768, %c0_769] : memref<2x4x5x8x32xf32, #tpu.memory_space<vmem>>, vector<1x1x1x8x32xf32>
    %706 = vector.shape_cast %705 : vector<1x1x1x8x32xf32> to vector<8x32xf32>
    %c0_770 = arith.constant 0 : index
    %c1_771 = arith.constant 1 : index
    %c4_772 = arith.constant 4 : index
    %c0_773 = arith.constant 0 : index
    %c0_774 = arith.constant 0 : index
    %707 = vector.load %arg12[%c0_770, %c1_771, %c4_772, %c0_773, %c0_774] : memref<2x4x5x8x32xf32, #tpu.memory_space<vmem>>, vector<1x1x1x8x32xf32>
    %708 = vector.shape_cast %707 : vector<1x1x1x8x32xf32> to vector<8x32xf32>
    %c0_775 = arith.constant 0 : index
    %c2_776 = arith.constant 2 : index
    %c4_777 = arith.constant 4 : index
    %c0_778 = arith.constant 0 : index
    %c0_779 = arith.constant 0 : index
    %709 = vector.load %arg12[%c0_775, %c2_776, %c4_777, %c0_778, %c0_779] : memref<2x4x5x8x32xf32, #tpu.memory_space<vmem>>, vector<1x1x1x8x32xf32>
    %710 = vector.shape_cast %709 : vector<1x1x1x8x32xf32> to vector<8x32xf32>
    %c1_780 = arith.constant 1 : index
    %c0_781 = arith.constant 0 : index
    %c4_782 = arith.constant 4 : index
    %c0_783 = arith.constant 0 : index
    %c0_784 = arith.constant 0 : index
    %711 = vector.load %arg12[%c1_780, %c0_781, %c4_782, %c0_783, %c0_784] : memref<2x4x5x8x32xf32, #tpu.memory_space<vmem>>, vector<1x1x1x8x32xf32>
    %712 = vector.shape_cast %711 : vector<1x1x1x8x32xf32> to vector<8x32xf32>
    %c1_785 = arith.constant 1 : index
    %c1_786 = arith.constant 1 : index
    %c4_787 = arith.constant 4 : index
    %c0_788 = arith.constant 0 : index
    %c0_789 = arith.constant 0 : index
    %713 = vector.load %arg12[%c1_785, %c1_786, %c4_787, %c0_788, %c0_789] : memref<2x4x5x8x32xf32, #tpu.memory_space<vmem>>, vector<1x1x1x8x32xf32>
    %714 = vector.shape_cast %713 : vector<1x1x1x8x32xf32> to vector<8x32xf32>
    %c1_790 = arith.constant 1 : index
    %c2_791 = arith.constant 2 : index
    %c4_792 = arith.constant 4 : index
    %c0_793 = arith.constant 0 : index
    %c0_794 = arith.constant 0 : index
    %715 = vector.load %arg12[%c1_790, %c2_791, %c4_792, %c0_793, %c0_794] : memref<2x4x5x8x32xf32, #tpu.memory_space<vmem>>, vector<1x1x1x8x32xf32>
    %716 = vector.shape_cast %715 : vector<1x1x1x8x32xf32> to vector<8x32xf32>
    %717 = tpu.concatenate %700, %702, %704, %706, %708, %710, %712, %714, %716 in 1 : vector<8x32xf32>, vector<8x32xf32>, vector<8x32xf32>, vector<8x32xf32>, vector<8x32xf32>, vector<8x32xf32>, vector<8x32xf32>, vector<8x32xf32>, vector<8x32xf32> -> vector<8x288xf32>
    %c88 = arith.constant 88 : index
    %c0_795 = arith.constant 0 : index
    %718 = vector.load %arg13[%c88, %c0_795] : memref<128x288xf32, #tpu.memory_space<vmem>>, vector<8x288xf32>
    tpu.vector_store %arg13[%c88, %c0_795], %717 {strides = array<i32>} : memref<128x288xf32, #tpu.memory_space<vmem>>, vector<8x288xf32>,
    %c1_796 = arith.constant 1 : index
    %c1_797 = arith.constant 1 : index
    %c0_798 = arith.constant 0 : index
    %c0_799 = arith.constant 0 : index
    %c0_800 = arith.constant 0 : index
    %719 = vector.load %arg12[%c1_796, %c1_797, %c0_798, %c0_799, %c0_800] : memref<2x4x5x8x32xf32, #tpu.memory_space<vmem>>, vector<1x1x1x8x32xf32>
    %720 = vector.shape_cast %719 : vector<1x1x1x8x32xf32> to vector<8x32xf32>
    %c1_801 = arith.constant 1 : index
    %c2_802 = arith.constant 2 : index
    %c0_803 = arith.constant 0 : index
    %c0_804 = arith.constant 0 : index
    %c0_805 = arith.constant 0 : index
    %721 = vector.load %arg12[%c1_801, %c2_802, %c0_803, %c0_804, %c0_805] : memref<2x4x5x8x32xf32, #tpu.memory_space<vmem>>, vector<1x1x1x8x32xf32>
    %722 = vector.shape_cast %721 : vector<1x1x1x8x32xf32> to vector<8x32xf32>
    %c1_806 = arith.constant 1 : index
    %c3_807 = arith.constant 3 : index
    %c0_808 = arith.constant 0 : index
    %c0_809 = arith.constant 0 : index
    %c0_810 = arith.constant 0 : index
    %723 = vector.load %arg12[%c1_806, %c3_807, %c0_808, %c0_809, %c0_810] : memref<2x4x5x8x32xf32, #tpu.memory_space<vmem>>, vector<1x1x1x8x32xf32>
    %724 = vector.shape_cast %723 : vector<1x1x1x8x32xf32> to vector<8x32xf32>
    %c0_811 = arith.constant 0 : index
    %c1_812 = arith.constant 1 : index
    %c1_813 = arith.constant 1 : index
    %c0_814 = arith.constant 0 : index
    %c0_815 = arith.constant 0 : index
    %725 = vector.load %arg12[%c0_811, %c1_812, %c1_813, %c0_814, %c0_815] : memref<2x4x5x8x32xf32, #tpu.memory_space<vmem>>, vector<1x1x1x8x32xf32>
    %726 = vector.shape_cast %725 : vector<1x1x1x8x32xf32> to vector<8x32xf32>
    %c0_816 = arith.constant 0 : index
    %c2_817 = arith.constant 2 : index
    %c1_818 = arith.constant 1 : index
    %c0_819 = arith.constant 0 : index
    %c0_820 = arith.constant 0 : index
    %727 = vector.load %arg12[%c0_816, %c2_817, %c1_818, %c0_819, %c0_820] : memref<2x4x5x8x32xf32, #tpu.memory_space<vmem>>, vector<1x1x1x8x32xf32>
    %728 = vector.shape_cast %727 : vector<1x1x1x8x32xf32> to vector<8x32xf32>
    %c0_821 = arith.constant 0 : index
    %c3_822 = arith.constant 3 : index
    %c1_823 = arith.constant 1 : index
    %c0_824 = arith.constant 0 : index
    %c0_825 = arith.constant 0 : index
    %729 = vector.load %arg12[%c0_821, %c3_822, %c1_823, %c0_824, %c0_825] : memref<2x4x5x8x32xf32, #tpu.memory_space<vmem>>, vector<1x1x1x8x32xf32>
    %730 = vector.shape_cast %729 : vector<1x1x1x8x32xf32> to vector<8x32xf32>
    %c1_826 = arith.constant 1 : index
    %c1_827 = arith.constant 1 : index
    %c1_828 = arith.constant 1 : index
    %c0_829 = arith.constant 0 : index
    %c0_830 = arith.constant 0 : index
    %731 = vector.load %arg12[%c1_826, %c1_827, %c1_828, %c0_829, %c0_830] : memref<2x4x5x8x32xf32, #tpu.memory_space<vmem>>, vector<1x1x1x8x32xf32>
    %732 = vector.shape_cast %731 : vector<1x1x1x8x32xf32> to vector<8x32xf32>
    %c1_831 = arith.constant 1 : index
    %c2_832 = arith.constant 2 : index
    %c1_833 = arith.constant 1 : index
    %c0_834 = arith.constant 0 : index
    %c0_835 = arith.constant 0 : index
    %733 = vector.load %arg12[%c1_831, %c2_832, %c1_833, %c0_834, %c0_835] : memref<2x4x5x8x32xf32, #tpu.memory_space<vmem>>, vector<1x1x1x8x32xf32>
    %734 = vector.shape_cast %733 : vector<1x1x1x8x32xf32> to vector<8x32xf32>
    %c1_836 = arith.constant 1 : index
    %c3_837 = arith.constant 3 : index
    %c1_838 = arith.constant 1 : index
    %c0_839 = arith.constant 0 : index
    %c0_840 = arith.constant 0 : index
    %735 = vector.load %arg12[%c1_836, %c3_837, %c1_838, %c0_839, %c0_840] : memref<2x4x5x8x32xf32, #tpu.memory_space<vmem>>, vector<1x1x1x8x32xf32>
    %736 = vector.shape_cast %735 : vector<1x1x1x8x32xf32> to vector<8x32xf32>
    %737 = tpu.concatenate %720, %722, %724, %726, %728, %730, %732, %734, %736 in 1 : vector<8x32xf32>, vector<8x32xf32>, vector<8x32xf32>, vector<8x32xf32>, vector<8x32xf32>, vector<8x32xf32>, vector<8x32xf32>, vector<8x32xf32>, vector<8x32xf32> -> vector<8x288xf32>
    %c96 = arith.constant 96 : index
    %c0_841 = arith.constant 0 : index
    %738 = vector.load %arg13[%c96, %c0_841] : memref<128x288xf32, #tpu.memory_space<vmem>>, vector<8x288xf32>
    tpu.vector_store %arg13[%c96, %c0_841], %737 {strides = array<i32>} : memref<128x288xf32, #tpu.memory_space<vmem>>, vector<8x288xf32>,
    %c1_842 = arith.constant 1 : index
    %c1_843 = arith.constant 1 : index
    %c1_844 = arith.constant 1 : index
    %c0_845 = arith.constant 0 : index
    %c0_846 = arith.constant 0 : index
    %739 = vector.load %arg12[%c1_842, %c1_843, %c1_844, %c0_845, %c0_846] : memref<2x4x5x8x32xf32, #tpu.memory_space<vmem>>, vector<1x1x1x8x32xf32>
    %740 = vector.shape_cast %739 : vector<1x1x1x8x32xf32> to vector<8x32xf32>
    %c1_847 = arith.constant 1 : index
    %c2_848 = arith.constant 2 : index
    %c1_849 = arith.constant 1 : index
    %c0_850 = arith.constant 0 : index
    %c0_851 = arith.constant 0 : index
    %741 = vector.load %arg12[%c1_847, %c2_848, %c1_849, %c0_850, %c0_851] : memref<2x4x5x8x32xf32, #tpu.memory_space<vmem>>, vector<1x1x1x8x32xf32>
    %742 = vector.shape_cast %741 : vector<1x1x1x8x32xf32> to vector<8x32xf32>
    %c1_852 = arith.constant 1 : index
    %c3_853 = arith.constant 3 : index
    %c1_854 = arith.constant 1 : index
    %c0_855 = arith.constant 0 : index
    %c0_856 = arith.constant 0 : index
    %743 = vector.load %arg12[%c1_852, %c3_853, %c1_854, %c0_855, %c0_856] : memref<2x4x5x8x32xf32, #tpu.memory_space<vmem>>, vector<1x1x1x8x32xf32>
    %744 = vector.shape_cast %743 : vector<1x1x1x8x32xf32> to vector<8x32xf32>
    %c0_857 = arith.constant 0 : index
    %c1_858 = arith.constant 1 : index
    %c2_859 = arith.constant 2 : index
    %c0_860 = arith.constant 0 : index
    %c0_861 = arith.constant 0 : index
    %745 = vector.load %arg12[%c0_857, %c1_858, %c2_859, %c0_860, %c0_861] : memref<2x4x5x8x32xf32, #tpu.memory_space<vmem>>, vector<1x1x1x8x32xf32>
    %746 = vector.shape_cast %745 : vector<1x1x1x8x32xf32> to vector<8x32xf32>
    %c0_862 = arith.constant 0 : index
    %c2_863 = arith.constant 2 : index
    %c2_864 = arith.constant 2 : index
    %c0_865 = arith.constant 0 : index
    %c0_866 = arith.constant 0 : index
    %747 = vector.load %arg12[%c0_862, %c2_863, %c2_864, %c0_865, %c0_866] : memref<2x4x5x8x32xf32, #tpu.memory_space<vmem>>, vector<1x1x1x8x32xf32>
    %748 = vector.shape_cast %747 : vector<1x1x1x8x32xf32> to vector<8x32xf32>
    %c0_867 = arith.constant 0 : index
    %c3_868 = arith.constant 3 : index
    %c2_869 = arith.constant 2 : index
    %c0_870 = arith.constant 0 : index
    %c0_871 = arith.constant 0 : index
    %749 = vector.load %arg12[%c0_867, %c3_868, %c2_869, %c0_870, %c0_871] : memref<2x4x5x8x32xf32, #tpu.memory_space<vmem>>, vector<1x1x1x8x32xf32>
    %750 = vector.shape_cast %749 : vector<1x1x1x8x32xf32> to vector<8x32xf32>
    %c1_872 = arith.constant 1 : index
    %c1_873 = arith.constant 1 : index
    %c2_874 = arith.constant 2 : index
    %c0_875 = arith.constant 0 : index
    %c0_876 = arith.constant 0 : index
    %751 = vector.load %arg12[%c1_872, %c1_873, %c2_874, %c0_875, %c0_876] : memref<2x4x5x8x32xf32, #tpu.memory_space<vmem>>, vector<1x1x1x8x32xf32>
    %752 = vector.shape_cast %751 : vector<1x1x1x8x32xf32> to vector<8x32xf32>
    %c1_877 = arith.constant 1 : index
    %c2_878 = arith.constant 2 : index
    %c2_879 = arith.constant 2 : index
    %c0_880 = arith.constant 0 : index
    %c0_881 = arith.constant 0 : index
    %753 = vector.load %arg12[%c1_877, %c2_878, %c2_879, %c0_880, %c0_881] : memref<2x4x5x8x32xf32, #tpu.memory_space<vmem>>, vector<1x1x1x8x32xf32>
    %754 = vector.shape_cast %753 : vector<1x1x1x8x32xf32> to vector<8x32xf32>
    %c1_882 = arith.constant 1 : index
    %c3_883 = arith.constant 3 : index
    %c2_884 = arith.constant 2 : index
    %c0_885 = arith.constant 0 : index
    %c0_886 = arith.constant 0 : index
    %755 = vector.load %arg12[%c1_882, %c3_883, %c2_884, %c0_885, %c0_886] : memref<2x4x5x8x32xf32, #tpu.memory_space<vmem>>, vector<1x1x1x8x32xf32>
    %756 = vector.shape_cast %755 : vector<1x1x1x8x32xf32> to vector<8x32xf32>
    %757 = tpu.concatenate %740, %742, %744, %746, %748, %750, %752, %754, %756 in 1 : vector<8x32xf32>, vector<8x32xf32>, vector<8x32xf32>, vector<8x32xf32>, vector<8x32xf32>, vector<8x32xf32>, vector<8x32xf32>, vector<8x32xf32>, vector<8x32xf32> -> vector<8x288xf32>
    %c104 = arith.constant 104 : index
    %c0_887 = arith.constant 0 : index
    %758 = vector.load %arg13[%c104, %c0_887] : memref<128x288xf32, #tpu.memory_space<vmem>>, vector<8x288xf32>
    tpu.vector_store %arg13[%c104, %c0_887], %757 {strides = array<i32>} : memref<128x288xf32, #tpu.memory_space<vmem>>, vector<8x288xf32>,
    %c1_888 = arith.constant 1 : index
    %c1_889 = arith.constant 1 : index
    %c2_890 = arith.constant 2 : index
    %c0_891 = arith.constant 0 : index
    %c0_892 = arith.constant 0 : index
    %759 = vector.load %arg12[%c1_888, %c1_889, %c2_890, %c0_891, %c0_892] : memref<2x4x5x8x32xf32, #tpu.memory_space<vmem>>, vector<1x1x1x8x32xf32>
    %760 = vector.shape_cast %759 : vector<1x1x1x8x32xf32> to vector<8x32xf32>
    %c1_893 = arith.constant 1 : index
    %c2_894 = arith.constant 2 : index
    %c2_895 = arith.constant 2 : index
    %c0_896 = arith.constant 0 : index
    %c0_897 = arith.constant 0 : index
    %761 = vector.load %arg12[%c1_893, %c2_894, %c2_895, %c0_896, %c0_897] : memref<2x4x5x8x32xf32, #tpu.memory_space<vmem>>, vector<1x1x1x8x32xf32>
    %762 = vector.shape_cast %761 : vector<1x1x1x8x32xf32> to vector<8x32xf32>
    %c1_898 = arith.constant 1 : index
    %c3_899 = arith.constant 3 : index
    %c2_900 = arith.constant 2 : index
    %c0_901 = arith.constant 0 : index
    %c0_902 = arith.constant 0 : index
    %763 = vector.load %arg12[%c1_898, %c3_899, %c2_900, %c0_901, %c0_902] : memref<2x4x5x8x32xf32, #tpu.memory_space<vmem>>, vector<1x1x1x8x32xf32>
    %764 = vector.shape_cast %763 : vector<1x1x1x8x32xf32> to vector<8x32xf32>
    %c0_903 = arith.constant 0 : index
    %c1_904 = arith.constant 1 : index
    %c3_905 = arith.constant 3 : index
    %c0_906 = arith.constant 0 : index
    %c0_907 = arith.constant 0 : index
    %765 = vector.load %arg12[%c0_903, %c1_904, %c3_905, %c0_906, %c0_907] : memref<2x4x5x8x32xf32, #tpu.memory_space<vmem>>, vector<1x1x1x8x32xf32>
    %766 = vector.shape_cast %765 : vector<1x1x1x8x32xf32> to vector<8x32xf32>
    %c0_908 = arith.constant 0 : index
    %c2_909 = arith.constant 2 : index
    %c3_910 = arith.constant 3 : index
    %c0_911 = arith.constant 0 : index
    %c0_912 = arith.constant 0 : index
    %767 = vector.load %arg12[%c0_908, %c2_909, %c3_910, %c0_911, %c0_912] : memref<2x4x5x8x32xf32, #tpu.memory_space<vmem>>, vector<1x1x1x8x32xf32>
    %768 = vector.shape_cast %767 : vector<1x1x1x8x32xf32> to vector<8x32xf32>
    %c0_913 = arith.constant 0 : index
    %c3_914 = arith.constant 3 : index
    %c3_915 = arith.constant 3 : index
    %c0_916 = arith.constant 0 : index
    %c0_917 = arith.constant 0 : index
    %769 = vector.load %arg12[%c0_913, %c3_914, %c3_915, %c0_916, %c0_917] : memref<2x4x5x8x32xf32, #tpu.memory_space<vmem>>, vector<1x1x1x8x32xf32>
    %770 = vector.shape_cast %769 : vector<1x1x1x8x32xf32> to vector<8x32xf32>
    %c1_918 = arith.constant 1 : index
    %c1_919 = arith.constant 1 : index
    %c3_920 = arith.constant 3 : index
    %c0_921 = arith.constant 0 : index
    %c0_922 = arith.constant 0 : index
    %771 = vector.load %arg12[%c1_918, %c1_919, %c3_920, %c0_921, %c0_922] : memref<2x4x5x8x32xf32, #tpu.memory_space<vmem>>, vector<1x1x1x8x32xf32>
    %772 = vector.shape_cast %771 : vector<1x1x1x8x32xf32> to vector<8x32xf32>
    %c1_923 = arith.constant 1 : index
    %c2_924 = arith.constant 2 : index
    %c3_925 = arith.constant 3 : index
    %c0_926 = arith.constant 0 : index
    %c0_927 = arith.constant 0 : index
    %773 = vector.load %arg12[%c1_923, %c2_924, %c3_925, %c0_926, %c0_927] : memref<2x4x5x8x32xf32, #tpu.memory_space<vmem>>, vector<1x1x1x8x32xf32>
    %774 = vector.shape_cast %773 : vector<1x1x1x8x32xf32> to vector<8x32xf32>
    %c1_928 = arith.constant 1 : index
    %c3_929 = arith.constant 3 : index
    %c3_930 = arith.constant 3 : index
    %c0_931 = arith.constant 0 : index
    %c0_932 = arith.constant 0 : index
    %775 = vector.load %arg12[%c1_928, %c3_929, %c3_930, %c0_931, %c0_932] : memref<2x4x5x8x32xf32, #tpu.memory_space<vmem>>, vector<1x1x1x8x32xf32>
    %776 = vector.shape_cast %775 : vector<1x1x1x8x32xf32> to vector<8x32xf32>
    %777 = tpu.concatenate %760, %762, %764, %766, %768, %770, %772, %774, %776 in 1 : vector<8x32xf32>, vector<8x32xf32>, vector<8x32xf32>, vector<8x32xf32>, vector<8x32xf32>, vector<8x32xf32>, vector<8x32xf32>, vector<8x32xf32>, vector<8x32xf32> -> vector<8x288xf32>
    %c112 = arith.constant 112 : index
    %c0_933 = arith.constant 0 : index
    %778 = vector.load %arg13[%c112, %c0_933] : memref<128x288xf32, #tpu.memory_space<vmem>>, vector<8x288xf32>
    tpu.vector_store %arg13[%c112, %c0_933], %777 {strides = array<i32>} : memref<128x288xf32, #tpu.memory_space<vmem>>, vector<8x288xf32>,
    %c1_934 = arith.constant 1 : index
    %c1_935 = arith.constant 1 : index
    %c3_936 = arith.constant 3 : index
    %c0_937 = arith.constant 0 : index
    %c0_938 = arith.constant 0 : index
    %779 = vector.load %arg12[%c1_934, %c1_935, %c3_936, %c0_937, %c0_938] : memref<2x4x5x8x32xf32, #tpu.memory_space<vmem>>, vector<1x1x1x8x32xf32>
    %780 = vector.shape_cast %779 : vector<1x1x1x8x32xf32> to vector<8x32xf32>
    %c1_939 = arith.constant 1 : index
    %c2_940 = arith.constant 2 : index
    %c3_941 = arith.constant 3 : index
    %c0_942 = arith.constant 0 : index
    %c0_943 = arith.constant 0 : index
    %781 = vector.load %arg12[%c1_939, %c2_940, %c3_941, %c0_942, %c0_943] : memref<2x4x5x8x32xf32, #tpu.memory_space<vmem>>, vector<1x1x1x8x32xf32>
    %782 = vector.shape_cast %781 : vector<1x1x1x8x32xf32> to vector<8x32xf32>
    %c1_944 = arith.constant 1 : index
    %c3_945 = arith.constant 3 : index
    %c3_946 = arith.constant 3 : index
    %c0_947 = arith.constant 0 : index
    %c0_948 = arith.constant 0 : index
    %783 = vector.load %arg12[%c1_944, %c3_945, %c3_946, %c0_947, %c0_948] : memref<2x4x5x8x32xf32, #tpu.memory_space<vmem>>, vector<1x1x1x8x32xf32>
    %784 = vector.shape_cast %783 : vector<1x1x1x8x32xf32> to vector<8x32xf32>
    %c0_949 = arith.constant 0 : index
    %c1_950 = arith.constant 1 : index
    %c4_951 = arith.constant 4 : index
    %c0_952 = arith.constant 0 : index
    %c0_953 = arith.constant 0 : index
    %785 = vector.load %arg12[%c0_949, %c1_950, %c4_951, %c0_952, %c0_953] : memref<2x4x5x8x32xf32, #tpu.memory_space<vmem>>, vector<1x1x1x8x32xf32>
    %786 = vector.shape_cast %785 : vector<1x1x1x8x32xf32> to vector<8x32xf32>
    %c0_954 = arith.constant 0 : index
    %c2_955 = arith.constant 2 : index
    %c4_956 = arith.constant 4 : index
    %c0_957 = arith.constant 0 : index
    %c0_958 = arith.constant 0 : index
    %787 = vector.load %arg12[%c0_954, %c2_955, %c4_956, %c0_957, %c0_958] : memref<2x4x5x8x32xf32, #tpu.memory_space<vmem>>, vector<1x1x1x8x32xf32>
    %788 = vector.shape_cast %787 : vector<1x1x1x8x32xf32> to vector<8x32xf32>
    %c0_959 = arith.constant 0 : index
    %c3_960 = arith.constant 3 : index
    %c4_961 = arith.constant 4 : index
    %c0_962 = arith.constant 0 : index
    %c0_963 = arith.constant 0 : index
    %789 = vector.load %arg12[%c0_959, %c3_960, %c4_961, %c0_962, %c0_963] : memref<2x4x5x8x32xf32, #tpu.memory_space<vmem>>, vector<1x1x1x8x32xf32>
    %790 = vector.shape_cast %789 : vector<1x1x1x8x32xf32> to vector<8x32xf32>
    %c1_964 = arith.constant 1 : index
    %c1_965 = arith.constant 1 : index
    %c4_966 = arith.constant 4 : index
    %c0_967 = arith.constant 0 : index
    %c0_968 = arith.constant 0 : index
    %791 = vector.load %arg12[%c1_964, %c1_965, %c4_966, %c0_967, %c0_968] : memref<2x4x5x8x32xf32, #tpu.memory_space<vmem>>, vector<1x1x1x8x32xf32>
    %792 = vector.shape_cast %791 : vector<1x1x1x8x32xf32> to vector<8x32xf32>
    %c1_969 = arith.constant 1 : index
    %c2_970 = arith.constant 2 : index
    %c4_971 = arith.constant 4 : index
    %c0_972 = arith.constant 0 : index
    %c0_973 = arith.constant 0 : index
    %793 = vector.load %arg12[%c1_969, %c2_970, %c4_971, %c0_972, %c0_973] : memref<2x4x5x8x32xf32, #tpu.memory_space<vmem>>, vector<1x1x1x8x32xf32>
    %794 = vector.shape_cast %793 : vector<1x1x1x8x32xf32> to vector<8x32xf32>
    %c1_974 = arith.constant 1 : index
    %c3_975 = arith.constant 3 : index
    %c4_976 = arith.constant 4 : index
    %c0_977 = arith.constant 0 : index
    %c0_978 = arith.constant 0 : index
    %795 = vector.load %arg12[%c1_974, %c3_975, %c4_976, %c0_977, %c0_978] : memref<2x4x5x8x32xf32, #tpu.memory_space<vmem>>, vector<1x1x1x8x32xf32>
    %796 = vector.shape_cast %795 : vector<1x1x1x8x32xf32> to vector<8x32xf32>
    %797 = tpu.concatenate %780, %782, %784, %786, %788, %790, %792, %794, %796 in 1 : vector<8x32xf32>, vector<8x32xf32>, vector<8x32xf32>, vector<8x32xf32>, vector<8x32xf32>, vector<8x32xf32>, vector<8x32xf32>, vector<8x32xf32>, vector<8x32xf32> -> vector<8x288xf32>
    %c120 = arith.constant 120 : index
    %c0_979 = arith.constant 0 : index
    %798 = vector.load %arg13[%c120, %c0_979] : memref<128x288xf32, #tpu.memory_space<vmem>>, vector<8x288xf32>
    tpu.vector_store %arg13[%c120, %c0_979], %797 {strides = array<i32>} : memref<128x288xf32, #tpu.memory_space<vmem>>, vector<8x288xf32>,
    %c0_i32_980 = arith.constant 0 : i32
    %799 = tpu.memref_slice %arg17[%c0_i32_980] : memref<2x!tpu.dma_semaphore, #tpu.memory_space<semaphore_mem>> -> memref<1x!tpu.dma_semaphore, #tpu.memory_space<semaphore_mem>>
    %800 = tpu.memref_squeeze %799 : memref<1x!tpu.dma_semaphore, #tpu.memory_space<semaphore_mem>> -> memref<!tpu.dma_semaphore, #tpu.memory_space<semaphore_mem>>
    tpu.wait_dma2 semaphore(%800 : memref<!tpu.dma_semaphore, #tpu.memory_space<semaphore_mem>>) src(%arg3 : memref<288x64xf32, #tpu.memory_space<any>>) dst(%arg15 : memref<288x64xf32, #tpu.memory_space<vmem>>)
    %c0_981 = arith.constant 0 : index
    %c0_982 = arith.constant 0 : index
    %801 = vector.load %arg13[%c0_981, %c0_982] : memref<128x288xf32, #tpu.memory_space<vmem>>, vector<128x288xf32>
    %c0_983 = arith.constant 0 : index
    %c0_984 = arith.constant 0 : index
    %802 = vector.load %arg15[%c0_983, %c0_984] : memref<288x64xf32, #tpu.memory_space<vmem>>, vector<288x64xf32>
    %cst_985 = arith.constant dense<0.000000e+00> : vector<128x64xf32>
    %803 = tpu.matmul %801, %802, %cst_985 {dimension_numbers = #tpu.dot_dimension_numbers<[1], [0], [0], [1], [0, 0, 1, 1], [], []>} : vector<128x288xf32>, vector<288x64xf32>, vector<128x64xf32> -> vector<128x64xf32>
    %804 = vector.shape_cast %803 : vector<128x64xf32> to vector<4x32x64xf32>
    %805 = vector.extract_strided_slice %804 {offsets = [0, 0, 0], sizes = [1, 32, 64], strides = [1, 1, 1]} : vector<4x32x64xf32> to vector<1x32x64xf32>
    %806 = vector.shape_cast %805 : vector<1x32x64xf32> to vector<32x64xf32>
    %807 = vector.extract_strided_slice %804 {offsets = [1, 0, 0], sizes = [1, 32, 64], strides = [1, 1, 1]} : vector<4x32x64xf32> to vector<1x32x64xf32>
    %808 = vector.shape_cast %807 : vector<1x32x64xf32> to vector<32x64xf32>
    %809 = arith.maximumf %806, %808 : vector<32x64xf32>
    %810 = vector.extract_strided_slice %804 {offsets = [2, 0, 0], sizes = [1, 32, 64], strides = [1, 1, 1]} : vector<4x32x64xf32> to vector<1x32x64xf32>
    %811 = vector.shape_cast %810 : vector<1x32x64xf32> to vector<32x64xf32>
    %812 = vector.extract_strided_slice %804 {offsets = [3, 0, 0], sizes = [1, 32, 64], strides = [1, 1, 1]} : vector<4x32x64xf32> to vector<1x32x64xf32>
    %813 = vector.shape_cast %812 : vector<1x32x64xf32> to vector<32x64xf32>
    %814 = arith.maximumf %811, %813 : vector<32x64xf32>
    %815 = arith.maximumf %809, %814 : vector<32x64xf32>
    %c0_986 = arith.constant 0 : index
    %c0_987 = arith.constant 0 : index
    %816 = vector.load %arg4[%c0_986, %c0_987] : memref<1x64xf32, #tpu.memory_space<vmem>>, vector<1x64xf32>
    %817 = vector.broadcast %816 : vector<1x64xf32> to vector<32x64xf32>
    %818 = arith.addf %815, %817 : vector<32x64xf32>
    %cst_988 = arith.constant 0.000000e+00 : f32
    %819 = vector.broadcast %cst_988 : f32 to vector<32x64xf32>
    %820 = arith.maximumf %818, %819 : vector<32x64xf32>
    %821 = vector.extract_strided_slice %820 {offsets = [0, 0], sizes = [2, 64], strides = [1, 1]} : vector<32x64xf32> to vector<2x64xf32>
    %c0_989 = arith.constant 0 : index
    %c0_990 = arith.constant 0 : index
    %822 = vector.load %arg14[%c0_989, %c0_990] : memref<2x1024xf32, #tpu.memory_space<vmem>>, vector<2x64xf32>
    tpu.vector_store %arg14[%c0_989, %c0_990], %821 {strides = array<i32>} : memref<2x1024xf32, #tpu.memory_space<vmem>>, vector<2x64xf32>,
    %823 = vector.extract_strided_slice %820 {offsets = [2, 0], sizes = [2, 64], strides = [1, 1]} : vector<32x64xf32> to vector<2x64xf32>
    %c0_991 = arith.constant 0 : index
    %c64_992 = arith.constant 64 : index
    %824 = vector.load %arg14[%c0_991, %c64_992] : memref<2x1024xf32, #tpu.memory_space<vmem>>, vector<2x64xf32>
    tpu.vector_store %arg14[%c0_991, %c64_992], %823 {strides = array<i32>} : memref<2x1024xf32, #tpu.memory_space<vmem>>, vector<2x64xf32>,
    %825 = vector.extract_strided_slice %820 {offsets = [4, 0], sizes = [2, 64], strides = [1, 1]} : vector<32x64xf32> to vector<2x64xf32>
    %c0_993 = arith.constant 0 : index
    %c128 = arith.constant 128 : index
    %826 = vector.load %arg14[%c0_993, %c128] : memref<2x1024xf32, #tpu.memory_space<vmem>>, vector<2x64xf32>
    tpu.vector_store %arg14[%c0_993, %c128], %825 {strides = array<i32>} : memref<2x1024xf32, #tpu.memory_space<vmem>>, vector<2x64xf32>,
    %827 = vector.extract_strided_slice %820 {offsets = [6, 0], sizes = [2, 64], strides = [1, 1]} : vector<32x64xf32> to vector<2x64xf32>
    %c0_994 = arith.constant 0 : index
    %c192 = arith.constant 192 : index
    %828 = vector.load %arg14[%c0_994, %c192] : memref<2x1024xf32, #tpu.memory_space<vmem>>, vector<2x64xf32>
    tpu.vector_store %arg14[%c0_994, %c192], %827 {strides = array<i32>} : memref<2x1024xf32, #tpu.memory_space<vmem>>, vector<2x64xf32>,
    %829 = vector.extract_strided_slice %820 {offsets = [8, 0], sizes = [2, 64], strides = [1, 1]} : vector<32x64xf32> to vector<2x64xf32>
    %c0_995 = arith.constant 0 : index
    %c256 = arith.constant 256 : index
    %830 = vector.load %arg14[%c0_995, %c256] : memref<2x1024xf32, #tpu.memory_space<vmem>>, vector<2x64xf32>
    tpu.vector_store %arg14[%c0_995, %c256], %829 {strides = array<i32>} : memref<2x1024xf32, #tpu.memory_space<vmem>>, vector<2x64xf32>,
    %831 = vector.extract_strided_slice %820 {offsets = [10, 0], sizes = [2, 64], strides = [1, 1]} : vector<32x64xf32> to vector<2x64xf32>
    %c0_996 = arith.constant 0 : index
    %c320 = arith.constant 320 : index
    %832 = vector.load %arg14[%c0_996, %c320] : memref<2x1024xf32, #tpu.memory_space<vmem>>, vector<2x64xf32>
    tpu.vector_store %arg14[%c0_996, %c320], %831 {strides = array<i32>} : memref<2x1024xf32, #tpu.memory_space<vmem>>, vector<2x64xf32>,
    %833 = vector.extract_strided_slice %820 {offsets = [12, 0], sizes = [2, 64], strides = [1, 1]} : vector<32x64xf32> to vector<2x64xf32>
    %c0_997 = arith.constant 0 : index
    %c384 = arith.constant 384 : index
    %834 = vector.load %arg14[%c0_997, %c384] : memref<2x1024xf32, #tpu.memory_space<vmem>>, vector<2x64xf32>
    tpu.vector_store %arg14[%c0_997, %c384], %833 {strides = array<i32>} : memref<2x1024xf32, #tpu.memory_space<vmem>>, vector<2x64xf32>,
    %835 = vector.extract_strided_slice %820 {offsets = [14, 0], sizes = [2, 64], strides = [1, 1]} : vector<32x64xf32> to vector<2x64xf32>
    %c0_998 = arith.constant 0 : index
    %c448 = arith.constant 448 : index
    %836 = vector.load %arg14[%c0_998, %c448] : memref<2x1024xf32, #tpu.memory_space<vmem>>, vector<2x64xf32>
    tpu.vector_store %arg14[%c0_998, %c448], %835 {strides = array<i32>} : memref<2x1024xf32, #tpu.memory_space<vmem>>, vector<2x64xf32>,
    %837 = vector.extract_strided_slice %820 {offsets = [16, 0], sizes = [2, 64], strides = [1, 1]} : vector<32x64xf32> to vector<2x64xf32>
    %c0_999 = arith.constant 0 : index
    %c512 = arith.constant 512 : index
    %838 = vector.load %arg14[%c0_999, %c512] : memref<2x1024xf32, #tpu.memory_space<vmem>>, vector<2x64xf32>
    tpu.vector_store %arg14[%c0_999, %c512], %837 {strides = array<i32>} : memref<2x1024xf32, #tpu.memory_space<vmem>>, vector<2x64xf32>,
    %839 = vector.extract_strided_slice %820 {offsets = [18, 0], sizes = [2, 64], strides = [1, 1]} : vector<32x64xf32> to vector<2x64xf32>
    %c0_1000 = arith.constant 0 : index
    %c576 = arith.constant 576 : index
    %840 = vector.load %arg14[%c0_1000, %c576] : memref<2x1024xf32, #tpu.memory_space<vmem>>, vector<2x64xf32>
    tpu.vector_store %arg14[%c0_1000, %c576], %839 {strides = array<i32>} : memref<2x1024xf32, #tpu.memory_space<vmem>>, vector<2x64xf32>,
    %841 = vector.extract_strided_slice %820 {offsets = [20, 0], sizes = [2, 64], strides = [1, 1]} : vector<32x64xf32> to vector<2x64xf32>
    %c0_1001 = arith.constant 0 : index
    %c640 = arith.constant 640 : index
    %842 = vector.load %arg14[%c0_1001, %c640] : memref<2x1024xf32, #tpu.memory_space<vmem>>, vector<2x64xf32>
    tpu.vector_store %arg14[%c0_1001, %c640], %841 {strides = array<i32>} : memref<2x1024xf32, #tpu.memory_space<vmem>>, vector<2x64xf32>,
    %843 = vector.extract_strided_slice %820 {offsets = [22, 0], sizes = [2, 64], strides = [1, 1]} : vector<32x64xf32> to vector<2x64xf32>
    %c0_1002 = arith.constant 0 : index
    %c704 = arith.constant 704 : index
    %844 = vector.load %arg14[%c0_1002, %c704] : memref<2x1024xf32, #tpu.memory_space<vmem>>, vector<2x64xf32>
    tpu.vector_store %arg14[%c0_1002, %c704], %843 {strides = array<i32>} : memref<2x1024xf32, #tpu.memory_space<vmem>>, vector<2x64xf32>,
    %845 = vector.extract_strided_slice %820 {offsets = [24, 0], sizes = [2, 64], strides = [1, 1]} : vector<32x64xf32> to vector<2x64xf32>
    %c0_1003 = arith.constant 0 : index
    %c768 = arith.constant 768 : index
    %846 = vector.load %arg14[%c0_1003, %c768] : memref<2x1024xf32, #tpu.memory_space<vmem>>, vector<2x64xf32>
    tpu.vector_store %arg14[%c0_1003, %c768], %845 {strides = array<i32>} : memref<2x1024xf32, #tpu.memory_space<vmem>>, vector<2x64xf32>,
    %847 = vector.extract_strided_slice %820 {offsets = [26, 0], sizes = [2, 64], strides = [1, 1]} : vector<32x64xf32> to vector<2x64xf32>
    %c0_1004 = arith.constant 0 : index
    %c832 = arith.constant 832 : index
    %848 = vector.load %arg14[%c0_1004, %c832] : memref<2x1024xf32, #tpu.memory_space<vmem>>, vector<2x64xf32>
    tpu.vector_store %arg14[%c0_1004, %c832], %847 {strides = array<i32>} : memref<2x1024xf32, #tpu.memory_space<vmem>>, vector<2x64xf32>,
    %849 = vector.extract_strided_slice %820 {offsets = [28, 0], sizes = [2, 64], strides = [1, 1]} : vector<32x64xf32> to vector<2x64xf32>
    %c0_1005 = arith.constant 0 : index
    %c896 = arith.constant 896 : index
    %850 = vector.load %arg14[%c0_1005, %c896] : memref<2x1024xf32, #tpu.memory_space<vmem>>, vector<2x64xf32>
    tpu.vector_store %arg14[%c0_1005, %c896], %849 {strides = array<i32>} : memref<2x1024xf32, #tpu.memory_space<vmem>>, vector<2x64xf32>,
    %851 = vector.extract_strided_slice %820 {offsets = [30, 0], sizes = [2, 64], strides = [1, 1]} : vector<32x64xf32> to vector<2x64xf32>
    %c0_1006 = arith.constant 0 : index
    %c960 = arith.constant 960 : index
    %852 = vector.load %arg14[%c0_1006, %c960] : memref<2x1024xf32, #tpu.memory_space<vmem>>, vector<2x64xf32>
    tpu.vector_store %arg14[%c0_1006, %c960], %851 {strides = array<i32>} : memref<2x1024xf32, #tpu.memory_space<vmem>>, vector<2x64xf32>,
    %c1_i32_1007 = arith.constant 1 : i32
    %853 = tpu.memref_slice %arg17[%c1_i32_1007] : memref<2x!tpu.dma_semaphore, #tpu.memory_space<semaphore_mem>> -> memref<1x!tpu.dma_semaphore, #tpu.memory_space<semaphore_mem>>
    %854 = tpu.memref_squeeze %853 : memref<1x!tpu.dma_semaphore, #tpu.memory_space<semaphore_mem>> -> memref<!tpu.dma_semaphore, #tpu.memory_space<semaphore_mem>>
    tpu.wait_dma2 semaphore(%854 : memref<!tpu.dma_semaphore, #tpu.memory_space<semaphore_mem>>) src(%arg5 : memref<1024x128xf32, #tpu.memory_space<any>>) dst(%arg16 : memref<1024x128xf32, #tpu.memory_space<vmem>>)
    %c0_1008 = arith.constant 0 : index
    %c0_1009 = arith.constant 0 : index
    %855 = vector.load %arg14[%c0_1008, %c0_1009] : memref<2x1024xf32, #tpu.memory_space<vmem>>, vector<2x1024xf32>
    %c0_1010 = arith.constant 0 : index
    %c0_1011 = arith.constant 0 : index
    %856 = vector.load %arg16[%c0_1010, %c0_1011] : memref<1024x128xf32, #tpu.memory_space<vmem>>, vector<1024x128xf32>
    %cst_1012 = arith.constant dense<0.000000e+00> : vector<2x128xf32>
    %857 = tpu.matmul %855, %856, %cst_1012 {dimension_numbers = #tpu.dot_dimension_numbers<[1], [0], [0], [1], [0, 0, 1, 1], [], []>} : vector<2x1024xf32>, vector<1024x128xf32>, vector<2x128xf32> -> vector<2x128xf32>
    %c0_1013 = arith.constant 0 : index
    %c0_1014 = arith.constant 0 : index
    %858 = vector.load %arg6[%c0_1013, %c0_1014] : memref<1x128xf32, #tpu.memory_space<vmem>>, vector<1x128xf32>
    %859 = vector.broadcast %858 : vector<1x128xf32> to vector<2x128xf32>
    %860 = arith.addf %857, %859 : vector<2x128xf32>
    %cst_1015 = arith.constant 0.000000e+00 : f32
    %861 = vector.broadcast %cst_1015 : f32 to vector<2x128xf32>
    %862 = arith.maximumf %860, %861 : vector<2x128xf32>
    %cst_1016 = arith.constant dense<0.000000e+00> : vector<2xf32>
    %863 = vector.multi_reduction <add>, %862, %cst_1016 [1] : vector<2x128xf32> to vector<2xf32>
    %864 = vector.shape_cast %863 : vector<2xf32> to vector<2x1xf32>
    %cst_1017 = arith.constant 1.280000e+02 : f32
    %865 = vector.broadcast %cst_1017 : f32 to vector<2x1xf32>
    %866 = arith.divf %864, %865 : vector<2x1xf32>
    %867 = vector.broadcast %866 : vector<2x1xf32> to vector<2x128xf32>
    %868 = arith.subf %862, %867 : vector<2x128xf32>
    %869 = vector.broadcast %866 : vector<2x1xf32> to vector<2x128xf32>
    %870 = arith.subf %862, %869 : vector<2x128xf32>
    %871 = arith.mulf %868, %870 : vector<2x128xf32>
    %cst_1018 = arith.constant dense<0.000000e+00> : vector<2xf32>
    %872 = vector.multi_reduction <add>, %871, %cst_1018 [1] : vector<2x128xf32> to vector<2xf32>
    %873 = vector.shape_cast %872 : vector<2xf32> to vector<2x1xf32>
    %cst_1019 = arith.constant 1.280000e+02 : f32
    %874 = vector.broadcast %cst_1019 : f32 to vector<2x1xf32>
    %875 = arith.divf %873, %874 : vector<2x1xf32>
    %876 = vector.broadcast %866 : vector<2x1xf32> to vector<2x128xf32>
    %877 = arith.subf %862, %876 : vector<2x128xf32>
    %cst_1020 = arith.constant 9.99999974E-6 : f32
    %878 = vector.broadcast %cst_1020 : f32 to vector<2x1xf32>
    %879 = arith.addf %875, %878 : vector<2x1xf32>
    %880 = math.rsqrt %879 : vector<2x1xf32>
    %881 = vector.broadcast %880 : vector<2x1xf32> to vector<2x128xf32>
    %882 = arith.mulf %877, %881 : vector<2x128xf32>
    %c0_1021 = arith.constant 0 : index
    %c0_1022 = arith.constant 0 : index
    %883 = vector.load %arg7[%c0_1021, %c0_1022] : memref<1x128xf32, #tpu.memory_space<vmem>>, vector<1x128xf32>
    %884 = vector.broadcast %883 : vector<1x128xf32> to vector<2x128xf32>
    %885 = arith.mulf %882, %884 : vector<2x128xf32>
    %c0_1023 = arith.constant 0 : index
    %c0_1024 = arith.constant 0 : index
    %886 = vector.load %arg8[%c0_1023, %c0_1024] : memref<1x128xf32, #tpu.memory_space<vmem>>, vector<1x128xf32>
    %887 = vector.broadcast %886 : vector<1x128xf32> to vector<2x128xf32>
    %888 = arith.addf %885, %887 : vector<2x128xf32>
    %c0_1025 = arith.constant 0 : index
    %c0_1026 = arith.constant 0 : index
    %889 = vector.load %arg9[%c0_1025, %c0_1026] : memref<128x10xf32, #tpu.memory_space<vmem>>, vector<128x10xf32>
    %cst_1027 = arith.constant dense<0.000000e+00> : vector<2x10xf32>
    %890 = tpu.matmul %888, %889, %cst_1027 {dimension_numbers = #tpu.dot_dimension_numbers<[1], [0], [0], [1], [0, 0, 1, 1], [], []>} : vector<2x128xf32>, vector<128x10xf32>, vector<2x10xf32> -> vector<2x10xf32>
    %c0_1028 = arith.constant 0 : index
    %c0_1029 = arith.constant 0 : index
    %891 = vector.load %arg10[%c0_1028, %c0_1029] : memref<1x10xf32, #tpu.memory_space<vmem>>, vector<1x10xf32>
    %892 = vector.broadcast %891 : vector<1x10xf32> to vector<2x10xf32>
    %893 = arith.addf %890, %892 : vector<2x10xf32>
    %cst_1030 = arith.constant dense<0xFF800000> : vector<2xf32>
    %894 = vector.multi_reduction <maximumf>, %893, %cst_1030 [1] : vector<2x10xf32> to vector<2xf32>
    %895 = vector.shape_cast %894 : vector<2xf32> to vector<2x1xf32>
    %896 = vector.broadcast %895 : vector<2x1xf32> to vector<2x10xf32>
    %897 = arith.subf %893, %896 : vector<2x10xf32>
    %898 = math.exp %897 : vector<2x10xf32>
    %cst_1031 = arith.constant dense<0.000000e+00> : vector<2xf32>
    %899 = vector.multi_reduction <add>, %898, %cst_1031 [1] : vector<2x10xf32> to vector<2xf32>
    %900 = vector.shape_cast %899 : vector<2xf32> to vector<2x1xf32>
    %901 = vector.broadcast %900 : vector<2x1xf32> to vector<2x10xf32>
    %902 = arith.divf %898, %901 : vector<2x10xf32>
    %c0_1032 = arith.constant 0 : index
    %c0_1033 = arith.constant 0 : index
    %903 = vector.load %arg11[%c0_1032, %c0_1033] : memref<2x10xf32, #tpu.memory_space<vmem>>, vector<2x10xf32>
    tpu.vector_store %arg11[%c0_1032, %c0_1033], %902 {strides = array<i32>} : memref<2x10xf32, #tpu.memory_space<vmem>>, vector<2x10xf32>,
    return
  }
}

</mosaic_0001>

<llo_original>
// kernel: forward.1
$region0: #{forward.1}
  #allocation0 [shape = 'u32[]', space=smem, size = 0x4, offset = 0x4, fixed_abs, tag = 'smem constant byte address 0x4 - core index']
  #allocation1 [shape = 'u32[144,128]{1,0:T(1,128)}', space=vmem, size = 0x12000, scoped, tag = 'internal scratch']
  #allocation2 [shape = 'f32[2,4,5,8,32]{4,3,2,1,0:T(8,128)}', space=vmem, size = 0x28000, scoped, tag = 'scratch operand']
  #allocation3 [shape = 'f32[128,288]{1,0:T(8,128)}', space=vmem, size = 0x30000, scoped, tag = 'scratch operand']
  #allocation4 [shape = 'f32[2,1024]{1,0:T(2,128)}', space=vmem, size = 0x2000, scoped, tag = 'scratch operand']
  #allocation5 [shape = 'f32[288,64]{1,0:T(8,128)}', space=vmem, size = 0x24000, scoped, tag = 'scratch operand']
  #allocation6 [shape = 'f32[1024,128]{1,0:T(8,128)}', space=vmem, size = 0x80000, scoped, tag = 'scratch operand']
  #allocation7 [shape = 's32[2]{0}', space=sflag, size = 0x8, scoped, tag = 'scratch operand']
  #allocation10 [shape = 's32[]', space=sflag, size = 0x4, offset = 0, fixed_abs, tag = 'sflag constant byte address 0x0 - dummy sync flag']
  #allocation11 [shape = 's32[]', space=sflag, size = 0x4, offset = 0, fixed_abs, tag = 'sflag constant byte address 0x0 - dummy sync flag']
  %s0 = inlined_call_operand.vmem [shape: f32[4,8,36], index: 0, kind: input, shape index: {}]
  %s1 = inlined_call_operand.vmem [shape: f32[16,128], index: 1, kind: input, shape index: {}]
  %s2 = inlined_call_operand.vmem [shape: f32[1,32], index: 2, kind: input, shape index: {}]
  %s3 = inlined_call_operand.vmem [shape: f32[288,64], index: 3, kind: input, shape index: {}]
  %s4 = inlined_call_operand.vmem [shape: f32[1,64], index: 4, kind: input, shape index: {}]
  %s5 = inlined_call_operand.vmem [shape: f32[1024,128], index: 5, kind: input, shape index: {}]
  %s6 = inlined_call_operand.vmem [shape: f32[1,128], index: 6, kind: input, shape index: {}]
  %s7 = inlined_call_operand.vmem [shape: f32[1,128], index: 7, kind: input, shape index: {}]
  %s8 = inlined_call_operand.vmem [shape: f32[1,128], index: 8, kind: input, shape index: {}]
  %s9 = inlined_call_operand.vmem [shape: f32[128,10], index: 9, kind: input, shape index: {}]
  %s10 = inlined_call_operand.vmem [shape: f32[1,10], index: 10, kind: input, shape index: {}]
  %s11 = inlined_call_operand.hbm [shape: f32[2,10], index: 11, kind: output, shape index: {}]
  %s12 = sld [smem:[#allocation0]]
  $region114: #{forward.1} parent=0
    _
  %s14 = ssub.s32 1, %s12
  %s15 = scalar_select 0, %s14, %s12
  $region1: #{forward.1} parent=0
    #allocation8 [shape = 'u8[1024]{0}', space=vmem, size = 0x400, scoped, tag = 'output window, operand 0, single buffered']
    #allocation9 [shape = 's32[1]{0}', space=sflag, size = 0x4, scoped, tag = 'scoped memory for forward.1']
    %16 = vsyncpa [#allocation9], 0
    // Predicated region
    $region2: #{forward.1} parent=1 // pred_check
      _
    $region3: #{forward.1} parent=1 // pred_check_branch
      %18 = sbr.rel (0) target = $region5
    $region4: #{forward.1} parent=1 // pred_region
      _
    $region5: #{forward.1} parent=1 // pred_fallthru
      _
    // Predicated region
    $region6: #{forward.1} parent=1 // pred_check
      _
    $region7: #{forward.1} parent=1 // pred_check_branch
      %20 = sbr.rel (0) target = $region9
    $region8: #{forward.1} parent=1 // pred_region
      _
    $region9: #{forward.1} parent=1 // pred_fallthru
      _
    // Predicated region
    $region10: #{forward.1} parent=1 // pred_check
      _
    $region11: #{forward.1} parent=1 // pred_check_branch
      %22 = sbr.rel (0) target = $region13
    $region12: #{forward.1} parent=1 // pred_region
      _
    $region13: #{forward.1} parent=1 // pred_fallthru
      _
    // Predicated region
    $region14: #{forward.1} parent=1 // pred_check
      _
    $region15: #{forward.1} parent=1 // pred_check_branch
      %24 = sbr.rel (0) target = $region17
    $region16: #{forward.1} parent=1 // pred_region
      _
    $region17: #{forward.1} parent=1 // pred_fallthru
      _
    // Predicated region
    $region18: #{forward.1} parent=1 // pred_check
      _
    $region19: #{forward.1} parent=1 // pred_check_branch
      %26 = sbr.rel (0) target = $region21
    $region20: #{forward.1} parent=1 // pred_region
      _
    $region21: #{forward.1} parent=1 // pred_fallthru
      _
    // Predicated region
    $region22: #{forward.1} parent=1 // pred_check
      _
    $region23: #{forward.1} parent=1 // pred_check_branch
      %28 = sbr.rel (0) target = $region25
    $region24: #{forward.1} parent=1 // pred_region
      _
    $region25: #{forward.1} parent=1 // pred_fallthru
      _
    // Predicated region
    $region26: #{forward.1} parent=1 // pred_check
      _
    $region27: #{forward.1} parent=1 // pred_check_branch
      %30 = sbr.rel (0) target = $region29
    $region28: #{forward.1} parent=1 // pred_region
      _
    $region29: #{forward.1} parent=1 // pred_fallthru
      _
    // Predicated region
    $region30: #{forward.1} parent=1 // pred_check
      _
    $region31: #{forward.1} parent=1 // pred_check_branch
      %32 = sbr.rel (0) target = $region33
    $region32: #{forward.1} parent=1 // pred_region
      _
    $region33: #{forward.1} parent=1 // pred_fallthru
      _
    // Predicated region
    $region34: #{forward.1} parent=1 // pred_check
      _
    $region35: #{forward.1} parent=1 // pred_check_branch
      %34 = sbr.rel (0) target = $region37
    $region36: #{forward.1} parent=1 // pred_region
      _
    $region37: #{forward.1} parent=1 // pred_fallthru
      _
    %p36 = scmp.lt.u32.totalorder 288, 8
    %p37 = pneg %p36
    // Predicated region
    $region38: #{forward.1} parent=1 // pred_check
      _
    $region39: #{forward.1} parent=1 // pred_check_branch
      %39 = sbr.rel (%p36) target = $region41
    $region40: #{forward.1} parent=1 // pred_region
      %s54 = sand.u32 288, 7
      %p55 = scmp.eq.s32.totalorder %s54, 0
      // Predicated region
      $region53: #{forward.1} parent=40 // pred_check
        %p56 = pneg %p55
      $region54: #{forward.1} parent=40 // pred_check_branch
        %58 = sbr.rel (%p56) target = $region56
      $region55: #{forward.1} parent=40 // pred_region
        loop: start=0, step=1, limit=1
        $region57: #{forward.1} parent=55 // loop_pre_header
          _
        $region58: #{forward.1} parent=55 // loop_header
          %s60 = sphi 0, %s64
          %p61 = scmp.ge.s32.totalorder %s60, 1
          %s65 = sphi %s3, %s3
          %s66 = sphi [#allocation5], [#allocation5]
        $region59: #{forward.1} parent=55 // loop_header_branch
          %63 = sbr.rel (%p61) target = $region63
        $region60: #{forward.1} parent=55 // loop_body
          %v67 = vld [vmem:[%s65] sm:$0xff]
          %68 = vst [vmem:[%s66] sm:$0xff] %v67
          %v69 = vld [vmem:[%s65 + $0x8] sm:$0xff]
          %70 = vst [vmem:[%s66 + $0x8] sm:$0xff] %v69
          %v71 = vld [vmem:[%s65 + $0x10] sm:$0xff]
          %72 = vst [vmem:[%s66 + $0x10] sm:$0xff] %v71
          %v73 = vld [vmem:[%s65 + $0x18] sm:$0xff]
          %74 = vst [vmem:[%s66 + $0x18] sm:$0xff] %v73
          %v75 = vld [vmem:[%s65 + $0x20] sm:$0xff]
          %76 = vst [vmem:[%s66 + $0x20] sm:$0xff] %v75
          %v77 = vld [vmem:[%s65 + $0x28] sm:$0xff]
          %78 = vst [vmem:[%s66 + $0x28] sm:$0xff] %v77
          %v79 = vld [vmem:[%s65 + $0x30] sm:$0xff]
          %80 = vst [vmem:[%s66 + $0x30] sm:$0xff] %v79
          %v81 = vld [vmem:[%s65 + $0x38] sm:$0xff]
          %82 = vst [vmem:[%s66 + $0x38] sm:$0xff] %v81
          %v83 = vld [vmem:[%s65 + $0x40] sm:$0xff]
          %84 = vst [vmem:[%s66 + $0x40] sm:$0xff] %v83
          %v85 = vld [vmem:[%s65 + $0x48] sm:$0xff]
          %86 = vst [vmem:[%s66 + $0x48] sm:$0xff] %v85
          %v87 = vld [vmem:[%s65 + $0x50] sm:$0xff]
          %88 = vst [vmem:[%s66 + $0x50] sm:$0xff] %v87
          %v89 = vld [vmem:[%s65 + $0x58] sm:$0xff]
          %90 = vst [vmem:[%s66 + $0x58] sm:$0xff] %v89
          %v91 = vld [vmem:[%s65 + $0x60] sm:$0xff]
          %92 = vst [vmem:[%s66 + $0x60] sm:$0xff] %v91
          %v93 = vld [vmem:[%s65 + $0x68] sm:$0xff]
          %94 = vst [vmem:[%s66 + $0x68] sm:$0xff] %v93
          %v95 = vld [vmem:[%s65 + $0x70] sm:$0xff]
          %96 = vst [vmem:[%s66 + $0x70] sm:$0xff] %v95
          %v97 = vld [vmem:[%s65 + $0x78] sm:$0xff]
          %98 = vst [vmem:[%s66 + $0x78] sm:$0xff] %v97
          %v99 = vld [vmem:[%s65 + $0x80] sm:$0xff]
          %100 = vst [vmem:[%s66 + $0x80] sm:$0xff] %v99
          %v101 = vld [vmem:[%s65 + $0x88] sm:$0xff]
          %102 = vst [vmem:[%s66 + $0x88] sm:$0xff] %v101
          %v103 = vld [vmem:[%s65 + $0x90] sm:$0xff]
          %104 = vst [vmem:[%s66 + $0x90] sm:$0xff] %v103
          %v105 = vld [vmem:[%s65 + $0x98] sm:$0xff]
          %106 = vst [vmem:[%s66 + $0x98] sm:$0xff] %v105
          %v107 = vld [vmem:[%s65 + $0xa0] sm:$0xff]
          %108 = vst [vmem:[%s66 + $0xa0] sm:$0xff] %v107
          %v109 = vld [vmem:[%s65 + $0xa8] sm:$0xff]
          %110 = vst [vmem:[%s66 + $0xa8] sm:$0xff] %v109
          %v111 = vld [vmem:[%s65 + $0xb0] sm:$0xff]
          %112 = vst [vmem:[%s66 + $0xb0] sm:$0xff] %v111
          %v113 = vld [vmem:[%s65 + $0xb8] sm:$0xff]
          %114 = vst [vmem:[%s66 + $0xb8] sm:$0xff] %v113
          %v115 = vld [vmem:[%s65 + $0xc0] sm:$0xff]
          %116 = vst [vmem:[%s66 + $0xc0] sm:$0xff] %v115
          %v117 = vld [vmem:[%s65 + $0xc8] sm:$0xff]
          %118 = vst [vmem:[%s66 + $0xc8] sm:$0xff] %v117
          %v119 = vld [vmem:[%s65 + $0xd0] sm:$0xff]
          %120 = vst [vmem:[%s66 + $0xd0] sm:$0xff] %v119
          %v121 = vld [vmem:[%s65 + $0xd8] sm:$0xff]
          %122 = vst [vmem:[%s66 + $0xd8] sm:$0xff] %v121
          %v123 = vld [vmem:[%s65 + $0xe0] sm:$0xff]
          %124 = vst [vmem:[%s66 + $0xe0] sm:$0xff] %v123
          %v125 = vld [vmem:[%s65 + $0xe8] sm:$0xff]
          %126 = vst [vmem:[%s66 + $0xe8] sm:$0xff] %v125
          %v127 = vld [vmem:[%s65 + $0xf0] sm:$0xff]
          %128 = vst [vmem:[%s66 + $0xf0] sm:$0xff] %v127
          %v129 = vld [vmem:[%s65 + $0xf8] sm:$0xff]
          %130 = vst [vmem:[%s66 + $0xf8] sm:$0xff] %v129
          %v131 = vld [vmem:[%s65 + $0x100] sm:$0xff]
          %132 = vst [vmem:[%s66 + $0x100] sm:$0xff] %v131
          %v133 = vld [vmem:[%s65 + $0x108] sm:$0xff]
          %134 = vst [vmem:[%s66 + $0x108] sm:$0xff] %v133
          %v135 = vld [vmem:[%s65 + $0x110] sm:$0xff]
          %136 = vst [vmem:[%s66 + $0x110] sm:$0xff] %v135
          %v137 = vld [vmem:[%s65 + $0x118] sm:$0xff]
          %138 = vst [vmem:[%s66 + $0x118] sm:$0xff] %v137
        $region61: #{forward.1} parent=55 // loop_footer
          %s64 = sadd.s32 1, %s60
        $region62: #{forward.1} parent=55 // loop_footer_branch
          %59 = sbr.rel target = $region58
        $region63: #{forward.1} parent=55 // loop_exit
          _
      $region56: #{forward.1} parent=40 // pred_fallthru
        _
      %p139 = pneg %p55
      // Predicated region
      $region64: #{forward.1} parent=40 // pred_check
        _
      $region65: #{forward.1} parent=40 // pred_check_branch
        %141 = sbr.rel (%p55) target = $region67
      $region66: #{forward.1} parent=40 // pred_region
        %s142 = sand.u32 288, 7
      $region67: #{forward.1} parent=40 // pred_fallthru
        _
    $region41: #{forward.1} parent=1 // pred_fallthru
      _
    // Predicated region
    $region42: #{forward.1} parent=1 // pred_check
      %p40 = pneg %p36
    $region43: #{forward.1} parent=1 // pred_check_branch
      %42 = sbr.rel (%p40) target = $region45
    $region44: #{forward.1} parent=1 // pred_region
      %s43 = sshllo.u32 0, 288
      loop: start=0, step=1, limit=1
      $region46: #{forward.1} parent=44 // loop_pre_header
        _
      $region47: #{forward.1} parent=44 // loop_header
        %s45 = sphi 0, %s49
        %p46 = scmp.ge.s32.totalorder %s45, 1
        %s50 = sphi %s3, %s3
        %s51 = sphi [#allocation5], [#allocation5]
      $region48: #{forward.1} parent=44 // loop_header_branch
        %48 = sbr.rel (%p46) target = $region52
      $region49: #{forward.1} parent=44 // loop_body
        %v52 = vld [vmem:[%s50] sm:%s43]
        %53 = vst [vmem:[%s51] sm:%s43] %v52
      $region50: #{forward.1} parent=44 // loop_footer
        %s49 = sadd.s32 1, %s45
      $region51: #{forward.1} parent=44 // loop_footer_branch
        %44 = sbr.rel target = $region47
      $region52: #{forward.1} parent=44 // loop_exit
        _
    $region45: #{forward.1} parent=1 // pred_fallthru
      _
    // Predicated region
    $region68: #{forward.1} parent=1 // pred_check
      _
    $region69: #{forward.1} parent=1 // pred_check_branch
      %145 = sbr.rel (0) target = $region71
    $region70: #{forward.1} parent=1 // pred_region
      %146 = vsyncadd [#allocation7], 4608
    $region71: #{forward.1} parent=1 // pred_fallthru
      _
    %s147 = scalar_lea.sflag [#allocation7], 1
    %p149 = scmp.lt.u32.totalorder 1024, 8
    %p150 = pneg %p149
    // Predicated region
    $region72: #{forward.1} parent=1 // pred_check
      _
    $region73: #{forward.1} parent=1 // pred_check_branch
      %152 = sbr.rel (%p149) target = $region75
    $region74: #{forward.1} parent=1 // pred_region
      %s167 = sand.u32 1024, 7
      %p168 = scmp.eq.s32.totalorder %s167, 0
      // Predicated region
      $region87: #{forward.1} parent=74 // pred_check
        %p169 = pneg %p168
      $region88: #{forward.1} parent=74 // pred_check_branch
        %171 = sbr.rel (%p169) target = $region90
      $region89: #{forward.1} parent=74 // pred_region
        loop: start=0, step=1, limit=1
        $region91: #{forward.1} parent=89 // loop_pre_header
          _
        $region92: #{forward.1} parent=89 // loop_header
          %s173 = sphi 0, %s177
          %p174 = scmp.ge.s32.totalorder %s173, 1
          %s178 = sphi %s5, %s5
          %s179 = sphi [#allocation6], [#allocation6]
        $region93: #{forward.1} parent=89 // loop_header_branch
          %176 = sbr.rel (%p174) target = $region97
        $region94: #{forward.1} parent=89 // loop_body
          %v180 = vld [vmem:[%s178] sm:$0xff]
          %181 = vst [vmem:[%s179] sm:$0xff] %v180
          %v182 = vld [vmem:[%s178 + $0x8] sm:$0xff]
          %183 = vst [vmem:[%s179 + $0x8] sm:$0xff] %v182
          %v184 = vld [vmem:[%s178 + $0x10] sm:$0xff]
          %185 = vst [vmem:[%s179 + $0x10] sm:$0xff] %v184
          %v186 = vld [vmem:[%s178 + $0x18] sm:$0xff]
          %187 = vst [vmem:[%s179 + $0x18] sm:$0xff] %v186
          %v188 = vld [vmem:[%s178 + $0x20] sm:$0xff]
          %189 = vst [vmem:[%s179 + $0x20] sm:$0xff] %v188
          %v190 = vld [vmem:[%s178 + $0x28] sm:$0xff]
          %191 = vst [vmem:[%s179 + $0x28] sm:$0xff] %v190
          %v192 = vld [vmem:[%s178 + $0x30] sm:$0xff]
          %193 = vst [vmem:[%s179 + $0x30] sm:$0xff] %v192
          %v194 = vld [vmem:[%s178 + $0x38] sm:$0xff]
          %195 = vst [vmem:[%s179 + $0x38] sm:$0xff] %v194
          %v196 = vld [vmem:[%s178 + $0x40] sm:$0xff]
          %197 = vst [vmem:[%s179 + $0x40] sm:$0xff] %v196
          %v198 = vld [vmem:[%s178 + $0x48] sm:$0xff]
          %199 = vst [vmem:[%s179 + $0x48] sm:$0xff] %v198
          %v200 = vld [vmem:[%s178 + $0x50] sm:$0xff]
          %201 = vst [vmem:[%s179 + $0x50] sm:$0xff] %v200
          %v202 = vld [vmem:[%s178 + $0x58] sm:$0xff]
          %203 = vst [vmem:[%s179 + $0x58] sm:$0xff] %v202
          %v204 = vld [vmem:[%s178 + $0x60] sm:$0xff]
          %205 = vst [vmem:[%s179 + $0x60] sm:$0xff] %v204
          %v206 = vld [vmem:[%s178 + $0x68] sm:$0xff]
          %207 = vst [vmem:[%s179 + $0x68] sm:$0xff] %v206
          %v208 = vld [vmem:[%s178 + $0x70] sm:$0xff]
          %209 = vst [vmem:[%s179 + $0x70] sm:$0xff] %v208
          %v210 = vld [vmem:[%s178 + $0x78] sm:$0xff]
          %211 = vst [vmem:[%s179 + $0x78] sm:$0xff] %v210
          %v212 = vld [vmem:[%s178 + $0x80] sm:$0xff]
          %213 = vst [vmem:[%s179 + $0x80] sm:$0xff] %v212
          %v214 = vld [vmem:[%s178 + $0x88] sm:$0xff]
          %215 = vst [vmem:[%s179 + $0x88] sm:$0xff] %v214
          %v216 = vld [vmem:[%s178 + $0x90] sm:$0xff]
          %217 = vst [vmem:[%s179 + $0x90] sm:$0xff] %v216
          %v218 = vld [vmem:[%s178 + $0x98] sm:$0xff]
          %219 = vst [vmem:[%s179 + $0x98] sm:$0xff] %v218
          %v220 = vld [vmem:[%s178 + $0xa0] sm:$0xff]
          %221 = vst [vmem:[%s179 + $0xa0] sm:$0xff] %v220
          %v222 = vld [vmem:[%s178 + $0xa8] sm:$0xff]
          %223 = vst [vmem:[%s179 + $0xa8] sm:$0xff] %v222
          %v224 = vld [vmem:[%s178 + $0xb0] sm:$0xff]
          %225 = vst [vmem:[%s179 + $0xb0] sm:$0xff] %v224
          %v226 = vld [vmem:[%s178 + $0xb8] sm:$0xff]
          %227 = vst [vmem:[%s179 + $0xb8] sm:$0xff] %v226
          %v228 = vld [vmem:[%s178 + $0xc0] sm:$0xff]
          %229 = vst [vmem:[%s179 + $0xc0] sm:$0xff] %v228
          %v230 = vld [vmem:[%s178 + $0xc8] sm:$0xff]
          %231 = vst [vmem:[%s179 + $0xc8] sm:$0xff] %v230
          %v232 = vld [vmem:[%s178 + $0xd0] sm:$0xff]
          %233 = vst [vmem:[%s179 + $0xd0] sm:$0xff] %v232
          %v234 = vld [vmem:[%s178 + $0xd8] sm:$0xff]
          %235 = vst [vmem:[%s179 + $0xd8] sm:$0xff] %v234
          %v236 = vld [vmem:[%s178 + $0xe0] sm:$0xff]
          %237 = vst [vmem:[%s179 + $0xe0] sm:$0xff] %v236
          %v238 = vld [vmem:[%s178 + $0xe8] sm:$0xff]
          %239 = vst [vmem:[%s179 + $0xe8] sm:$0xff] %v238
          %v240 = vld [vmem:[%s178 + $0xf0] sm:$0xff]
          %241 = vst [vmem:[%s179 + $0xf0] sm:$0xff] %v240
          %v242 = vld [vmem:[%s178 + $0xf8] sm:$0xff]
          %243 = vst [vmem:[%s179 + $0xf8] sm:$0xff] %v242
          %v244 = vld [vmem:[%s178 + $0x100] sm:$0xff]
          %245 = vst [vmem:[%s179 + $0x100] sm:$0xff] %v244
          %v246 = vld [vmem:[%s178 + $0x108] sm:$0xff]
          %247 = vst [vmem:[%s179 + $0x108] sm:$0xff] %v246
          %v248 = vld [vmem:[%s178 + $0x110] sm:$0xff]
          %249 = vst [vmem:[%s179 + $0x110] sm:$0xff] %v248
          %v250 = vld [vmem:[%s178 + $0x118] sm:$0xff]
          %251 = vst [vmem:[%s179 + $0x118] sm:$0xff] %v250
          %v252 = vld [vmem:[%s178 + $0x120] sm:$0xff]
          %253 = vst [vmem:[%s179 + $0x120] sm:$0xff] %v252
          %v254 = vld [vmem:[%s178 + $0x128] sm:$0xff]
          %255 = vst [vmem:[%s179 + $0x128] sm:$0xff] %v254
          %v256 = vld [vmem:[%s178 + $0x130] sm:$0xff]
          %257 = vst [vmem:[%s179 + $0x130] sm:$0xff] %v256
          %v258 = vld [vmem:[%s178 + $0x138] sm:$0xff]
          %259 = vst [vmem:[%s179 + $0x138] sm:$0xff] %v258
          %v260 = vld [vmem:[%s178 + $0x140] sm:$0xff]
          %261 = vst [vmem:[%s179 + $0x140] sm:$0xff] %v260
          %v262 = vld [vmem:[%s178 + $0x148] sm:$0xff]
          %263 = vst [vmem:[%s179 + $0x148] sm:$0xff] %v262
          %v264 = vld [vmem:[%s178 + $0x150] sm:$0xff]
          %265 = vst [vmem:[%s179 + $0x150] sm:$0xff] %v264
          %v266 = vld [vmem:[%s178 + $0x158] sm:$0xff]
          %267 = vst [vmem:[%s179 + $0x158] sm:$0xff] %v266
          %v268 = vld [vmem:[%s178 + $0x160] sm:$0xff]
          %269 = vst [vmem:[%s179 + $0x160] sm:$0xff] %v268
          %v270 = vld [vmem:[%s178 + $0x168] sm:$0xff]
          %271 = vst [vmem:[%s179 + $0x168] sm:$0xff] %v270
          %v272 = vld [vmem:[%s178 + $0x170] sm:$0xff]
          %273 = vst [vmem:[%s179 + $0x170] sm:$0xff] %v272
          %v274 = vld [vmem:[%s178 + $0x178] sm:$0xff]
          %275 = vst [vmem:[%s179 + $0x178] sm:$0xff] %v274
          %v276 = vld [vmem:[%s178 + $0x180] sm:$0xff]
          %277 = vst [vmem:[%s179 + $0x180] sm:$0xff] %v276
          %v278 = vld [vmem:[%s178 + $0x188] sm:$0xff]
          %279 = vst [vmem:[%s179 + $0x188] sm:$0xff] %v278
          %v280 = vld [vmem:[%s178 + $0x190] sm:$0xff]
          %281 = vst [vmem:[%s179 + $0x190] sm:$0xff] %v280
          %v282 = vld [vmem:[%s178 + $0x198] sm:$0xff]
          %283 = vst [vmem:[%s179 + $0x198] sm:$0xff] %v282
          %v284 = vld [vmem:[%s178 + $0x1a0] sm:$0xff]
          %285 = vst [vmem:[%s179 + $0x1a0] sm:$0xff] %v284
          %v286 = vld [vmem:[%s178 + $0x1a8] sm:$0xff]
          %287 = vst [vmem:[%s179 + $0x1a8] sm:$0xff] %v286
          %v288 = vld [vmem:[%s178 + $0x1b0] sm:$0xff]
          %289 = vst [vmem:[%s179 + $0x1b0] sm:$0xff] %v288
          %v290 = vld [vmem:[%s178 + $0x1b8] sm:$0xff]
          %291 = vst [vmem:[%s179 + $0x1b8] sm:$0xff] %v290
          %v292 = vld [vmem:[%s178 + $0x1c0] sm:$0xff]
          %293 = vst [vmem:[%s179 + $0x1c0] sm:$0xff] %v292
          %v294 = vld [vmem:[%s178 + $0x1c8] sm:$0xff]
          %295 = vst [vmem:[%s179 + $0x1c8] sm:$0xff] %v294
          %v296 = vld [vmem:[%s178 + $0x1d0] sm:$0xff]
          %297 = vst [vmem:[%s179 + $0x1d0] sm:$0xff] %v296
          %v298 = vld [vmem:[%s178 + $0x1d8] sm:$0xff]
          %299 = vst [vmem:[%s179 + $0x1d8] sm:$0xff] %v298
          %v300 = vld [vmem:[%s178 + $0x1e0] sm:$0xff]
          %301 = vst [vmem:[%s179 + $0x1e0] sm:$0xff] %v300
          %v302 = vld [vmem:[%s178 + $0x1e8] sm:$0xff]
          %303 = vst [vmem:[%s179 + $0x1e8] sm:$0xff] %v302
          %v304 = vld [vmem:[%s178 + $0x1f0] sm:$0xff]
          %305 = vst [vmem:[%s179 + $0x1f0] sm:$0xff] %v304
          %v306 = vld [vmem:[%s178 + $0x1f8] sm:$0xff]
          %307 = vst [vmem:[%s179 + $0x1f8] sm:$0xff] %v306
          %v308 = vld [vmem:[%s178 + $0x200] sm:$0xff]
          %309 = vst [vmem:[%s179 + $0x200] sm:$0xff] %v308
          %v310 = vld [vmem:[%s178 + $0x208] sm:$0xff]
          %311 = vst [vmem:[%s179 + $0x208] sm:$0xff] %v310
          %v312 = vld [vmem:[%s178 + $0x210] sm:$0xff]
          %313 = vst [vmem:[%s179 + $0x210] sm:$0xff] %v312
          %v314 = vld [vmem:[%s178 + $0x218] sm:$0xff]
          %315 = vst [vmem:[%s179 + $0x218] sm:$0xff] %v314
          %v316 = vld [vmem:[%s178 + $0x220] sm:$0xff]
          %317 = vst [vmem:[%s179 + $0x220] sm:$0xff] %v316
          %v318 = vld [vmem:[%s178 + $0x228] sm:$0xff]
          %319 = vst [vmem:[%s179 + $0x228] sm:$0xff] %v318
          %v320 = vld [vmem:[%s178 + $0x230] sm:$0xff]
          %321 = vst [vmem:[%s179 + $0x230] sm:$0xff] %v320
          %v322 = vld [vmem:[%s178 + $0x238] sm:$0xff]
          %323 = vst [vmem:[%s179 + $0x238] sm:$0xff] %v322
          %v324 = vld [vmem:[%s178 + $0x240] sm:$0xff]
          %325 = vst [vmem:[%s179 + $0x240] sm:$0xff] %v324
          %v326 = vld [vmem:[%s178 + $0x248] sm:$0xff]
          %327 = vst [vmem:[%s179 + $0x248] sm:$0xff] %v326
          %v328 = vld [vmem:[%s178 + $0x250] sm:$0xff]
          %329 = vst [vmem:[%s179 + $0x250] sm:$0xff] %v328
          %v330 = vld [vmem:[%s178 + $0x258] sm:$0xff]
          %331 = vst [vmem:[%s179 + $0x258] sm:$0xff] %v330
          %v332 = vld [vmem:[%s178 + $0x260] sm:$0xff]
          %333 = vst [vmem:[%s179 + $0x260] sm:$0xff] %v332
          %v334 = vld [vmem:[%s178 + $0x268] sm:$0xff]
          %335 = vst [vmem:[%s179 + $0x268] sm:$0xff] %v334
          %v336 = vld [vmem:[%s178 + $0x270] sm:$0xff]
          %337 = vst [vmem:[%s179 + $0x270] sm:$0xff] %v336
          %v338 = vld [vmem:[%s178 + $0x278] sm:$0xff]
          %339 = vst [vmem:[%s179 + $0x278] sm:$0xff] %v338
          %v340 = vld [vmem:[%s178 + $0x280] sm:$0xff]
          %341 = vst [vmem:[%s179 + $0x280] sm:$0xff] %v340
          %v342 = vld [vmem:[%s178 + $0x288] sm:$0xff]
          %343 = vst [vmem:[%s179 + $0x288] sm:$0xff] %v342
          %v344 = vld [vmem:[%s178 + $0x290] sm:$0xff]
          %345 = vst [vmem:[%s179 + $0x290] sm:$0xff] %v344
          %v346 = vld [vmem:[%s178 + $0x298] sm:$0xff]
          %347 = vst [vmem:[%s179 + $0x298] sm:$0xff] %v346
          %v348 = vld [vmem:[%s178 + $0x2a0] sm:$0xff]
          %349 = vst [vmem:[%s179 + $0x2a0] sm:$0xff] %v348
          %v350 = vld [vmem:[%s178 + $0x2a8] sm:$0xff]
          %351 = vst [vmem:[%s179 + $0x2a8] sm:$0xff] %v350
          %v352 = vld [vmem:[%s178 + $0x2b0] sm:$0xff]
          %353 = vst [vmem:[%s179 + $0x2b0] sm:$0xff] %v352
          %v354 = vld [vmem:[%s178 + $0x2b8] sm:$0xff]
          %355 = vst [vmem:[%s179 + $0x2b8] sm:$0xff] %v354
          %v356 = vld [vmem:[%s178 + $0x2c0] sm:$0xff]
          %357 = vst [vmem:[%s179 + $0x2c0] sm:$0xff] %v356
          %v358 = vld [vmem:[%s178 + $0x2c8] sm:$0xff]
          %359 = vst [vmem:[%s179 + $0x2c8] sm:$0xff] %v358
          %v360 = vld [vmem:[%s178 + $0x2d0] sm:$0xff]
          %361 = vst [vmem:[%s179 + $0x2d0] sm:$0xff] %v360
          %v362 = vld [vmem:[%s178 + $0x2d8] sm:$0xff]
          %363 = vst [vmem:[%s179 + $0x2d8] sm:$0xff] %v362
          %v364 = vld [vmem:[%s178 + $0x2e0] sm:$0xff]
          %365 = vst [vmem:[%s179 + $0x2e0] sm:$0xff] %v364
          %v366 = vld [vmem:[%s178 + $0x2e8] sm:$0xff]
          %367 = vst [vmem:[%s179 + $0x2e8] sm:$0xff] %v366
          %v368 = vld [vmem:[%s178 + $0x2f0] sm:$0xff]
          %369 = vst [vmem:[%s179 + $0x2f0] sm:$0xff] %v368
          %v370 = vld [vmem:[%s178 + $0x2f8] sm:$0xff]
          %371 = vst [vmem:[%s179 + $0x2f8] sm:$0xff] %v370
          %v372 = vld [vmem:[%s178 + $0x300] sm:$0xff]
          %373 = vst [vmem:[%s179 + $0x300] sm:$0xff] %v372
          %v374 = vld [vmem:[%s178 + $0x308] sm:$0xff]
          %375 = vst [vmem:[%s179 + $0x308] sm:$0xff] %v374
          %v376 = vld [vmem:[%s178 + $0x310] sm:$0xff]
          %377 = vst [vmem:[%s179 + $0x310] sm:$0xff] %v376
          %v378 = vld [vmem:[%s178 + $0x318] sm:$0xff]
          %379 = vst [vmem:[%s179 + $0x318] sm:$0xff] %v378
          %v380 = vld [vmem:[%s178 + $0x320] sm:$0xff]
          %381 = vst [vmem:[%s179 + $0x320] sm:$0xff] %v380
          %v382 = vld [vmem:[%s178 + $0x328] sm:$0xff]
          %383 = vst [vmem:[%s179 + $0x328] sm:$0xff] %v382
          %v384 = vld [vmem:[%s178 + $0x330] sm:$0xff]
          %385 = vst [vmem:[%s179 + $0x330] sm:$0xff] %v384
          %v386 = vld [vmem:[%s178 + $0x338] sm:$0xff]
          %387 = vst [vmem:[%s179 + $0x338] sm:$0xff] %v386
          %v388 = vld [vmem:[%s178 + $0x340] sm:$0xff]
          %389 = vst [vmem:[%s179 + $0x340] sm:$0xff] %v388
          %v390 = vld [vmem:[%s178 + $0x348] sm:$0xff]
          %391 = vst [vmem:[%s179 + $0x348] sm:$0xff] %v390
          %v392 = vld [vmem:[%s178 + $0x350] sm:$0xff]
          %393 = vst [vmem:[%s179 + $0x350] sm:$0xff] %v392
          %v394 = vld [vmem:[%s178 + $0x358] sm:$0xff]
          %395 = vst [vmem:[%s179 + $0x358] sm:$0xff] %v394
          %v396 = vld [vmem:[%s178 + $0x360] sm:$0xff]
          %397 = vst [vmem:[%s179 + $0x360] sm:$0xff] %v396
          %v398 = vld [vmem:[%s178 + $0x368] sm:$0xff]
          %399 = vst [vmem:[%s179 + $0x368] sm:$0xff] %v398
          %v400 = vld [vmem:[%s178 + $0x370] sm:$0xff]
          %401 = vst [vmem:[%s179 + $0x370] sm:$0xff] %v400
          %v402 = vld [vmem:[%s178 + $0x378] sm:$0xff]
          %403 = vst [vmem:[%s179 + $0x378] sm:$0xff] %v402
          %v404 = vld [vmem:[%s178 + $0x380] sm:$0xff]
          %405 = vst [vmem:[%s179 + $0x380] sm:$0xff] %v404
          %v406 = vld [vmem:[%s178 + $0x388] sm:$0xff]
          %407 = vst [vmem:[%s179 + $0x388] sm:$0xff] %v406
          %v408 = vld [vmem:[%s178 + $0x390] sm:$0xff]
          %409 = vst [vmem:[%s179 + $0x390] sm:$0xff] %v408
          %v410 = vld [vmem:[%s178 + $0x398] sm:$0xff]
          %411 = vst [vmem:[%s179 + $0x398] sm:$0xff] %v410
          %v412 = vld [vmem:[%s178 + $0x3a0] sm:$0xff]
          %413 = vst [vmem:[%s179 + $0x3a0] sm:$0xff] %v412
          %v414 = vld [vmem:[%s178 + $0x3a8] sm:$0xff]
          %415 = vst [vmem:[%s179 + $0x3a8] sm:$0xff] %v414
          %v416 = vld [vmem:[%s178 + $0x3b0] sm:$0xff]
          %417 = vst [vmem:[%s179 + $0x3b0] sm:$0xff] %v416
          %v418 = vld [vmem:[%s178 + $0x3b8] sm:$0xff]
          %419 = vst [vmem:[%s179 + $0x3b8] sm:$0xff] %v418
          %v420 = vld [vmem:[%s178 + $0x3c0] sm:$0xff]
          %421 = vst [vmem:[%s179 + $0x3c0] sm:$0xff] %v420
          %v422 = vld [vmem:[%s178 + $0x3c8] sm:$0xff]
          %423 = vst [vmem:[%s179 + $0x3c8] sm:$0xff] %v422
          %v424 = vld [vmem:[%s178 + $0x3d0] sm:$0xff]
          %425 = vst [vmem:[%s179 + $0x3d0] sm:$0xff] %v424
          %v426 = vld [vmem:[%s178 + $0x3d8] sm:$0xff]
          %427 = vst [vmem:[%s179 + $0x3d8] sm:$0xff] %v426
          %v428 = vld [vmem:[%s178 + $0x3e0] sm:$0xff]
          %429 = vst [vmem:[%s179 + $0x3e0] sm:$0xff] %v428
          %v430 = vld [vmem:[%s178 + $0x3e8] sm:$0xff]
          %431 = vst [vmem:[%s179 + $0x3e8] sm:$0xff] %v430
          %v432 = vld [vmem:[%s178 + $0x3f0] sm:$0xff]
          %433 = vst [vmem:[%s179 + $0x3f0] sm:$0xff] %v432
          %v434 = vld [vmem:[%s178 + $0x3f8] sm:$0xff]
          %435 = vst [vmem:[%s179 + $0x3f8] sm:$0xff] %v434
        $region95: #{forward.1} parent=89 // loop_footer
          %s177 = sadd.s32 1, %s173
        $region96: #{forward.1} parent=89 // loop_footer_branch
          %172 = sbr.rel target = $region92
        $region97: #{forward.1} parent=89 // loop_exit
          _
      $region90: #{forward.1} parent=74 // pred_fallthru
        _
      %p436 = pneg %p168
      // Predicated region
      $region98: #{forward.1} parent=74 // pred_check
        _
      $region99: #{forward.1} parent=74 // pred_check_branch
        %438 = sbr.rel (%p168) target = $region101
      $region100: #{forward.1} parent=74 // pred_region
        %s439 = sand.u32 1024, 7
      $region101: #{forward.1} parent=74 // pred_fallthru
        _
    $region75: #{forward.1} parent=1 // pred_fallthru
      _
    // Predicated region
    $region76: #{forward.1} parent=1 // pred_check
      %p153 = pneg %p149
    $region77: #{forward.1} parent=1 // pred_check_branch
      %155 = sbr.rel (%p153) target = $region79
    $region78: #{forward.1} parent=1 // pred_region
      %s156 = sshllo.u32 0, 1024
      loop: start=0, step=1, limit=1
      $region80: #{forward.1} parent=78 // loop_pre_header
        _
      $region81: #{forward.1} parent=78 // loop_header
        %s158 = sphi 0, %s162
        %p159 = scmp.ge.s32.totalorder %s158, 1
        %s163 = sphi %s5, %s5
        %s164 = sphi [#allocation6], [#allocation6]
      $region82: #{forward.1} parent=78 // loop_header_branch
        %161 = sbr.rel (%p159) target = $region86
      $region83: #{forward.1} parent=78 // loop_body
        %v165 = vld [vmem:[%s163] sm:%s156]
        %166 = vst [vmem:[%s164] sm:%s156] %v165
      $region84: #{forward.1} parent=78 // loop_footer
        %s162 = sadd.s32 1, %s158
      $region85: #{forward.1} parent=78 // loop_footer_branch
        %157 = sbr.rel target = $region81
      $region86: #{forward.1} parent=78 // loop_exit
        _
    $region79: #{forward.1} parent=1 // pred_fallthru
      _
    // Predicated region
    $region102: #{forward.1} parent=1 // pred_check
      _
    $region103: #{forward.1} parent=1 // pred_check_branch
      %442 = sbr.rel (0) target = $region105
    $region104: #{forward.1} parent=1 // pred_region
      %443 = vsyncadd %s147, 16384
    $region105: #{forward.1} parent=1 // pred_fallthru
      _
    %vm444 = vcmask 261120
    %445 = vst.msk [vmem:[#allocation2] sm:$0xff] %vm444, 0.0
    %446 = vst.msk [vmem:[#allocation2 + $0x8] sm:$0xff] %vm444, 0.0
    %447 = vst.msk [vmem:[#allocation2 + $0x10] sm:$0xff] %vm444, 0.0
    %448 = vst.msk [vmem:[#allocation2 + $0x18] sm:$0xff] %vm444, 0.0
    %449 = vst.msk [vmem:[#allocation2 + $0x20] sm:$0xff] %vm444, 0.0
    %450 = vst.msk [vmem:[#allocation2 + $0x28] sm:$0xff] %vm444, 0.0
    %451 = vst.msk [vmem:[#allocation2 + $0x30] sm:$0xff] %vm444, 0.0
    %452 = vst.msk [vmem:[#allocation2 + $0x38] sm:$0xff] %vm444, 0.0
    %453 = vst.msk [vmem:[#allocation2 + $0x40] sm:$0xff] %vm444, 0.0
    %454 = vst.msk [vmem:[#allocation2 + $0x48] sm:$0xff] %vm444, 0.0
    %455 = vst.msk [vmem:[#allocation2 + $0x50] sm:$0xff] %vm444, 0.0
    %456 = vst.msk [vmem:[#allocation2 + $0x58] sm:$0xff] %vm444, 0.0
    %457 = vst.msk [vmem:[#allocation2 + $0x60] sm:$0xff] %vm444, 0.0
    %458 = vst.msk [vmem:[#allocation2 + $0x68] sm:$0xff] %vm444, 0.0
    %459 = vst.msk [vmem:[#allocation2 + $0x70] sm:$0xff] %vm444, 0.0
    %460 = vst.msk [vmem:[#allocation2 + $0x78] sm:$0xff] %vm444, 0.0
    %461 = vst.msk [vmem:[#allocation2 + $0x80] sm:$0xff] %vm444, 0.0
    %462 = vst.msk [vmem:[#allocation2 + $0x88] sm:$0xff] %vm444, 0.0
    %463 = vst.msk [vmem:[#allocation2 + $0x90] sm:$0xff] %vm444, 0.0
    %464 = vst.msk [vmem:[#allocation2 + $0x98] sm:$0xff] %vm444, 0.0
    %465 = vst.msk [vmem:[#allocation2 + $0xa0] sm:$0xff] %vm444, 0.0
    %466 = vst.msk [vmem:[#allocation2 + $0xa8] sm:$0xff] %vm444, 0.0
    %467 = vst.msk [vmem:[#allocation2 + $0xb0] sm:$0xff] %vm444, 0.0
    %468 = vst.msk [vmem:[#allocation2 + $0xb8] sm:$0xff] %vm444, 0.0
    %469 = vst.msk [vmem:[#allocation2 + $0xc0] sm:$0xff] %vm444, 0.0
    %470 = vst.msk [vmem:[#allocation2 + $0xc8] sm:$0xff] %vm444, 0.0
    %471 = vst.msk [vmem:[#allocation2 + $0xd0] sm:$0xff] %vm444, 0.0
    %472 = vst.msk [vmem:[#allocation2 + $0xd8] sm:$0xff] %vm444, 0.0
    %473 = vst.msk [vmem:[#allocation2 + $0xe0] sm:$0xff] %vm444, 0.0
    %474 = vst.msk [vmem:[#allocation2 + $0xe8] sm:$0xff] %vm444, 0.0
    %475 = vst.msk [vmem:[#allocation2 + $0xf0] sm:$0xff] %vm444, 0.0
    %476 = vst.msk [vmem:[#allocation2 + $0xf8] sm:$0xff] %vm444, 0.0
    %477 = vst.msk [vmem:[#allocation2 + $0x100] sm:$0xff] %vm444, 0.0
    %478 = vst.msk [vmem:[#allocation2 + $0x108] sm:$0xff] %vm444, 0.0
    %479 = vst.msk [vmem:[#allocation2 + $0x110] sm:$0xff] %vm444, 0.0
    %480 = vst.msk [vmem:[#allocation2 + $0x118] sm:$0xff] %vm444, 0.0
    %481 = vst.msk [vmem:[#allocation2 + $0x120] sm:$0xff] %vm444, 0.0
    %482 = vst.msk [vmem:[#allocation2 + $0x128] sm:$0xff] %vm444, 0.0
    %483 = vst.msk [vmem:[#allocation2 + $0x130] sm:$0xff] %vm444, 0.0
    %484 = vst.msk [vmem:[#allocation2 + $0x138] sm:$0xff] %vm444, 0.0
    %v485 = vld [vmem:[%s1] sm:$0x1]
    %v486 = vld [vmem:[%s1 + $0x1] sm:$0x1]
    %v487 = vld [vmem:[%s1 + $0x2] sm:$0x1]
    %v488 = vld [vmem:[%s1 + $0x3] sm:$0x1]
    %v489 = vld [vmem:[%s1 + $0x4] sm:$0x1]
    %v490 = vld [vmem:[%s1 + $0x5] sm:$0x1]
    %v491 = vld [vmem:[%s1 + $0x6] sm:$0x1]
    %v492 = vld [vmem:[%s1 + $0x7] sm:$0x1]
    %v493 = vld [vmem:[%s1 + $0x8] sm:$0x1]
    %v494 = vld [vmem:[%s1 + $0x9] sm:$0x1]
    %v495 = vld [vmem:[%s1 + $0xa] sm:$0x1]
    %v496 = vld [vmem:[%s1 + $0xb] sm:$0x1]
    %v497 = vld [vmem:[%s1 + $0xc] sm:$0x1]
    %v498 = vld [vmem:[%s1 + $0xd] sm:$0x1]
    %v499 = vld [vmem:[%s1 + $0xe] sm:$0x1]
    %v500 = vld [vmem:[%s1 + $0xf] sm:$0x1]
    %v501 = vld [vmem:[%s2] sm:$0x1]
    %v502 = vld [vmem:[%s0] sm:$0xff]
    %v503 = vld [vmem:[%s0 + $0x8] sm:$0xff]
    %v504 = vld [vmem:[%s0 + $0x10] sm:$0xff]
    %v505 = vld [vmem:[%s0 + $0x18] sm:$0xff]
    %507 = vset.pattern.permute.xlu0 0
    %508 = vperm.xlu0 %507, %v502
    %v509 = vpop.permute.xlu0 %508
    %512 = vset.pattern.permute.xlu0 0
    %513 = vperm.xlu0 %512, %v503
    %v514 = vpop.permute.xlu0 %513
    %517 = vset.pattern.permute.xlu0 0
    %518 = vperm.xlu0 %517, %v504
    %v519 = vpop.permute.xlu0 %518
    %522 = vset.pattern.permute.xlu0 0
    %523 = vperm.xlu0 %522, %v505
    %v524 = vpop.permute.xlu0 %523
    %v526 = vlaneseq
    %v527 = vshrl.u32 %v526, 7
    %v528 = vsub.s32 0, %v527
    %v529 = vrot.slane %v485, %v528
    %v530 = vmul.f32 %v509, %v529
    %v531 = vmul.f32 %v514, %v529
    %v532 = vmul.f32 %v519, %v529
    %v533 = vmul.f32 %v524, %v529
    %534 = vset.pattern.permute.xlu0 1
    %535 = vperm.xlu0 %534, %v502
    %v536 = vpop.permute.xlu0 %535
    %538 = vset.pattern.permute.xlu0 1
    %539 = vperm.xlu0 %538, %v503
    %v540 = vpop.permute.xlu0 %539
    %542 = vset.pattern.permute.xlu0 1
    %543 = vperm.xlu0 %542, %v504
    %v544 = vpop.permute.xlu0 %543
    %546 = vset.pattern.permute.xlu0 1
    %547 = vperm.xlu0 %546, %v505
    %v548 = vpop.permute.xlu0 %547
    %v550 = vlaneseq
    %v551 = vshrl.u32 %v550, 7
    %v552 = vsub.s32 0, %v551
    %v553 = vrot.slane %v486, %v552
    %v554 = vmul.f32 %v536, %v553
    %v555 = vmul.f32 %v540, %v553
    %v556 = vmul.f32 %v544, %v553
    %v557 = vmul.f32 %v548, %v553
    %v558 = vadd.f32 %v530, %v554
    %v559 = vadd.f32 %v531, %v555
    %v560 = vadd.f32 %v532, %v556
    %v561 = vadd.f32 %v533, %v557
    %562 = vset.pattern.permute.xlu0 2
    %563 = vperm.xlu0 %562, %v502
    %v564 = vpop.permute.xlu0 %563
    %566 = vset.pattern.permute.xlu0 2
    %567 = vperm.xlu0 %566, %v503
    %v568 = vpop.permute.xlu0 %567
    %570 = vset.pattern.permute.xlu0 2
    %571 = vperm.xlu0 %570, %v504
    %v572 = vpop.permute.xlu0 %571
    %574 = vset.pattern.permute.xlu0 2
    %575 = vperm.xlu0 %574, %v505
    %v576 = vpop.permute.xlu0 %575
    %v578 = vlaneseq
    %v579 = vshrl.u32 %v578, 7
    %v580 = vsub.s32 0, %v579
    %v581 = vrot.slane %v487, %v580
    %v582 = vmul.f32 %v564, %v581
    %v583 = vmul.f32 %v568, %v581
    %v584 = vmul.f32 %v572, %v581
    %v585 = vmul.f32 %v576, %v581
    %v586 = vadd.f32 %v558, %v582
    %v587 = vadd.f32 %v559, %v583
    %v588 = vadd.f32 %v560, %v584
    %v589 = vadd.f32 %v561, %v585
    %590 = vset.pattern.permute.xlu0 3
    %591 = vperm.xlu0 %590, %v502
    %v592 = vpop.permute.xlu0 %591
    %594 = vset.pattern.permute.xlu0 3
    %595 = vperm.xlu0 %594, %v503
    %v596 = vpop.permute.xlu0 %595
    %598 = vset.pattern.permute.xlu0 3
    %599 = vperm.xlu0 %598, %v504
    %v600 = vpop.permute.xlu0 %599
    %602 = vset.pattern.permute.xlu0 3
    %603 = vperm.xlu0 %602, %v505
    %v604 = vpop.permute.xlu0 %603
    %v606 = vlaneseq
    %v607 = vshrl.u32 %v606, 7
    %v608 = vsub.s32 0, %v607
    %v609 = vrot.slane %v488, %v608
    %v610 = vmul.f32 %v592, %v609
    %v611 = vmul.f32 %v596, %v609
    %v612 = vmul.f32 %v600, %v609
    %v613 = vmul.f32 %v604, %v609
    %v614 = vadd.f32 %v586, %v610
    %v615 = vadd.f32 %v587, %v611
    %v616 = vadd.f32 %v588, %v612
    %v617 = vadd.f32 %v589, %v613
    %618 = vset.pattern.permute.xlu0 6
    %619 = vperm.xlu0 %618, %v502
    %v620 = vpop.permute.xlu0 %619
    %622 = vset.pattern.permute.xlu0 6
    %623 = vperm.xlu0 %622, %v503
    %v624 = vpop.permute.xlu0 %623
    %626 = vset.pattern.permute.xlu0 6
    %627 = vperm.xlu0 %626, %v504
    %v628 = vpop.permute.xlu0 %627
    %630 = vset.pattern.permute.xlu0 6
    %631 = vperm.xlu0 %630, %v505
    %v632 = vpop.permute.xlu0 %631
    %v634 = vlaneseq
    %v635 = vshrl.u32 %v634, 7
    %v636 = vsub.s32 0, %v635
    %v637 = vrot.slane %v489, %v636
    %v638 = vmul.f32 %v620, %v637
    %v639 = vmul.f32 %v624, %v637
    %v640 = vmul.f32 %v628, %v637
    %v641 = vmul.f32 %v632, %v637
    %v642 = vadd.f32 %v614, %v638
    %v643 = vadd.f32 %v615, %v639
    %v644 = vadd.f32 %v616, %v640
    %v645 = vadd.f32 %v617, %v641
    %646 = vset.pattern.permute.xlu0 7
    %647 = vperm.xlu0 %646, %v502
    %v648 = vpop.permute.xlu0 %647
    %650 = vset.pattern.permute.xlu0 7
    %651 = vperm.xlu0 %650, %v503
    %v652 = vpop.permute.xlu0 %651
    %654 = vset.pattern.permute.xlu0 7
    %655 = vperm.xlu0 %654, %v504
    %v656 = vpop.permute.xlu0 %655
    %658 = vset.pattern.permute.xlu0 7
    %659 = vperm.xlu0 %658, %v505
    %v660 = vpop.permute.xlu0 %659
    %v662 = vlaneseq
    %v663 = vshrl.u32 %v662, 7
    %v664 = vsub.s32 0, %v663
    %v665 = vrot.slane %v490, %v664
    %v666 = vmul.f32 %v648, %v665
    %v667 = vmul.f32 %v652, %v665
    %v668 = vmul.f32 %v656, %v665
    %v669 = vmul.f32 %v660, %v665
    %v670 = vadd.f32 %v642, %v666
    %v671 = vadd.f32 %v643, %v667
    %v672 = vadd.f32 %v644, %v668
    %v673 = vadd.f32 %v645, %v669
    %674 = vset.pattern.permute.xlu0 8
    %675 = vperm.xlu0 %674, %v502
    %v676 = vpop.permute.xlu0 %675
    %678 = vset.pattern.permute.xlu0 8
    %679 = vperm.xlu0 %678, %v503
    %v680 = vpop.permute.xlu0 %679
    %682 = vset.pattern.permute.xlu0 8
    %683 = vperm.xlu0 %682, %v504
    %v684 = vpop.permute.xlu0 %683
    %686 = vset.pattern.permute.xlu0 8
    %687 = vperm.xlu0 %686, %v505
    %v688 = vpop.permute.xlu0 %687
    %v690 = vlaneseq
    %v691 = vshrl.u32 %v690, 7
    %v692 = vsub.s32 0, %v691
    %v693 = vrot.slane %v491, %v692
    %v694 = vmul.f32 %v676, %v693
    %v695 = vmul.f32 %v680, %v693
    %v696 = vmul.f32 %v684, %v693
    %v697 = vmul.f32 %v688, %v693
    %v698 = vadd.f32 %v670, %v694
    %v699 = vadd.f32 %v671, %v695
    %v700 = vadd.f32 %v672, %v696
    %v701 = vadd.f32 %v673, %v697
    %702 = vset.pattern.permute.xlu0 9
    %703 = vperm.xlu0 %702, %v502
    %v704 = vpop.permute.xlu0 %703
    %706 = vset.pattern.permute.xlu0 9
    %707 = vperm.xlu0 %706, %v503
    %v708 = vpop.permute.xlu0 %707
    %710 = vset.pattern.permute.xlu0 9
    %711 = vperm.xlu0 %710, %v504
    %v712 = vpop.permute.xlu0 %711
    %714 = vset.pattern.permute.xlu0 9
    %715 = vperm.xlu0 %714, %v505
    %v716 = vpop.permute.xlu0 %715
    %v718 = vlaneseq
    %v719 = vshrl.u32 %v718, 7
    %v720 = vsub.s32 0, %v719
    %v721 = vrot.slane %v492, %v720
    %v722 = vmul.f32 %v704, %v721
    %v723 = vmul.f32 %v708, %v721
    %v724 = vmul.f32 %v712, %v721
    %v725 = vmul.f32 %v716, %v721
    %v726 = vadd.f32 %v698, %v722
    %v727 = vadd.f32 %v699, %v723
    %v728 = vadd.f32 %v700, %v724
    %v729 = vadd.f32 %v701, %v725
    %730 = vset.pattern.permute.xlu0 12
    %731 = vperm.xlu0 %730, %v502
    %v732 = vpop.permute.xlu0 %731
    %734 = vset.pattern.permute.xlu0 12
    %735 = vperm.xlu0 %734, %v503
    %v736 = vpop.permute.xlu0 %735
    %738 = vset.pattern.permute.xlu0 12
    %739 = vperm.xlu0 %738, %v504
    %v740 = vpop.permute.xlu0 %739
    %742 = vset.pattern.permute.xlu0 12
    %743 = vperm.xlu0 %742, %v505
    %v744 = vpop.permute.xlu0 %743
    %v746 = vlaneseq
    %v747 = vshrl.u32 %v746, 7
    %v748 = vsub.s32 0, %v747
    %v749 = vrot.slane %v493, %v748
    %v750 = vmul.f32 %v732, %v749
    %v751 = vmul.f32 %v736, %v749
    %v752 = vmul.f32 %v740, %v749
    %v753 = vmul.f32 %v744, %v749
    %v754 = vadd.f32 %v726, %v750
    %v755 = vadd.f32 %v727, %v751
    %v756 = vadd.f32 %v728, %v752
    %v757 = vadd.f32 %v729, %v753
    %758 = vset.pattern.permute.xlu0 13
    %759 = vperm.xlu0 %758, %v502
    %v760 = vpop.permute.xlu0 %759
    %762 = vset.pattern.permute.xlu0 13
    %763 = vperm.xlu0 %762, %v503
    %v764 = vpop.permute.xlu0 %763
    %766 = vset.pattern.permute.xlu0 13
    %767 = vperm.xlu0 %766, %v504
    %v768 = vpop.permute.xlu0 %767
    %770 = vset.pattern.permute.xlu0 13
    %771 = vperm.xlu0 %770, %v505
    %v772 = vpop.permute.xlu0 %771
    %v774 = vlaneseq
    %v775 = vshrl.u32 %v774, 7
    %v776 = vsub.s32 0, %v775
    %v777 = vrot.slane %v494, %v776
    %v778 = vmul.f32 %v760, %v777
    %v779 = vmul.f32 %v764, %v777
    %v780 = vmul.f32 %v768, %v777
    %v781 = vmul.f32 %v772, %v777
    %v782 = vadd.f32 %v754, %v778
    %v783 = vadd.f32 %v755, %v779
    %v784 = vadd.f32 %v756, %v780
    %v785 = vadd.f32 %v757, %v781
    %786 = vset.pattern.permute.xlu0 14
    %787 = vperm.xlu0 %786, %v502
    %v788 = vpop.permute.xlu0 %787
    %790 = vset.pattern.permute.xlu0 14
    %791 = vperm.xlu0 %790, %v503
    %v792 = vpop.permute.xlu0 %791
    %794 = vset.pattern.permute.xlu0 14
    %795 = vperm.xlu0 %794, %v504
    %v796 = vpop.permute.xlu0 %795
    %798 = vset.pattern.permute.xlu0 14
    %799 = vperm.xlu0 %798, %v505
    %v800 = vpop.permute.xlu0 %799
    %v802 = vlaneseq
    %v803 = vshrl.u32 %v802, 7
    %v804 = vsub.s32 0, %v803
    %v805 = vrot.slane %v495, %v804
    %v806 = vmul.f32 %v788, %v805
    %v807 = vmul.f32 %v792, %v805
    %v808 = vmul.f32 %v796, %v805
    %v809 = vmul.f32 %v800, %v805
    %v810 = vadd.f32 %v782, %v806
    %v811 = vadd.f32 %v783, %v807
    %v812 = vadd.f32 %v784, %v808
    %v813 = vadd.f32 %v785, %v809
    %814 = vset.pattern.permute.xlu0 15
    %815 = vperm.xlu0 %814, %v502
    %v816 = vpop.permute.xlu0 %815
    %818 = vset.pattern.permute.xlu0 15
    %819 = vperm.xlu0 %818, %v503
    %v820 = vpop.permute.xlu0 %819
    %822 = vset.pattern.permute.xlu0 15
    %823 = vperm.xlu0 %822, %v504
    %v824 = vpop.permute.xlu0 %823
    %826 = vset.pattern.permute.xlu0 15
    %827 = vperm.xlu0 %826, %v505
    %v828 = vpop.permute.xlu0 %827
    %v830 = vlaneseq
    %v831 = vshrl.u32 %v830, 7
    %v832 = vsub.s32 0, %v831
    %v833 = vrot.slane %v496, %v832
    %v834 = vmul.f32 %v816, %v833
    %v835 = vmul.f32 %v820, %v833
    %v836 = vmul.f32 %v824, %v833
    %v837 = vmul.f32 %v828, %v833
    %v838 = vadd.f32 %v810, %v834
    %v839 = vadd.f32 %v811, %v835
    %v840 = vadd.f32 %v812, %v836
    %v841 = vadd.f32 %v813, %v837
    %842 = vset.pattern.permute.xlu0 18
    %843 = vperm.xlu0 %842, %v502
    %v844 = vpop.permute.xlu0 %843
    %846 = vset.pattern.permute.xlu0 18
    %847 = vperm.xlu0 %846, %v503
    %v848 = vpop.permute.xlu0 %847
    %850 = vset.pattern.permute.xlu0 18
    %851 = vperm.xlu0 %850, %v504
    %v852 = vpop.permute.xlu0 %851
    %854 = vset.pattern.permute.xlu0 18
    %855 = vperm.xlu0 %854, %v505
    %v856 = vpop.permute.xlu0 %855
    %v858 = vlaneseq
    %v859 = vshrl.u32 %v858, 7
    %v860 = vsub.s32 0, %v859
    %v861 = vrot.slane %v497, %v860
    %v862 = vmul.f32 %v844, %v861
    %v863 = vmul.f32 %v848, %v861
    %v864 = vmul.f32 %v852, %v861
    %v865 = vmul.f32 %v856, %v861
    %v866 = vadd.f32 %v838, %v862
    %v867 = vadd.f32 %v839, %v863
    %v868 = vadd.f32 %v840, %v864
    %v869 = vadd.f32 %v841, %v865
    %870 = vset.pattern.permute.xlu0 19
    %871 = vperm.xlu0 %870, %v502
    %v872 = vpop.permute.xlu0 %871
    %874 = vset.pattern.permute.xlu0 19
    %875 = vperm.xlu0 %874, %v503
    %v876 = vpop.permute.xlu0 %875
    %878 = vset.pattern.permute.xlu0 19
    %879 = vperm.xlu0 %878, %v504
    %v880 = vpop.permute.xlu0 %879
    %882 = vset.pattern.permute.xlu0 19
    %883 = vperm.xlu0 %882, %v505
    %v884 = vpop.permute.xlu0 %883
    %v886 = vlaneseq
    %v887 = vshrl.u32 %v886, 7
    %v888 = vsub.s32 0, %v887
    %v889 = vrot.slane %v498, %v888
    %v890 = vmul.f32 %v872, %v889
    %v891 = vmul.f32 %v876, %v889
    %v892 = vmul.f32 %v880, %v889
    %v893 = vmul.f32 %v884, %v889
    %v894 = vadd.f32 %v866, %v890
    %v895 = vadd.f32 %v867, %v891
    %v896 = vadd.f32 %v868, %v892
    %v897 = vadd.f32 %v869, %v893
    %898 = vset.pattern.permute.xlu0 20
    %899 = vperm.xlu0 %898, %v502
    %v900 = vpop.permute.xlu0 %899
    %902 = vset.pattern.permute.xlu0 20
    %903 = vperm.xlu0 %902, %v503
    %v904 = vpop.permute.xlu0 %903
    %906 = vset.pattern.permute.xlu0 20
    %907 = vperm.xlu0 %906, %v504
    %v908 = vpop.permute.xlu0 %907
    %910 = vset.pattern.permute.xlu0 20
    %911 = vperm.xlu0 %910, %v505
    %v912 = vpop.permute.xlu0 %911
    %v914 = vlaneseq
    %v915 = vshrl.u32 %v914, 7
    %v916 = vsub.s32 0, %v915
    %v917 = vrot.slane %v499, %v916
    %v918 = vmul.f32 %v900, %v917
    %v919 = vmul.f32 %v904, %v917
    %v920 = vmul.f32 %v908, %v917
    %v921 = vmul.f32 %v912, %v917
    %v922 = vadd.f32 %v894, %v918
    %v923 = vadd.f32 %v895, %v919
    %v924 = vadd.f32 %v896, %v920
    %v925 = vadd.f32 %v897, %v921
    %926 = vset.pattern.permute.xlu0 21
    %927 = vperm.xlu0 %926, %v502
    %v928 = vpop.permute.xlu0 %927
    %930 = vset.pattern.permute.xlu0 21
    %931 = vperm.xlu0 %930, %v503
    %v932 = vpop.permute.xlu0 %931
    %934 = vset.pattern.permute.xlu0 21
    %935 = vperm.xlu0 %934, %v504
    %v936 = vpop.permute.xlu0 %935
    %938 = vset.pattern.permute.xlu0 21
    %939 = vperm.xlu0 %938, %v505
    %v940 = vpop.permute.xlu0 %939
    %v942 = vlaneseq
    %v943 = vshrl.u32 %v942, 7
    %v944 = vsub.s32 0, %v943
    %v945 = vrot.slane %v500, %v944
    %v946 = vmul.f32 %v928, %v945
    %v947 = vmul.f32 %v932, %v945
    %v948 = vmul.f32 %v936, %v945
    %v949 = vmul.f32 %v940, %v945
    %v950 = vadd.f32 %v922, %v946
    %v951 = vadd.f32 %v923, %v947
    %v952 = vadd.f32 %v924, %v948
    %v953 = vadd.f32 %v925, %v949
    %958 = vrot.lane.b32.xlu0 %v950, 96
    %v959 = vpop.permute.xlu0 %958
    %960 = vrot.lane.b32.xlu0 %v951, 96
    %v961 = vpop.permute.xlu0 %960
    %962 = vrot.lane.b32.xlu0 %v952, 96
    %v963 = vpop.permute.xlu0 %962
    %964 = vrot.lane.b32.xlu0 %v953, 96
    %v965 = vpop.permute.xlu0 %964
    %v970 = vmax.f32 %v950, %v959
    %v971 = vmax.f32 %v951, %v961
    %v972 = vmax.f32 %v952, %v963
    %v973 = vmax.f32 %v953, %v965
    %978 = vrot.lane.b32.xlu0 %v970, 64
    %v979 = vpop.permute.xlu0 %978
    %980 = vrot.lane.b32.xlu0 %v971, 64
    %v981 = vpop.permute.xlu0 %980
    %982 = vrot.lane.b32.xlu0 %v972, 64
    %v983 = vpop.permute.xlu0 %982
    %984 = vrot.lane.b32.xlu0 %v973, 64
    %v985 = vpop.permute.xlu0 %984
    %v990 = vmax.f32 %v970, %v979
    %v991 = vmax.f32 %v971, %v981
    %v992 = vmax.f32 %v972, %v983
    %v993 = vmax.f32 %v973, %v985
    %v995 = vlaneseq
    %v996 = vshrl.u32 %v995, 7
    %v997 = vsub.s32 0, %v996
    %v998 = vrot.slane %v501, %v997
    %v1000 = vadd.f32 %v990, %v998
    %v1001 = vadd.f32 %v991, %v998
    %v1002 = vadd.f32 %v992, %v998
    %v1003 = vadd.f32 %v993, %v998
    %v1004 = vmax.f32 %v1000, 0.0
    %v1005 = vmax.f32 %v1001, 0.0
    %v1006 = vmax.f32 %v1002, 0.0
    %v1007 = vmax.f32 %v1003, 0.0
    %s1008 = scalar_lea.vmem [#allocation2], 200
    %1009 = vst.msk [vmem:[%s1008] sm:$0xff] %vm444, %v1004
    %1010 = vst.msk [vmem:[%s1008 + $0x8] sm:$0xff] %vm444, %v1005
    %1011 = vst.msk [vmem:[%s1008 + $0x10] sm:$0xff] %vm444, %v1006
    %1012 = vst.msk [vmem:[%s1008 + $0x18] sm:$0xff] %vm444, %v1007
    %s1013 = scalar_lea.vmem [#allocation2], 280
    %vm1014 = vcmask 261122
    %1015 = vst.msk [vmem:[%s1013 - $0x2] sm:$0xfc] %vm1014, %v1004
    %1016 = vst.msk [vmem:[%s1013 + $0x6] sm:$0xfc] %vm1014, %v1005
    %1017 = vst.msk [vmem:[%s1013 + $0xe] sm:$0xfc] %vm1014, %v1006
    %1018 = vst.msk [vmem:[%s1013 + $0x16] sm:$0xfc] %vm1014, %v1007
    %v1019 = vld [vmem:[%s0] sm:$0xff]
    %v1020 = vld [vmem:[%s0 + $0x8] sm:$0xff]
    %v1021 = vld [vmem:[%s0 + $0x10] sm:$0xff]
    %v1022 = vld [vmem:[%s0 + $0x18] sm:$0xff]
    %1024 = vset.pattern.permute.xlu0 2
    %1025 = vperm.xlu0 %1024, %v1019
    %v1026 = vpop.permute.xlu0 %1025
    %1029 = vset.pattern.permute.xlu0 2
    %1030 = vperm.xlu0 %1029, %v1020
    %v1031 = vpop.permute.xlu0 %1030
    %1034 = vset.pattern.permute.xlu0 2
    %1035 = vperm.xlu0 %1034, %v1021
    %v1036 = vpop.permute.xlu0 %1035
    %1039 = vset.pattern.permute.xlu0 2
    %1040 = vperm.xlu0 %1039, %v1022
    %v1041 = vpop.permute.xlu0 %1040
    %v1043 = vmul.f32 %v1026, %v529
    %v1044 = vmul.f32 %v1031, %v529
    %v1045 = vmul.f32 %v1036, %v529
    %v1046 = vmul.f32 %v1041, %v529
    %1047 = vset.pattern.permute.xlu0 3
    %1048 = vperm.xlu0 %1047, %v1019
    %v1049 = vpop.permute.xlu0 %1048
    %1051 = vset.pattern.permute.xlu0 3
    %1052 = vperm.xlu0 %1051, %v1020
    %v1053 = vpop.permute.xlu0 %1052
    %1055 = vset.pattern.permute.xlu0 3
    %1056 = vperm.xlu0 %1055, %v1021
    %v1057 = vpop.permute.xlu0 %1056
    %1059 = vset.pattern.permute.xlu0 3
    %1060 = vperm.xlu0 %1059, %v1022
    %v1061 = vpop.permute.xlu0 %1060
    %v1063 = vmul.f32 %v1049, %v553
    %v1064 = vmul.f32 %v1053, %v553
    %v1065 = vmul.f32 %v1057, %v553
    %v1066 = vmul.f32 %v1061, %v553
    %v1067 = vadd.f32 %v1043, %v1063
    %v1068 = vadd.f32 %v1044, %v1064
    %v1069 = vadd.f32 %v1045, %v1065
    %v1070 = vadd.f32 %v1046, %v1066
    %1071 = vset.pattern.permute.xlu0 4
    %1072 = vperm.xlu0 %1071, %v1019
    %v1073 = vpop.permute.xlu0 %1072
    %1075 = vset.pattern.permute.xlu0 4
    %1076 = vperm.xlu0 %1075, %v1020
    %v1077 = vpop.permute.xlu0 %1076
    %1079 = vset.pattern.permute.xlu0 4
    %1080 = vperm.xlu0 %1079, %v1021
    %v1081 = vpop.permute.xlu0 %1080
    %1083 = vset.pattern.permute.xlu0 4
    %1084 = vperm.xlu0 %1083, %v1022
    %v1085 = vpop.permute.xlu0 %1084
    %v1087 = vmul.f32 %v1073, %v581
    %v1088 = vmul.f32 %v1077, %v581
    %v1089 = vmul.f32 %v1081, %v581
    %v1090 = vmul.f32 %v1085, %v581
    %v1091 = vadd.f32 %v1067, %v1087
    %v1092 = vadd.f32 %v1068, %v1088
    %v1093 = vadd.f32 %v1069, %v1089
    %v1094 = vadd.f32 %v1070, %v1090
    %1095 = vset.pattern.permute.xlu0 5
    %1096 = vperm.xlu0 %1095, %v1019
    %v1097 = vpop.permute.xlu0 %1096
    %1099 = vset.pattern.permute.xlu0 5
    %1100 = vperm.xlu0 %1099, %v1020
    %v1101 = vpop.permute.xlu0 %1100
    %1103 = vset.pattern.permute.xlu0 5
    %1104 = vperm.xlu0 %1103, %v1021
    %v1105 = vpop.permute.xlu0 %1104
    %1107 = vset.pattern.permute.xlu0 5
    %1108 = vperm.xlu0 %1107, %v1022
    %v1109 = vpop.permute.xlu0 %1108
    %v1111 = vmul.f32 %v1097, %v609
    %v1112 = vmul.f32 %v1101, %v609
    %v1113 = vmul.f32 %v1105, %v609
    %v1114 = vmul.f32 %v1109, %v609
    %v1115 = vadd.f32 %v1091, %v1111
    %v1116 = vadd.f32 %v1092, %v1112
    %v1117 = vadd.f32 %v1093, %v1113
    %v1118 = vadd.f32 %v1094, %v1114
    %1119 = vset.pattern.permute.xlu0 8
    %1120 = vperm.xlu0 %1119, %v1019
    %v1121 = vpop.permute.xlu0 %1120
    %1123 = vset.pattern.permute.xlu0 8
    %1124 = vperm.xlu0 %1123, %v1020
    %v1125 = vpop.permute.xlu0 %1124
    %1127 = vset.pattern.permute.xlu0 8
    %1128 = vperm.xlu0 %1127, %v1021
    %v1129 = vpop.permute.xlu0 %1128
    %1131 = vset.pattern.permute.xlu0 8
    %1132 = vperm.xlu0 %1131, %v1022
    %v1133 = vpop.permute.xlu0 %1132
    %v1135 = vmul.f32 %v1121, %v637
    %v1136 = vmul.f32 %v1125, %v637
    %v1137 = vmul.f32 %v1129, %v637
    %v1138 = vmul.f32 %v1133, %v637
    %v1139 = vadd.f32 %v1115, %v1135
    %v1140 = vadd.f32 %v1116, %v1136
    %v1141 = vadd.f32 %v1117, %v1137
    %v1142 = vadd.f32 %v1118, %v1138
    %1143 = vset.pattern.permute.xlu0 9
    %1144 = vperm.xlu0 %1143, %v1019
    %v1145 = vpop.permute.xlu0 %1144
    %1147 = vset.pattern.permute.xlu0 9
    %1148 = vperm.xlu0 %1147, %v1020
    %v1149 = vpop.permute.xlu0 %1148
    %1151 = vset.pattern.permute.xlu0 9
    %1152 = vperm.xlu0 %1151, %v1021
    %v1153 = vpop.permute.xlu0 %1152
    %1155 = vset.pattern.permute.xlu0 9
    %1156 = vperm.xlu0 %1155, %v1022
    %v1157 = vpop.permute.xlu0 %1156
    %v1159 = vmul.f32 %v1145, %v665
    %v1160 = vmul.f32 %v1149, %v665
    %v1161 = vmul.f32 %v1153, %v665
    %v1162 = vmul.f32 %v1157, %v665
    %v1163 = vadd.f32 %v1139, %v1159
    %v1164 = vadd.f32 %v1140, %v1160
    %v1165 = vadd.f32 %v1141, %v1161
    %v1166 = vadd.f32 %v1142, %v1162
    %1167 = vset.pattern.permute.xlu0 10
    %1168 = vperm.xlu0 %1167, %v1019
    %v1169 = vpop.permute.xlu0 %1168
    %1171 = vset.pattern.permute.xlu0 10
    %1172 = vperm.xlu0 %1171, %v1020
    %v1173 = vpop.permute.xlu0 %1172
    %1175 = vset.pattern.permute.xlu0 10
    %1176 = vperm.xlu0 %1175, %v1021
    %v1177 = vpop.permute.xlu0 %1176
    %1179 = vset.pattern.permute.xlu0 10
    %1180 = vperm.xlu0 %1179, %v1022
    %v1181 = vpop.permute.xlu0 %1180
    %v1183 = vmul.f32 %v1169, %v693
    %v1184 = vmul.f32 %v1173, %v693
    %v1185 = vmul.f32 %v1177, %v693
    %v1186 = vmul.f32 %v1181, %v693
    %v1187 = vadd.f32 %v1163, %v1183
    %v1188 = vadd.f32 %v1164, %v1184
    %v1189 = vadd.f32 %v1165, %v1185
    %v1190 = vadd.f32 %v1166, %v1186
    %1191 = vset.pattern.permute.xlu0 11
    %1192 = vperm.xlu0 %1191, %v1019
    %v1193 = vpop.permute.xlu0 %1192
    %1195 = vset.pattern.permute.xlu0 11
    %1196 = vperm.xlu0 %1195, %v1020
    %v1197 = vpop.permute.xlu0 %1196
    %1199 = vset.pattern.permute.xlu0 11
    %1200 = vperm.xlu0 %1199, %v1021
    %v1201 = vpop.permute.xlu0 %1200
    %1203 = vset.pattern.permute.xlu0 11
    %1204 = vperm.xlu0 %1203, %v1022
    %v1205 = vpop.permute.xlu0 %1204
    %v1207 = vmul.f32 %v1193, %v721
    %v1208 = vmul.f32 %v1197, %v721
    %v1209 = vmul.f32 %v1201, %v721
    %v1210 = vmul.f32 %v1205, %v721
    %v1211 = vadd.f32 %v1187, %v1207
    %v1212 = vadd.f32 %v1188, %v1208
    %v1213 = vadd.f32 %v1189, %v1209
    %v1214 = vadd.f32 %v1190, %v1210
    %1215 = vset.pattern.permute.xlu0 14
    %1216 = vperm.xlu0 %1215, %v1019
    %v1217 = vpop.permute.xlu0 %1216
    %1219 = vset.pattern.permute.xlu0 14
    %1220 = vperm.xlu0 %1219, %v1020
    %v1221 = vpop.permute.xlu0 %1220
    %1223 = vset.pattern.permute.xlu0 14
    %1224 = vperm.xlu0 %1223, %v1021
    %v1225 = vpop.permute.xlu0 %1224
    %1227 = vset.pattern.permute.xlu0 14
    %1228 = vperm.xlu0 %1227, %v1022
    %v1229 = vpop.permute.xlu0 %1228
    %v1231 = vmul.f32 %v1217, %v749
    %v1232 = vmul.f32 %v1221, %v749
    %v1233 = vmul.f32 %v1225, %v749
    %v1234 = vmul.f32 %v1229, %v749
    %v1235 = vadd.f32 %v1211, %v1231
    %v1236 = vadd.f32 %v1212, %v1232
    %v1237 = vadd.f32 %v1213, %v1233
    %v1238 = vadd.f32 %v1214, %v1234
    %1239 = vset.pattern.permute.xlu0 15
    %1240 = vperm.xlu0 %1239, %v1019
    %v1241 = vpop.permute.xlu0 %1240
    %1243 = vset.pattern.permute.xlu0 15
    %1244 = vperm.xlu0 %1243, %v1020
    %v1245 = vpop.permute.xlu0 %1244
    %1247 = vset.pattern.permute.xlu0 15
    %1248 = vperm.xlu0 %1247, %v1021
    %v1249 = vpop.permute.xlu0 %1248
    %1251 = vset.pattern.permute.xlu0 15
    %1252 = vperm.xlu0 %1251, %v1022
    %v1253 = vpop.permute.xlu0 %1252
    %v1255 = vmul.f32 %v1241, %v777
    %v1256 = vmul.f32 %v1245, %v777
    %v1257 = vmul.f32 %v1249, %v777
    %v1258 = vmul.f32 %v1253, %v777
    %v1259 = vadd.f32 %v1235, %v1255
    %v1260 = vadd.f32 %v1236, %v1256
    %v1261 = vadd.f32 %v1237, %v1257
    %v1262 = vadd.f32 %v1238, %v1258
    %1263 = vset.pattern.permute.xlu0 16
    %1264 = vperm.xlu0 %1263, %v1019
    %v1265 = vpop.permute.xlu0 %1264
    %1267 = vset.pattern.permute.xlu0 16
    %1268 = vperm.xlu0 %1267, %v1020
    %v1269 = vpop.permute.xlu0 %1268
    %1271 = vset.pattern.permute.xlu0 16
    %1272 = vperm.xlu0 %1271, %v1021
    %v1273 = vpop.permute.xlu0 %1272
    %1275 = vset.pattern.permute.xlu0 16
    %1276 = vperm.xlu0 %1275, %v1022
    %v1277 = vpop.permute.xlu0 %1276
    %v1279 = vmul.f32 %v1265, %v805
    %v1280 = vmul.f32 %v1269, %v805
    %v1281 = vmul.f32 %v1273, %v805
    %v1282 = vmul.f32 %v1277, %v805
    %v1283 = vadd.f32 %v1259, %v1279
    %v1284 = vadd.f32 %v1260, %v1280
    %v1285 = vadd.f32 %v1261, %v1281
    %v1286 = vadd.f32 %v1262, %v1282
    %1287 = vset.pattern.permute.xlu0 17
    %1288 = vperm.xlu0 %1287, %v1019
    %v1289 = vpop.permute.xlu0 %1288
    %1291 = vset.pattern.permute.xlu0 17
    %1292 = vperm.xlu0 %1291, %v1020
    %v1293 = vpop.permute.xlu0 %1292
    %1295 = vset.pattern.permute.xlu0 17
    %1296 = vperm.xlu0 %1295, %v1021
    %v1297 = vpop.permute.xlu0 %1296
    %1299 = vset.pattern.permute.xlu0 17
    %1300 = vperm.xlu0 %1299, %v1022
    %v1301 = vpop.permute.xlu0 %1300
    %v1303 = vmul.f32 %v1289, %v833
    %v1304 = vmul.f32 %v1293, %v833
    %v1305 = vmul.f32 %v1297, %v833
    %v1306 = vmul.f32 %v1301, %v833
    %v1307 = vadd.f32 %v1283, %v1303
    %v1308 = vadd.f32 %v1284, %v1304
    %v1309 = vadd.f32 %v1285, %v1305
    %v1310 = vadd.f32 %v1286, %v1306
    %1311 = vset.pattern.permute.xlu0 20
    %1312 = vperm.xlu0 %1311, %v1019
    %v1313 = vpop.permute.xlu0 %1312
    %1315 = vset.pattern.permute.xlu0 20
    %1316 = vperm.xlu0 %1315, %v1020
    %v1317 = vpop.permute.xlu0 %1316
    %1319 = vset.pattern.permute.xlu0 20
    %1320 = vperm.xlu0 %1319, %v1021
    %v1321 = vpop.permute.xlu0 %1320
    %1323 = vset.pattern.permute.xlu0 20
    %1324 = vperm.xlu0 %1323, %v1022
    %v1325 = vpop.permute.xlu0 %1324
    %v1327 = vmul.f32 %v1313, %v861
    %v1328 = vmul.f32 %v1317, %v861
    %v1329 = vmul.f32 %v1321, %v861
    %v1330 = vmul.f32 %v1325, %v861
    %v1331 = vadd.f32 %v1307, %v1327
    %v1332 = vadd.f32 %v1308, %v1328
    %v1333 = vadd.f32 %v1309, %v1329
    %v1334 = vadd.f32 %v1310, %v1330
    %1335 = vset.pattern.permute.xlu0 21
    %1336 = vperm.xlu0 %1335, %v1019
    %v1337 = vpop.permute.xlu0 %1336
    %1339 = vset.pattern.permute.xlu0 21
    %1340 = vperm.xlu0 %1339, %v1020
    %v1341 = vpop.permute.xlu0 %1340
    %1343 = vset.pattern.permute.xlu0 21
    %1344 = vperm.xlu0 %1343, %v1021
    %v1345 = vpop.permute.xlu0 %1344
    %1347 = vset.pattern.permute.xlu0 21
    %1348 = vperm.xlu0 %1347, %v1022
    %v1349 = vpop.permute.xlu0 %1348
    %v1351 = vmul.f32 %v1337, %v889
    %v1352 = vmul.f32 %v1341, %v889
    %v1353 = vmul.f32 %v1345, %v889
    %v1354 = vmul.f32 %v1349, %v889
    %v1355 = vadd.f32 %v1331, %v1351
    %v1356 = vadd.f32 %v1332, %v1352
    %v1357 = vadd.f32 %v1333, %v1353
    %v1358 = vadd.f32 %v1334, %v1354
    %1359 = vset.pattern.permute.xlu0 22
    %1360 = vperm.xlu0 %1359, %v1019
    %v1361 = vpop.permute.xlu0 %1360
    %1363 = vset.pattern.permute.xlu0 22
    %1364 = vperm.xlu0 %1363, %v1020
    %v1365 = vpop.permute.xlu0 %1364
    %1367 = vset.pattern.permute.xlu0 22
    %1368 = vperm.xlu0 %1367, %v1021
    %v1369 = vpop.permute.xlu0 %1368
    %1371 = vset.pattern.permute.xlu0 22
    %1372 = vperm.xlu0 %1371, %v1022
    %v1373 = vpop.permute.xlu0 %1372
    %v1375 = vmul.f32 %v1361, %v917
    %v1376 = vmul.f32 %v1365, %v917
    %v1377 = vmul.f32 %v1369, %v917
    %v1378 = vmul.f32 %v1373, %v917
    %v1379 = vadd.f32 %v1355, %v1375
    %v1380 = vadd.f32 %v1356, %v1376
    %v1381 = vadd.f32 %v1357, %v1377
    %v1382 = vadd.f32 %v1358, %v1378
    %1383 = vset.pattern.permute.xlu0 23
    %1384 = vperm.xlu0 %1383, %v1019
    %v1385 = vpop.permute.xlu0 %1384
    %1387 = vset.pattern.permute.xlu0 23
    %1388 = vperm.xlu0 %1387, %v1020
    %v1389 = vpop.permute.xlu0 %1388
    %1391 = vset.pattern.permute.xlu0 23
    %1392 = vperm.xlu0 %1391, %v1021
    %v1393 = vpop.permute.xlu0 %1392
    %1395 = vset.pattern.permute.xlu0 23
    %1396 = vperm.xlu0 %1395, %v1022
    %v1397 = vpop.permute.xlu0 %1396
    %v1399 = vmul.f32 %v1385, %v945
    %v1400 = vmul.f32 %v1389, %v945
    %v1401 = vmul.f32 %v1393, %v945
    %v1402 = vmul.f32 %v1397, %v945
    %v1403 = vadd.f32 %v1379, %v1399
    %v1404 = vadd.f32 %v1380, %v1400
    %v1405 = vadd.f32 %v1381, %v1401
    %v1406 = vadd.f32 %v1382, %v1402
    %1411 = vrot.lane.b32.xlu0 %v1403, 96
    %v1412 = vpop.permute.xlu0 %1411
    %1413 = vrot.lane.b32.xlu0 %v1404, 96
    %v1414 = vpop.permute.xlu0 %1413
    %1415 = vrot.lane.b32.xlu0 %v1405, 96
    %v1416 = vpop.permute.xlu0 %1415
    %1417 = vrot.lane.b32.xlu0 %v1406, 96
    %v1418 = vpop.permute.xlu0 %1417
    %v1423 = vmax.f32 %v1403, %v1412
    %v1424 = vmax.f32 %v1404, %v1414
    %v1425 = vmax.f32 %v1405, %v1416
    %v1426 = vmax.f32 %v1406, %v1418
    %1431 = vrot.lane.b32.xlu0 %v1423, 64
    %v1432 = vpop.permute.xlu0 %1431
    %1433 = vrot.lane.b32.xlu0 %v1424, 64
    %v1434 = vpop.permute.xlu0 %1433
    %1435 = vrot.lane.b32.xlu0 %v1425, 64
    %v1436 = vpop.permute.xlu0 %1435
    %1437 = vrot.lane.b32.xlu0 %v1426, 64
    %v1438 = vpop.permute.xlu0 %1437
    %v1443 = vmax.f32 %v1423, %v1432
    %v1444 = vmax.f32 %v1424, %v1434
    %v1445 = vmax.f32 %v1425, %v1436
    %v1446 = vmax.f32 %v1426, %v1438
    %v1447 = vadd.f32 %v1443, %v998
    %v1448 = vadd.f32 %v1444, %v998
    %v1449 = vadd.f32 %v1445, %v998
    %v1450 = vadd.f32 %v1446, %v998
    %v1451 = vmax.f32 %v1447, 0.0
    %v1452 = vmax.f32 %v1448, 0.0
    %v1453 = vmax.f32 %v1449, 0.0
    %v1454 = vmax.f32 %v1450, 0.0
    %s1455 = scalar_lea.vmem [#allocation2], 160
    %vm1456 = vcmask 259072
    %1457 = vst.msk [vmem:[%s1455 + $0x2] sm:$0x3f] %vm1456, %v1451
    %1458 = vst.msk [vmem:[%s1455 + $0xa] sm:$0x3f] %vm1456, %v1452
    %1459 = vst.msk [vmem:[%s1455 + $0x12] sm:$0x3f] %vm1456, %v1453
    %1460 = vst.msk [vmem:[%s1455 + $0x1a] sm:$0x3f] %vm1456, %v1454
    %s1461 = scalar_lea.vmem [#allocation2], 240
    %1462 = vst.msk [vmem:[%s1461] sm:$0xff] %vm444, %v1451
    %1463 = vst.msk [vmem:[%s1461 + $0x8] sm:$0xff] %vm444, %v1452
    %1464 = vst.msk [vmem:[%s1461 + $0x10] sm:$0xff] %vm444, %v1453
    %1465 = vst.msk [vmem:[%s1461 + $0x18] sm:$0xff] %vm444, %v1454
    %v1466 = vld [vmem:[%s0] sm:$0xff]
    %v1467 = vld [vmem:[%s0 + $0x8] sm:$0xff]
    %v1468 = vld [vmem:[%s0 + $0x10] sm:$0xff]
    %v1469 = vld [vmem:[%s0 + $0x18] sm:$0xff]
    %1471 = vset.pattern.permute.xlu0 12
    %1472 = vperm.xlu0 %1471, %v1466
    %v1473 = vpop.permute.xlu0 %1472
    %1476 = vset.pattern.permute.xlu0 12
    %1477 = vperm.xlu0 %1476, %v1467
    %v1478 = vpop.permute.xlu0 %1477
    %1481 = vset.pattern.permute.xlu0 12
    %1482 = vperm.xlu0 %1481, %v1468
    %v1483 = vpop.permute.xlu0 %1482
    %1486 = vset.pattern.permute.xlu0 12
    %1487 = vperm.xlu0 %1486, %v1469
    %v1488 = vpop.permute.xlu0 %1487
    %v1490 = vmul.f32 %v1473, %v529
    %v1491 = vmul.f32 %v1478, %v529
    %v1492 = vmul.f32 %v1483, %v529
    %v1493 = vmul.f32 %v1488, %v529
    %1494 = vset.pattern.permute.xlu0 13
    %1495 = vperm.xlu0 %1494, %v1466
    %v1496 = vpop.permute.xlu0 %1495
    %1498 = vset.pattern.permute.xlu0 13
    %1499 = vperm.xlu0 %1498, %v1467
    %v1500 = vpop.permute.xlu0 %1499
    %1502 = vset.pattern.permute.xlu0 13
    %1503 = vperm.xlu0 %1502, %v1468
    %v1504 = vpop.permute.xlu0 %1503
    %1506 = vset.pattern.permute.xlu0 13
    %1507 = vperm.xlu0 %1506, %v1469
    %v1508 = vpop.permute.xlu0 %1507
    %v1510 = vmul.f32 %v1496, %v553
    %v1511 = vmul.f32 %v1500, %v553
    %v1512 = vmul.f32 %v1504, %v553
    %v1513 = vmul.f32 %v1508, %v553
    %v1514 = vadd.f32 %v1490, %v1510
    %v1515 = vadd.f32 %v1491, %v1511
    %v1516 = vadd.f32 %v1492, %v1512
    %v1517 = vadd.f32 %v1493, %v1513
    %1518 = vset.pattern.permute.xlu0 14
    %1519 = vperm.xlu0 %1518, %v1466
    %v1520 = vpop.permute.xlu0 %1519
    %1522 = vset.pattern.permute.xlu0 14
    %1523 = vperm.xlu0 %1522, %v1467
    %v1524 = vpop.permute.xlu0 %1523
    %1526 = vset.pattern.permute.xlu0 14
    %1527 = vperm.xlu0 %1526, %v1468
    %v1528 = vpop.permute.xlu0 %1527
    %1530 = vset.pattern.permute.xlu0 14
    %1531 = vperm.xlu0 %1530, %v1469
    %v1532 = vpop.permute.xlu0 %1531
    %v1534 = vmul.f32 %v1520, %v581
    %v1535 = vmul.f32 %v1524, %v581
    %v1536 = vmul.f32 %v1528, %v581
    %v1537 = vmul.f32 %v1532, %v581
    %v1538 = vadd.f32 %v1514, %v1534
    %v1539 = vadd.f32 %v1515, %v1535
    %v1540 = vadd.f32 %v1516, %v1536
    %v1541 = vadd.f32 %v1517, %v1537
    %1542 = vset.pattern.permute.xlu0 15
    %1543 = vperm.xlu0 %1542, %v1466
    %v1544 = vpop.permute.xlu0 %1543
    %1546 = vset.pattern.permute.xlu0 15
    %1547 = vperm.xlu0 %1546, %v1467
    %v1548 = vpop.permute.xlu0 %1547
    %1550 = vset.pattern.permute.xlu0 15
    %1551 = vperm.xlu0 %1550, %v1468
    %v1552 = vpop.permute.xlu0 %1551
    %1554 = vset.pattern.permute.xlu0 15
    %1555 = vperm.xlu0 %1554, %v1469
    %v1556 = vpop.permute.xlu0 %1555
    %v1558 = vmul.f32 %v1544, %v609
    %v1559 = vmul.f32 %v1548, %v609
    %v1560 = vmul.f32 %v1552, %v609
    %v1561 = vmul.f32 %v1556, %v609
    %v1562 = vadd.f32 %v1538, %v1558
    %v1563 = vadd.f32 %v1539, %v1559
    %v1564 = vadd.f32 %v1540, %v1560
    %v1565 = vadd.f32 %v1541, %v1561
    %1566 = vset.pattern.permute.xlu0 18
    %1567 = vperm.xlu0 %1566, %v1466
    %v1568 = vpop.permute.xlu0 %1567
    %1570 = vset.pattern.permute.xlu0 18
    %1571 = vperm.xlu0 %1570, %v1467
    %v1572 = vpop.permute.xlu0 %1571
    %1574 = vset.pattern.permute.xlu0 18
    %1575 = vperm.xlu0 %1574, %v1468
    %v1576 = vpop.permute.xlu0 %1575
    %1578 = vset.pattern.permute.xlu0 18
    %1579 = vperm.xlu0 %1578, %v1469
    %v1580 = vpop.permute.xlu0 %1579
    %v1582 = vmul.f32 %v1568, %v637
    %v1583 = vmul.f32 %v1572, %v637
    %v1584 = vmul.f32 %v1576, %v637
    %v1585 = vmul.f32 %v1580, %v637
    %v1586 = vadd.f32 %v1562, %v1582
    %v1587 = vadd.f32 %v1563, %v1583
    %v1588 = vadd.f32 %v1564, %v1584
    %v1589 = vadd.f32 %v1565, %v1585
    %1590 = vset.pattern.permute.xlu0 19
    %1591 = vperm.xlu0 %1590, %v1466
    %v1592 = vpop.permute.xlu0 %1591
    %1594 = vset.pattern.permute.xlu0 19
    %1595 = vperm.xlu0 %1594, %v1467
    %v1596 = vpop.permute.xlu0 %1595
    %1598 = vset.pattern.permute.xlu0 19
    %1599 = vperm.xlu0 %1598, %v1468
    %v1600 = vpop.permute.xlu0 %1599
    %1602 = vset.pattern.permute.xlu0 19
    %1603 = vperm.xlu0 %1602, %v1469
    %v1604 = vpop.permute.xlu0 %1603
    %v1606 = vmul.f32 %v1592, %v665
    %v1607 = vmul.f32 %v1596, %v665
    %v1608 = vmul.f32 %v1600, %v665
    %v1609 = vmul.f32 %v1604, %v665
    %v1610 = vadd.f32 %v1586, %v1606
    %v1611 = vadd.f32 %v1587, %v1607
    %v1612 = vadd.f32 %v1588, %v1608
    %v1613 = vadd.f32 %v1589, %v1609
    %1614 = vset.pattern.permute.xlu0 20
    %1615 = vperm.xlu0 %1614, %v1466
    %v1616 = vpop.permute.xlu0 %1615
    %1618 = vset.pattern.permute.xlu0 20
    %1619 = vperm.xlu0 %1618, %v1467
    %v1620 = vpop.permute.xlu0 %1619
    %1622 = vset.pattern.permute.xlu0 20
    %1623 = vperm.xlu0 %1622, %v1468
    %v1624 = vpop.permute.xlu0 %1623
    %1626 = vset.pattern.permute.xlu0 20
    %1627 = vperm.xlu0 %1626, %v1469
    %v1628 = vpop.permute.xlu0 %1627
    %v1630 = vmul.f32 %v1616, %v693
    %v1631 = vmul.f32 %v1620, %v693
    %v1632 = vmul.f32 %v1624, %v693
    %v1633 = vmul.f32 %v1628, %v693
    %v1634 = vadd.f32 %v1610, %v1630
    %v1635 = vadd.f32 %v1611, %v1631
    %v1636 = vadd.f32 %v1612, %v1632
    %v1637 = vadd.f32 %v1613, %v1633
    %1638 = vset.pattern.permute.xlu0 21
    %1639 = vperm.xlu0 %1638, %v1466
    %v1640 = vpop.permute.xlu0 %1639
    %1642 = vset.pattern.permute.xlu0 21
    %1643 = vperm.xlu0 %1642, %v1467
    %v1644 = vpop.permute.xlu0 %1643
    %1646 = vset.pattern.permute.xlu0 21
    %1647 = vperm.xlu0 %1646, %v1468
    %v1648 = vpop.permute.xlu0 %1647
    %1650 = vset.pattern.permute.xlu0 21
    %1651 = vperm.xlu0 %1650, %v1469
    %v1652 = vpop.permute.xlu0 %1651
    %v1654 = vmul.f32 %v1640, %v721
    %v1655 = vmul.f32 %v1644, %v721
    %v1656 = vmul.f32 %v1648, %v721
    %v1657 = vmul.f32 %v1652, %v721
    %v1658 = vadd.f32 %v1634, %v1654
    %v1659 = vadd.f32 %v1635, %v1655
    %v1660 = vadd.f32 %v1636, %v1656
    %v1661 = vadd.f32 %v1637, %v1657
    %1662 = vset.pattern.permute.xlu0 24
    %1663 = vperm.xlu0 %1662, %v1466
    %v1664 = vpop.permute.xlu0 %1663
    %1666 = vset.pattern.permute.xlu0 24
    %1667 = vperm.xlu0 %1666, %v1467
    %v1668 = vpop.permute.xlu0 %1667
    %1670 = vset.pattern.permute.xlu0 24
    %1671 = vperm.xlu0 %1670, %v1468
    %v1672 = vpop.permute.xlu0 %1671
    %1674 = vset.pattern.permute.xlu0 24
    %1675 = vperm.xlu0 %1674, %v1469
    %v1676 = vpop.permute.xlu0 %1675
    %v1678 = vmul.f32 %v1664, %v749
    %v1679 = vmul.f32 %v1668, %v749
    %v1680 = vmul.f32 %v1672, %v749
    %v1681 = vmul.f32 %v1676, %v749
    %v1682 = vadd.f32 %v1658, %v1678
    %v1683 = vadd.f32 %v1659, %v1679
    %v1684 = vadd.f32 %v1660, %v1680
    %v1685 = vadd.f32 %v1661, %v1681
    %1686 = vset.pattern.permute.xlu0 25
    %1687 = vperm.xlu0 %1686, %v1466
    %v1688 = vpop.permute.xlu0 %1687
    %1690 = vset.pattern.permute.xlu0 25
    %1691 = vperm.xlu0 %1690, %v1467
    %v1692 = vpop.permute.xlu0 %1691
    %1694 = vset.pattern.permute.xlu0 25
    %1695 = vperm.xlu0 %1694, %v1468
    %v1696 = vpop.permute.xlu0 %1695
    %1698 = vset.pattern.permute.xlu0 25
    %1699 = vperm.xlu0 %1698, %v1469
    %v1700 = vpop.permute.xlu0 %1699
    %v1702 = vmul.f32 %v1688, %v777
    %v1703 = vmul.f32 %v1692, %v777
    %v1704 = vmul.f32 %v1696, %v777
    %v1705 = vmul.f32 %v1700, %v777
    %v1706 = vadd.f32 %v1682, %v1702
    %v1707 = vadd.f32 %v1683, %v1703
    %v1708 = vadd.f32 %v1684, %v1704
    %v1709 = vadd.f32 %v1685, %v1705
    %1710 = vset.pattern.permute.xlu0 26
    %1711 = vperm.xlu0 %1710, %v1466
    %v1712 = vpop.permute.xlu0 %1711
    %1714 = vset.pattern.permute.xlu0 26
    %1715 = vperm.xlu0 %1714, %v1467
    %v1716 = vpop.permute.xlu0 %1715
    %1718 = vset.pattern.permute.xlu0 26
    %1719 = vperm.xlu0 %1718, %v1468
    %v1720 = vpop.permute.xlu0 %1719
    %1722 = vset.pattern.permute.xlu0 26
    %1723 = vperm.xlu0 %1722, %v1469
    %v1724 = vpop.permute.xlu0 %1723
    %v1726 = vmul.f32 %v1712, %v805
    %v1727 = vmul.f32 %v1716, %v805
    %v1728 = vmul.f32 %v1720, %v805
    %v1729 = vmul.f32 %v1724, %v805
    %v1730 = vadd.f32 %v1706, %v1726
    %v1731 = vadd.f32 %v1707, %v1727
    %v1732 = vadd.f32 %v1708, %v1728
    %v1733 = vadd.f32 %v1709, %v1729
    %1734 = vset.pattern.permute.xlu0 27
    %1735 = vperm.xlu0 %1734, %v1466
    %v1736 = vpop.permute.xlu0 %1735
    %1738 = vset.pattern.permute.xlu0 27
    %1739 = vperm.xlu0 %1738, %v1467
    %v1740 = vpop.permute.xlu0 %1739
    %1742 = vset.pattern.permute.xlu0 27
    %1743 = vperm.xlu0 %1742, %v1468
    %v1744 = vpop.permute.xlu0 %1743
    %1746 = vset.pattern.permute.xlu0 27
    %1747 = vperm.xlu0 %1746, %v1469
    %v1748 = vpop.permute.xlu0 %1747
    %v1750 = vmul.f32 %v1736, %v833
    %v1751 = vmul.f32 %v1740, %v833
    %v1752 = vmul.f32 %v1744, %v833
    %v1753 = vmul.f32 %v1748, %v833
    %v1754 = vadd.f32 %v1730, %v1750
    %v1755 = vadd.f32 %v1731, %v1751
    %v1756 = vadd.f32 %v1732, %v1752
    %v1757 = vadd.f32 %v1733, %v1753
    %1758 = vset.pattern.permute.xlu0 30
    %1759 = vperm.xlu0 %1758, %v1466
    %v1760 = vpop.permute.xlu0 %1759
    %1762 = vset.pattern.permute.xlu0 30
    %1763 = vperm.xlu0 %1762, %v1467
    %v1764 = vpop.permute.xlu0 %1763
    %1766 = vset.pattern.permute.xlu0 30
    %1767 = vperm.xlu0 %1766, %v1468
    %v1768 = vpop.permute.xlu0 %1767
    %1770 = vset.pattern.permute.xlu0 30
    %1771 = vperm.xlu0 %1770, %v1469
    %v1772 = vpop.permute.xlu0 %1771
    %v1774 = vmul.f32 %v1760, %v861
    %v1775 = vmul.f32 %v1764, %v861
    %v1776 = vmul.f32 %v1768, %v861
    %v1777 = vmul.f32 %v1772, %v861
    %v1778 = vadd.f32 %v1754, %v1774
    %v1779 = vadd.f32 %v1755, %v1775
    %v1780 = vadd.f32 %v1756, %v1776
    %v1781 = vadd.f32 %v1757, %v1777
    %1782 = vset.pattern.permute.xlu0 31
    %1783 = vperm.xlu0 %1782, %v1466
    %v1784 = vpop.permute.xlu0 %1783
    %1786 = vset.pattern.permute.xlu0 31
    %1787 = vperm.xlu0 %1786, %v1467
    %v1788 = vpop.permute.xlu0 %1787
    %1790 = vset.pattern.permute.xlu0 31
    %1791 = vperm.xlu0 %1790, %v1468
    %v1792 = vpop.permute.xlu0 %1791
    %1794 = vset.pattern.permute.xlu0 31
    %1795 = vperm.xlu0 %1794, %v1469
    %v1796 = vpop.permute.xlu0 %1795
    %v1798 = vmul.f32 %v1784, %v889
    %v1799 = vmul.f32 %v1788, %v889
    %v1800 = vmul.f32 %v1792, %v889
    %v1801 = vmul.f32 %v1796, %v889
    %v1802 = vadd.f32 %v1778, %v1798
    %v1803 = vadd.f32 %v1779, %v1799
    %v1804 = vadd.f32 %v1780, %v1800
    %v1805 = vadd.f32 %v1781, %v1801
    %1806 = vset.pattern.permute.xlu0 32
    %1807 = vperm.xlu0 %1806, %v1466
    %v1808 = vpop.permute.xlu0 %1807
    %1810 = vset.pattern.permute.xlu0 32
    %1811 = vperm.xlu0 %1810, %v1467
    %v1812 = vpop.permute.xlu0 %1811
    %1814 = vset.pattern.permute.xlu0 32
    %1815 = vperm.xlu0 %1814, %v1468
    %v1816 = vpop.permute.xlu0 %1815
    %1818 = vset.pattern.permute.xlu0 32
    %1819 = vperm.xlu0 %1818, %v1469
    %v1820 = vpop.permute.xlu0 %1819
    %v1822 = vmul.f32 %v1808, %v917
    %v1823 = vmul.f32 %v1812, %v917
    %v1824 = vmul.f32 %v1816, %v917
    %v1825 = vmul.f32 %v1820, %v917
    %v1826 = vadd.f32 %v1802, %v1822
    %v1827 = vadd.f32 %v1803, %v1823
    %v1828 = vadd.f32 %v1804, %v1824
    %v1829 = vadd.f32 %v1805, %v1825
    %1830 = vset.pattern.permute.xlu0 33
    %1831 = vperm.xlu0 %1830, %v1466
    %v1832 = vpop.permute.xlu0 %1831
    %1834 = vset.pattern.permute.xlu0 33
    %1835 = vperm.xlu0 %1834, %v1467
    %v1836 = vpop.permute.xlu0 %1835
    %1838 = vset.pattern.permute.xlu0 33
    %1839 = vperm.xlu0 %1838, %v1468
    %v1840 = vpop.permute.xlu0 %1839
    %1842 = vset.pattern.permute.xlu0 33
    %1843 = vperm.xlu0 %1842, %v1469
    %v1844 = vpop.permute.xlu0 %1843
    %v1846 = vmul.f32 %v1832, %v945
    %v1847 = vmul.f32 %v1836, %v945
    %v1848 = vmul.f32 %v1840, %v945
    %v1849 = vmul.f32 %v1844, %v945
    %v1850 = vadd.f32 %v1826, %v1846
    %v1851 = vadd.f32 %v1827, %v1847
    %v1852 = vadd.f32 %v1828, %v1848
    %v1853 = vadd.f32 %v1829, %v1849
    %1858 = vrot.lane.b32.xlu0 %v1850, 96
    %v1859 = vpop.permute.xlu0 %1858
    %1860 = vrot.lane.b32.xlu0 %v1851, 96
    %v1861 = vpop.permute.xlu0 %1860
    %1862 = vrot.lane.b32.xlu0 %v1852, 96
    %v1863 = vpop.permute.xlu0 %1862
    %1864 = vrot.lane.b32.xlu0 %v1853, 96
    %v1865 = vpop.permute.xlu0 %1864
    %v1870 = vmax.f32 %v1850, %v1859
    %v1871 = vmax.f32 %v1851, %v1861
    %v1872 = vmax.f32 %v1852, %v1863
    %v1873 = vmax.f32 %v1853, %v1865
    %1878 = vrot.lane.b32.xlu0 %v1870, 64
    %v1879 = vpop.permute.xlu0 %1878
    %1880 = vrot.lane.b32.xlu0 %v1871, 64
    %v1881 = vpop.permute.xlu0 %1880
    %1882 = vrot.lane.b32.xlu0 %v1872, 64
    %v1883 = vpop.permute.xlu0 %1882
    %1884 = vrot.lane.b32.xlu0 %v1873, 64
    %v1885 = vpop.permute.xlu0 %1884
    %v1890 = vmax.f32 %v1870, %v1879
    %v1891 = vmax.f32 %v1871, %v1881
    %v1892 = vmax.f32 %v1872, %v1883
    %v1893 = vmax.f32 %v1873, %v1885
    %v1894 = vadd.f32 %v1890, %v998
    %v1895 = vadd.f32 %v1891, %v998
    %v1896 = vadd.f32 %v1892, %v998
    %v1897 = vadd.f32 %v1893, %v998
    %v1898 = vmax.f32 %v1894, 0.0
    %v1899 = vmax.f32 %v1895, 0.0
    %v1900 = vmax.f32 %v1896, 0.0
    %v1901 = vmax.f32 %v1897, 0.0
    %s1902 = scalar_lea.vmem [#allocation2], 48
    %1903 = vst.msk [vmem:[%s1902] sm:$0xff] %vm444, %v1898
    %1904 = vst.msk [vmem:[%s1902 + $0x8] sm:$0xff] %vm444, %v1899
    %1905 = vst.msk [vmem:[%s1902 + $0x10] sm:$0xff] %vm444, %v1900
    %1906 = vst.msk [vmem:[%s1902 + $0x18] sm:$0xff] %vm444, %v1901
    %s1907 = scalar_lea.vmem [#allocation2], 128
    %1908 = vst.msk [vmem:[%s1907 - $0x2] sm:$0xfc] %vm1014, %v1898
    %1909 = vst.msk [vmem:[%s1907 + $0x6] sm:$0xfc] %vm1014, %v1899
    %1910 = vst.msk [vmem:[%s1907 + $0xe] sm:$0xfc] %vm1014, %v1900
    %1911 = vst.msk [vmem:[%s1907 + $0x16] sm:$0xfc] %vm1014, %v1901
    %v1912 = vld [vmem:[%s0] sm:$0xff]
    %v1913 = vld [vmem:[%s0 + $0x8] sm:$0xff]
    %v1914 = vld [vmem:[%s0 + $0x10] sm:$0xff]
    %v1915 = vld [vmem:[%s0 + $0x18] sm:$0xff]
    %1917 = vset.pattern.permute.xlu0 14
    %1918 = vperm.xlu0 %1917, %v1912
    %v1919 = vpop.permute.xlu0 %1918
    %1922 = vset.pattern.permute.xlu0 14
    %1923 = vperm.xlu0 %1922, %v1913
    %v1924 = vpop.permute.xlu0 %1923
    %1927 = vset.pattern.permute.xlu0 14
    %1928 = vperm.xlu0 %1927, %v1914
    %v1929 = vpop.permute.xlu0 %1928
    %1932 = vset.pattern.permute.xlu0 14
    %1933 = vperm.xlu0 %1932, %v1915
    %v1934 = vpop.permute.xlu0 %1933
    %v1936 = vmul.f32 %v1919, %v529
    %v1937 = vmul.f32 %v1924, %v529
    %v1938 = vmul.f32 %v1929, %v529
    %v1939 = vmul.f32 %v1934, %v529
    %1940 = vset.pattern.permute.xlu0 15
    %1941 = vperm.xlu0 %1940, %v1912
    %v1942 = vpop.permute.xlu0 %1941
    %1944 = vset.pattern.permute.xlu0 15
    %1945 = vperm.xlu0 %1944, %v1913
    %v1946 = vpop.permute.xlu0 %1945
    %1948 = vset.pattern.permute.xlu0 15
    %1949 = vperm.xlu0 %1948, %v1914
    %v1950 = vpop.permute.xlu0 %1949
    %1952 = vset.pattern.permute.xlu0 15
    %1953 = vperm.xlu0 %1952, %v1915
    %v1954 = vpop.permute.xlu0 %1953
    %v1956 = vmul.f32 %v1942, %v553
    %v1957 = vmul.f32 %v1946, %v553
    %v1958 = vmul.f32 %v1950, %v553
    %v1959 = vmul.f32 %v1954, %v553
    %v1960 = vadd.f32 %v1936, %v1956
    %v1961 = vadd.f32 %v1937, %v1957
    %v1962 = vadd.f32 %v1938, %v1958
    %v1963 = vadd.f32 %v1939, %v1959
    %1964 = vset.pattern.permute.xlu0 16
    %1965 = vperm.xlu0 %1964, %v1912
    %v1966 = vpop.permute.xlu0 %1965
    %1968 = vset.pattern.permute.xlu0 16
    %1969 = vperm.xlu0 %1968, %v1913
    %v1970 = vpop.permute.xlu0 %1969
    %1972 = vset.pattern.permute.xlu0 16
    %1973 = vperm.xlu0 %1972, %v1914
    %v1974 = vpop.permute.xlu0 %1973
    %1976 = vset.pattern.permute.xlu0 16
    %1977 = vperm.xlu0 %1976, %v1915
    %v1978 = vpop.permute.xlu0 %1977
    %v1980 = vmul.f32 %v1966, %v581
    %v1981 = vmul.f32 %v1970, %v581
    %v1982 = vmul.f32 %v1974, %v581
    %v1983 = vmul.f32 %v1978, %v581
    %v1984 = vadd.f32 %v1960, %v1980
    %v1985 = vadd.f32 %v1961, %v1981
    %v1986 = vadd.f32 %v1962, %v1982
    %v1987 = vadd.f32 %v1963, %v1983
    %1988 = vset.pattern.permute.xlu0 17
    %1989 = vperm.xlu0 %1988, %v1912
    %v1990 = vpop.permute.xlu0 %1989
    %1992 = vset.pattern.permute.xlu0 17
    %1993 = vperm.xlu0 %1992, %v1913
    %v1994 = vpop.permute.xlu0 %1993
    %1996 = vset.pattern.permute.xlu0 17
    %1997 = vperm.xlu0 %1996, %v1914
    %v1998 = vpop.permute.xlu0 %1997
    %2000 = vset.pattern.permute.xlu0 17
    %2001 = vperm.xlu0 %2000, %v1915
    %v2002 = vpop.permute.xlu0 %2001
    %v2004 = vmul.f32 %v1990, %v609
    %v2005 = vmul.f32 %v1994, %v609
    %v2006 = vmul.f32 %v1998, %v609
    %v2007 = vmul.f32 %v2002, %v609
    %v2008 = vadd.f32 %v1984, %v2004
    %v2009 = vadd.f32 %v1985, %v2005
    %v2010 = vadd.f32 %v1986, %v2006
    %v2011 = vadd.f32 %v1987, %v2007
    %2012 = vset.pattern.permute.xlu0 20
    %2013 = vperm.xlu0 %2012, %v1912
    %v2014 = vpop.permute.xlu0 %2013
    %2016 = vset.pattern.permute.xlu0 20
    %2017 = vperm.xlu0 %2016, %v1913
    %v2018 = vpop.permute.xlu0 %2017
    %2020 = vset.pattern.permute.xlu0 20
    %2021 = vperm.xlu0 %2020, %v1914
    %v2022 = vpop.permute.xlu0 %2021
    %2024 = vset.pattern.permute.xlu0 20
    %2025 = vperm.xlu0 %2024, %v1915
    %v2026 = vpop.permute.xlu0 %2025
    %v2028 = vmul.f32 %v2014, %v637
    %v2029 = vmul.f32 %v2018, %v637
    %v2030 = vmul.f32 %v2022, %v637
    %v2031 = vmul.f32 %v2026, %v637
    %v2032 = vadd.f32 %v2008, %v2028
    %v2033 = vadd.f32 %v2009, %v2029
    %v2034 = vadd.f32 %v2010, %v2030
    %v2035 = vadd.f32 %v2011, %v2031
    %2036 = vset.pattern.permute.xlu0 21
    %2037 = vperm.xlu0 %2036, %v1912
    %v2038 = vpop.permute.xlu0 %2037
    %2040 = vset.pattern.permute.xlu0 21
    %2041 = vperm.xlu0 %2040, %v1913
    %v2042 = vpop.permute.xlu0 %2041
    %2044 = vset.pattern.permute.xlu0 21
    %2045 = vperm.xlu0 %2044, %v1914
    %v2046 = vpop.permute.xlu0 %2045
    %2048 = vset.pattern.permute.xlu0 21
    %2049 = vperm.xlu0 %2048, %v1915
    %v2050 = vpop.permute.xlu0 %2049
    %v2052 = vmul.f32 %v2038, %v665
    %v2053 = vmul.f32 %v2042, %v665
    %v2054 = vmul.f32 %v2046, %v665
    %v2055 = vmul.f32 %v2050, %v665
    %v2056 = vadd.f32 %v2032, %v2052
    %v2057 = vadd.f32 %v2033, %v2053
    %v2058 = vadd.f32 %v2034, %v2054
    %v2059 = vadd.f32 %v2035, %v2055
    %2060 = vset.pattern.permute.xlu0 22
    %2061 = vperm.xlu0 %2060, %v1912
    %v2062 = vpop.permute.xlu0 %2061
    %2064 = vset.pattern.permute.xlu0 22
    %2065 = vperm.xlu0 %2064, %v1913
    %v2066 = vpop.permute.xlu0 %2065
    %2068 = vset.pattern.permute.xlu0 22
    %2069 = vperm.xlu0 %2068, %v1914
    %v2070 = vpop.permute.xlu0 %2069
    %2072 = vset.pattern.permute.xlu0 22
    %2073 = vperm.xlu0 %2072, %v1915
    %v2074 = vpop.permute.xlu0 %2073
    %v2076 = vmul.f32 %v2062, %v693
    %v2077 = vmul.f32 %v2066, %v693
    %v2078 = vmul.f32 %v2070, %v693
    %v2079 = vmul.f32 %v2074, %v693
    %v2080 = vadd.f32 %v2056, %v2076
    %v2081 = vadd.f32 %v2057, %v2077
    %v2082 = vadd.f32 %v2058, %v2078
    %v2083 = vadd.f32 %v2059, %v2079
    %2084 = vset.pattern.permute.xlu0 23
    %2085 = vperm.xlu0 %2084, %v1912
    %v2086 = vpop.permute.xlu0 %2085
    %2088 = vset.pattern.permute.xlu0 23
    %2089 = vperm.xlu0 %2088, %v1913
    %v2090 = vpop.permute.xlu0 %2089
    %2092 = vset.pattern.permute.xlu0 23
    %2093 = vperm.xlu0 %2092, %v1914
    %v2094 = vpop.permute.xlu0 %2093
    %2096 = vset.pattern.permute.xlu0 23
    %2097 = vperm.xlu0 %2096, %v1915
    %v2098 = vpop.permute.xlu0 %2097
    %v2100 = vmul.f32 %v2086, %v721
    %v2101 = vmul.f32 %v2090, %v721
    %v2102 = vmul.f32 %v2094, %v721
    %v2103 = vmul.f32 %v2098, %v721
    %v2104 = vadd.f32 %v2080, %v2100
    %v2105 = vadd.f32 %v2081, %v2101
    %v2106 = vadd.f32 %v2082, %v2102
    %v2107 = vadd.f32 %v2083, %v2103
    %2108 = vset.pattern.permute.xlu0 26
    %2109 = vperm.xlu0 %2108, %v1912
    %v2110 = vpop.permute.xlu0 %2109
    %2112 = vset.pattern.permute.xlu0 26
    %2113 = vperm.xlu0 %2112, %v1913
    %v2114 = vpop.permute.xlu0 %2113
    %2116 = vset.pattern.permute.xlu0 26
    %2117 = vperm.xlu0 %2116, %v1914
    %v2118 = vpop.permute.xlu0 %2117
    %2120 = vset.pattern.permute.xlu0 26
    %2121 = vperm.xlu0 %2120, %v1915
    %v2122 = vpop.permute.xlu0 %2121
    %v2124 = vmul.f32 %v2110, %v749
    %v2125 = vmul.f32 %v2114, %v749
    %v2126 = vmul.f32 %v2118, %v749
    %v2127 = vmul.f32 %v2122, %v749
    %v2128 = vadd.f32 %v2104, %v2124
    %v2129 = vadd.f32 %v2105, %v2125
    %v2130 = vadd.f32 %v2106, %v2126
    %v2131 = vadd.f32 %v2107, %v2127
    %2132 = vset.pattern.permute.xlu0 27
    %2133 = vperm.xlu0 %2132, %v1912
    %v2134 = vpop.permute.xlu0 %2133
    %2136 = vset.pattern.permute.xlu0 27
    %2137 = vperm.xlu0 %2136, %v1913
    %v2138 = vpop.permute.xlu0 %2137
    %2140 = vset.pattern.permute.xlu0 27
    %2141 = vperm.xlu0 %2140, %v1914
    %v2142 = vpop.permute.xlu0 %2141
    %2144 = vset.pattern.permute.xlu0 27
    %2145 = vperm.xlu0 %2144, %v1915
    %v2146 = vpop.permute.xlu0 %2145
    %v2148 = vmul.f32 %v2134, %v777
    %v2149 = vmul.f32 %v2138, %v777
    %v2150 = vmul.f32 %v2142, %v777
    %v2151 = vmul.f32 %v2146, %v777
    %v2152 = vadd.f32 %v2128, %v2148
    %v2153 = vadd.f32 %v2129, %v2149
    %v2154 = vadd.f32 %v2130, %v2150
    %v2155 = vadd.f32 %v2131, %v2151
    %2156 = vset.pattern.permute.xlu0 28
    %2157 = vperm.xlu0 %2156, %v1912
    %v2158 = vpop.permute.xlu0 %2157
    %2160 = vset.pattern.permute.xlu0 28
    %2161 = vperm.xlu0 %2160, %v1913
    %v2162 = vpop.permute.xlu0 %2161
    %2164 = vset.pattern.permute.xlu0 28
    %2165 = vperm.xlu0 %2164, %v1914
    %v2166 = vpop.permute.xlu0 %2165
    %2168 = vset.pattern.permute.xlu0 28
    %2169 = vperm.xlu0 %2168, %v1915
    %v2170 = vpop.permute.xlu0 %2169
    %v2172 = vmul.f32 %v2158, %v805
    %v2173 = vmul.f32 %v2162, %v805
    %v2174 = vmul.f32 %v2166, %v805
    %v2175 = vmul.f32 %v2170, %v805
    %v2176 = vadd.f32 %v2152, %v2172
    %v2177 = vadd.f32 %v2153, %v2173
    %v2178 = vadd.f32 %v2154, %v2174
    %v2179 = vadd.f32 %v2155, %v2175
    %2180 = vset.pattern.permute.xlu0 29
    %2181 = vperm.xlu0 %2180, %v1912
    %v2182 = vpop.permute.xlu0 %2181
    %2184 = vset.pattern.permute.xlu0 29
    %2185 = vperm.xlu0 %2184, %v1913
    %v2186 = vpop.permute.xlu0 %2185
    %2188 = vset.pattern.permute.xlu0 29
    %2189 = vperm.xlu0 %2188, %v1914
    %v2190 = vpop.permute.xlu0 %2189
    %2192 = vset.pattern.permute.xlu0 29
    %2193 = vperm.xlu0 %2192, %v1915
    %v2194 = vpop.permute.xlu0 %2193
    %v2196 = vmul.f32 %v2182, %v833
    %v2197 = vmul.f32 %v2186, %v833
    %v2198 = vmul.f32 %v2190, %v833
    %v2199 = vmul.f32 %v2194, %v833
    %v2200 = vadd.f32 %v2176, %v2196
    %v2201 = vadd.f32 %v2177, %v2197
    %v2202 = vadd.f32 %v2178, %v2198
    %v2203 = vadd.f32 %v2179, %v2199
    %2204 = vset.pattern.permute.xlu0 32
    %2205 = vperm.xlu0 %2204, %v1912
    %v2206 = vpop.permute.xlu0 %2205
    %2208 = vset.pattern.permute.xlu0 32
    %2209 = vperm.xlu0 %2208, %v1913
    %v2210 = vpop.permute.xlu0 %2209
    %2212 = vset.pattern.permute.xlu0 32
    %2213 = vperm.xlu0 %2212, %v1914
    %v2214 = vpop.permute.xlu0 %2213
    %2216 = vset.pattern.permute.xlu0 32
    %2217 = vperm.xlu0 %2216, %v1915
    %v2218 = vpop.permute.xlu0 %2217
    %v2220 = vmul.f32 %v2206, %v861
    %v2221 = vmul.f32 %v2210, %v861
    %v2222 = vmul.f32 %v2214, %v861
    %v2223 = vmul.f32 %v2218, %v861
    %v2224 = vadd.f32 %v2200, %v2220
    %v2225 = vadd.f32 %v2201, %v2221
    %v2226 = vadd.f32 %v2202, %v2222
    %v2227 = vadd.f32 %v2203, %v2223
    %2228 = vset.pattern.permute.xlu0 33
    %2229 = vperm.xlu0 %2228, %v1912
    %v2230 = vpop.permute.xlu0 %2229
    %2232 = vset.pattern.permute.xlu0 33
    %2233 = vperm.xlu0 %2232, %v1913
    %v2234 = vpop.permute.xlu0 %2233
    %2236 = vset.pattern.permute.xlu0 33
    %2237 = vperm.xlu0 %2236, %v1914
    %v2238 = vpop.permute.xlu0 %2237
    %2240 = vset.pattern.permute.xlu0 33
    %2241 = vperm.xlu0 %2240, %v1915
    %v2242 = vpop.permute.xlu0 %2241
    %v2244 = vmul.f32 %v2230, %v889
    %v2245 = vmul.f32 %v2234, %v889
    %v2246 = vmul.f32 %v2238, %v889
    %v2247 = vmul.f32 %v2242, %v889
    %v2248 = vadd.f32 %v2224, %v2244
    %v2249 = vadd.f32 %v2225, %v2245
    %v2250 = vadd.f32 %v2226, %v2246
    %v2251 = vadd.f32 %v2227, %v2247
    %2252 = vset.pattern.permute.xlu0 34
    %2253 = vperm.xlu0 %2252, %v1912
    %v2254 = vpop.permute.xlu0 %2253
    %2256 = vset.pattern.permute.xlu0 34
    %2257 = vperm.xlu0 %2256, %v1913
    %v2258 = vpop.permute.xlu0 %2257
    %2260 = vset.pattern.permute.xlu0 34
    %2261 = vperm.xlu0 %2260, %v1914
    %v2262 = vpop.permute.xlu0 %2261
    %2264 = vset.pattern.permute.xlu0 34
    %2265 = vperm.xlu0 %2264, %v1915
    %v2266 = vpop.permute.xlu0 %2265
    %v2268 = vmul.f32 %v2254, %v917
    %v2269 = vmul.f32 %v2258, %v917
    %v2270 = vmul.f32 %v2262, %v917
    %v2271 = vmul.f32 %v2266, %v917
    %v2272 = vadd.f32 %v2248, %v2268
    %v2273 = vadd.f32 %v2249, %v2269
    %v2274 = vadd.f32 %v2250, %v2270
    %v2275 = vadd.f32 %v2251, %v2271
    %2276 = vset.pattern.permute.xlu0 35
    %2277 = vperm.xlu0 %2276, %v1912
    %v2278 = vpop.permute.xlu0 %2277
    %2280 = vset.pattern.permute.xlu0 35
    %2281 = vperm.xlu0 %2280, %v1913
    %v2282 = vpop.permute.xlu0 %2281
    %2284 = vset.pattern.permute.xlu0 35
    %2285 = vperm.xlu0 %2284, %v1914
    %v2286 = vpop.permute.xlu0 %2285
    %2288 = vset.pattern.permute.xlu0 35
    %2289 = vperm.xlu0 %2288, %v1915
    %v2290 = vpop.permute.xlu0 %2289
    %v2292 = vmul.f32 %v2278, %v945
    %v2293 = vmul.f32 %v2282, %v945
    %v2294 = vmul.f32 %v2286, %v945
    %v2295 = vmul.f32 %v2290, %v945
    %v2296 = vadd.f32 %v2272, %v2292
    %v2297 = vadd.f32 %v2273, %v2293
    %v2298 = vadd.f32 %v2274, %v2294
    %v2299 = vadd.f32 %v2275, %v2295
    %2304 = vrot.lane.b32.xlu0 %v2296, 96
    %v2305 = vpop.permute.xlu0 %2304
    %2306 = vrot.lane.b32.xlu0 %v2297, 96
    %v2307 = vpop.permute.xlu0 %2306
    %2308 = vrot.lane.b32.xlu0 %v2298, 96
    %v2309 = vpop.permute.xlu0 %2308
    %2310 = vrot.lane.b32.xlu0 %v2299, 96
    %v2311 = vpop.permute.xlu0 %2310
    %v2316 = vmax.f32 %v2296, %v2305
    %v2317 = vmax.f32 %v2297, %v2307
    %v2318 = vmax.f32 %v2298, %v2309
    %v2319 = vmax.f32 %v2299, %v2311
    %2324 = vrot.lane.b32.xlu0 %v2316, 64
    %v2325 = vpop.permute.xlu0 %2324
    %2326 = vrot.lane.b32.xlu0 %v2317, 64
    %v2327 = vpop.permute.xlu0 %2326
    %2328 = vrot.lane.b32.xlu0 %v2318, 64
    %v2329 = vpop.permute.xlu0 %2328
    %2330 = vrot.lane.b32.xlu0 %v2319, 64
    %v2331 = vpop.permute.xlu0 %2330
    %v2336 = vmax.f32 %v2316, %v2325
    %v2337 = vmax.f32 %v2317, %v2327
    %v2338 = vmax.f32 %v2318, %v2329
    %v2339 = vmax.f32 %v2319, %v2331
    %v2340 = vadd.f32 %v2336, %v998
    %v2341 = vadd.f32 %v2337, %v998
    %v2342 = vadd.f32 %v2338, %v998
    %v2343 = vadd.f32 %v2339, %v998
    %v2344 = vmax.f32 %v2340, 0.0
    %v2345 = vmax.f32 %v2341, 0.0
    %v2346 = vmax.f32 %v2342, 0.0
    %v2347 = vmax.f32 %v2343, 0.0
    %s2348 = scalar_lea.vmem [#allocation2], 8
    %2349 = vst.msk [vmem:[%s2348 + $0x2] sm:$0x3f] %vm1456, %v2344
    %2350 = vst.msk [vmem:[%s2348 + $0xa] sm:$0x3f] %vm1456, %v2345
    %2351 = vst.msk [vmem:[%s2348 + $0x12] sm:$0x3f] %vm1456, %v2346
    %2352 = vst.msk [vmem:[%s2348 + $0x1a] sm:$0x3f] %vm1456, %v2347
    %s2353 = scalar_lea.vmem [#allocation2], 88
    %2354 = vst.msk [vmem:[%s2353] sm:$0xff] %vm444, %v2344
    %2355 = vst.msk [vmem:[%s2353 + $0x8] sm:$0xff] %vm444, %v2345
    %2356 = vst.msk [vmem:[%s2353 + $0x10] sm:$0xff] %vm444, %v2346
    %2357 = vst.msk [vmem:[%s2353 + $0x18] sm:$0xff] %vm444, %v2347
    %v2358 = vld [vmem:[#allocation2] sm:$0xff]
    %s2359 = scalar_lea.vmem [#allocation2], 40
    %v2360 = vld [vmem:[%s2359] sm:$0xff]
    %s2361 = scalar_lea.vmem [#allocation2], 80
    %v2362 = vld [vmem:[%s2361] sm:$0xff]
    %v2363 = vld [vmem:[%s1455] sm:$0xff]
    %v2364 = vld [vmem:[%s1008] sm:$0xff]
    %v2365 = vld [vmem:[%s1461] sm:$0xff]
    %v2366 = vld [vmem:[%s2348] sm:$0xff]
    %v2367 = vld [vmem:[%s1902] sm:$0xff]
    %v2368 = vld [vmem:[%s2353] sm:$0xff]
    %2370 = vrot.lane.b32.xlu0 %v2360, 32
    %v2371 = vpop.permute.xlu0 %2370
    %2374 = vrot.lane.b32.xlu0 %v2362, 64
    %v2375 = vpop.permute.xlu0 %2374
    %2378 = vrot.lane.b32.xlu0 %v2363, 96
    %v2379 = vpop.permute.xlu0 %2378
    %2382 = vrot.lane.b32.xlu0 %v2365, 32
    %v2383 = vpop.permute.xlu0 %2382
    %2386 = vrot.lane.b32.xlu0 %v2366, 64
    %v2387 = vpop.permute.xlu0 %2386
    %2390 = vrot.lane.b32.xlu0 %v2367, 96
    %v2391 = vpop.permute.xlu0 %2390
    %v2393 = vsel %vm444, %v2358, %v2371
    %vm2394 = vcmask 523264
    %v2395 = vsel %vm2394, %v2393, %v2375
    %vm2396 = vcmask 785408
    %v2397 = vsel %vm2396, %v2395, %v2379
    %v2398 = vsel %vm444, %v2364, %v2383
    %v2399 = vsel %vm2394, %v2398, %v2387
    %v2400 = vsel %vm2396, %v2399, %v2391
    %2401 = vst [vmem:[#allocation3] sm:$0xff] %v2397
    %2402 = vst [vmem:[#allocation3 + $0x8] sm:$0xff] %v2400
    %2403 = vst.msk [vmem:[#allocation3 + $0x10] sm:$0xff] %vm444, %v2368
    %v2404 = vld [vmem:[%s2348] sm:$0xff]
    %v2405 = vld [vmem:[%s1902] sm:$0xff]
    %v2406 = vld [vmem:[%s2353] sm:$0xff]
    %s2407 = scalar_lea.vmem [#allocation2], 168
    %v2408 = vld [vmem:[%s2407] sm:$0xff]
    %s2409 = scalar_lea.vmem [#allocation2], 208
    %v2410 = vld [vmem:[%s2409] sm:$0xff]
    %s2411 = scalar_lea.vmem [#allocation2], 248
    %v2412 = vld [vmem:[%s2411] sm:$0xff]
    %s2413 = scalar_lea.vmem [#allocation2], 16
    %v2414 = vld [vmem:[%s2413] sm:$0xff]
    %s2415 = scalar_lea.vmem [#allocation2], 56
    %v2416 = vld [vmem:[%s2415] sm:$0xff]
    %s2417 = scalar_lea.vmem [#allocation2], 96
    %v2418 = vld [vmem:[%s2417] sm:$0xff]
    %2420 = vrot.lane.b32.xlu0 %v2405, 32
    %v2421 = vpop.permute.xlu0 %2420
    %2424 = vrot.lane.b32.xlu0 %v2406, 64
    %v2425 = vpop.permute.xlu0 %2424
    %2428 = vrot.lane.b32.xlu0 %v2408, 96
    %v2429 = vpop.permute.xlu0 %2428
    %2432 = vrot.lane.b32.xlu0 %v2412, 32
    %v2433 = vpop.permute.xlu0 %2432
    %2436 = vrot.lane.b32.xlu0 %v2414, 64
    %v2437 = vpop.permute.xlu0 %2436
    %2440 = vrot.lane.b32.xlu0 %v2416, 96
    %v2441 = vpop.permute.xlu0 %2440
    %v2443 = vsel %vm444, %v2404, %v2421
    %v2444 = vsel %vm2394, %v2443, %v2425
    %v2445 = vsel %vm2396, %v2444, %v2429
    %v2446 = vsel %vm444, %v2410, %v2433
    %v2447 = vsel %vm2394, %v2446, %v2437
    %v2448 = vsel %vm2396, %v2447, %v2441
    %2449 = vst [vmem:[#allocation3 + $0x18] sm:$0xff] %v2445
    %2450 = vst [vmem:[#allocation3 + $0x20] sm:$0xff] %v2448
    %2451 = vst.msk [vmem:[#allocation3 + $0x28] sm:$0xff] %vm444, %v2418
    %v2452 = vld [vmem:[%s2413] sm:$0xff]
    %v2453 = vld [vmem:[%s2415] sm:$0xff]
    %v2454 = vld [vmem:[%s2417] sm:$0xff]
    %s2455 = scalar_lea.vmem [#allocation2], 176
    %v2456 = vld [vmem:[%s2455] sm:$0xff]
    %s2457 = scalar_lea.vmem [#allocation2], 216
    %v2458 = vld [vmem:[%s2457] sm:$0xff]
    %s2459 = scalar_lea.vmem [#allocation2], 256
    %v2460 = vld [vmem:[%s2459] sm:$0xff]
    %s2461 = scalar_lea.vmem [#allocation2], 24
    %v2462 = vld [vmem:[%s2461] sm:$0xff]
    %s2463 = scalar_lea.vmem [#allocation2], 64
    %v2464 = vld [vmem:[%s2463] sm:$0xff]
    %s2465 = scalar_lea.vmem [#allocation2], 104
    %v2466 = vld [vmem:[%s2465] sm:$0xff]
    %2468 = vrot.lane.b32.xlu0 %v2453, 32
    %v2469 = vpop.permute.xlu0 %2468
    %2472 = vrot.lane.b32.xlu0 %v2454, 64
    %v2473 = vpop.permute.xlu0 %2472
    %2476 = vrot.lane.b32.xlu0 %v2456, 96
    %v2477 = vpop.permute.xlu0 %2476
    %2480 = vrot.lane.b32.xlu0 %v2460, 32
    %v2481 = vpop.permute.xlu0 %2480
    %2484 = vrot.lane.b32.xlu0 %v2462, 64
    %v2485 = vpop.permute.xlu0 %2484
    %2488 = vrot.lane.b32.xlu0 %v2464, 96
    %v2489 = vpop.permute.xlu0 %2488
    %v2491 = vsel %vm444, %v2452, %v2469
    %v2492 = vsel %vm2394, %v2491, %v2473
    %v2493 = vsel %vm2396, %v2492, %v2477
    %v2494 = vsel %vm444, %v2458, %v2481
    %v2495 = vsel %vm2394, %v2494, %v2485
    %v2496 = vsel %vm2396, %v2495, %v2489
    %2497 = vst [vmem:[#allocation3 + $0x30] sm:$0xff] %v2493
    %2498 = vst [vmem:[#allocation3 + $0x38] sm:$0xff] %v2496
    %2499 = vst.msk [vmem:[#allocation3 + $0x40] sm:$0xff] %vm444, %v2466
    %v2500 = vld [vmem:[%s2461] sm:$0xff]
    %v2501 = vld [vmem:[%s2463] sm:$0xff]
    %v2502 = vld [vmem:[%s2465] sm:$0xff]
    %s2503 = scalar_lea.vmem [#allocation2], 184
    %v2504 = vld [vmem:[%s2503] sm:$0xff]
    %s2505 = scalar_lea.vmem [#allocation2], 224
    %v2506 = vld [vmem:[%s2505] sm:$0xff]
    %s2507 = scalar_lea.vmem [#allocation2], 264
    %v2508 = vld [vmem:[%s2507] sm:$0xff]
    %s2509 = scalar_lea.vmem [#allocation2], 32
    %v2510 = vld [vmem:[%s2509] sm:$0xff]
    %s2511 = scalar_lea.vmem [#allocation2], 72
    %v2512 = vld [vmem:[%s2511] sm:$0xff]
    %s2513 = scalar_lea.vmem [#allocation2], 112
    %v2514 = vld [vmem:[%s2513] sm:$0xff]
    %2516 = vrot.lane.b32.xlu0 %v2501, 32
    %v2517 = vpop.permute.xlu0 %2516
    %2520 = vrot.lane.b32.xlu0 %v2502, 64
    %v2521 = vpop.permute.xlu0 %2520
    %2524 = vrot.lane.b32.xlu0 %v2504, 96
    %v2525 = vpop.permute.xlu0 %2524
    %2528 = vrot.lane.b32.xlu0 %v2508, 32
    %v2529 = vpop.permute.xlu0 %2528
    %2532 = vrot.lane.b32.xlu0 %v2510, 64
    %v2533 = vpop.permute.xlu0 %2532
    %2536 = vrot.lane.b32.xlu0 %v2512, 96
    %v2537 = vpop.permute.xlu0 %2536
    %v2539 = vsel %vm444, %v2500, %v2517
    %v2540 = vsel %vm2394, %v2539, %v2521
    %v2541 = vsel %vm2396, %v2540, %v2525
    %v2542 = vsel %vm444, %v2506, %v2529
    %v2543 = vsel %vm2394, %v2542, %v2533
    %v2544 = vsel %vm2396, %v2543, %v2537
    %2545 = vst [vmem:[#allocation3 + $0x48] sm:$0xff] %v2541
    %2546 = vst [vmem:[#allocation3 + $0x50] sm:$0xff] %v2544
    %2547 = vst.msk [vmem:[#allocation3 + $0x58] sm:$0xff] %vm444, %v2514
    %v2548 = vld [vmem:[%s2359] sm:$0xff]
    %v2549 = vld [vmem:[%s2361] sm:$0xff]
    %s2550 = scalar_lea.vmem [#allocation2], 120
    %v2551 = vld [vmem:[%s2550] sm:$0xff]
    %v2552 = vld [vmem:[%s1008] sm:$0xff]
    %v2553 = vld [vmem:[%s1461] sm:$0xff]
    %v2554 = vld [vmem:[%s1013] sm:$0xff]
    %v2555 = vld [vmem:[%s1902] sm:$0xff]
    %v2556 = vld [vmem:[%s2353] sm:$0xff]
    %v2557 = vld [vmem:[%s1907] sm:$0xff]
    %2559 = vrot.lane.b32.xlu0 %v2549, 32
    %v2560 = vpop.permute.xlu0 %2559
    %2563 = vrot.lane.b32.xlu0 %v2551, 64
    %v2564 = vpop.permute.xlu0 %2563
    %2567 = vrot.lane.b32.xlu0 %v2552, 96
    %v2568 = vpop.permute.xlu0 %2567
    %2571 = vrot.lane.b32.xlu0 %v2554, 32
    %v2572 = vpop.permute.xlu0 %2571
    %2575 = vrot.lane.b32.xlu0 %v2555, 64
    %v2576 = vpop.permute.xlu0 %2575
    %2579 = vrot.lane.b32.xlu0 %v2556, 96
    %v2580 = vpop.permute.xlu0 %2579
    %v2582 = vsel %vm444, %v2548, %v2560
    %v2583 = vsel %vm2394, %v2582, %v2564
    %v2584 = vsel %vm2396, %v2583, %v2568
    %v2585 = vsel %vm444, %v2553, %v2572
    %v2586 = vsel %vm2394, %v2585, %v2576
    %v2587 = vsel %vm2396, %v2586, %v2580
    %2588 = vst [vmem:[#allocation3 + $0x60] sm:$0xff] %v2584
    %2589 = vst [vmem:[#allocation3 + $0x68] sm:$0xff] %v2587
    %2590 = vst.msk [vmem:[#allocation3 + $0x70] sm:$0xff] %vm444, %v2557
    %v2591 = vld [vmem:[%s1902] sm:$0xff]
    %v2592 = vld [vmem:[%s2353] sm:$0xff]
    %v2593 = vld [vmem:[%s1907] sm:$0xff]
    %v2594 = vld [vmem:[%s2409] sm:$0xff]
    %v2595 = vld [vmem:[%s2411] sm:$0xff]
    %s2596 = scalar_lea.vmem [#allocation2], 288
    %v2597 = vld [vmem:[%s2596] sm:$0xff]
    %v2598 = vld [vmem:[%s2415] sm:$0xff]
    %v2599 = vld [vmem:[%s2417] sm:$0xff]
    %s2600 = scalar_lea.vmem [#allocation2], 136
    %v2601 = vld [vmem:[%s2600] sm:$0xff]
    %2603 = vrot.lane.b32.xlu0 %v2592, 32
    %v2604 = vpop.permute.xlu0 %2603
    %2607 = vrot.lane.b32.xlu0 %v2593, 64
    %v2608 = vpop.permute.xlu0 %2607
    %2611 = vrot.lane.b32.xlu0 %v2594, 96
    %v2612 = vpop.permute.xlu0 %2611
    %2615 = vrot.lane.b32.xlu0 %v2597, 32
    %v2616 = vpop.permute.xlu0 %2615
    %2619 = vrot.lane.b32.xlu0 %v2598, 64
    %v2620 = vpop.permute.xlu0 %2619
    %2623 = vrot.lane.b32.xlu0 %v2599, 96
    %v2624 = vpop.permute.xlu0 %2623
    %v2626 = vsel %vm444, %v2591, %v2604
    %v2627 = vsel %vm2394, %v2626, %v2608
    %v2628 = vsel %vm2396, %v2627, %v2612
    %v2629 = vsel %vm444, %v2595, %v2616
    %v2630 = vsel %vm2394, %v2629, %v2620
    %v2631 = vsel %vm2396, %v2630, %v2624
    %2632 = vst [vmem:[#allocation3 + $0x78] sm:$0xff] %v2628
    %2633 = vst [vmem:[#allocation3 + $0x80] sm:$0xff] %v2631
    %2634 = vst.msk [vmem:[#allocation3 + $0x88] sm:$0xff] %vm444, %v2601
    %v2635 = vld [vmem:[%s2415] sm:$0xff]
    %v2636 = vld [vmem:[%s2417] sm:$0xff]
    %v2637 = vld [vmem:[%s2600] sm:$0xff]
    %v2638 = vld [vmem:[%s2457] sm:$0xff]
    %v2639 = vld [vmem:[%s2459] sm:$0xff]
    %s2640 = scalar_lea.vmem [#allocation2], 296
    %v2641 = vld [vmem:[%s2640] sm:$0xff]
    %v2642 = vld [vmem:[%s2463] sm:$0xff]
    %v2643 = vld [vmem:[%s2465] sm:$0xff]
    %s2644 = scalar_lea.vmem [#allocation2], 144
    %v2645 = vld [vmem:[%s2644] sm:$0xff]
    %2647 = vrot.lane.b32.xlu0 %v2636, 32
    %v2648 = vpop.permute.xlu0 %2647
    %2651 = vrot.lane.b32.xlu0 %v2637, 64
    %v2652 = vpop.permute.xlu0 %2651
    %2655 = vrot.lane.b32.xlu0 %v2638, 96
    %v2656 = vpop.permute.xlu0 %2655
    %2659 = vrot.lane.b32.xlu0 %v2641, 32
    %v2660 = vpop.permute.xlu0 %2659
    %2663 = vrot.lane.b32.xlu0 %v2642, 64
    %v2664 = vpop.permute.xlu0 %2663
    %2667 = vrot.lane.b32.xlu0 %v2643, 96
    %v2668 = vpop.permute.xlu0 %2667
    %v2670 = vsel %vm444, %v2635, %v2648
    %v2671 = vsel %vm2394, %v2670, %v2652
    %v2672 = vsel %vm2396, %v2671, %v2656
    %v2673 = vsel %vm444, %v2639, %v2660
    %v2674 = vsel %vm2394, %v2673, %v2664
    %v2675 = vsel %vm2396, %v2674, %v2668
    %2676 = vst [vmem:[#allocation3 + $0x90] sm:$0xff] %v2672
    %2677 = vst [vmem:[#allocation3 + $0x98] sm:$0xff] %v2675
    %2678 = vst.msk [vmem:[#allocation3 + $0xa0] sm:$0xff] %vm444, %v2645
    %v2679 = vld [vmem:[%s2463] sm:$0xff]
    %v2680 = vld [vmem:[%s2465] sm:$0xff]
    %v2681 = vld [vmem:[%s2644] sm:$0xff]
    %v2682 = vld [vmem:[%s2505] sm:$0xff]
    %v2683 = vld [vmem:[%s2507] sm:$0xff]
    %s2684 = scalar_lea.vmem [#allocation2], 304
    %v2685 = vld [vmem:[%s2684] sm:$0xff]
    %v2686 = vld [vmem:[%s2511] sm:$0xff]
    %v2687 = vld [vmem:[%s2513] sm:$0xff]
    %s2688 = scalar_lea.vmem [#allocation2], 152
    %v2689 = vld [vmem:[%s2688] sm:$0xff]
    %2691 = vrot.lane.b32.xlu0 %v2680, 32
    %v2692 = vpop.permute.xlu0 %2691
    %2695 = vrot.lane.b32.xlu0 %v2681, 64
    %v2696 = vpop.permute.xlu0 %2695
    %2699 = vrot.lane.b32.xlu0 %v2682, 96
    %v2700 = vpop.permute.xlu0 %2699
    %2703 = vrot.lane.b32.xlu0 %v2685, 32
    %v2704 = vpop.permute.xlu0 %2703
    %2707 = vrot.lane.b32.xlu0 %v2686, 64
    %v2708 = vpop.permute.xlu0 %2707
    %2711 = vrot.lane.b32.xlu0 %v2687, 96
    %v2712 = vpop.permute.xlu0 %2711
    %v2714 = vsel %vm444, %v2679, %v2692
    %v2715 = vsel %vm2394, %v2714, %v2696
    %v2716 = vsel %vm2396, %v2715, %v2700
    %v2717 = vsel %vm444, %v2683, %v2704
    %v2718 = vsel %vm2394, %v2717, %v2708
    %v2719 = vsel %vm2396, %v2718, %v2712
    %2720 = vst [vmem:[#allocation3 + $0xa8] sm:$0xff] %v2716
    %2721 = vst [vmem:[#allocation3 + $0xb0] sm:$0xff] %v2719
    %2722 = vst.msk [vmem:[#allocation3 + $0xb8] sm:$0xff] %vm444, %v2689
    %v2723 = vld [vmem:[%s1455] sm:$0xff]
    %v2724 = vld [vmem:[%s1008] sm:$0xff]
    %v2725 = vld [vmem:[%s1461] sm:$0xff]
    %v2726 = vld [vmem:[%s2348] sm:$0xff]
    %v2727 = vld [vmem:[%s1902] sm:$0xff]
    %v2728 = vld [vmem:[%s2353] sm:$0xff]
    %v2729 = vld [vmem:[%s2407] sm:$0xff]
    %v2730 = vld [vmem:[%s2409] sm:$0xff]
    %v2731 = vld [vmem:[%s2411] sm:$0xff]
    %2733 = vrot.lane.b32.xlu0 %v2724, 32
    %v2734 = vpop.permute.xlu0 %2733
    %2737 = vrot.lane.b32.xlu0 %v2725, 64
    %v2738 = vpop.permute.xlu0 %2737
    %2741 = vrot.lane.b32.xlu0 %v2726, 96
    %v2742 = vpop.permute.xlu0 %2741
    %2745 = vrot.lane.b32.xlu0 %v2728, 32
    %v2746 = vpop.permute.xlu0 %2745
    %2749 = vrot.lane.b32.xlu0 %v2729, 64
    %v2750 = vpop.permute.xlu0 %2749
    %2753 = vrot.lane.b32.xlu0 %v2730, 96
    %v2754 = vpop.permute.xlu0 %2753
    %v2756 = vsel %vm444, %v2723, %v2734
    %v2757 = vsel %vm2394, %v2756, %v2738
    %v2758 = vsel %vm2396, %v2757, %v2742
    %v2759 = vsel %vm444, %v2727, %v2746
    %v2760 = vsel %vm2394, %v2759, %v2750
    %v2761 = vsel %vm2396, %v2760, %v2754
    %2762 = vst [vmem:[#allocation3 + $0xc0] sm:$0xff] %v2758
    %2763 = vst [vmem:[#allocation3 + $0xc8] sm:$0xff] %v2761
    %2764 = vst.msk [vmem:[#allocation3 + $0xd0] sm:$0xff] %vm444, %v2731
    %v2765 = vld [vmem:[%s2407] sm:$0xff]
    %v2766 = vld [vmem:[%s2409] sm:$0xff]
    %v2767 = vld [vmem:[%s2411] sm:$0xff]
    %v2768 = vld [vmem:[%s2413] sm:$0xff]
    %v2769 = vld [vmem:[%s2415] sm:$0xff]
    %v2770 = vld [vmem:[%s2417] sm:$0xff]
    %v2771 = vld [vmem:[%s2455] sm:$0xff]
    %v2772 = vld [vmem:[%s2457] sm:$0xff]
    %v2773 = vld [vmem:[%s2459] sm:$0xff]
    %2775 = vrot.lane.b32.xlu0 %v2766, 32
    %v2776 = vpop.permute.xlu0 %2775
    %2779 = vrot.lane.b32.xlu0 %v2767, 64
    %v2780 = vpop.permute.xlu0 %2779
    %2783 = vrot.lane.b32.xlu0 %v2768, 96
    %v2784 = vpop.permute.xlu0 %2783
    %2787 = vrot.lane.b32.xlu0 %v2770, 32
    %v2788 = vpop.permute.xlu0 %2787
    %2791 = vrot.lane.b32.xlu0 %v2771, 64
    %v2792 = vpop.permute.xlu0 %2791
    %2795 = vrot.lane.b32.xlu0 %v2772, 96
    %v2796 = vpop.permute.xlu0 %2795
    %v2798 = vsel %vm444, %v2765, %v2776
    %v2799 = vsel %vm2394, %v2798, %v2780
    %v2800 = vsel %vm2396, %v2799, %v2784
    %v2801 = vsel %vm444, %v2769, %v2788
    %v2802 = vsel %vm2394, %v2801, %v2792
    %v2803 = vsel %vm2396, %v2802, %v2796
    %2804 = vst [vmem:[#allocation3 + $0xd8] sm:$0xff] %v2800
    %2805 = vst [vmem:[#allocation3 + $0xe0] sm:$0xff] %v2803
    %2806 = vst.msk [vmem:[#allocation3 + $0xe8] sm:$0xff] %vm444, %v2773
    %v2807 = vld [vmem:[%s2455] sm:$0xff]
    %v2808 = vld [vmem:[%s2457] sm:$0xff]
    %v2809 = vld [vmem:[%s2459] sm:$0xff]
    %v2810 = vld [vmem:[%s2461] sm:$0xff]
    %v2811 = vld [vmem:[%s2463] sm:$0xff]
    %v2812 = vld [vmem:[%s2465] sm:$0xff]
    %v2813 = vld [vmem:[%s2503] sm:$0xff]
    %v2814 = vld [vmem:[%s2505] sm:$0xff]
    %v2815 = vld [vmem:[%s2507] sm:$0xff]
    %2817 = vrot.lane.b32.xlu0 %v2808, 32
    %v2818 = vpop.permute.xlu0 %2817
    %2821 = vrot.lane.b32.xlu0 %v2809, 64
    %v2822 = vpop.permute.xlu0 %2821
    %2825 = vrot.lane.b32.xlu0 %v2810, 96
    %v2826 = vpop.permute.xlu0 %2825
    %2829 = vrot.lane.b32.xlu0 %v2812, 32
    %v2830 = vpop.permute.xlu0 %2829
    %2833 = vrot.lane.b32.xlu0 %v2813, 64
    %v2834 = vpop.permute.xlu0 %2833
    %2837 = vrot.lane.b32.xlu0 %v2814, 96
    %v2838 = vpop.permute.xlu0 %2837
    %v2840 = vsel %vm444, %v2807, %v2818
    %v2841 = vsel %vm2394, %v2840, %v2822
    %v2842 = vsel %vm2396, %v2841, %v2826
    %v2843 = vsel %vm444, %v2811, %v2830
    %v2844 = vsel %vm2394, %v2843, %v2834
    %v2845 = vsel %vm2396, %v2844, %v2838
    %2846 = vst [vmem:[#allocation3 + $0xf0] sm:$0xff] %v2842
    %2847 = vst [vmem:[#allocation3 + $0xf8] sm:$0xff] %v2845
    %2848 = vst.msk [vmem:[#allocation3 + $0x100] sm:$0xff] %vm444, %v2815
    %v2849 = vld [vmem:[%s2503] sm:$0xff]
    %v2850 = vld [vmem:[%s2505] sm:$0xff]
    %v2851 = vld [vmem:[%s2507] sm:$0xff]
    %v2852 = vld [vmem:[%s2509] sm:$0xff]
    %v2853 = vld [vmem:[%s2511] sm:$0xff]
    %v2854 = vld [vmem:[%s2513] sm:$0xff]
    %s2855 = scalar_lea.vmem [#allocation2], 192
    %v2856 = vld [vmem:[%s2855] sm:$0xff]
    %s2857 = scalar_lea.vmem [#allocation2], 232
    %v2858 = vld [vmem:[%s2857] sm:$0xff]
    %s2859 = scalar_lea.vmem [#allocation2], 272
    %v2860 = vld [vmem:[%s2859] sm:$0xff]
    %2862 = vrot.lane.b32.xlu0 %v2850, 32
    %v2863 = vpop.permute.xlu0 %2862
    %2866 = vrot.lane.b32.xlu0 %v2851, 64
    %v2867 = vpop.permute.xlu0 %2866
    %2870 = vrot.lane.b32.xlu0 %v2852, 96
    %v2871 = vpop.permute.xlu0 %2870
    %2874 = vrot.lane.b32.xlu0 %v2854, 32
    %v2875 = vpop.permute.xlu0 %2874
    %2878 = vrot.lane.b32.xlu0 %v2856, 64
    %v2879 = vpop.permute.xlu0 %2878
    %2882 = vrot.lane.b32.xlu0 %v2858, 96
    %v2883 = vpop.permute.xlu0 %2882
    %v2885 = vsel %vm444, %v2849, %v2863
    %v2886 = vsel %vm2394, %v2885, %v2867
    %v2887 = vsel %vm2396, %v2886, %v2871
    %v2888 = vsel %vm444, %v2853, %v2875
    %v2889 = vsel %vm2394, %v2888, %v2879
    %v2890 = vsel %vm2396, %v2889, %v2883
    %2891 = vst [vmem:[#allocation3 + $0x108] sm:$0xff] %v2887
    %2892 = vst [vmem:[#allocation3 + $0x110] sm:$0xff] %v2890
    %2893 = vst.msk [vmem:[#allocation3 + $0x118] sm:$0xff] %vm444, %v2860
    %v2894 = vld [vmem:[%s1008] sm:$0xff]
    %v2895 = vld [vmem:[%s1461] sm:$0xff]
    %v2896 = vld [vmem:[%s1013] sm:$0xff]
    %v2897 = vld [vmem:[%s1902] sm:$0xff]
    %v2898 = vld [vmem:[%s2353] sm:$0xff]
    %v2899 = vld [vmem:[%s1907] sm:$0xff]
    %v2900 = vld [vmem:[%s2409] sm:$0xff]
    %v2901 = vld [vmem:[%s2411] sm:$0xff]
    %v2902 = vld [vmem:[%s2596] sm:$0xff]
    %2904 = vrot.lane.b32.xlu0 %v2895, 32
    %v2905 = vpop.permute.xlu0 %2904
    %2908 = vrot.lane.b32.xlu0 %v2896, 64
    %v2909 = vpop.permute.xlu0 %2908
    %2912 = vrot.lane.b32.xlu0 %v2897, 96
    %v2913 = vpop.permute.xlu0 %2912
    %2916 = vrot.lane.b32.xlu0 %v2899, 32
    %v2917 = vpop.permute.xlu0 %2916
    %2920 = vrot.lane.b32.xlu0 %v2900, 64
    %v2921 = vpop.permute.xlu0 %2920
    %2924 = vrot.lane.b32.xlu0 %v2901, 96
    %v2925 = vpop.permute.xlu0 %2924
    %v2927 = vsel %vm444, %v2894, %v2905
    %v2928 = vsel %vm2394, %v2927, %v2909
    %v2929 = vsel %vm2396, %v2928, %v2913
    %v2930 = vsel %vm444, %v2898, %v2917
    %v2931 = vsel %vm2394, %v2930, %v2921
    %v2932 = vsel %vm2396, %v2931, %v2925
    %2933 = vst [vmem:[#allocation3 + $0x120] sm:$0xff] %v2929
    %2934 = vst [vmem:[#allocation3 + $0x128] sm:$0xff] %v2932
    %2935 = vst.msk [vmem:[#allocation3 + $0x130] sm:$0xff] %vm444, %v2902
    %v2936 = vld [vmem:[%s2409] sm:$0xff]
    %v2937 = vld [vmem:[%s2411] sm:$0xff]
    %v2938 = vld [vmem:[%s2596] sm:$0xff]
    %v2939 = vld [vmem:[%s2415] sm:$0xff]
    %v2940 = vld [vmem:[%s2417] sm:$0xff]
    %v2941 = vld [vmem:[%s2600] sm:$0xff]
    %v2942 = vld [vmem:[%s2457] sm:$0xff]
    %v2943 = vld [vmem:[%s2459] sm:$0xff]
    %v2944 = vld [vmem:[%s2640] sm:$0xff]
    %2946 = vrot.lane.b32.xlu0 %v2937, 32
    %v2947 = vpop.permute.xlu0 %2946
    %2950 = vrot.lane.b32.xlu0 %v2938, 64
    %v2951 = vpop.permute.xlu0 %2950
    %2954 = vrot.lane.b32.xlu0 %v2939, 96
    %v2955 = vpop.permute.xlu0 %2954
    %2958 = vrot.lane.b32.xlu0 %v2941, 32
    %v2959 = vpop.permute.xlu0 %2958
    %2962 = vrot.lane.b32.xlu0 %v2942, 64
    %v2963 = vpop.permute.xlu0 %2962
    %2966 = vrot.lane.b32.xlu0 %v2943, 96
    %v2967 = vpop.permute.xlu0 %2966
    %v2969 = vsel %vm444, %v2936, %v2947
    %v2970 = vsel %vm2394, %v2969, %v2951
    %v2971 = vsel %vm2396, %v2970, %v2955
    %v2972 = vsel %vm444, %v2940, %v2959
    %v2973 = vsel %vm2394, %v2972, %v2963
    %v2974 = vsel %vm2396, %v2973, %v2967
    %2975 = vst [vmem:[#allocation3 + $0x138] sm:$0xff] %v2971
    %2976 = vst [vmem:[#allocation3 + $0x140] sm:$0xff] %v2974
    %2977 = vst.msk [vmem:[#allocation3 + $0x148] sm:$0xff] %vm444, %v2944
    %v2978 = vld [vmem:[%s2457] sm:$0xff]
    %v2979 = vld [vmem:[%s2459] sm:$0xff]
    %v2980 = vld [vmem:[%s2640] sm:$0xff]
    %v2981 = vld [vmem:[%s2463] sm:$0xff]
    %v2982 = vld [vmem:[%s2465] sm:$0xff]
    %v2983 = vld [vmem:[%s2644] sm:$0xff]
    %v2984 = vld [vmem:[%s2505] sm:$0xff]
    %v2985 = vld [vmem:[%s2507] sm:$0xff]
    %v2986 = vld [vmem:[%s2684] sm:$0xff]
    %2988 = vrot.lane.b32.xlu0 %v2979, 32
    %v2989 = vpop.permute.xlu0 %2988
    %2992 = vrot.lane.b32.xlu0 %v2980, 64
    %v2993 = vpop.permute.xlu0 %2992
    %2996 = vrot.lane.b32.xlu0 %v2981, 96
    %v2997 = vpop.permute.xlu0 %2996
    %3000 = vrot.lane.b32.xlu0 %v2983, 32
    %v3001 = vpop.permute.xlu0 %3000
    %3004 = vrot.lane.b32.xlu0 %v2984, 64
    %v3005 = vpop.permute.xlu0 %3004
    %3008 = vrot.lane.b32.xlu0 %v2985, 96
    %v3009 = vpop.permute.xlu0 %3008
    %v3011 = vsel %vm444, %v2978, %v2989
    %v3012 = vsel %vm2394, %v3011, %v2993
    %v3013 = vsel %vm2396, %v3012, %v2997
    %v3014 = vsel %vm444, %v2982, %v3001
    %v3015 = vsel %vm2394, %v3014, %v3005
    %v3016 = vsel %vm2396, %v3015, %v3009
    %3017 = vst [vmem:[#allocation3 + $0x150] sm:$0xff] %v3013
    %3018 = vst [vmem:[#allocation3 + $0x158] sm:$0xff] %v3016
    %3019 = vst.msk [vmem:[#allocation3 + $0x160] sm:$0xff] %vm444, %v2986
    %v3020 = vld [vmem:[%s2505] sm:$0xff]
    %v3021 = vld [vmem:[%s2507] sm:$0xff]
    %v3022 = vld [vmem:[%s2684] sm:$0xff]
    %v3023 = vld [vmem:[%s2511] sm:$0xff]
    %v3024 = vld [vmem:[%s2513] sm:$0xff]
    %v3025 = vld [vmem:[%s2688] sm:$0xff]
    %v3026 = vld [vmem:[%s2857] sm:$0xff]
    %v3027 = vld [vmem:[%s2859] sm:$0xff]
    %s3028 = scalar_lea.vmem [#allocation2], 312
    %v3029 = vld [vmem:[%s3028] sm:$0xff]
    %3031 = vrot.lane.b32.xlu0 %v3021, 32
    %v3032 = vpop.permute.xlu0 %3031
    %3035 = vrot.lane.b32.xlu0 %v3022, 64
    %v3036 = vpop.permute.xlu0 %3035
    %3039 = vrot.lane.b32.xlu0 %v3023, 96
    %v3040 = vpop.permute.xlu0 %3039
    %3043 = vrot.lane.b32.xlu0 %v3025, 32
    %v3044 = vpop.permute.xlu0 %3043
    %3047 = vrot.lane.b32.xlu0 %v3026, 64
    %v3048 = vpop.permute.xlu0 %3047
    %3051 = vrot.lane.b32.xlu0 %v3027, 96
    %v3052 = vpop.permute.xlu0 %3051
    %v3054 = vsel %vm444, %v3020, %v3032
    %v3055 = vsel %vm2394, %v3054, %v3036
    %v3056 = vsel %vm2396, %v3055, %v3040
    %v3057 = vsel %vm444, %v3024, %v3044
    %v3058 = vsel %vm2394, %v3057, %v3048
    %v3059 = vsel %vm2396, %v3058, %v3052
    %3060 = vst [vmem:[#allocation3 + $0x168] sm:$0xff] %v3056
    %3061 = vst [vmem:[#allocation3 + $0x170] sm:$0xff] %v3059
    %3062 = vst.msk [vmem:[#allocation3 + $0x178] sm:$0xff] %vm444, %v3029
    %s3063 = smul.u32 288, 1
    %s3064 = sshll.u32 %s3063, 4
    %3065 = dma.done [#allocation7], %s3064
    %v3066 = vld [vmem:[#allocation3] sm:$0xff]
    %v3067 = vld [vmem:[#allocation3 + $0x8] sm:$0xff]
    %v3068 = vld [vmem:[#allocation3 + $0x10] sm:$0xff]
    %v3069 = vld [vmem:[#allocation3 + $0x18] sm:$0xff]
    %v3070 = vld [vmem:[#allocation3 + $0x20] sm:$0xff]
    %v3071 = vld [vmem:[#allocation3 + $0x28] sm:$0xff]
    %v3072 = vld [vmem:[#allocation3 + $0x30] sm:$0xff]
    %v3073 = vld [vmem:[#allocation3 + $0x38] sm:$0xff]
    %v3074 = vld [vmem:[#allocation3 + $0x40] sm:$0xff]
    %v3075 = vld [vmem:[#allocation3 + $0x48] sm:$0xff]
    %v3076 = vld [vmem:[#allocation3 + $0x50] sm:$0xff]
    %v3077 = vld [vmem:[#allocation3 + $0x58] sm:$0xff]
    %v3078 = vld [vmem:[#allocation3 + $0x60] sm:$0xff]
    %v3079 = vld [vmem:[#allocation3 + $0x68] sm:$0xff]
    %v3080 = vld [vmem:[#allocation3 + $0x70] sm:$0xff]
    %v3081 = vld [vmem:[#allocation3 + $0x78] sm:$0xff]
    %v3082 = vld [vmem:[#allocation3 + $0x80] sm:$0xff]
    %v3083 = vld [vmem:[#allocation3 + $0x88] sm:$0xff]
    %v3084 = vld [vmem:[#allocation3 + $0x90] sm:$0xff]
    %v3085 = vld [vmem:[#allocation3 + $0x98] sm:$0xff]
    %v3086 = vld [vmem:[#allocation3 + $0xa0] sm:$0xff]
    %v3087 = vld [vmem:[#allocation3 + $0xa8] sm:$0xff]
    %v3088 = vld [vmem:[#allocation3 + $0xb0] sm:$0xff]
    %v3089 = vld [vmem:[#allocation3 + $0xb8] sm:$0xff]
    %v3090 = vld [vmem:[#allocation3 + $0xc0] sm:$0xff]
    %v3091 = vld [vmem:[#allocation3 + $0xc8] sm:$0xff]
    %v3092 = vld [vmem:[#allocation3 + $0xd0] sm:$0xff]
    %v3093 = vld [vmem:[#allocation3 + $0xd8] sm:$0xff]
    %v3094 = vld [vmem:[#allocation3 + $0xe0] sm:$0xff]
    %v3095 = vld [vmem:[#allocation3 + $0xe8] sm:$0xff]
    %v3096 = vld [vmem:[#allocation3 + $0xf0] sm:$0xff]
    %v3097 = vld [vmem:[#allocation3 + $0xf8] sm:$0xff]
    %v3098 = vld [vmem:[#allocation3 + $0x100] sm:$0xff]
    %v3099 = vld [vmem:[#allocation3 + $0x108] sm:$0xff]
    %v3100 = vld [vmem:[#allocation3 + $0x110] sm:$0xff]
    %v3101 = vld [vmem:[#allocation3 + $0x118] sm:$0xff]
    %v3102 = vld [vmem:[#allocation3 + $0x120] sm:$0xff]
    %v3103 = vld [vmem:[#allocation3 + $0x128] sm:$0xff]
    %v3104 = vld [vmem:[#allocation3 + $0x130] sm:$0xff]
    %v3105 = vld [vmem:[#allocation3 + $0x138] sm:$0xff]
    %v3106 = vld [vmem:[#allocation3 + $0x140] sm:$0xff]
    %v3107 = vld [vmem:[#allocation3 + $0x148] sm:$0xff]
    %v3108 = vld [vmem:[#allocation3 + $0x150] sm:$0xff]
    %v3109 = vld [vmem:[#allocation3 + $0x158] sm:$0xff]
    %v3110 = vld [vmem:[#allocation3 + $0x160] sm:$0xff]
    %v3111 = vld [vmem:[#allocation3 + $0x168] sm:$0xff]
    %v3112 = vld [vmem:[#allocation3 + $0x170] sm:$0xff]
    %v3113 = vld [vmem:[#allocation3 + $0x178] sm:$0xff]
    %v3114 = vld [vmem:[#allocation5] sm:$0xff]
    %v3115 = vld [vmem:[#allocation5 + $0x8] sm:$0xff]
    %v3116 = vld [vmem:[#allocation5 + $0x10] sm:$0xff]
    %v3117 = vld [vmem:[#allocation5 + $0x18] sm:$0xff]
    %v3118 = vld [vmem:[#allocation5 + $0x20] sm:$0xff]
    %v3119 = vld [vmem:[#allocation5 + $0x28] sm:$0xff]
    %v3120 = vld [vmem:[#allocation5 + $0x30] sm:$0xff]
    %v3121 = vld [vmem:[#allocation5 + $0x38] sm:$0xff]
    %v3122 = vld [vmem:[#allocation5 + $0x40] sm:$0xff]
    %v3123 = vld [vmem:[#allocation5 + $0x48] sm:$0xff]
    %v3124 = vld [vmem:[#allocation5 + $0x50] sm:$0xff]
    %v3125 = vld [vmem:[#allocation5 + $0x58] sm:$0xff]
    %v3126 = vld [vmem:[#allocation5 + $0x60] sm:$0xff]
    %v3127 = vld [vmem:[#allocation5 + $0x68] sm:$0xff]
    %v3128 = vld [vmem:[#allocation5 + $0x70] sm:$0xff]
    %v3129 = vld [vmem:[#allocation5 + $0x78] sm:$0xff]
    %v3130 = vld [vmem:[#allocation5 + $0x80] sm:$0xff]
    %v3131 = vld [vmem:[#allocation5 + $0x88] sm:$0xff]
    %v3132 = vld [vmem:[#allocation5 + $0x90] sm:$0xff]
    %v3133 = vld [vmem:[#allocation5 + $0x98] sm:$0xff]
    %v3134 = vld [vmem:[#allocation5 + $0xa0] sm:$0xff]
    %v3135 = vld [vmem:[#allocation5 + $0xa8] sm:$0xff]
    %v3136 = vld [vmem:[#allocation5 + $0xb0] sm:$0xff]
    %v3137 = vld [vmem:[#allocation5 + $0xb8] sm:$0xff]
    %v3138 = vld [vmem:[#allocation5 + $0xc0] sm:$0xff]
    %v3139 = vld [vmem:[#allocation5 + $0xc8] sm:$0xff]
    %v3140 = vld [vmem:[#allocation5 + $0xd0] sm:$0xff]
    %v3141 = vld [vmem:[#allocation5 + $0xd8] sm:$0xff]
    %v3142 = vld [vmem:[#allocation5 + $0xe0] sm:$0xff]
    %v3143 = vld [vmem:[#allocation5 + $0xe8] sm:$0xff]
    %v3144 = vld [vmem:[#allocation5 + $0xf0] sm:$0xff]
    %v3145 = vld [vmem:[#allocation5 + $0xf8] sm:$0xff]
    %v3146 = vld [vmem:[#allocation5 + $0x100] sm:$0xff]
    %v3147 = vld [vmem:[#allocation5 + $0x108] sm:$0xff]
    %v3148 = vld [vmem:[#allocation5 + $0x110] sm:$0xff]
    %v3149 = vld [vmem:[#allocation5 + $0x118] sm:$0xff]
    %v3151 = vsel %vm444, %v3068, 0
    %v3154 = vsel %vm444, %v3071, 0
    %v3157 = vsel %vm444, %v3074, 0
    %v3160 = vsel %vm444, %v3077, 0
    %v3163 = vsel %vm444, %v3080, 0
    %v3166 = vsel %vm444, %v3083, 0
    %v3169 = vsel %vm444, %v3086, 0
    %v3172 = vsel %vm444, %v3089, 0
    %v3175 = vsel %vm444, %v3092, 0
    %v3178 = vsel %vm444, %v3095, 0
    %v3181 = vsel %vm444, %v3098, 0
    %v3184 = vsel %vm444, %v3101, 0
    %v3187 = vsel %vm444, %v3104, 0
    %v3190 = vsel %vm444, %v3107, 0
    %v3193 = vsel %vm444, %v3110, 0
    %v3196 = vsel %vm444, %v3113, 0
    %3198 = vmatprep.subr.mxu0 0.0
    %3199 = vmatpush1.msra.mxu0 %v3114
    %3200 = vmatprep.subr.mxu0 0.0
    %3201 = vmatpush1.msra.mxu0 %v3115
    %3202 = vmatprep.subr.mxu0 0.0
    %3203 = vmatpush1.msra.mxu0 %v3116
    %3204 = vmatprep.subr.mxu0 0.0
    %3205 = vmatpush1.msra.mxu0 %v3117
    %3206 = vmatprep.subr.mxu0 0.0
    %3207 = vmatpush1.msra.mxu0 %v3118
    %3208 = vmatprep.subr.mxu0 0.0
    %3209 = vmatpush1.msra.mxu0 %v3119
    %3210 = vmatprep.subr.mxu0 0.0
    %3211 = vmatpush1.msra.mxu0 %v3120
    %3212 = vmatprep.subr.mxu0 0.0
    %3213 = vmatpush1.msra.mxu0 %v3121
    %3214 = vmatprep.subr.mxu0 0.0
    %3215 = vmatpush1.msra.mxu0 %v3122
    %3216 = vmatprep.subr.mxu0 0.0
    %3217 = vmatpush1.msra.mxu0 %v3123
    %3218 = vmatprep.subr.mxu0 0.0
    %3219 = vmatpush1.msra.mxu0 %v3124
    %3220 = vmatprep.subr.mxu0 0.0
    %3221 = vmatpush1.msra.mxu0 %v3125
    %3222 = vmatprep.subr.mxu0 0.0
    %3223 = vmatpush1.msra.mxu0 %v3126
    %3224 = vmatprep.subr.mxu0 0.0
    %3225 = vmatpush1.msra.mxu0 %v3127
    %3226 = vmatprep.subr.mxu0 0.0
    %3227 = vmatpush1.msra.mxu0 %v3128
    %3228 = vmatprep.subr.mxu0 0.0
    %3229 = vmatpush1.msra.mxu0 %v3129
    %3230 = vmatprep.subr.mxu0 0.0
    %3231 = vmatpush1.msra.mxu0 %v3130
    %3232 = vmatprep.subr.mxu0 0.0
    %3233 = vmatpush1.msra.mxu0 %v3131
    %3234 = vmatprep.subr.mxu0 0.0
    %3235 = vmatpush1.msra.mxu0 %v3132
    %3236 = vmatprep.subr.mxu0 0.0
    %3237 = vmatpush1.msra.mxu0 %v3133
    %3238 = vmatprep.subr.mxu0 0.0
    %3239 = vmatpush1.msra.mxu0 %v3134
    %3240 = vmatprep.subr.mxu0 0.0
    %3241 = vmatpush1.msra.mxu0 %v3135
    %3242 = vmatprep.subr.mxu0 0.0
    %3243 = vmatpush1.msra.mxu0 %v3136
    %3244 = vmatprep.subr.mxu0 0.0
    %3245 = vmatpush1.msra.mxu0 %v3137
    %3246 = vmatprep.subr.mxu0 0.0
    %3247 = vmatpush1.msra.mxu0 %v3138
    %3248 = vmatprep.subr.mxu0 0.0
    %3249 = vmatpush1.msra.mxu0 %v3139
    %3250 = vmatprep.subr.mxu0 0.0
    %3251 = vmatpush1.msra.mxu0 %v3140
    %3252 = vmatprep.subr.mxu0 0.0
    %3253 = vmatpush1.msra.mxu0 %v3141
    %3254 = vmatprep.subr.mxu0 0.0
    %3255 = vmatpush1.msra.mxu0 %v3142
    %3256 = vmatprep.subr.mxu0 0.0
    %3257 = vmatpush1.msra.mxu0 %v3143
    %3258 = vmatprep.subr.mxu0 0.0
    %3259 = vmatpush1.msra.mxu0 %v3144
    %3260 = vmatprep.subr.mxu0 0.0
    %3261 = vmatpush1.msra.mxu0 %v3145
    %3262 = vmatprep.mubr.f32.mxu0 %v3067
    %3263 = vmatmul.mubr.f32.gmra.mrb[0].mxu0 %v3066
    %v3264 = vpop.f32.mrb[0].mxu0
    %v3265 = vadd.f32 0.0, %v3264
    %v3266 = vpop.f32.mrb[0].mxu0
    %3267 = vmatprep.mubr.f32.mxu0 %v3070
    %3268 = vmatmul.mubr.f32.gmra.mrb[0].mxu0 %v3069
    %v3269 = vpop.f32.mrb[0].mxu0
    %v3270 = vadd.f32 0.0, %v3269
    %v3271 = vpop.f32.mrb[0].mxu0
    %3272 = vmatprep.mubr.f32.mxu0 %v3073
    %3273 = vmatmul.mubr.f32.gmra.mrb[0].mxu0 %v3072
    %v3274 = vpop.f32.mrb[0].mxu0
    %v3275 = vadd.f32 0.0, %v3274
    %v3276 = vpop.f32.mrb[0].mxu0
    %3277 = vmatprep.mubr.f32.mxu0 %v3076
    %3278 = vmatmul.mubr.f32.gmra.mrb[0].mxu0 %v3075
    %v3279 = vpop.f32.mrb[0].mxu0
    %v3280 = vadd.f32 0.0, %v3279
    %v3281 = vpop.f32.mrb[0].mxu0
    %3282 = vmatprep.mubr.f32.mxu0 %v3079
    %3283 = vmatmul.mubr.f32.gmra.mrb[0].mxu0 %v3078
    %v3284 = vpop.f32.mrb[0].mxu0
    %v3285 = vadd.f32 0.0, %v3284
    %v3286 = vpop.f32.mrb[0].mxu0
    %3287 = vmatprep.mubr.f32.mxu0 %v3082
    %3288 = vmatmul.mubr.f32.gmra.mrb[0].mxu0 %v3081
    %v3289 = vpop.f32.mrb[0].mxu0
    %v3290 = vadd.f32 0.0, %v3289
    %v3291 = vpop.f32.mrb[0].mxu0
    %3292 = vmatprep.mubr.f32.mxu0 %v3085
    %3293 = vmatmul.mubr.f32.gmra.mrb[0].mxu0 %v3084
    %v3294 = vpop.f32.mrb[0].mxu0
    %v3295 = vadd.f32 0.0, %v3294
    %v3296 = vpop.f32.mrb[0].mxu0
    %3297 = vmatprep.mubr.f32.mxu0 %v3088
    %3298 = vmatmul.mubr.f32.gmra.mrb[0].mxu0 %v3087
    %v3299 = vpop.f32.mrb[0].mxu0
    %v3300 = vadd.f32 0.0, %v3299
    %v3301 = vpop.f32.mrb[0].mxu0
    %3302 = vmatprep.mubr.f32.mxu0 %v3091
    %3303 = vmatmul.mubr.f32.gmra.mrb[0].mxu0 %v3090
    %v3304 = vpop.f32.mrb[0].mxu0
    %v3305 = vadd.f32 0.0, %v3304
    %v3306 = vpop.f32.mrb[0].mxu0
    %3307 = vmatprep.mubr.f32.mxu0 %v3094
    %3308 = vmatmul.mubr.f32.gmra.mrb[0].mxu0 %v3093
    %v3309 = vpop.f32.mrb[0].mxu0
    %v3310 = vadd.f32 0.0, %v3309
    %v3311 = vpop.f32.mrb[0].mxu0
    %3312 = vmatprep.mubr.f32.mxu0 %v3097
    %3313 = vmatmul.mubr.f32.gmra.mrb[0].mxu0 %v3096
    %v3314 = vpop.f32.mrb[0].mxu0
    %v3315 = vadd.f32 0.0, %v3314
    %v3316 = vpop.f32.mrb[0].mxu0
    %3317 = vmatprep.mubr.f32.mxu0 %v3100
    %3318 = vmatmul.mubr.f32.gmra.mrb[0].mxu0 %v3099
    %v3319 = vpop.f32.mrb[0].mxu0
    %v3320 = vadd.f32 0.0, %v3319
    %v3321 = vpop.f32.mrb[0].mxu0
    %3322 = vmatprep.mubr.f32.mxu0 %v3103
    %3323 = vmatmul.mubr.f32.gmra.mrb[0].mxu0 %v3102
    %v3324 = vpop.f32.mrb[0].mxu0
    %v3325 = vadd.f32 0.0, %v3324
    %v3326 = vpop.f32.mrb[0].mxu0
    %3327 = vmatprep.mubr.f32.mxu0 %v3106
    %3328 = vmatmul.mubr.f32.gmra.mrb[0].mxu0 %v3105
    %v3329 = vpop.f32.mrb[0].mxu0
    %v3330 = vadd.f32 0.0, %v3329
    %v3331 = vpop.f32.mrb[0].mxu0
    %3332 = vmatprep.mubr.f32.mxu0 %v3109
    %3333 = vmatmul.mubr.f32.gmra.mrb[0].mxu0 %v3108
    %v3334 = vpop.f32.mrb[0].mxu0
    %v3335 = vadd.f32 0.0, %v3334
    %v3336 = vpop.f32.mrb[0].mxu0
    %3337 = vmatprep.mubr.f32.mxu0 %v3112
    %3338 = vmatmul.mubr.f32.gmra.mrb[0].mxu0 %v3111
    %v3339 = vpop.f32.mrb[0].mxu0
    %v3340 = vadd.f32 0.0, %v3339
    %v3341 = vpop.f32.mrb[0].mxu0
    %3342 = vdwg.mxu0
    %3343 = vmatprep.subr.mxu0 0.0
    %3344 = vmatpush1.msra.mxu0 %v3146
    %3345 = vmatprep.subr.mxu0 0.0
    %3346 = vmatpush1.msra.mxu0 %v3147
    %3347 = vmatprep.subr.mxu0 0.0
    %3348 = vmatpush1.msra.mxu0 %v3148
    %3349 = vmatprep.subr.mxu0 0.0
    %3350 = vmatpush1.msra.mxu0 %v3149
    %3351 = vmatprep.subr.mxu0 0.0
    %3352 = vmatpush1.msra.mxu0 0.0
    %3353 = vmatprep.subr.mxu0 0.0
    %3354 = vmatpush1.msra.mxu0 0.0
    %3355 = vmatprep.subr.mxu0 0.0
    %3356 = vmatpush1.msra.mxu0 0.0
    %3357 = vmatprep.subr.mxu0 0.0
    %3358 = vmatpush1.msra.mxu0 0.0
    %3359 = vmatprep.subr.mxu0 0.0
    %3360 = vmatpush1.msra.mxu0 0.0
    %3361 = vmatprep.subr.mxu0 0.0
    %3362 = vmatpush1.msra.mxu0 0.0
    %3363 = vmatprep.subr.mxu0 0.0
    %3364 = vmatpush1.msra.mxu0 0.0
    %3365 = vmatprep.subr.mxu0 0.0
    %3366 = vmatpush1.msra.mxu0 0.0
    %3367 = vmatprep.subr.mxu0 0.0
    %3368 = vmatpush1.msra.mxu0 0.0
    %3369 = vmatprep.subr.mxu0 0.0
    %3370 = vmatpush1.msra.mxu0 0.0
    %3371 = vmatprep.subr.mxu0 0.0
    %3372 = vmatpush1.msra.mxu0 0.0
    %3373 = vmatprep.subr.mxu0 0.0
    %3374 = vmatpush1.msra.mxu0 0.0
    %3375 = vmatprep.subr.mxu0 0.0
    %3376 = vmatpush1.msra.mxu0 0.0
    %3377 = vmatprep.subr.mxu0 0.0
    %3378 = vmatpush1.msra.mxu0 0.0
    %3379 = vmatprep.subr.mxu0 0.0
    %3380 = vmatpush1.msra.mxu0 0.0
    %3381 = vmatprep.subr.mxu0 0.0
    %3382 = vmatpush1.msra.mxu0 0.0
    %3383 = vmatprep.subr.mxu0 0.0
    %3384 = vmatpush1.msra.mxu0 0.0
    %3385 = vmatprep.subr.mxu0 0.0
    %3386 = vmatpush1.msra.mxu0 0.0
    %3387 = vmatprep.subr.mxu0 0.0
    %3388 = vmatpush1.msra.mxu0 0.0
    %3389 = vmatprep.subr.mxu0 0.0
    %3390 = vmatpush1.msra.mxu0 0.0
    %3391 = vmatprep.subr.mxu0 0.0
    %3392 = vmatpush1.msra.mxu0 0.0
    %3393 = vmatprep.subr.mxu0 0.0
    %3394 = vmatpush1.msra.mxu0 0.0
    %3395 = vmatprep.subr.mxu0 0.0
    %3396 = vmatpush1.msra.mxu0 0.0
    %3397 = vmatprep.subr.mxu0 0.0
    %3398 = vmatpush1.msra.mxu0 0.0
    %3399 = vmatprep.subr.mxu0 0.0
    %3400 = vmatpush1.msra.mxu0 0.0
    %3401 = vmatprep.subr.mxu0 0.0
    %3402 = vmatpush1.msra.mxu0 0.0
    %3403 = vmatprep.subr.mxu0 0.0
    %3404 = vmatpush1.msra.mxu0 0.0
    %3405 = vmatprep.subr.mxu0 0.0
    %3406 = vmatpush1.msra.mxu0 0.0
    %3407 = vmatprep.mubr.f32.mxu0 0.0
    %3408 = vmatmul.mubr.f32.gmra.mrb[0].mxu0 %v3151
    %v3409 = vpop.f32.mrb[0].mxu0
    %v3410 = vadd.f32 %v3265, %v3409
    %v3411 = vpop.f32.mrb[0].mxu0
    %3412 = vmatprep.mubr.f32.mxu0 0.0
    %3413 = vmatmul.mubr.f32.gmra.mrb[0].mxu0 %v3154
    %v3414 = vpop.f32.mrb[0].mxu0
    %v3415 = vadd.f32 %v3270, %v3414
    %v3416 = vpop.f32.mrb[0].mxu0
    %3417 = vmatprep.mubr.f32.mxu0 0.0
    %3418 = vmatmul.mubr.f32.gmra.mrb[0].mxu0 %v3157
    %v3419 = vpop.f32.mrb[0].mxu0
    %v3420 = vadd.f32 %v3275, %v3419
    %v3421 = vpop.f32.mrb[0].mxu0
    %3422 = vmatprep.mubr.f32.mxu0 0.0
    %3423 = vmatmul.mubr.f32.gmra.mrb[0].mxu0 %v3160
    %v3424 = vpop.f32.mrb[0].mxu0
    %v3425 = vadd.f32 %v3280, %v3424
    %v3426 = vpop.f32.mrb[0].mxu0
    %3427 = vmatprep.mubr.f32.mxu0 0.0
    %3428 = vmatmul.mubr.f32.gmra.mrb[0].mxu0 %v3163
    %v3429 = vpop.f32.mrb[0].mxu0
    %v3430 = vadd.f32 %v3285, %v3429
    %v3431 = vpop.f32.mrb[0].mxu0
    %3432 = vmatprep.mubr.f32.mxu0 0.0
    %3433 = vmatmul.mubr.f32.gmra.mrb[0].mxu0 %v3166
    %v3434 = vpop.f32.mrb[0].mxu0
    %v3435 = vadd.f32 %v3290, %v3434
    %v3436 = vpop.f32.mrb[0].mxu0
    %3437 = vmatprep.mubr.f32.mxu0 0.0
    %3438 = vmatmul.mubr.f32.gmra.mrb[0].mxu0 %v3169
    %v3439 = vpop.f32.mrb[0].mxu0
    %v3440 = vadd.f32 %v3295, %v3439
    %v3441 = vpop.f32.mrb[0].mxu0
    %3442 = vmatprep.mubr.f32.mxu0 0.0
    %3443 = vmatmul.mubr.f32.gmra.mrb[0].mxu0 %v3172
    %v3444 = vpop.f32.mrb[0].mxu0
    %v3445 = vadd.f32 %v3300, %v3444
    %v3446 = vpop.f32.mrb[0].mxu0
    %3447 = vmatprep.mubr.f32.mxu0 0.0
    %3448 = vmatmul.mubr.f32.gmra.mrb[0].mxu0 %v3175
    %v3449 = vpop.f32.mrb[0].mxu0
    %v3450 = vadd.f32 %v3305, %v3449
    %v3451 = vpop.f32.mrb[0].mxu0
    %3452 = vmatprep.mubr.f32.mxu0 0.0
    %3453 = vmatmul.mubr.f32.gmra.mrb[0].mxu0 %v3178
    %v3454 = vpop.f32.mrb[0].mxu0
    %v3455 = vadd.f32 %v3310, %v3454
    %v3456 = vpop.f32.mrb[0].mxu0
    %3457 = vmatprep.mubr.f32.mxu0 0.0
    %3458 = vmatmul.mubr.f32.gmra.mrb[0].mxu0 %v3181
    %v3459 = vpop.f32.mrb[0].mxu0
    %v3460 = vadd.f32 %v3315, %v3459
    %v3461 = vpop.f32.mrb[0].mxu0
    %3462 = vmatprep.mubr.f32.mxu0 0.0
    %3463 = vmatmul.mubr.f32.gmra.mrb[0].mxu0 %v3184
    %v3464 = vpop.f32.mrb[0].mxu0
    %v3465 = vadd.f32 %v3320, %v3464
    %v3466 = vpop.f32.mrb[0].mxu0
    %3467 = vmatprep.mubr.f32.mxu0 0.0
    %3468 = vmatmul.mubr.f32.gmra.mrb[0].mxu0 %v3187
    %v3469 = vpop.f32.mrb[0].mxu0
    %v3470 = vadd.f32 %v3325, %v3469
    %v3471 = vpop.f32.mrb[0].mxu0
    %3472 = vmatprep.mubr.f32.mxu0 0.0
    %3473 = vmatmul.mubr.f32.gmra.mrb[0].mxu0 %v3190
    %v3474 = vpop.f32.mrb[0].mxu0
    %v3475 = vadd.f32 %v3330, %v3474
    %v3476 = vpop.f32.mrb[0].mxu0
    %3477 = vmatprep.mubr.f32.mxu0 0.0
    %3478 = vmatmul.mubr.f32.gmra.mrb[0].mxu0 %v3193
    %v3479 = vpop.f32.mrb[0].mxu0
    %v3480 = vadd.f32 %v3335, %v3479
    %v3481 = vpop.f32.mrb[0].mxu0
    %3482 = vmatprep.mubr.f32.mxu0 0.0
    %3483 = vmatmul.mubr.f32.gmra.mrb[0].mxu0 %v3196
    %v3484 = vpop.f32.mrb[0].mxu0
    %v3485 = vadd.f32 %v3340, %v3484
    %v3486 = vpop.f32.mrb[0].mxu0
    %3487 = vdwg.mxu0
    %v3488 = vmax.f32 %v3410, %v3430
    %v3489 = vmax.f32 %v3415, %v3435
    %v3490 = vmax.f32 %v3420, %v3440
    %v3491 = vmax.f32 %v3425, %v3445
    %v3492 = vmax.f32 %v3450, %v3470
    %v3493 = vmax.f32 %v3455, %v3475
    %v3494 = vmax.f32 %v3460, %v3480
    %v3495 = vmax.f32 %v3465, %v3485
    %v3496 = vmax.f32 %v3488, %v3492
    %v3497 = vmax.f32 %v3489, %v3493
    %v3498 = vmax.f32 %v3490, %v3494
    %v3499 = vmax.f32 %v3491, %v3495
    %v3500 = vld [vmem:[%s4] sm:$0x1]
    %v3502 = vlaneseq
    %v3503 = vshrl.u32 %v3502, 7
    %v3504 = vsub.s32 0, %v3503
    %v3505 = vrot.slane %v3500, %v3504
    %v3507 = vadd.f32 %v3496, %v3505
    %v3508 = vadd.f32 %v3497, %v3505
    %v3509 = vadd.f32 %v3498, %v3505
    %v3510 = vadd.f32 %v3499, %v3505
    %v3511 = vmax.f32 %v3507, 0.0
    %v3512 = vmax.f32 %v3508, 0.0
    %v3513 = vmax.f32 %v3509, 0.0
    %v3514 = vmax.f32 %v3510, 0.0
    %vm3515 = vcmask 517120
    %3516 = vst.msk [vmem:[#allocation4] sm:$0x3] %vm3515, %v3511
    %v3519 = vunpack.c.l.s4 1983009808
    %v3520 = vunpack.c.0.s8 %v3519
    %v3521 = vlaneseq
    %v3522 = vshrl.u32 %v3521, 7
    %v3523 = vsub.s32 %v3520, %v3522
    %v3524 = vrot.slane %v3511, %v3523
    %v3525 = vcombine.high %v3524, %v3524
    %3526 = vrot.lane.b32.xlu0 %v3525, 64
    %v3527 = vpop.permute.xlu0 %3526
    %vm3529 = vcmask 1041920
    %3530 = vst.msk [vmem:[#allocation4] sm:$0x3] %vm3529, %v3527
    %v3531 = vcombine.high %v3511, %v3511
    %v3533 = vunpack.c.l.s4 1983009808
    %v3534 = vunpack.c.0.s8 %v3533
    %v3535 = vlaneseq
    %v3536 = vshrl.u32 %v3535, 7
    %v3537 = vsub.s32 %v3534, %v3536
    %v3538 = vrot.slane %v3531, %v3537
    %3540 = vst.msk [vmem:[#allocation4 + $0x2] sm:$0x3] %vm3515, %v3538
    %v3541 = vcombine.high %v3538, %v3538
    %3542 = vrot.lane.b32.xlu0 %v3541, 64
    %v3543 = vpop.permute.xlu0 %3542
    %3545 = vst.msk [vmem:[#allocation4 + $0x2] sm:$0x3] %vm3529, %v3543
    %3546 = vst.msk [vmem:[#allocation4 + $0x4] sm:$0x3] %vm3515, %v3512
    %v3549 = vunpack.c.l.s4 1983009808
    %v3550 = vunpack.c.0.s8 %v3549
    %v3551 = vlaneseq
    %v3552 = vshrl.u32 %v3551, 7
    %v3553 = vsub.s32 %v3550, %v3552
    %v3554 = vrot.slane %v3512, %v3553
    %v3555 = vcombine.high %v3554, %v3554
    %3556 = vrot.lane.b32.xlu0 %v3555, 64
    %v3557 = vpop.permute.xlu0 %3556
    %3559 = vst.msk [vmem:[#allocation4 + $0x4] sm:$0x3] %vm3529, %v3557
    %v3560 = vcombine.high %v3512, %v3512
    %v3562 = vunpack.c.l.s4 1983009808
    %v3563 = vunpack.c.0.s8 %v3562
    %v3564 = vlaneseq
    %v3565 = vshrl.u32 %v3564, 7
    %v3566 = vsub.s32 %v3563, %v3565
    %v3567 = vrot.slane %v3560, %v3566
    %3569 = vst.msk [vmem:[#allocation4 + $0x6] sm:$0x3] %vm3515, %v3567
    %v3570 = vcombine.high %v3567, %v3567
    %3571 = vrot.lane.b32.xlu0 %v3570, 64
    %v3572 = vpop.permute.xlu0 %3571
    %3574 = vst.msk [vmem:[#allocation4 + $0x6] sm:$0x3] %vm3529, %v3572
    %3575 = vst.msk [vmem:[#allocation4 + $0x8] sm:$0x3] %vm3515, %v3513
    %v3578 = vunpack.c.l.s4 1983009808
    %v3579 = vunpack.c.0.s8 %v3578
    %v3580 = vlaneseq
    %v3581 = vshrl.u32 %v3580, 7
    %v3582 = vsub.s32 %v3579, %v3581
    %v3583 = vrot.slane %v3513, %v3582
    %v3584 = vcombine.high %v3583, %v3583
    %3585 = vrot.lane.b32.xlu0 %v3584, 64
    %v3586 = vpop.permute.xlu0 %3585
    %3588 = vst.msk [vmem:[#allocation4 + $0x8] sm:$0x3] %vm3529, %v3586
    %v3589 = vcombine.high %v3513, %v3513
    %v3591 = vunpack.c.l.s4 1983009808
    %v3592 = vunpack.c.0.s8 %v3591
    %v3593 = vlaneseq
    %v3594 = vshrl.u32 %v3593, 7
    %v3595 = vsub.s32 %v3592, %v3594
    %v3596 = vrot.slane %v3589, %v3595
    %3598 = vst.msk [vmem:[#allocation4 + $0xa] sm:$0x3] %vm3515, %v3596
    %v3599 = vcombine.high %v3596, %v3596
    %3600 = vrot.lane.b32.xlu0 %v3599, 64
    %v3601 = vpop.permute.xlu0 %3600
    %3603 = vst.msk [vmem:[#allocation4 + $0xa] sm:$0x3] %vm3529, %v3601
    %3604 = vst.msk [vmem:[#allocation4 + $0xc] sm:$0x3] %vm3515, %v3514
    %v3607 = vunpack.c.l.s4 1983009808
    %v3608 = vunpack.c.0.s8 %v3607
    %v3609 = vlaneseq
    %v3610 = vshrl.u32 %v3609, 7
    %v3611 = vsub.s32 %v3608, %v3610
    %v3612 = vrot.slane %v3514, %v3611
    %v3613 = vcombine.high %v3612, %v3612
    %3614 = vrot.lane.b32.xlu0 %v3613, 64
    %v3615 = vpop.permute.xlu0 %3614
    %3617 = vst.msk [vmem:[#allocation4 + $0xc] sm:$0x3] %vm3529, %v3615
    %v3618 = vcombine.high %v3514, %v3514
    %v3620 = vunpack.c.l.s4 1983009808
    %v3621 = vunpack.c.0.s8 %v3620
    %v3622 = vlaneseq
    %v3623 = vshrl.u32 %v3622, 7
    %v3624 = vsub.s32 %v3621, %v3623
    %v3625 = vrot.slane %v3618, %v3624
    %3627 = vst.msk [vmem:[#allocation4 + $0xe] sm:$0x3] %vm3515, %v3625
    %v3628 = vcombine.high %v3625, %v3625
    %3629 = vrot.lane.b32.xlu0 %v3628, 64
    %v3630 = vpop.permute.xlu0 %3629
    %3632 = vst.msk [vmem:[#allocation4 + $0xe] sm:$0x3] %vm3529, %v3630
    %s3633 = smul.u32 1024, 1
    %s3634 = sshll.u32 %s3633, 4
    %3635 = dma.done %s147, %s3634
    %v3636 = vld [vmem:[#allocation4] sm:$0xff]
    %v3637 = vld [vmem:[#allocation4 + $0x8] sm:$0xff]
    %v3638 = vld [vmem:[#allocation6] sm:$0xff]
    %v3639 = vld [vmem:[#allocation6 + $0x8] sm:$0xff]
    %v3640 = vld [vmem:[#allocation6 + $0x10] sm:$0xff]
    %v3641 = vld [vmem:[#allocation6 + $0x18] sm:$0xff]
    %v3642 = vld [vmem:[#allocation6 + $0x20] sm:$0xff]
    %v3643 = vld [vmem:[#allocation6 + $0x28] sm:$0xff]
    %v3644 = vld [vmem:[#allocation6 + $0x30] sm:$0xff]
    %v3645 = vld [vmem:[#allocation6 + $0x38] sm:$0xff]
    %v3646 = vld [vmem:[#allocation6 + $0x40] sm:$0xff]
    %v3647 = vld [vmem:[#allocation6 + $0x48] sm:$0xff]
    %v3648 = vld [vmem:[#allocation6 + $0x50] sm:$0xff]
    %v3649 = vld [vmem:[#allocation6 + $0x58] sm:$0xff]
    %v3650 = vld [vmem:[#allocation6 + $0x60] sm:$0xff]
    %v3651 = vld [vmem:[#allocation6 + $0x68] sm:$0xff]
    %v3652 = vld [vmem:[#allocation6 + $0x70] sm:$0xff]
    %v3653 = vld [vmem:[#allocation6 + $0x78] sm:$0xff]
    %v3654 = vld [vmem:[#allocation6 + $0x80] sm:$0xff]
    %v3655 = vld [vmem:[#allocation6 + $0x88] sm:$0xff]
    %v3656 = vld [vmem:[#allocation6 + $0x90] sm:$0xff]
    %v3657 = vld [vmem:[#allocation6 + $0x98] sm:$0xff]
    %v3658 = vld [vmem:[#allocation6 + $0xa0] sm:$0xff]
    %v3659 = vld [vmem:[#allocation6 + $0xa8] sm:$0xff]
    %v3660 = vld [vmem:[#allocation6 + $0xb0] sm:$0xff]
    %v3661 = vld [vmem:[#allocation6 + $0xb8] sm:$0xff]
    %v3662 = vld [vmem:[#allocation6 + $0xc0] sm:$0xff]
    %v3663 = vld [vmem:[#allocation6 + $0xc8] sm:$0xff]
    %v3664 = vld [vmem:[#allocation6 + $0xd0] sm:$0xff]
    %v3665 = vld [vmem:[#allocation6 + $0xd8] sm:$0xff]
    %v3666 = vld [vmem:[#allocation6 + $0xe0] sm:$0xff]
    %v3667 = vld [vmem:[#allocation6 + $0xe8] sm:$0xff]
    %v3668 = vld [vmem:[#allocation6 + $0xf0] sm:$0xff]
    %v3669 = vld [vmem:[#allocation6 + $0xf8] sm:$0xff]
    %v3670 = vld [vmem:[#allocation6 + $0x100] sm:$0xff]
    %v3671 = vld [vmem:[#allocation6 + $0x108] sm:$0xff]
    %v3672 = vld [vmem:[#allocation6 + $0x110] sm:$0xff]
    %v3673 = vld [vmem:[#allocation6 + $0x118] sm:$0xff]
    %v3674 = vld [vmem:[#allocation6 + $0x120] sm:$0xff]
    %v3675 = vld [vmem:[#allocation6 + $0x128] sm:$0xff]
    %v3676 = vld [vmem:[#allocation6 + $0x130] sm:$0xff]
    %v3677 = vld [vmem:[#allocation6 + $0x138] sm:$0xff]
    %v3678 = vld [vmem:[#allocation6 + $0x140] sm:$0xff]
    %v3679 = vld [vmem:[#allocation6 + $0x148] sm:$0xff]
    %v3680 = vld [vmem:[#allocation6 + $0x150] sm:$0xff]
    %v3681 = vld [vmem:[#allocation6 + $0x158] sm:$0xff]
    %v3682 = vld [vmem:[#allocation6 + $0x160] sm:$0xff]
    %v3683 = vld [vmem:[#allocation6 + $0x168] sm:$0xff]
    %v3684 = vld [vmem:[#allocation6 + $0x170] sm:$0xff]
    %v3685 = vld [vmem:[#allocation6 + $0x178] sm:$0xff]
    %v3686 = vld [vmem:[#allocation6 + $0x180] sm:$0xff]
    %v3687 = vld [vmem:[#allocation6 + $0x188] sm:$0xff]
    %v3688 = vld [vmem:[#allocation6 + $0x190] sm:$0xff]
    %v3689 = vld [vmem:[#allocation6 + $0x198] sm:$0xff]
    %v3690 = vld [vmem:[#allocation6 + $0x1a0] sm:$0xff]
    %v3691 = vld [vmem:[#allocation6 + $0x1a8] sm:$0xff]
    %v3692 = vld [vmem:[#allocation6 + $0x1b0] sm:$0xff]
    %v3693 = vld [vmem:[#allocation6 + $0x1b8] sm:$0xff]
    %v3694 = vld [vmem:[#allocation6 + $0x1c0] sm:$0xff]
    %v3695 = vld [vmem:[#allocation6 + $0x1c8] sm:$0xff]
    %v3696 = vld [vmem:[#allocation6 + $0x1d0] sm:$0xff]
    %v3697 = vld [vmem:[#allocation6 + $0x1d8] sm:$0xff]
    %v3698 = vld [vmem:[#allocation6 + $0x1e0] sm:$0xff]
    %v3699 = vld [vmem:[#allocation6 + $0x1e8] sm:$0xff]
    %v3700 = vld [vmem:[#allocation6 + $0x1f0] sm:$0xff]
    %v3701 = vld [vmem:[#allocation6 + $0x1f8] sm:$0xff]
    %v3702 = vld [vmem:[#allocation6 + $0x200] sm:$0xff]
    %v3703 = vld [vmem:[#allocation6 + $0x208] sm:$0xff]
    %v3704 = vld [vmem:[#allocation6 + $0x210] sm:$0xff]
    %v3705 = vld [vmem:[#allocation6 + $0x218] sm:$0xff]
    %v3706 = vld [vmem:[#allocation6 + $0x220] sm:$0xff]
    %v3707 = vld [vmem:[#allocation6 + $0x228] sm:$0xff]
    %v3708 = vld [vmem:[#allocation6 + $0x230] sm:$0xff]
    %v3709 = vld [vmem:[#allocation6 + $0x238] sm:$0xff]
    %v3710 = vld [vmem:[#allocation6 + $0x240] sm:$0xff]
    %v3711 = vld [vmem:[#allocation6 + $0x248] sm:$0xff]
    %v3712 = vld [vmem:[#allocation6 + $0x250] sm:$0xff]
    %v3713 = vld [vmem:[#allocation6 + $0x258] sm:$0xff]
    %v3714 = vld [vmem:[#allocation6 + $0x260] sm:$0xff]
    %v3715 = vld [vmem:[#allocation6 + $0x268] sm:$0xff]
    %v3716 = vld [vmem:[#allocation6 + $0x270] sm:$0xff]
    %v3717 = vld [vmem:[#allocation6 + $0x278] sm:$0xff]
    %v3718 = vld [vmem:[#allocation6 + $0x280] sm:$0xff]
    %v3719 = vld [vmem:[#allocation6 + $0x288] sm:$0xff]
    %v3720 = vld [vmem:[#allocation6 + $0x290] sm:$0xff]
    %v3721 = vld [vmem:[#allocation6 + $0x298] sm:$0xff]
    %v3722 = vld [vmem:[#allocation6 + $0x2a0] sm:$0xff]
    %v3723 = vld [vmem:[#allocation6 + $0x2a8] sm:$0xff]
    %v3724 = vld [vmem:[#allocation6 + $0x2b0] sm:$0xff]
    %v3725 = vld [vmem:[#allocation6 + $0x2b8] sm:$0xff]
    %v3726 = vld [vmem:[#allocation6 + $0x2c0] sm:$0xff]
    %v3727 = vld [vmem:[#allocation6 + $0x2c8] sm:$0xff]
    %v3728 = vld [vmem:[#allocation6 + $0x2d0] sm:$0xff]
    %v3729 = vld [vmem:[#allocation6 + $0x2d8] sm:$0xff]
    %v3730 = vld [vmem:[#allocation6 + $0x2e0] sm:$0xff]
    %v3731 = vld [vmem:[#allocation6 + $0x2e8] sm:$0xff]
    %v3732 = vld [vmem:[#allocation6 + $0x2f0] sm:$0xff]
    %v3733 = vld [vmem:[#allocation6 + $0x2f8] sm:$0xff]
    %v3734 = vld [vmem:[#allocation6 + $0x300] sm:$0xff]
    %v3735 = vld [vmem:[#allocation6 + $0x308] sm:$0xff]
    %v3736 = vld [vmem:[#allocation6 + $0x310] sm:$0xff]
    %v3737 = vld [vmem:[#allocation6 + $0x318] sm:$0xff]
    %v3738 = vld [vmem:[#allocation6 + $0x320] sm:$0xff]
    %v3739 = vld [vmem:[#allocation6 + $0x328] sm:$0xff]
    %v3740 = vld [vmem:[#allocation6 + $0x330] sm:$0xff]
    %v3741 = vld [vmem:[#allocation6 + $0x338] sm:$0xff]
    %v3742 = vld [vmem:[#allocation6 + $0x340] sm:$0xff]
    %v3743 = vld [vmem:[#allocation6 + $0x348] sm:$0xff]
    %v3744 = vld [vmem:[#allocation6 + $0x350] sm:$0xff]
    %v3745 = vld [vmem:[#allocation6 + $0x358] sm:$0xff]
    %v3746 = vld [vmem:[#allocation6 + $0x360] sm:$0xff]
    %v3747 = vld [vmem:[#allocation6 + $0x368] sm:$0xff]
    %v3748 = vld [vmem:[#allocation6 + $0x370] sm:$0xff]
    %v3749 = vld [vmem:[#allocation6 + $0x378] sm:$0xff]
    %v3750 = vld [vmem:[#allocation6 + $0x380] sm:$0xff]
    %v3751 = vld [vmem:[#allocation6 + $0x388] sm:$0xff]
    %v3752 = vld [vmem:[#allocation6 + $0x390] sm:$0xff]
    %v3753 = vld [vmem:[#allocation6 + $0x398] sm:$0xff]
    %v3754 = vld [vmem:[#allocation6 + $0x3a0] sm:$0xff]
    %v3755 = vld [vmem:[#allocation6 + $0x3a8] sm:$0xff]
    %v3756 = vld [vmem:[#allocation6 + $0x3b0] sm:$0xff]
    %v3757 = vld [vmem:[#allocation6 + $0x3b8] sm:$0xff]
    %v3758 = vld [vmem:[#allocation6 + $0x3c0] sm:$0xff]
    %v3759 = vld [vmem:[#allocation6 + $0x3c8] sm:$0xff]
    %v3760 = vld [vmem:[#allocation6 + $0x3d0] sm:$0xff]
    %v3761 = vld [vmem:[#allocation6 + $0x3d8] sm:$0xff]
    %v3762 = vld [vmem:[#allocation6 + $0x3e0] sm:$0xff]
    %v3763 = vld [vmem:[#allocation6 + $0x3e8] sm:$0xff]
    %v3764 = vld [vmem:[#allocation6 + $0x3f0] sm:$0xff]
    %v3765 = vld [vmem:[#allocation6 + $0x3f8] sm:$0xff]
    %v3766 = vld [vmem:[%s6] sm:$0x1]
    %v3768 = vlaneseq
    %v3769 = vshrl.u32 %v3768, 7
    %v3770 = vsub.s32 0, %v3769
    %v3771 = vrot.slane %v3766, %v3770
    %v3775 = vcombine.high %v3636, %v3636
    %v3777 = vunpack.c.l.s4 1983009808
    %v3778 = vunpack.c.0.s8 %v3777
    %v3779 = vlaneseq
    %v3780 = vshrl.u32 %v3779, 7
    %v3781 = vsub.s32 %v3778, %v3780
    %v3782 = vrot.slane %v3636, %v3781
    %v3784 = vunpack.c.l.s4 1983009808
    %v3785 = vunpack.c.0.s8 %v3784
    %v3786 = vlaneseq
    %v3787 = vshrl.u32 %v3786, 7
    %v3788 = vsub.s32 %v3785, %v3787
    %v3789 = vrot.slane %v3775, %v3788
    %v3790 = vcombine.high %v3782, %v3782
    %v3791 = vcombine.high %v3789, %v3789
    %v3792 = vcombine.high %v3637, %v3637
    %v3794 = vunpack.c.l.s4 1983009808
    %v3795 = vunpack.c.0.s8 %v3794
    %v3796 = vlaneseq
    %v3797 = vshrl.u32 %v3796, 7
    %v3798 = vsub.s32 %v3795, %v3797
    %v3799 = vrot.slane %v3637, %v3798
    %v3801 = vunpack.c.l.s4 1983009808
    %v3802 = vunpack.c.0.s8 %v3801
    %v3803 = vlaneseq
    %v3804 = vshrl.u32 %v3803, 7
    %v3805 = vsub.s32 %v3802, %v3804
    %v3806 = vrot.slane %v3792, %v3805
    %v3807 = vcombine.high %v3799, %v3799
    %v3808 = vcombine.high %v3806, %v3806
    %3817 = vmatprep.subr.mxu0 0.0
    %3818 = vmatpush1.msra.mxu0 %v3638
    %3819 = vmatprep.subr.mxu0 0.0
    %3820 = vmatpush1.msra.mxu0 %v3639
    %3821 = vmatprep.subr.mxu0 0.0
    %3822 = vmatpush1.msra.mxu0 %v3640
    %3823 = vmatprep.subr.mxu0 0.0
    %3824 = vmatpush1.msra.mxu0 %v3641
    %3825 = vmatprep.subr.mxu0 0.0
    %3826 = vmatpush1.msra.mxu0 %v3642
    %3827 = vmatprep.subr.mxu0 0.0
    %3828 = vmatpush1.msra.mxu0 %v3643
    %3829 = vmatprep.subr.mxu0 0.0
    %3830 = vmatpush1.msra.mxu0 %v3644
    %3831 = vmatprep.subr.mxu0 0.0
    %3832 = vmatpush1.msra.mxu0 %v3645
    %3833 = vmatprep.subr.mxu0 0.0
    %3834 = vmatpush1.msra.mxu0 %v3646
    %3835 = vmatprep.subr.mxu0 0.0
    %3836 = vmatpush1.msra.mxu0 %v3647
    %3837 = vmatprep.subr.mxu0 0.0
    %3838 = vmatpush1.msra.mxu0 %v3648
    %3839 = vmatprep.subr.mxu0 0.0
    %3840 = vmatpush1.msra.mxu0 %v3649
    %3841 = vmatprep.subr.mxu0 0.0
    %3842 = vmatpush1.msra.mxu0 %v3650
    %3843 = vmatprep.subr.mxu0 0.0
    %3844 = vmatpush1.msra.mxu0 %v3651
    %3845 = vmatprep.subr.mxu0 0.0
    %3846 = vmatpush1.msra.mxu0 %v3652
    %3847 = vmatprep.subr.mxu0 0.0
    %3848 = vmatpush1.msra.mxu0 %v3653
    %3849 = vmatprep.subr.mxu0 0.0
    %3850 = vmatpush1.msra.mxu0 %v3654
    %3851 = vmatprep.subr.mxu0 0.0
    %3852 = vmatpush1.msra.mxu0 %v3655
    %3853 = vmatprep.subr.mxu0 0.0
    %3854 = vmatpush1.msra.mxu0 %v3656
    %3855 = vmatprep.subr.mxu0 0.0
    %3856 = vmatpush1.msra.mxu0 %v3657
    %3857 = vmatprep.subr.mxu0 0.0
    %3858 = vmatpush1.msra.mxu0 %v3658
    %3859 = vmatprep.subr.mxu0 0.0
    %3860 = vmatpush1.msra.mxu0 %v3659
    %3861 = vmatprep.subr.mxu0 0.0
    %3862 = vmatpush1.msra.mxu0 %v3660
    %3863 = vmatprep.subr.mxu0 0.0
    %3864 = vmatpush1.msra.mxu0 %v3661
    %3865 = vmatprep.subr.mxu0 0.0
    %3866 = vmatpush1.msra.mxu0 %v3662
    %3867 = vmatprep.subr.mxu0 0.0
    %3868 = vmatpush1.msra.mxu0 %v3663
    %3869 = vmatprep.subr.mxu0 0.0
    %3870 = vmatpush1.msra.mxu0 %v3664
    %3871 = vmatprep.subr.mxu0 0.0
    %3872 = vmatpush1.msra.mxu0 %v3665
    %3873 = vmatprep.subr.mxu0 0.0
    %3874 = vmatpush1.msra.mxu0 %v3666
    %3875 = vmatprep.subr.mxu0 0.0
    %3876 = vmatpush1.msra.mxu0 %v3667
    %3877 = vmatprep.subr.mxu0 0.0
    %3878 = vmatpush1.msra.mxu0 %v3668
    %3879 = vmatprep.subr.mxu0 0.0
    %3880 = vmatpush1.msra.mxu0 %v3669
    %3881 = vmatprep.mubr.f32.mxu0 %v3790
    %3882 = vmatmul.mubr.f32.gmra.mrb[0].mxu0 %v3782
    %v3883 = vpop.f32.mrb[0].mxu0
    %v3884 = vadd.f32 %v3771, %v3883
    %v3885 = vpop.f32.mrb[0].mxu0
    %3886 = vdwg.mxu0
    %3887 = vmatprep.subr.mxu0 0.0
    %3888 = vmatpush1.msra.mxu0 %v3670
    %3889 = vmatprep.subr.mxu0 0.0
    %3890 = vmatpush1.msra.mxu0 %v3671
    %3891 = vmatprep.subr.mxu0 0.0
    %3892 = vmatpush1.msra.mxu0 %v3672
    %3893 = vmatprep.subr.mxu0 0.0
    %3894 = vmatpush1.msra.mxu0 %v3673
    %3895 = vmatprep.subr.mxu0 0.0
    %3896 = vmatpush1.msra.mxu0 %v3674
    %3897 = vmatprep.subr.mxu0 0.0
    %3898 = vmatpush1.msra.mxu0 %v3675
    %3899 = vmatprep.subr.mxu0 0.0
    %3900 = vmatpush1.msra.mxu0 %v3676
    %3901 = vmatprep.subr.mxu0 0.0
    %3902 = vmatpush1.msra.mxu0 %v3677
    %3903 = vmatprep.subr.mxu0 0.0
    %3904 = vmatpush1.msra.mxu0 %v3678
    %3905 = vmatprep.subr.mxu0 0.0
    %3906 = vmatpush1.msra.mxu0 %v3679
    %3907 = vmatprep.subr.mxu0 0.0
    %3908 = vmatpush1.msra.mxu0 %v3680
    %3909 = vmatprep.subr.mxu0 0.0
    %3910 = vmatpush1.msra.mxu0 %v3681
    %3911 = vmatprep.subr.mxu0 0.0
    %3912 = vmatpush1.msra.mxu0 %v3682
    %3913 = vmatprep.subr.mxu0 0.0
    %3914 = vmatpush1.msra.mxu0 %v3683
    %3915 = vmatprep.subr.mxu0 0.0
    %3916 = vmatpush1.msra.mxu0 %v3684
    %3917 = vmatprep.subr.mxu0 0.0
    %3918 = vmatpush1.msra.mxu0 %v3685
    %3919 = vmatprep.subr.mxu0 0.0
    %3920 = vmatpush1.msra.mxu0 %v3686
    %3921 = vmatprep.subr.mxu0 0.0
    %3922 = vmatpush1.msra.mxu0 %v3687
    %3923 = vmatprep.subr.mxu0 0.0
    %3924 = vmatpush1.msra.mxu0 %v3688
    %3925 = vmatprep.subr.mxu0 0.0
    %3926 = vmatpush1.msra.mxu0 %v3689
    %3927 = vmatprep.subr.mxu0 0.0
    %3928 = vmatpush1.msra.mxu0 %v3690
    %3929 = vmatprep.subr.mxu0 0.0
    %3930 = vmatpush1.msra.mxu0 %v3691
    %3931 = vmatprep.subr.mxu0 0.0
    %3932 = vmatpush1.msra.mxu0 %v3692
    %3933 = vmatprep.subr.mxu0 0.0
    %3934 = vmatpush1.msra.mxu0 %v3693
    %3935 = vmatprep.subr.mxu0 0.0
    %3936 = vmatpush1.msra.mxu0 %v3694
    %3937 = vmatprep.subr.mxu0 0.0
    %3938 = vmatpush1.msra.mxu0 %v3695
    %3939 = vmatprep.subr.mxu0 0.0
    %3940 = vmatpush1.msra.mxu0 %v3696
    %3941 = vmatprep.subr.mxu0 0.0
    %3942 = vmatpush1.msra.mxu0 %v3697
    %3943 = vmatprep.subr.mxu0 0.0
    %3944 = vmatpush1.msra.mxu0 %v3698
    %3945 = vmatprep.subr.mxu0 0.0
    %3946 = vmatpush1.msra.mxu0 %v3699
    %3947 = vmatprep.subr.mxu0 0.0
    %3948 = vmatpush1.msra.mxu0 %v3700
    %3949 = vmatprep.subr.mxu0 0.0
    %3950 = vmatpush1.msra.mxu0 %v3701
    %3951 = vmatprep.mubr.f32.mxu0 %v3791
    %3952 = vmatmul.mubr.f32.gmra.mrb[0].mxu0 %v3789
    %v3953 = vpop.f32.mrb[0].mxu0
    %v3954 = vadd.f32 %v3884, %v3953
    %v3955 = vpop.f32.mrb[0].mxu0
    %3956 = vdwg.mxu0
    %3957 = vmatprep.subr.mxu0 0.0
    %3958 = vmatpush1.msra.mxu0 %v3702
    %3959 = vmatprep.subr.mxu0 0.0
    %3960 = vmatpush1.msra.mxu0 %v3703
    %3961 = vmatprep.subr.mxu0 0.0
    %3962 = vmatpush1.msra.mxu0 %v3704
    %3963 = vmatprep.subr.mxu0 0.0
    %3964 = vmatpush1.msra.mxu0 %v3705
    %3965 = vmatprep.subr.mxu0 0.0
    %3966 = vmatpush1.msra.mxu0 %v3706
    %3967 = vmatprep.subr.mxu0 0.0
    %3968 = vmatpush1.msra.mxu0 %v3707
    %3969 = vmatprep.subr.mxu0 0.0
    %3970 = vmatpush1.msra.mxu0 %v3708
    %3971 = vmatprep.subr.mxu0 0.0
    %3972 = vmatpush1.msra.mxu0 %v3709
    %3973 = vmatprep.subr.mxu0 0.0
    %3974 = vmatpush1.msra.mxu0 %v3710
    %3975 = vmatprep.subr.mxu0 0.0
    %3976 = vmatpush1.msra.mxu0 %v3711
    %3977 = vmatprep.subr.mxu0 0.0
    %3978 = vmatpush1.msra.mxu0 %v3712
    %3979 = vmatprep.subr.mxu0 0.0
    %3980 = vmatpush1.msra.mxu0 %v3713
    %3981 = vmatprep.subr.mxu0 0.0
    %3982 = vmatpush1.msra.mxu0 %v3714
    %3983 = vmatprep.subr.mxu0 0.0
    %3984 = vmatpush1.msra.mxu0 %v3715
    %3985 = vmatprep.subr.mxu0 0.0
    %3986 = vmatpush1.msra.mxu0 %v3716
    %3987 = vmatprep.subr.mxu0 0.0
    %3988 = vmatpush1.msra.mxu0 %v3717
    %3989 = vmatprep.subr.mxu0 0.0
    %3990 = vmatpush1.msra.mxu0 %v3718
    %3991 = vmatprep.subr.mxu0 0.0
    %3992 = vmatpush1.msra.mxu0 %v3719
    %3993 = vmatprep.subr.mxu0 0.0
    %3994 = vmatpush1.msra.mxu0 %v3720
    %3995 = vmatprep.subr.mxu0 0.0
    %3996 = vmatpush1.msra.mxu0 %v3721
    %3997 = vmatprep.subr.mxu0 0.0
    %3998 = vmatpush1.msra.mxu0 %v3722
    %3999 = vmatprep.subr.mxu0 0.0
    %4000 = vmatpush1.msra.mxu0 %v3723
    %4001 = vmatprep.subr.mxu0 0.0
    %4002 = vmatpush1.msra.mxu0 %v3724
    %4003 = vmatprep.subr.mxu0 0.0
    %4004 = vmatpush1.msra.mxu0 %v3725
    %4005 = vmatprep.subr.mxu0 0.0
    %4006 = vmatpush1.msra.mxu0 %v3726
    %4007 = vmatprep.subr.mxu0 0.0
    %4008 = vmatpush1.msra.mxu0 %v3727
    %4009 = vmatprep.subr.mxu0 0.0
    %4010 = vmatpush1.msra.mxu0 %v3728
    %4011 = vmatprep.subr.mxu0 0.0
    %4012 = vmatpush1.msra.mxu0 %v3729
    %4013 = vmatprep.subr.mxu0 0.0
    %4014 = vmatpush1.msra.mxu0 %v3730
    %4015 = vmatprep.subr.mxu0 0.0
    %4016 = vmatpush1.msra.mxu0 %v3731
    %4017 = vmatprep.subr.mxu0 0.0
    %4018 = vmatpush1.msra.mxu0 %v3732
    %4019 = vmatprep.subr.mxu0 0.0
    %4020 = vmatpush1.msra.mxu0 %v3733
    %4021 = vmatprep.mubr.f32.mxu0 %v3807
    %4022 = vmatmul.mubr.f32.gmra.mrb[0].mxu0 %v3799
    %v4023 = vpop.f32.mrb[0].mxu0
    %v4024 = vadd.f32 %v3954, %v4023
    %v4025 = vpop.f32.mrb[0].mxu0
    %4026 = vdwg.mxu0
    %4027 = vmatprep.subr.mxu0 0.0
    %4028 = vmatpush1.msra.mxu0 %v3734
    %4029 = vmatprep.subr.mxu0 0.0
    %4030 = vmatpush1.msra.mxu0 %v3735
    %4031 = vmatprep.subr.mxu0 0.0
    %4032 = vmatpush1.msra.mxu0 %v3736
    %4033 = vmatprep.subr.mxu0 0.0
    %4034 = vmatpush1.msra.mxu0 %v3737
    %4035 = vmatprep.subr.mxu0 0.0
    %4036 = vmatpush1.msra.mxu0 %v3738
    %4037 = vmatprep.subr.mxu0 0.0
    %4038 = vmatpush1.msra.mxu0 %v3739
    %4039 = vmatprep.subr.mxu0 0.0
    %4040 = vmatpush1.msra.mxu0 %v3740
    %4041 = vmatprep.subr.mxu0 0.0
    %4042 = vmatpush1.msra.mxu0 %v3741
    %4043 = vmatprep.subr.mxu0 0.0
    %4044 = vmatpush1.msra.mxu0 %v3742
    %4045 = vmatprep.subr.mxu0 0.0
    %4046 = vmatpush1.msra.mxu0 %v3743
    %4047 = vmatprep.subr.mxu0 0.0
    %4048 = vmatpush1.msra.mxu0 %v3744
    %4049 = vmatprep.subr.mxu0 0.0
    %4050 = vmatpush1.msra.mxu0 %v3745
    %4051 = vmatprep.subr.mxu0 0.0
    %4052 = vmatpush1.msra.mxu0 %v3746
    %4053 = vmatprep.subr.mxu0 0.0
    %4054 = vmatpush1.msra.mxu0 %v3747
    %4055 = vmatprep.subr.mxu0 0.0
    %4056 = vmatpush1.msra.mxu0 %v3748
    %4057 = vmatprep.subr.mxu0 0.0
    %4058 = vmatpush1.msra.mxu0 %v3749
    %4059 = vmatprep.subr.mxu0 0.0
    %4060 = vmatpush1.msra.mxu0 %v3750
    %4061 = vmatprep.subr.mxu0 0.0
    %4062 = vmatpush1.msra.mxu0 %v3751
    %4063 = vmatprep.subr.mxu0 0.0
    %4064 = vmatpush1.msra.mxu0 %v3752
    %4065 = vmatprep.subr.mxu0 0.0
    %4066 = vmatpush1.msra.mxu0 %v3753
    %4067 = vmatprep.subr.mxu0 0.0
    %4068 = vmatpush1.msra.mxu0 %v3754
    %4069 = vmatprep.subr.mxu0 0.0
    %4070 = vmatpush1.msra.mxu0 %v3755
    %4071 = vmatprep.subr.mxu0 0.0
    %4072 = vmatpush1.msra.mxu0 %v3756
    %4073 = vmatprep.subr.mxu0 0.0
    %4074 = vmatpush1.msra.mxu0 %v3757
    %4075 = vmatprep.subr.mxu0 0.0
    %4076 = vmatpush1.msra.mxu0 %v3758
    %4077 = vmatprep.subr.mxu0 0.0
    %4078 = vmatpush1.msra.mxu0 %v3759
    %4079 = vmatprep.subr.mxu0 0.0
    %4080 = vmatpush1.msra.mxu0 %v3760
    %4081 = vmatprep.subr.mxu0 0.0
    %4082 = vmatpush1.msra.mxu0 %v3761
    %4083 = vmatprep.subr.mxu0 0.0
    %4084 = vmatpush1.msra.mxu0 %v3762
    %4085 = vmatprep.subr.mxu0 0.0
    %4086 = vmatpush1.msra.mxu0 %v3763
    %4087 = vmatprep.subr.mxu0 0.0
    %4088 = vmatpush1.msra.mxu0 %v3764
    %4089 = vmatprep.subr.mxu0 0.0
    %4090 = vmatpush1.msra.mxu0 %v3765
    %4091 = vmatprep.mubr.f32.mxu0 %v3808
    %4092 = vmatmul.mubr.f32.gmra.mrb[0].mxu0 %v3806
    %v4093 = vpop.f32.mrb[0].mxu0
    %v4094 = vadd.f32 %v4024, %v4093
    %v4095 = vpop.f32.mrb[0].mxu0
    %4096 = vdwg.mxu0
    %v4097 = vmax.f32 %v4094, 0.0
    %vm4098 = vcmask 1041408
    %v4099 = vsel %vm4098, %v4097, 0.0
    %4100 = vadd.xlane.f32.xlu0 %v4099
    %v4101 = vpop.xlane.xlu0 %4100
    %v4102 = vrcp.pop 128.0
    %v4103 = vmul.f32 %v4101, %v4102
    %v4104 = vsub.f32 %v4097, %v4103
    %v4105 = vmul.f32 %v4104, %v4104
    %v4106 = vsel %vm4098, %v4105, 0.0
    %4107 = vadd.xlane.f32.xlu0 %v4106
    %v4108 = vpop.xlane.xlu0 %4107
    %v4109 = vmul.f32 %v4108, %v4102
    %v4110 = vadd.f32 %v4109, 1e-05
    %v4111 = vrsqrt.pop %v4110
    %v4112 = vmul.f32 %v4104, %v4111
    %v4113 = vld [vmem:[%s7] sm:$0x1]
    %v4115 = vlaneseq
    %v4116 = vshrl.u32 %v4115, 7
    %v4117 = vsub.s32 0, %v4116
    %v4118 = vrot.slane %v4113, %v4117
    %v4120 = vmul.f32 %v4112, %v4118
    %v4121 = vld [vmem:[%s8] sm:$0x1]
    %v4123 = vlaneseq
    %v4124 = vshrl.u32 %v4123, 7
    %v4125 = vsub.s32 0, %v4124
    %v4126 = vrot.slane %v4121, %v4125
    %v4128 = vadd.f32 %v4120, %v4126
    %v4129 = vld [vmem:[%s9] sm:$0xff]
    %v4130 = vld [vmem:[%s9 + $0x8] sm:$0xff]
    %v4131 = vld [vmem:[%s9 + $0x10] sm:$0xff]
    %v4132 = vld [vmem:[%s9 + $0x18] sm:$0xff]
    %v4133 = vld [vmem:[%s9 + $0x20] sm:$0xff]
    %v4134 = vld [vmem:[%s9 + $0x28] sm:$0xff]
    %v4135 = vld [vmem:[%s9 + $0x30] sm:$0xff]
    %v4136 = vld [vmem:[%s9 + $0x38] sm:$0xff]
    %v4137 = vld [vmem:[%s9 + $0x40] sm:$0xff]
    %v4138 = vld [vmem:[%s9 + $0x48] sm:$0xff]
    %v4139 = vld [vmem:[%s9 + $0x50] sm:$0xff]
    %v4140 = vld [vmem:[%s9 + $0x58] sm:$0xff]
    %v4141 = vld [vmem:[%s9 + $0x60] sm:$0xff]
    %v4142 = vld [vmem:[%s9 + $0x68] sm:$0xff]
    %v4143 = vld [vmem:[%s9 + $0x70] sm:$0xff]
    %v4144 = vld [vmem:[%s9 + $0x78] sm:$0xff]
    %v4145 = vld [vmem:[%s10] sm:$0x1]
    %v4147 = vlaneseq
    %v4148 = vshrl.u32 %v4147, 7
    %v4149 = vsub.s32 0, %v4148
    %v4150 = vrot.slane %v4145, %v4149
    %4152 = vmatprep.subr.mxu0 0.0
    %4153 = vmatpush1.msra.mxu0 %v4129
    %4154 = vmatprep.subr.mxu0 0.0
    %4155 = vmatpush1.msra.mxu0 %v4130
    %4156 = vmatprep.subr.mxu0 0.0
    %4157 = vmatpush1.msra.mxu0 %v4131
    %4158 = vmatprep.subr.mxu0 0.0
    %4159 = vmatpush1.msra.mxu0 %v4132
    %4160 = vmatprep.subr.mxu0 0.0
    %4161 = vmatpush1.msra.mxu0 %v4133
    %4162 = vmatprep.subr.mxu0 0.0
    %4163 = vmatpush1.msra.mxu0 %v4134
    %4164 = vmatprep.subr.mxu0 0.0
    %4165 = vmatpush1.msra.mxu0 %v4135
    %4166 = vmatprep.subr.mxu0 0.0
    %4167 = vmatpush1.msra.mxu0 %v4136
    %4168 = vmatprep.subr.mxu0 0.0
    %4169 = vmatpush1.msra.mxu0 %v4137
    %4170 = vmatprep.subr.mxu0 0.0
    %4171 = vmatpush1.msra.mxu0 %v4138
    %4172 = vmatprep.subr.mxu0 0.0
    %4173 = vmatpush1.msra.mxu0 %v4139
    %4174 = vmatprep.subr.mxu0 0.0
    %4175 = vmatpush1.msra.mxu0 %v4140
    %4176 = vmatprep.subr.mxu0 0.0
    %4177 = vmatpush1.msra.mxu0 %v4141
    %4178 = vmatprep.subr.mxu0 0.0
    %4179 = vmatpush1.msra.mxu0 %v4142
    %4180 = vmatprep.subr.mxu0 0.0
    %4181 = vmatpush1.msra.mxu0 %v4143
    %4182 = vmatprep.subr.mxu0 0.0
    %4183 = vmatpush1.msra.mxu0 %v4144
    %4184 = vmatprep.subr.mxu0 0.0
    %4185 = vmatpush1.msra.mxu0 0.0
    %4186 = vmatprep.subr.mxu0 0.0
    %4187 = vmatpush1.msra.mxu0 0.0
    %4188 = vmatprep.subr.mxu0 0.0
    %4189 = vmatpush1.msra.mxu0 0.0
    %4190 = vmatprep.subr.mxu0 0.0
    %4191 = vmatpush1.msra.mxu0 0.0
    %4192 = vmatprep.subr.mxu0 0.0
    %4193 = vmatpush1.msra.mxu0 0.0
    %4194 = vmatprep.subr.mxu0 0.0
    %4195 = vmatpush1.msra.mxu0 0.0
    %4196 = vmatprep.subr.mxu0 0.0
    %4197 = vmatpush1.msra.mxu0 0.0
    %4198 = vmatprep.subr.mxu0 0.0
    %4199 = vmatpush1.msra.mxu0 0.0
    %4200 = vmatprep.subr.mxu0 0.0
    %4201 = vmatpush1.msra.mxu0 0.0
    %4202 = vmatprep.subr.mxu0 0.0
    %4203 = vmatpush1.msra.mxu0 0.0
    %4204 = vmatprep.subr.mxu0 0.0
    %4205 = vmatpush1.msra.mxu0 0.0
    %4206 = vmatprep.subr.mxu0 0.0
    %4207 = vmatpush1.msra.mxu0 0.0
    %4208 = vmatprep.subr.mxu0 0.0
    %4209 = vmatpush1.msra.mxu0 0.0
    %4210 = vmatprep.subr.mxu0 0.0
    %4211 = vmatpush1.msra.mxu0 0.0
    %4212 = vmatprep.subr.mxu0 0.0
    %4213 = vmatpush1.msra.mxu0 0.0
    %4214 = vmatprep.subr.mxu0 0.0
    %4215 = vmatpush1.msra.mxu0 0.0
    %4216 = vmatprep.mubr.f32.mxu0 0.0
    %4217 = vmatmul.mubr.f32.gmra.mrb[0].mxu0 %v4128
    %v4218 = vpop.f32.mrb[0].mxu0
    %v4219 = vadd.f32 %v4150, %v4218
    %v4220 = vpop.f32.mrb[0].mxu0
    %4221 = vdwg.mxu0
    %vm4222 = vcmask 74752
    %v4223 = vsel %vm4222, %v4219, -inf
    %4224 = vmax.xlane.f32.xlu0 %v4223
    %v4225 = vpop.xlane.xlu0 %4224
    %v4226 = vsub.f32 %v4219, %v4225
    %v4227 = vmul.f32 %v4226, 1.442695
    %v4228 = vpow.pop %v4227
    %v4229 = vsel %vm4222, %v4228, 0.0
    %4230 = vadd.xlane.f32.xlu0 %v4229
    %v4231 = vpop.xlane.xlu0 %4230
    %v4232 = vrcp.pop %v4231
    %v4233 = vmul.f32 %v4228, %v4232
    %4234 = vst.msk [vmem:[#allocation8] sm:$0x3] %vm4222, %v4233
    // Predicated region
    $region106: #{forward.1} parent=1 // pred_check
      _
    $region107: #{forward.1} parent=1 // pred_check_branch
      %4236 = sbr.rel (0) target = $region109
    $region108: #{forward.1} parent=1 // pred_region
      %s4238 = ssub.s32 32, 32
      %4239 = vsyncadd [#allocation9], %s4238
      %s4241 = sshll.u32 [#allocation8], 4
      %s4242 = int_to_ptr.vmem [resolvable:$true] %s4241
      %4244 = dma.vmem_to_hbm [thread:$0]  %s4242, 32, %s11, [#allocation9]
    $region109: #{forward.1} parent=1 // pred_fallthru
      _
    // Predicated region
    $region110: #{forward.1} parent=1 // pred_check
      _
    $region111: #{forward.1} parent=1 // pred_check_branch
      %4246 = sbr.rel (0) target = $region113
    $region112: #{forward.1} parent=1 // pred_region
      %4247 = dma.done [#allocation9], 32
    $region113: #{forward.1} parent=1 // pred_fallthru
      _
    %4248 = vsyncpa [#allocation9], 1
  %4249 = vsyncmov [#allocation7]
  %s4250 = vpop.sfrf %4249
  %p4251 = scmp.eq.s32.totalorder %s4250, 0
  %p4252 = pneg %p4251
  %4254 = shalt.err (%p4252)
  %s4255 = scalar_lea.sflag [#allocation7], 1
  %4256 = vsyncmov %s4255
  %s4257 = vpop.sfrf %4256
  %p4258 = scmp.eq.s32.totalorder %s4257, 0
  %p4259 = pneg %p4258
  %4261 = shalt.err (%p4259)

</llo_original>
